<compile_context>
chip_gen: v7x
topology: tpu7x:2x2x1
jax: 0.10.0
libtpu: 0.0.40
codegen_flags: <defaults>
</compile_context>

<pallas_src>
import functools

import jax
import jax.numpy as jnp
import numpy as np
from jax.experimental import pallas as pl
from jax.experimental.pallas import tpu as pltpu

d_q = d_k = d_v = 64
d_model = 512
n_heads = 8
LN_EPS = 1e-5                 # PyTorch nn.LayerNorm default
HD = n_heads * d_q            # 512
NEG_INF = -1e30               # large-negative (avoids inf arithmetic) for key-padding mask


def _layer_norm(z, gamma, beta):
    mu = jnp.mean(z, axis=-1, keepdims=True)
    var = jnp.mean((z - mu) ** 2, axis=-1, keepdims=True)
    return (z - mu) * jax.lax.rsqrt(var + LN_EPS) * gamma + beta


def encoder_layer_kernel(
    x_full_ref,                 # (Bt, S, D)   f32  -- whole (padded) sequence, for K/V
    x_q_ref,                    # (Bt, TQ, D)  f32  -- current query tile
    wqkv_ref, bqkv_ref,         # (D, 3*HD) bf16, (1, 3*HD) f32 (1/sqrt(d_k) folded into Q part)
    wo_ref, bo_ref,             # (HD, D) bf16, (1, D) f32
    g0_ref, be0_ref,            # (1, D) f32
    w1_ref, b1_ref,             # (D, D) bf16, (1, D) f32
    g1_ref, be1_ref,            # (1, D) f32
    out_ref,                    # (Bt, TQ, D)  f32
    attn_ref,                   # (Bt, H, TQ, S)  attn dtype (bf16 by default)
    kv_ref,                     # VMEM scratch (Bt, S, 2*HD) bf16 -- persists across q tiles
    *, n_valid_keys,            # static: number of real (unpadded) key positions
):
    Bt, S, D = x_full_ref.shape
    TQ = x_q_ref.shape[1]
    MQ = Bt * TQ

    # --- K/V projection for the whole sequence: once per batch block (q-tile 0) ---
    @pl.when(pl.program_id(1) == 0)
    def _():
        xf = x_full_ref[...].reshape(Bt * S, D).astype(jnp.bfloat16)
        kv = jnp.dot(xf, wqkv_ref[:, HD:], preferred_element_type=jnp.float32)
        kv = kv + bqkv_ref[:, HD:]
        kv_ref[...] = kv.reshape(Bt, S, 2 * HD).astype(kv_ref.dtype)

    # --- Q projection for this query tile (1/sqrt(d_k) pre-folded on the host) ---
    xq = x_q_ref[...].reshape(MQ, D)                       # residual path stays f32
    q = jnp.dot(xq.astype(jnp.bfloat16), wqkv_ref[:, :HD],
                preferred_element_type=jnp.float32) + bqkv_ref[:, :HD]
    q_bf = q.astype(jnp.bfloat16)                          # cast once, slice per head

    kv = kv_ref[...]                                       # (Bt, S, 2*HD) bf16

    # Key-padding mask: only materialized when S was padded in the wrapper.
    if n_valid_keys < S:
        key_ids = jax.lax.broadcasted_iota(jnp.int32, (1, 1, S), 2)
        key_mask = key_ids < n_valid_keys
    else:
        key_mask = None

    # Residual + attention-output bias; per-head Wo partials accumulate into this (f32).
    msa_acc = xq + bo_ref[...]

    # Static head loop (avoids relayout-heavy 4-D transposes); all Bt*TQ rows per einsum.
    # TODO(synk): if bundle dumps show the K=64 score/ctx matmul drains dominating on
    # v6e/v7x, evaluate one (Bt*H)-batched einsum over all heads instead of this loop.
    for h in range(n_heads):
        sl = slice(h * d_q, (h + 1) * d_q)
        qh = q_bf[:, sl].reshape(Bt, TQ, d_q)
        kh = kv[:, :, sl]                                  # (Bt, S, d_k) bf16
        vh = kv[:, :, HD + h * d_v: HD + (h + 1) * d_v]    # (Bt, S, d_v) bf16

        s = jnp.einsum("bqd,bkd->bqk", qh, kh,
                       preferred_element_type=jnp.float32)  # (Bt, TQ, S)
        if key_mask is not None:
            s = jnp.where(key_mask, s, NEG_INF)
        s = s - jnp.max(s, axis=-1, keepdims=True)
        p = jnp.exp(s)
        denom = jnp.sum(p, axis=-1, keepdims=True)
        p = p * pl.reciprocal(denom, approx=True)           # softmax(dim=-1)
        attn_ref[:, h] = p.astype(attn_ref.dtype)

        ctx_h = jnp.einsum("bqk,bkd->bqd", p.astype(jnp.bfloat16), vh,
                           preferred_element_type=jnp.float32)   # (Bt, TQ, d_v)
        # Per-head output projection: ctx_h @ Wo[h*64:(h+1)*64, :], accumulated in f32.
        msa_acc = msa_acc + jnp.dot(
            ctx_h.reshape(MQ, d_v).astype(jnp.bfloat16), wo_ref[sl, :],
            preferred_element_type=jnp.float32)

    # --- residual + LayerNorm 0 ---
    ln0 = _layer_norm(msa_acc, g0_ref[...], be0_ref[...])

    # --- row-wise feed-forward (Linear + ReLU) + residual + LayerNorm 1 ---
    ff = jnp.dot(ln0.astype(jnp.bfloat16), w1_ref[...],
                 preferred_element_type=jnp.float32) + b1_ref[...]
    ff = jnp.maximum(ff, 0.0)
    out = _layer_norm(ff + ln0, g1_ref[...], be1_ref[...])

    out_ref[...] = out.reshape(Bt, TQ, D).astype(out_ref.dtype)


def _pick_seq_tile(S):
    """Query-tile length: whole (sublane-padded) sequence for short S, 256 for long S."""
    if S <= 512:
        return pl.cdiv(S, 8) * 8
    return 256


def _vmem_estimate(Bt, S_pad, TQ, attn_bytes):
    """Rough per-step VMEM footprint: double-buffered blocks + scratch + f32 temporaries."""
    D = d_model
    weights = 2 * ((D * 3 * HD + HD * D + D * D) * 2 + 16 * D * 4)
    x_full = 2 * Bt * S_pad * D * 4
    x_q = 2 * Bt * TQ * D * 4
    out = 2 * Bt * TQ * D * 4
    attn = 2 * Bt * n_heads * TQ * S_pad * attn_bytes
    kv = Bt * S_pad * 2 * HD * 2
    temps = 8 * Bt * TQ * D * 4 + 3 * Bt * TQ * S_pad * 4
    return weights + x_full + x_q + out + attn + kv + temps


def _pick_block_batch(B, S_pad, TQ, attn_bytes, *, target_rows=512, vmem_budget=48 << 20):
    """Aim for ~512 rows (Bt*TQ) per grid step, capped by the VMEM budget, and keep
    >= 2 batch grid steps whenever possible so v7x's two TensorCores both get work."""
    Bt = max(1, min(B, pl.cdiv(target_rows, TQ)))
    while Bt > 1 and _vmem_estimate(Bt, S_pad, TQ, attn_bytes) > vmem_budget:
        Bt -= 1
    if B >= 2 and pl.cdiv(B, Bt) < 2:
        Bt = max(1, B // 2)
    return Bt


def encoder_layer(x, kparams, *, block_batch=None, attn_dtype=jnp.bfloat16):
    """x: (B, S, d_model) f32; kparams from prepare_kernel_params().

    Returns (out f32, attn). attn is emitted in `attn_dtype` (bf16 by default — it is the
    dominant HBM writeback; pass jnp.float32 if exact-parity attention weights are needed).
    """
    B, S, D = x.shape
    assert D == d_model
    H = n_heads

    TQ = _pick_seq_tile(S)
    S_pad = pl.cdiv(S, TQ) * TQ                        # TQ always divides S_pad
    attn_bytes = jnp.dtype(attn_dtype).itemsize

    Bt = block_batch if block_batch is not None else _pick_block_batch(
        B, S_pad, TQ, attn_bytes)
    B_pad = pl.cdiv(B, Bt) * Bt

    if B_pad != B or S_pad != S:
        x = jnp.pad(x, ((0, B_pad - B), (0, S_pad - S), (0, 0)))
    grid = (B_pad // Bt, S_pad // TQ)

    def full_spec(shape):
        nd = len(shape)
        # TODO(synk): these weight blocks are identical every grid step; single-buffering
        # them (pipeline_mode=pl.Buffered(1)) would reclaim ~1.3 MiB of VMEM once that
        # knob is verified on the target JAX/Mosaic version.
        return pl.BlockSpec(shape, lambda b, qi, _nd=nd: (0,) * _nd)

    in_specs = [
        pl.BlockSpec((Bt, S_pad, D), lambda b, qi: (b, 0, 0)),   # x: whole sequence (K/V)
        pl.BlockSpec((Bt, TQ, D), lambda b, qi: (b, qi, 0)),     # x: query tile
        full_spec((D, 3 * HD)), full_spec((1, 3 * HD)),          # W_qkv, b_qkv
        full_spec((HD, D)), full_spec((1, D)),                   # Wo, bo
        full_spec((1, D)), full_spec((1, D)),                    # ln0 gamma, beta
        full_spec((D, D)), full_spec((1, D)),                    # W1, b1
        full_spec((1, D)), full_spec((1, D)),                    # ln1 gamma, beta
    ]
    out_specs = [
        pl.BlockSpec((Bt, TQ, D), lambda b, qi: (b, qi, 0)),
        # NOTE: for very small S the attn last dim is < 128 lanes (masked stores); it is
        # lane-dense for any realistic sequence length.
        pl.BlockSpec((Bt, H, TQ, S_pad), lambda b, qi: (b, 0, qi, 0)),
    ]
    out_shape = [
        jax.ShapeDtypeStruct((B_pad, S_pad, D), jnp.float32),
        jax.ShapeDtypeStruct((B_pad, H, S_pad, S_pad), attn_dtype),
    ]

    vmem_limit = int(min(max(_vmem_estimate(Bt, S_pad, TQ, attn_bytes), 32 << 20),
                         64 << 20))

    fn = pl.pallas_call(
        functools.partial(encoder_layer_kernel, n_valid_keys=S),
        out_shape=out_shape,
        grid_spec=pltpu.PrefetchScalarGridSpec(
            num_scalar_prefetch=0,
            grid=grid,
            in_specs=in_specs,
            out_specs=out_specs,
            scratch_shapes=[pltpu.VMEM((Bt, S_pad, 2 * HD), jnp.bfloat16)],
        ),
        compiler_params=pltpu.CompilerParams(
            dimension_semantics=("parallel", "arbitrary"),
            vmem_limit_bytes=vmem_limit,
        ),
    )
    out, attn = fn(
        x, x,
        kparams["wqkv"], kparams["bqkv"],
        kparams["wo"], kparams["bo"],
        kparams["g0"], kparams["be0"],
        kparams["w1"], kparams["b1"],
        kparams["g1"], kparams["be1"],
    )
    if B_pad != B or S_pad != S:
        out = out[:B, :S]
        attn = attn[:B, :, :S, :S]
    return out, attn


def make_params(key):
    """Deterministic synthetic f32 parameters. Weights are stored (in, out) so the
    math is y = x @ W + b (PyTorch Linear stores (out, in))."""
    ks = jax.random.split(key, 10)
    s = 0.02
    return {
        "wq": jax.random.normal(ks[0], (d_model, HD), jnp.float32) * s,
        "bq": jax.random.normal(ks[1], (1, HD), jnp.float32) * s,
        "wk": jax.random.normal(ks[2], (d_model, HD), jnp.float32) * s,
        "bk": jax.random.normal(ks[3], (1, HD), jnp.float32) * s,
        "wv": jax.random.normal(ks[4], (d_model, HD), jnp.float32) * s,
        "bv": jax.random.normal(ks[5], (1, HD), jnp.float32) * s,
        "wo": jax.random.normal(ks[6], (HD, d_model), jnp.float32) * s,
        "bo": jax.random.normal(ks[7], (1, d_model), jnp.float32) * s,
        "w1": jax.random.normal(ks[8], (d_model, d_model), jnp.float32) * s,
        "b1": jax.random.normal(ks[9], (1, d_model), jnp.float32) * s,
        "g0": jnp.ones((1, d_model), jnp.float32),
        "be0": jnp.zeros((1, d_model), jnp.float32),
        "g1": jnp.ones((1, d_model), jnp.float32),
        "be1": jnp.zeros((1, d_model), jnp.float32),
    }


def prepare_kernel_params(p):
    """Host-side prep: fuse Q|K|V, fold 1/sqrt(d_k) into the Q columns, cast weights to bf16."""
    scale = jnp.float32(1.0 / np.sqrt(d_k))
    wqkv = jnp.concatenate([p["wq"] * scale, p["wk"], p["wv"]], axis=1)   # (D, 3*HD)
    bqkv = jnp.concatenate([p["bq"] * scale, p["bk"], p["bv"]], axis=1)   # (1, 3*HD)
    return {
        "wqkv": wqkv.astype(jnp.bfloat16),
        "bqkv": bqkv.astype(jnp.float32),
        "wo": p["wo"].astype(jnp.bfloat16),
        "bo": p["bo"],
        "w1": p["w1"].astype(jnp.bfloat16),
        "b1": p["b1"],
        "g0": p["g0"], "be0": p["be0"],
        "g1": p["g1"], "be1": p["be1"],
    }


def encoder_layer_ref(x, p):
    """Pure-JAX f32 reference matching the PyTorch forward."""
    B, S, D = x.shape
    q = (x @ p["wq"] + p["bq"]).reshape(B, S, n_heads, d_q).transpose(0, 2, 1, 3)
    k = (x @ p["wk"] + p["bk"]).reshape(B, S, n_heads, d_k).transpose(0, 2, 1, 3)
    v = (x @ p["wv"] + p["bv"]).reshape(B, S, n_heads, d_v).transpose(0, 2, 1, 3)
    scores = jnp.einsum("bhqd,bhkd->bhqk", q, k) / np.sqrt(d_k)
    attn = jax.nn.softmax(scores, axis=-1)
    ctx = jnp.einsum("bhqk,bhkd->bhqd", attn, v).transpose(0, 2, 1, 3).reshape(B, S, -1)
    msa = ctx @ p["wo"] + p["bo"]
    ln0 = _layer_norm(x + msa, p["g0"], p["be0"])
    ff = jnp.maximum(ln0 @ p["w1"] + p["b1"], 0.0)
    out = _layer_norm(ff + ln0, p["g1"], p["be1"])
    return out, attn


if __name__ == "__main__":
    key = jax.random.PRNGKey(0)
    kx, kp = jax.random.split(key)
    params = make_params(kp)
    kparams = prepare_kernel_params(params)

    # Case 1: aligned smoke shapes (B=2, S=8).
    B, S = 2, 8
    x = jax.random.normal(kx, (B, S, d_model), jnp.float32)
    out, attn = encoder_layer(x, kparams)
    out = jax.block_until_ready(out)
    attn = jax.block_until_ready(attn)
    out_ref, attn_ref = encoder_layer_ref(x, params)
    assert out.shape == (B, S, d_model) and attn.shape == (B, n_heads, S, S)
    # bf16 matmul inputs / bf16 attn output (f32 accumulation) -> relaxed tolerance.
    np.testing.assert_allclose(np.asarray(out), np.asarray(out_ref), rtol=2e-2, atol=2e-2)
    np.testing.assert_allclose(np.asarray(attn.astype(jnp.float32)), np.asarray(attn_ref),
                               rtol=2e-2, atol=2e-2)

    # Case 2: ragged shapes (B=3, S=7) exercising batch + sequence padding and the
    # key-padding mask.
    B2, S2 = 3, 7
    x2 = jax.random.normal(jax.random.PRNGKey(1), (B2, S2, d_model), jnp.float32)
    out2, attn2 = encoder_layer(x2, kparams)
    out2 = jax.block_until_ready(out2)
    attn2 = jax.block_until_ready(attn2)
    out2_ref, attn2_ref = encoder_layer_ref(x2, params)
    assert out2.shape == (B2, S2, d_model) and attn2.shape == (B2, n_heads, S2, S2)
    np.testing.assert_allclose(np.asarray(out2), np.asarray(out2_ref), rtol=2e-2, atol=2e-2)
    np.testing.assert_allclose(np.asarray(attn2.astype(jnp.float32)), np.asarray(attn2_ref),
                               rtol=2e-2, atol=2e-2)

    print("KERNEL_OK")
</pallas_src>

<mosaic_0001>
module attributes {stable_mosaic.version = 11 : i64} {
  func.func @encoder_layer_kernel(%arg0: i32, %arg1: i32, %arg2: memref<1x8x512xf32, #tpu.memory_space<vmem>>, %arg3: memref<1x8x512xf32, #tpu.memory_space<vmem>>, %arg4: memref<512x1536xbf16, #tpu.memory_space<vmem>>, %arg5: memref<1x1536xf32, #tpu.memory_space<vmem>>, %arg6: memref<512x512xbf16, #tpu.memory_space<vmem>>, %arg7: memref<1x512xf32, #tpu.memory_space<vmem>>, %arg8: memref<1x512xf32, #tpu.memory_space<vmem>>, %arg9: memref<1x512xf32, #tpu.memory_space<vmem>>, %arg10: memref<512x512xbf16, #tpu.memory_space<vmem>>, %arg11: memref<1x512xf32, #tpu.memory_space<vmem>>, %arg12: memref<1x512xf32, #tpu.memory_space<vmem>>, %arg13: memref<1x512xf32, #tpu.memory_space<vmem>>, %arg14: memref<1x8x512xf32, #tpu.memory_space<vmem>>, %arg15: memref<1x8x8x8xbf16, #tpu.memory_space<vmem>>, %arg16: memref<1x8x1024xbf16, #tpu.memory_space<vmem>>) attributes {dimension_semantics = [#tpu.dimension_semantics<parallel>, #tpu.dimension_semantics<arbitrary>], iteration_bounds = array<i64: 2, 1>, scalar_prefetch = 0 : i64, scratch_operands = 1 : i64, tpu.core_type = #tpu.core_type<tc>, window_params = [{transform_indices = @transform_0, window_bounds = array<i64: 1, 8, 512>}, {transform_indices = @transform_1, window_bounds = array<i64: 1, 8, 512>}, {pipeline_mode = #tpu.pipeline_mode<synchronous>, transform_indices = @transform_2, window_bounds = array<i64: 512, 1536>}, {pipeline_mode = #tpu.pipeline_mode<synchronous>, transform_indices = @transform_3, window_bounds = array<i64: 1, 1536>}, {pipeline_mode = #tpu.pipeline_mode<synchronous>, transform_indices = @transform_4, window_bounds = array<i64: 512, 512>}, {pipeline_mode = #tpu.pipeline_mode<synchronous>, transform_indices = @transform_5, window_bounds = array<i64: 1, 512>}, {pipeline_mode = #tpu.pipeline_mode<synchronous>, transform_indices = @transform_6, window_bounds = array<i64: 1, 512>}, {pipeline_mode = #tpu.pipeline_mode<synchronous>, transform_indices = @transform_7, window_bounds = array<i64: 1, 512>}, {pipeline_mode = #tpu.pipeline_mode<synchronous>, transform_indices = @transform_8, window_bounds = array<i64: 512, 512>}, {pipeline_mode = #tpu.pipeline_mode<synchronous>, transform_indices = @transform_9, window_bounds = array<i64: 1, 512>}, {pipeline_mode = #tpu.pipeline_mode<synchronous>, transform_indices = @transform_10, window_bounds = array<i64: 1, 512>}, {pipeline_mode = #tpu.pipeline_mode<synchronous>, transform_indices = @transform_11, window_bounds = array<i64: 1, 512>}, {transform_indices = @transform_12, window_bounds = array<i64: 1, 8, 512>}, {transform_indices = @transform_13, window_bounds = array<i64: 1, 8, 8, 8>}]} {
    %c0_i32 = arith.constant 0 : i32
    %0 = arith.cmpi eq, %arg1, %c0_i32 : i32
    %1 = arith.extui %0 : i1 to i32
    %c0_i32_0 = arith.constant 0 : i32
    %2 = arith.cmpi ne, %1, %c0_i32_0 : i32
    scf.if %2 {
      %c0_113 = arith.constant 0 : index
      %c0_114 = arith.constant 0 : index
      %c0_115 = arith.constant 0 : index
      %283 = vector.load %arg2[%c0_113, %c0_114, %c0_115] : memref<1x8x512xf32, #tpu.memory_space<vmem>>, vector<1x8x512xf32>
      %284 = vector.shape_cast %283 : vector<1x8x512xf32> to vector<8x512xf32>
      %285 = arith.truncf %284 : vector<8x512xf32> to vector<8x512xbf16>
      %c0_116 = arith.constant 0 : index
      %c512 = arith.constant 512 : index
      %286 = vector.load %arg4[%c0_116, %c512] : memref<512x1536xbf16, #tpu.memory_space<vmem>>, vector<512x1024xbf16>
      %cst_117 = arith.constant dense<0.000000e+00> : vector<8x1024xf32>
      %287 = tpu.matmul %285, %286, %cst_117 {dimension_numbers = #tpu.dot_dimension_numbers<[1], [0], [0], [1], [0, 0, 1, 1], [], []>} : vector<8x512xbf16>, vector<512x1024xbf16>, vector<8x1024xf32> -> vector<8x1024xf32>
      %c0_118 = arith.constant 0 : index
      %c512_119 = arith.constant 512 : index
      %288 = vector.load %arg5[%c0_118, %c512_119] : memref<1x1536xf32, #tpu.memory_space<vmem>>, vector<1x1024xf32>
      %289 = vector.broadcast %288 : vector<1x1024xf32> to vector<8x1024xf32>
      %290 = arith.addf %287, %289 : vector<8x1024xf32>
      %291 = vector.shape_cast %290 : vector<8x1024xf32> to vector<1x8x1024xf32>
      %292 = arith.truncf %291 : vector<1x8x1024xf32> to vector<1x8x1024xbf16>
      %c0_120 = arith.constant 0 : index
      %c0_121 = arith.constant 0 : index
      %c0_122 = arith.constant 0 : index
      %293 = vector.load %arg16[%c0_120, %c0_121, %c0_122] : memref<1x8x1024xbf16, #tpu.memory_space<vmem>>, vector<1x8x1024xbf16>
      tpu.vector_store %arg16[%c0_120, %c0_121, %c0_122], %292 {strides = array<i32>} : memref<1x8x1024xbf16, #tpu.memory_space<vmem>>, vector<1x8x1024xbf16>,
    } else {
    }
    %c0 = arith.constant 0 : index
    %c0_1 = arith.constant 0 : index
    %c0_2 = arith.constant 0 : index
    %3 = vector.load %arg3[%c0, %c0_1, %c0_2] : memref<1x8x512xf32, #tpu.memory_space<vmem>>, vector<1x8x512xf32>
    %4 = vector.shape_cast %3 : vector<1x8x512xf32> to vector<8x512xf32>
    %5 = arith.truncf %4 : vector<8x512xf32> to vector<8x512xbf16>
    %c0_3 = arith.constant 0 : index
    %c0_4 = arith.constant 0 : index
    %6 = vector.load %arg4[%c0_3, %c0_4] : memref<512x1536xbf16, #tpu.memory_space<vmem>>, vector<512x512xbf16>
    %cst = arith.constant dense<0.000000e+00> : vector<8x512xf32>
    %7 = tpu.matmul %5, %6, %cst {dimension_numbers = #tpu.dot_dimension_numbers<[1], [0], [0], [1], [0, 0, 1, 1], [], []>} : vector<8x512xbf16>, vector<512x512xbf16>, vector<8x512xf32> -> vector<8x512xf32>
    %c0_5 = arith.constant 0 : index
    %c0_6 = arith.constant 0 : index
    %8 = vector.load %arg5[%c0_5, %c0_6] : memref<1x1536xf32, #tpu.memory_space<vmem>>, vector<1x512xf32>
    %9 = vector.broadcast %8 : vector<1x512xf32> to vector<8x512xf32>
    %10 = arith.addf %7, %9 : vector<8x512xf32>
    %11 = arith.truncf %10 : vector<8x512xf32> to vector<8x512xbf16>
    %c0_7 = arith.constant 0 : index
    %c0_8 = arith.constant 0 : index
    %c0_9 = arith.constant 0 : index
    %12 = vector.load %arg16[%c0_7, %c0_8, %c0_9] : memref<1x8x1024xbf16, #tpu.memory_space<vmem>>, vector<1x8x1024xbf16>
    %c0_10 = arith.constant 0 : index
    %c0_11 = arith.constant 0 : index
    %13 = vector.load %arg7[%c0_10, %c0_11] : memref<1x512xf32, #tpu.memory_space<vmem>>, vector<1x512xf32>
    %14 = vector.broadcast %13 : vector<1x512xf32> to vector<8x512xf32>
    %15 = arith.addf %4, %14 : vector<8x512xf32>
    %16 = vector.extract_strided_slice %11 {offsets = [0, 0], sizes = [8, 64], strides = [1, 1]} : vector<8x512xbf16> to vector<8x64xbf16>
    %17 = vector.shape_cast %16 : vector<8x64xbf16> to vector<1x8x64xbf16>
    %18 = vector.extract_strided_slice %12 {offsets = [0, 0, 0], sizes = [1, 8, 64], strides = [1, 1, 1]} : vector<1x8x1024xbf16> to vector<1x8x64xbf16>
    %19 = vector.extract_strided_slice %12 {offsets = [0, 0, 512], sizes = [1, 8, 64], strides = [1, 1, 1]} : vector<1x8x1024xbf16> to vector<1x8x64xbf16>
    "tpu.trace_start"() <{level = 10 : i32, message = "bqd,bkd->bqk"}> : () -> ()
    %cst_12 = arith.constant dense<0.000000e+00> : vector<1x8x8xf32>
    %20 = tpu.matmul %17, %18, %cst_12 {dimension_numbers = #tpu.dot_dimension_numbers<[2], [2], [1], [1], [0, 0, 0, 1, 1, 1], [0], [0]>} : vector<1x8x64xbf16>, vector<1x8x64xbf16>, vector<1x8x8xf32> -> vector<1x8x8xf32>
    "tpu.trace_stop"() : () -> ()
    %cst_13 = arith.constant dense<0xFF800000> : vector<1x8xf32>
    %21 = vector.multi_reduction <maximumf>, %20, %cst_13 [2] : vector<1x8x8xf32> to vector<1x8xf32>
    %22 = vector.shape_cast %21 : vector<1x8xf32> to vector<1x8x1xf32>
    %23 = vector.broadcast %22 : vector<1x8x1xf32> to vector<1x8x8xf32>
    %24 = arith.subf %20, %23 : vector<1x8x8xf32>
    %25 = math.exp %24 : vector<1x8x8xf32>
    %cst_14 = arith.constant dense<0.000000e+00> : vector<1x8xf32>
    %26 = vector.multi_reduction <add>, %25, %cst_14 [2] : vector<1x8x8xf32> to vector<1x8xf32>
    %27 = vector.shape_cast %26 : vector<1x8xf32> to vector<1x8x1xf32>
    %28 = tpu.reciprocal %27 {approx = true} : vector<1x8x1xf32> -> vector<1x8x1xf32>
    %29 = vector.broadcast %28 : vector<1x8x1xf32> to vector<1x8x8xf32>
    %30 = arith.mulf %25, %29 : vector<1x8x8xf32>
    %31 = arith.truncf %30 : vector<1x8x8xf32> to vector<1x8x8xbf16>
    %c0_15 = arith.constant 0 : index
    %c0_16 = arith.constant 0 : index
    %c0_17 = arith.constant 0 : index
    %c0_18 = arith.constant 0 : index
    %32 = vector.load %arg15[%c0_15, %c0_16, %c0_17, %c0_18] : memref<1x8x8x8xbf16, #tpu.memory_space<vmem>>, vector<1x1x8x8xbf16>
    %33 = vector.shape_cast %32 : vector<1x1x8x8xbf16> to vector<1x8x8xbf16>
    %34 = vector.shape_cast %31 : vector<1x8x8xbf16> to vector<1x1x8x8xbf16>
    tpu.vector_store %arg15[%c0_15, %c0_16, %c0_17, %c0_18], %34 {strides = array<i32>} : memref<1x8x8x8xbf16, #tpu.memory_space<vmem>>, vector<1x1x8x8xbf16>,
    %35 = arith.truncf %30 : vector<1x8x8xf32> to vector<1x8x8xbf16>
    "tpu.trace_start"() <{level = 10 : i32, message = "bqk,bkd->bqd"}> : () -> ()
    %cst_19 = arith.constant dense<0.000000e+00> : vector<1x8x64xf32>
    %36 = tpu.matmul %35, %19, %cst_19 {dimension_numbers = #tpu.dot_dimension_numbers<[2], [1], [1], [2], [0, 0, 0, 1, 1, 2], [0], [0]>} : vector<1x8x8xbf16>, vector<1x8x64xbf16>, vector<1x8x64xf32> -> vector<1x8x64xf32>
    "tpu.trace_stop"() : () -> ()
    %37 = vector.shape_cast %36 : vector<1x8x64xf32> to vector<8x64xf32>
    %38 = arith.truncf %37 : vector<8x64xf32> to vector<8x64xbf16>
    %c0_20 = arith.constant 0 : index
    %c0_21 = arith.constant 0 : index
    %39 = vector.load %arg6[%c0_20, %c0_21] : memref<512x512xbf16, #tpu.memory_space<vmem>>, vector<64x512xbf16>
    %cst_22 = arith.constant dense<0.000000e+00> : vector<8x512xf32>
    %40 = tpu.matmul %38, %39, %cst_22 {dimension_numbers = #tpu.dot_dimension_numbers<[1], [0], [0], [1], [0, 0, 1, 1], [], []>} : vector<8x64xbf16>, vector<64x512xbf16>, vector<8x512xf32> -> vector<8x512xf32>
    %41 = arith.addf %15, %40 : vector<8x512xf32>
    %42 = vector.extract_strided_slice %11 {offsets = [0, 64], sizes = [8, 64], strides = [1, 1]} : vector<8x512xbf16> to vector<8x64xbf16>
    %43 = vector.shape_cast %42 : vector<8x64xbf16> to vector<1x8x64xbf16>
    %44 = vector.extract_strided_slice %12 {offsets = [0, 0, 64], sizes = [1, 8, 64], strides = [1, 1, 1]} : vector<1x8x1024xbf16> to vector<1x8x64xbf16>
    %45 = vector.extract_strided_slice %12 {offsets = [0, 0, 576], sizes = [1, 8, 64], strides = [1, 1, 1]} : vector<1x8x1024xbf16> to vector<1x8x64xbf16>
    "tpu.trace_start"() <{level = 10 : i32, message = "bqd,bkd->bqk"}> : () -> ()
    %cst_23 = arith.constant dense<0.000000e+00> : vector<1x8x8xf32>
    %46 = tpu.matmul %43, %44, %cst_23 {dimension_numbers = #tpu.dot_dimension_numbers<[2], [2], [1], [1], [0, 0, 0, 1, 1, 1], [0], [0]>} : vector<1x8x64xbf16>, vector<1x8x64xbf16>, vector<1x8x8xf32> -> vector<1x8x8xf32>
    "tpu.trace_stop"() : () -> ()
    %cst_24 = arith.constant dense<0xFF800000> : vector<1x8xf32>
    %47 = vector.multi_reduction <maximumf>, %46, %cst_24 [2] : vector<1x8x8xf32> to vector<1x8xf32>
    %48 = vector.shape_cast %47 : vector<1x8xf32> to vector<1x8x1xf32>
    %49 = vector.broadcast %48 : vector<1x8x1xf32> to vector<1x8x8xf32>
    %50 = arith.subf %46, %49 : vector<1x8x8xf32>
    %51 = math.exp %50 : vector<1x8x8xf32>
    %cst_25 = arith.constant dense<0.000000e+00> : vector<1x8xf32>
    %52 = vector.multi_reduction <add>, %51, %cst_25 [2] : vector<1x8x8xf32> to vector<1x8xf32>
    %53 = vector.shape_cast %52 : vector<1x8xf32> to vector<1x8x1xf32>
    %54 = tpu.reciprocal %53 {approx = true} : vector<1x8x1xf32> -> vector<1x8x1xf32>
    %55 = vector.broadcast %54 : vector<1x8x1xf32> to vector<1x8x8xf32>
    %56 = arith.mulf %51, %55 : vector<1x8x8xf32>
    %57 = arith.truncf %56 : vector<1x8x8xf32> to vector<1x8x8xbf16>
    %c0_26 = arith.constant 0 : index
    %c1 = arith.constant 1 : index
    %c0_27 = arith.constant 0 : index
    %c0_28 = arith.constant 0 : index
    %58 = vector.load %arg15[%c0_26, %c1, %c0_27, %c0_28] : memref<1x8x8x8xbf16, #tpu.memory_space<vmem>>, vector<1x1x8x8xbf16>
    %59 = vector.shape_cast %58 : vector<1x1x8x8xbf16> to vector<1x8x8xbf16>
    %60 = vector.shape_cast %57 : vector<1x8x8xbf16> to vector<1x1x8x8xbf16>
    tpu.vector_store %arg15[%c0_26, %c1, %c0_27, %c0_28], %60 {strides = array<i32>} : memref<1x8x8x8xbf16, #tpu.memory_space<vmem>>, vector<1x1x8x8xbf16>,
    %61 = arith.truncf %56 : vector<1x8x8xf32> to vector<1x8x8xbf16>
    "tpu.trace_start"() <{level = 10 : i32, message = "bqk,bkd->bqd"}> : () -> ()
    %cst_29 = arith.constant dense<0.000000e+00> : vector<1x8x64xf32>
    %62 = tpu.matmul %61, %45, %cst_29 {dimension_numbers = #tpu.dot_dimension_numbers<[2], [1], [1], [2], [0, 0, 0, 1, 1, 2], [0], [0]>} : vector<1x8x8xbf16>, vector<1x8x64xbf16>, vector<1x8x64xf32> -> vector<1x8x64xf32>
    "tpu.trace_stop"() : () -> ()
    %63 = vector.shape_cast %62 : vector<1x8x64xf32> to vector<8x64xf32>
    %64 = arith.truncf %63 : vector<8x64xf32> to vector<8x64xbf16>
    %c64 = arith.constant 64 : index
    %c0_30 = arith.constant 0 : index
    %65 = vector.load %arg6[%c64, %c0_30] : memref<512x512xbf16, #tpu.memory_space<vmem>>, vector<64x512xbf16>
    %cst_31 = arith.constant dense<0.000000e+00> : vector<8x512xf32>
    %66 = tpu.matmul %64, %65, %cst_31 {dimension_numbers = #tpu.dot_dimension_numbers<[1], [0], [0], [1], [0, 0, 1, 1], [], []>} : vector<8x64xbf16>, vector<64x512xbf16>, vector<8x512xf32> -> vector<8x512xf32>
    %67 = arith.addf %41, %66 : vector<8x512xf32>
    %68 = vector.extract_strided_slice %11 {offsets = [0, 128], sizes = [8, 64], strides = [1, 1]} : vector<8x512xbf16> to vector<8x64xbf16>
    %69 = vector.shape_cast %68 : vector<8x64xbf16> to vector<1x8x64xbf16>
    %70 = vector.extract_strided_slice %12 {offsets = [0, 0, 128], sizes = [1, 8, 64], strides = [1, 1, 1]} : vector<1x8x1024xbf16> to vector<1x8x64xbf16>
    %71 = vector.extract_strided_slice %12 {offsets = [0, 0, 640], sizes = [1, 8, 64], strides = [1, 1, 1]} : vector<1x8x1024xbf16> to vector<1x8x64xbf16>
    "tpu.trace_start"() <{level = 10 : i32, message = "bqd,bkd->bqk"}> : () -> ()
    %cst_32 = arith.constant dense<0.000000e+00> : vector<1x8x8xf32>
    %72 = tpu.matmul %69, %70, %cst_32 {dimension_numbers = #tpu.dot_dimension_numbers<[2], [2], [1], [1], [0, 0, 0, 1, 1, 1], [0], [0]>} : vector<1x8x64xbf16>, vector<1x8x64xbf16>, vector<1x8x8xf32> -> vector<1x8x8xf32>
    "tpu.trace_stop"() : () -> ()
    %cst_33 = arith.constant dense<0xFF800000> : vector<1x8xf32>
    %73 = vector.multi_reduction <maximumf>, %72, %cst_33 [2] : vector<1x8x8xf32> to vector<1x8xf32>
    %74 = vector.shape_cast %73 : vector<1x8xf32> to vector<1x8x1xf32>
    %75 = vector.broadcast %74 : vector<1x8x1xf32> to vector<1x8x8xf32>
    %76 = arith.subf %72, %75 : vector<1x8x8xf32>
    %77 = math.exp %76 : vector<1x8x8xf32>
    %cst_34 = arith.constant dense<0.000000e+00> : vector<1x8xf32>
    %78 = vector.multi_reduction <add>, %77, %cst_34 [2] : vector<1x8x8xf32> to vector<1x8xf32>
    %79 = vector.shape_cast %78 : vector<1x8xf32> to vector<1x8x1xf32>
    %80 = tpu.reciprocal %79 {approx = true} : vector<1x8x1xf32> -> vector<1x8x1xf32>
    %81 = vector.broadcast %80 : vector<1x8x1xf32> to vector<1x8x8xf32>
    %82 = arith.mulf %77, %81 : vector<1x8x8xf32>
    %83 = arith.truncf %82 : vector<1x8x8xf32> to vector<1x8x8xbf16>
    %c0_35 = arith.constant 0 : index
    %c2 = arith.constant 2 : index
    %c0_36 = arith.constant 0 : index
    %c0_37 = arith.constant 0 : index
    %84 = vector.load %arg15[%c0_35, %c2, %c0_36, %c0_37] : memref<1x8x8x8xbf16, #tpu.memory_space<vmem>>, vector<1x1x8x8xbf16>
    %85 = vector.shape_cast %84 : vector<1x1x8x8xbf16> to vector<1x8x8xbf16>
    %86 = vector.shape_cast %83 : vector<1x8x8xbf16> to vector<1x1x8x8xbf16>
    tpu.vector_store %arg15[%c0_35, %c2, %c0_36, %c0_37], %86 {strides = array<i32>} : memref<1x8x8x8xbf16, #tpu.memory_space<vmem>>, vector<1x1x8x8xbf16>,
    %87 = arith.truncf %82 : vector<1x8x8xf32> to vector<1x8x8xbf16>
    "tpu.trace_start"() <{level = 10 : i32, message = "bqk,bkd->bqd"}> : () -> ()
    %cst_38 = arith.constant dense<0.000000e+00> : vector<1x8x64xf32>
    %88 = tpu.matmul %87, %71, %cst_38 {dimension_numbers = #tpu.dot_dimension_numbers<[2], [1], [1], [2], [0, 0, 0, 1, 1, 2], [0], [0]>} : vector<1x8x8xbf16>, vector<1x8x64xbf16>, vector<1x8x64xf32> -> vector<1x8x64xf32>
    "tpu.trace_stop"() : () -> ()
    %89 = vector.shape_cast %88 : vector<1x8x64xf32> to vector<8x64xf32>
    %90 = arith.truncf %89 : vector<8x64xf32> to vector<8x64xbf16>
    %c128 = arith.constant 128 : index
    %c0_39 = arith.constant 0 : index
    %91 = vector.load %arg6[%c128, %c0_39] : memref<512x512xbf16, #tpu.memory_space<vmem>>, vector<64x512xbf16>
    %cst_40 = arith.constant dense<0.000000e+00> : vector<8x512xf32>
    %92 = tpu.matmul %90, %91, %cst_40 {dimension_numbers = #tpu.dot_dimension_numbers<[1], [0], [0], [1], [0, 0, 1, 1], [], []>} : vector<8x64xbf16>, vector<64x512xbf16>, vector<8x512xf32> -> vector<8x512xf32>
    %93 = arith.addf %67, %92 : vector<8x512xf32>
    %94 = vector.extract_strided_slice %11 {offsets = [0, 192], sizes = [8, 64], strides = [1, 1]} : vector<8x512xbf16> to vector<8x64xbf16>
    %95 = vector.shape_cast %94 : vector<8x64xbf16> to vector<1x8x64xbf16>
    %96 = vector.extract_strided_slice %12 {offsets = [0, 0, 192], sizes = [1, 8, 64], strides = [1, 1, 1]} : vector<1x8x1024xbf16> to vector<1x8x64xbf16>
    %97 = vector.extract_strided_slice %12 {offsets = [0, 0, 704], sizes = [1, 8, 64], strides = [1, 1, 1]} : vector<1x8x1024xbf16> to vector<1x8x64xbf16>
    "tpu.trace_start"() <{level = 10 : i32, message = "bqd,bkd->bqk"}> : () -> ()
    %cst_41 = arith.constant dense<0.000000e+00> : vector<1x8x8xf32>
    %98 = tpu.matmul %95, %96, %cst_41 {dimension_numbers = #tpu.dot_dimension_numbers<[2], [2], [1], [1], [0, 0, 0, 1, 1, 1], [0], [0]>} : vector<1x8x64xbf16>, vector<1x8x64xbf16>, vector<1x8x8xf32> -> vector<1x8x8xf32>
    "tpu.trace_stop"() : () -> ()
    %cst_42 = arith.constant dense<0xFF800000> : vector<1x8xf32>
    %99 = vector.multi_reduction <maximumf>, %98, %cst_42 [2] : vector<1x8x8xf32> to vector<1x8xf32>
    %100 = vector.shape_cast %99 : vector<1x8xf32> to vector<1x8x1xf32>
    %101 = vector.broadcast %100 : vector<1x8x1xf32> to vector<1x8x8xf32>
    %102 = arith.subf %98, %101 : vector<1x8x8xf32>
    %103 = math.exp %102 : vector<1x8x8xf32>
    %cst_43 = arith.constant dense<0.000000e+00> : vector<1x8xf32>
    %104 = vector.multi_reduction <add>, %103, %cst_43 [2] : vector<1x8x8xf32> to vector<1x8xf32>
    %105 = vector.shape_cast %104 : vector<1x8xf32> to vector<1x8x1xf32>
    %106 = tpu.reciprocal %105 {approx = true} : vector<1x8x1xf32> -> vector<1x8x1xf32>
    %107 = vector.broadcast %106 : vector<1x8x1xf32> to vector<1x8x8xf32>
    %108 = arith.mulf %103, %107 : vector<1x8x8xf32>
    %109 = arith.truncf %108 : vector<1x8x8xf32> to vector<1x8x8xbf16>
    %c0_44 = arith.constant 0 : index
    %c3 = arith.constant 3 : index
    %c0_45 = arith.constant 0 : index
    %c0_46 = arith.constant 0 : index
    %110 = vector.load %arg15[%c0_44, %c3, %c0_45, %c0_46] : memref<1x8x8x8xbf16, #tpu.memory_space<vmem>>, vector<1x1x8x8xbf16>
    %111 = vector.shape_cast %110 : vector<1x1x8x8xbf16> to vector<1x8x8xbf16>
    %112 = vector.shape_cast %109 : vector<1x8x8xbf16> to vector<1x1x8x8xbf16>
    tpu.vector_store %arg15[%c0_44, %c3, %c0_45, %c0_46], %112 {strides = array<i32>} : memref<1x8x8x8xbf16, #tpu.memory_space<vmem>>, vector<1x1x8x8xbf16>,
    %113 = arith.truncf %108 : vector<1x8x8xf32> to vector<1x8x8xbf16>
    "tpu.trace_start"() <{level = 10 : i32, message = "bqk,bkd->bqd"}> : () -> ()
    %cst_47 = arith.constant dense<0.000000e+00> : vector<1x8x64xf32>
    %114 = tpu.matmul %113, %97, %cst_47 {dimension_numbers = #tpu.dot_dimension_numbers<[2], [1], [1], [2], [0, 0, 0, 1, 1, 2], [0], [0]>} : vector<1x8x8xbf16>, vector<1x8x64xbf16>, vector<1x8x64xf32> -> vector<1x8x64xf32>
    "tpu.trace_stop"() : () -> ()
    %115 = vector.shape_cast %114 : vector<1x8x64xf32> to vector<8x64xf32>
    %116 = arith.truncf %115 : vector<8x64xf32> to vector<8x64xbf16>
    %c192 = arith.constant 192 : index
    %c0_48 = arith.constant 0 : index
    %117 = vector.load %arg6[%c192, %c0_48] : memref<512x512xbf16, #tpu.memory_space<vmem>>, vector<64x512xbf16>
    %cst_49 = arith.constant dense<0.000000e+00> : vector<8x512xf32>
    %118 = tpu.matmul %116, %117, %cst_49 {dimension_numbers = #tpu.dot_dimension_numbers<[1], [0], [0], [1], [0, 0, 1, 1], [], []>} : vector<8x64xbf16>, vector<64x512xbf16>, vector<8x512xf32> -> vector<8x512xf32>
    %119 = arith.addf %93, %118 : vector<8x512xf32>
    %120 = vector.extract_strided_slice %11 {offsets = [0, 256], sizes = [8, 64], strides = [1, 1]} : vector<8x512xbf16> to vector<8x64xbf16>
    %121 = vector.shape_cast %120 : vector<8x64xbf16> to vector<1x8x64xbf16>
    %122 = vector.extract_strided_slice %12 {offsets = [0, 0, 256], sizes = [1, 8, 64], strides = [1, 1, 1]} : vector<1x8x1024xbf16> to vector<1x8x64xbf16>
    %123 = vector.extract_strided_slice %12 {offsets = [0, 0, 768], sizes = [1, 8, 64], strides = [1, 1, 1]} : vector<1x8x1024xbf16> to vector<1x8x64xbf16>
    "tpu.trace_start"() <{level = 10 : i32, message = "bqd,bkd->bqk"}> : () -> ()
    %cst_50 = arith.constant dense<0.000000e+00> : vector<1x8x8xf32>
    %124 = tpu.matmul %121, %122, %cst_50 {dimension_numbers = #tpu.dot_dimension_numbers<[2], [2], [1], [1], [0, 0, 0, 1, 1, 1], [0], [0]>} : vector<1x8x64xbf16>, vector<1x8x64xbf16>, vector<1x8x8xf32> -> vector<1x8x8xf32>
    "tpu.trace_stop"() : () -> ()
    %cst_51 = arith.constant dense<0xFF800000> : vector<1x8xf32>
    %125 = vector.multi_reduction <maximumf>, %124, %cst_51 [2] : vector<1x8x8xf32> to vector<1x8xf32>
    %126 = vector.shape_cast %125 : vector<1x8xf32> to vector<1x8x1xf32>
    %127 = vector.broadcast %126 : vector<1x8x1xf32> to vector<1x8x8xf32>
    %128 = arith.subf %124, %127 : vector<1x8x8xf32>
    %129 = math.exp %128 : vector<1x8x8xf32>
    %cst_52 = arith.constant dense<0.000000e+00> : vector<1x8xf32>
    %130 = vector.multi_reduction <add>, %129, %cst_52 [2] : vector<1x8x8xf32> to vector<1x8xf32>
    %131 = vector.shape_cast %130 : vector<1x8xf32> to vector<1x8x1xf32>
    %132 = tpu.reciprocal %131 {approx = true} : vector<1x8x1xf32> -> vector<1x8x1xf32>
    %133 = vector.broadcast %132 : vector<1x8x1xf32> to vector<1x8x8xf32>
    %134 = arith.mulf %129, %133 : vector<1x8x8xf32>
    %135 = arith.truncf %134 : vector<1x8x8xf32> to vector<1x8x8xbf16>
    %c0_53 = arith.constant 0 : index
    %c4 = arith.constant 4 : index
    %c0_54 = arith.constant 0 : index
    %c0_55 = arith.constant 0 : index
    %136 = vector.load %arg15[%c0_53, %c4, %c0_54, %c0_55] : memref<1x8x8x8xbf16, #tpu.memory_space<vmem>>, vector<1x1x8x8xbf16>
    %137 = vector.shape_cast %136 : vector<1x1x8x8xbf16> to vector<1x8x8xbf16>
    %138 = vector.shape_cast %135 : vector<1x8x8xbf16> to vector<1x1x8x8xbf16>
    tpu.vector_store %arg15[%c0_53, %c4, %c0_54, %c0_55], %138 {strides = array<i32>} : memref<1x8x8x8xbf16, #tpu.memory_space<vmem>>, vector<1x1x8x8xbf16>,
    %139 = arith.truncf %134 : vector<1x8x8xf32> to vector<1x8x8xbf16>
    "tpu.trace_start"() <{level = 10 : i32, message = "bqk,bkd->bqd"}> : () -> ()
    %cst_56 = arith.constant dense<0.000000e+00> : vector<1x8x64xf32>
    %140 = tpu.matmul %139, %123, %cst_56 {dimension_numbers = #tpu.dot_dimension_numbers<[2], [1], [1], [2], [0, 0, 0, 1, 1, 2], [0], [0]>} : vector<1x8x8xbf16>, vector<1x8x64xbf16>, vector<1x8x64xf32> -> vector<1x8x64xf32>
    "tpu.trace_stop"() : () -> ()
    %141 = vector.shape_cast %140 : vector<1x8x64xf32> to vector<8x64xf32>
    %142 = arith.truncf %141 : vector<8x64xf32> to vector<8x64xbf16>
    %c256 = arith.constant 256 : index
    %c0_57 = arith.constant 0 : index
    %143 = vector.load %arg6[%c256, %c0_57] : memref<512x512xbf16, #tpu.memory_space<vmem>>, vector<64x512xbf16>
    %cst_58 = arith.constant dense<0.000000e+00> : vector<8x512xf32>
    %144 = tpu.matmul %142, %143, %cst_58 {dimension_numbers = #tpu.dot_dimension_numbers<[1], [0], [0], [1], [0, 0, 1, 1], [], []>} : vector<8x64xbf16>, vector<64x512xbf16>, vector<8x512xf32> -> vector<8x512xf32>
    %145 = arith.addf %119, %144 : vector<8x512xf32>
    %146 = vector.extract_strided_slice %11 {offsets = [0, 320], sizes = [8, 64], strides = [1, 1]} : vector<8x512xbf16> to vector<8x64xbf16>
    %147 = vector.shape_cast %146 : vector<8x64xbf16> to vector<1x8x64xbf16>
    %148 = vector.extract_strided_slice %12 {offsets = [0, 0, 320], sizes = [1, 8, 64], strides = [1, 1, 1]} : vector<1x8x1024xbf16> to vector<1x8x64xbf16>
    %149 = vector.extract_strided_slice %12 {offsets = [0, 0, 832], sizes = [1, 8, 64], strides = [1, 1, 1]} : vector<1x8x1024xbf16> to vector<1x8x64xbf16>
    "tpu.trace_start"() <{level = 10 : i32, message = "bqd,bkd->bqk"}> : () -> ()
    %cst_59 = arith.constant dense<0.000000e+00> : vector<1x8x8xf32>
    %150 = tpu.matmul %147, %148, %cst_59 {dimension_numbers = #tpu.dot_dimension_numbers<[2], [2], [1], [1], [0, 0, 0, 1, 1, 1], [0], [0]>} : vector<1x8x64xbf16>, vector<1x8x64xbf16>, vector<1x8x8xf32> -> vector<1x8x8xf32>
    "tpu.trace_stop"() : () -> ()
    %cst_60 = arith.constant dense<0xFF800000> : vector<1x8xf32>
    %151 = vector.multi_reduction <maximumf>, %150, %cst_60 [2] : vector<1x8x8xf32> to vector<1x8xf32>
    %152 = vector.shape_cast %151 : vector<1x8xf32> to vector<1x8x1xf32>
    %153 = vector.broadcast %152 : vector<1x8x1xf32> to vector<1x8x8xf32>
    %154 = arith.subf %150, %153 : vector<1x8x8xf32>
    %155 = math.exp %154 : vector<1x8x8xf32>
    %cst_61 = arith.constant dense<0.000000e+00> : vector<1x8xf32>
    %156 = vector.multi_reduction <add>, %155, %cst_61 [2] : vector<1x8x8xf32> to vector<1x8xf32>
    %157 = vector.shape_cast %156 : vector<1x8xf32> to vector<1x8x1xf32>
    %158 = tpu.reciprocal %157 {approx = true} : vector<1x8x1xf32> -> vector<1x8x1xf32>
    %159 = vector.broadcast %158 : vector<1x8x1xf32> to vector<1x8x8xf32>
    %160 = arith.mulf %155, %159 : vector<1x8x8xf32>
    %161 = arith.truncf %160 : vector<1x8x8xf32> to vector<1x8x8xbf16>
    %c0_62 = arith.constant 0 : index
    %c5 = arith.constant 5 : index
    %c0_63 = arith.constant 0 : index
    %c0_64 = arith.constant 0 : index
    %162 = vector.load %arg15[%c0_62, %c5, %c0_63, %c0_64] : memref<1x8x8x8xbf16, #tpu.memory_space<vmem>>, vector<1x1x8x8xbf16>
    %163 = vector.shape_cast %162 : vector<1x1x8x8xbf16> to vector<1x8x8xbf16>
    %164 = vector.shape_cast %161 : vector<1x8x8xbf16> to vector<1x1x8x8xbf16>
    tpu.vector_store %arg15[%c0_62, %c5, %c0_63, %c0_64], %164 {strides = array<i32>} : memref<1x8x8x8xbf16, #tpu.memory_space<vmem>>, vector<1x1x8x8xbf16>,
    %165 = arith.truncf %160 : vector<1x8x8xf32> to vector<1x8x8xbf16>
    "tpu.trace_start"() <{level = 10 : i32, message = "bqk,bkd->bqd"}> : () -> ()
    %cst_65 = arith.constant dense<0.000000e+00> : vector<1x8x64xf32>
    %166 = tpu.matmul %165, %149, %cst_65 {dimension_numbers = #tpu.dot_dimension_numbers<[2], [1], [1], [2], [0, 0, 0, 1, 1, 2], [0], [0]>} : vector<1x8x8xbf16>, vector<1x8x64xbf16>, vector<1x8x64xf32> -> vector<1x8x64xf32>
    "tpu.trace_stop"() : () -> ()
    %167 = vector.shape_cast %166 : vector<1x8x64xf32> to vector<8x64xf32>
    %168 = arith.truncf %167 : vector<8x64xf32> to vector<8x64xbf16>
    %c320 = arith.constant 320 : index
    %c0_66 = arith.constant 0 : index
    %169 = vector.load %arg6[%c320, %c0_66] : memref<512x512xbf16, #tpu.memory_space<vmem>>, vector<64x512xbf16>
    %cst_67 = arith.constant dense<0.000000e+00> : vector<8x512xf32>
    %170 = tpu.matmul %168, %169, %cst_67 {dimension_numbers = #tpu.dot_dimension_numbers<[1], [0], [0], [1], [0, 0, 1, 1], [], []>} : vector<8x64xbf16>, vector<64x512xbf16>, vector<8x512xf32> -> vector<8x512xf32>
    %171 = arith.addf %145, %170 : vector<8x512xf32>
    %172 = vector.extract_strided_slice %11 {offsets = [0, 384], sizes = [8, 64], strides = [1, 1]} : vector<8x512xbf16> to vector<8x64xbf16>
    %173 = vector.shape_cast %172 : vector<8x64xbf16> to vector<1x8x64xbf16>
    %174 = vector.extract_strided_slice %12 {offsets = [0, 0, 384], sizes = [1, 8, 64], strides = [1, 1, 1]} : vector<1x8x1024xbf16> to vector<1x8x64xbf16>
    %175 = vector.extract_strided_slice %12 {offsets = [0, 0, 896], sizes = [1, 8, 64], strides = [1, 1, 1]} : vector<1x8x1024xbf16> to vector<1x8x64xbf16>
    "tpu.trace_start"() <{level = 10 : i32, message = "bqd,bkd->bqk"}> : () -> ()
    %cst_68 = arith.constant dense<0.000000e+00> : vector<1x8x8xf32>
    %176 = tpu.matmul %173, %174, %cst_68 {dimension_numbers = #tpu.dot_dimension_numbers<[2], [2], [1], [1], [0, 0, 0, 1, 1, 1], [0], [0]>} : vector<1x8x64xbf16>, vector<1x8x64xbf16>, vector<1x8x8xf32> -> vector<1x8x8xf32>
    "tpu.trace_stop"() : () -> ()
    %cst_69 = arith.constant dense<0xFF800000> : vector<1x8xf32>
    %177 = vector.multi_reduction <maximumf>, %176, %cst_69 [2] : vector<1x8x8xf32> to vector<1x8xf32>
    %178 = vector.shape_cast %177 : vector<1x8xf32> to vector<1x8x1xf32>
    %179 = vector.broadcast %178 : vector<1x8x1xf32> to vector<1x8x8xf32>
    %180 = arith.subf %176, %179 : vector<1x8x8xf32>
    %181 = math.exp %180 : vector<1x8x8xf32>
    %cst_70 = arith.constant dense<0.000000e+00> : vector<1x8xf32>
    %182 = vector.multi_reduction <add>, %181, %cst_70 [2] : vector<1x8x8xf32> to vector<1x8xf32>
    %183 = vector.shape_cast %182 : vector<1x8xf32> to vector<1x8x1xf32>
    %184 = tpu.reciprocal %183 {approx = true} : vector<1x8x1xf32> -> vector<1x8x1xf32>
    %185 = vector.broadcast %184 : vector<1x8x1xf32> to vector<1x8x8xf32>
    %186 = arith.mulf %181, %185 : vector<1x8x8xf32>
    %187 = arith.truncf %186 : vector<1x8x8xf32> to vector<1x8x8xbf16>
    %c0_71 = arith.constant 0 : index
    %c6 = arith.constant 6 : index
    %c0_72 = arith.constant 0 : index
    %c0_73 = arith.constant 0 : index
    %188 = vector.load %arg15[%c0_71, %c6, %c0_72, %c0_73] : memref<1x8x8x8xbf16, #tpu.memory_space<vmem>>, vector<1x1x8x8xbf16>
    %189 = vector.shape_cast %188 : vector<1x1x8x8xbf16> to vector<1x8x8xbf16>
    %190 = vector.shape_cast %187 : vector<1x8x8xbf16> to vector<1x1x8x8xbf16>
    tpu.vector_store %arg15[%c0_71, %c6, %c0_72, %c0_73], %190 {strides = array<i32>} : memref<1x8x8x8xbf16, #tpu.memory_space<vmem>>, vector<1x1x8x8xbf16>,
    %191 = arith.truncf %186 : vector<1x8x8xf32> to vector<1x8x8xbf16>
    "tpu.trace_start"() <{level = 10 : i32, message = "bqk,bkd->bqd"}> : () -> ()
    %cst_74 = arith.constant dense<0.000000e+00> : vector<1x8x64xf32>
    %192 = tpu.matmul %191, %175, %cst_74 {dimension_numbers = #tpu.dot_dimension_numbers<[2], [1], [1], [2], [0, 0, 0, 1, 1, 2], [0], [0]>} : vector<1x8x8xbf16>, vector<1x8x64xbf16>, vector<1x8x64xf32> -> vector<1x8x64xf32>
    "tpu.trace_stop"() : () -> ()
    %193 = vector.shape_cast %192 : vector<1x8x64xf32> to vector<8x64xf32>
    %194 = arith.truncf %193 : vector<8x64xf32> to vector<8x64xbf16>
    %c384 = arith.constant 384 : index
    %c0_75 = arith.constant 0 : index
    %195 = vector.load %arg6[%c384, %c0_75] : memref<512x512xbf16, #tpu.memory_space<vmem>>, vector<64x512xbf16>
    %cst_76 = arith.constant dense<0.000000e+00> : vector<8x512xf32>
    %196 = tpu.matmul %194, %195, %cst_76 {dimension_numbers = #tpu.dot_dimension_numbers<[1], [0], [0], [1], [0, 0, 1, 1], [], []>} : vector<8x64xbf16>, vector<64x512xbf16>, vector<8x512xf32> -> vector<8x512xf32>
    %197 = arith.addf %171, %196 : vector<8x512xf32>
    %198 = vector.extract_strided_slice %11 {offsets = [0, 448], sizes = [8, 64], strides = [1, 1]} : vector<8x512xbf16> to vector<8x64xbf16>
    %199 = vector.shape_cast %198 : vector<8x64xbf16> to vector<1x8x64xbf16>
    %200 = vector.extract_strided_slice %12 {offsets = [0, 0, 448], sizes = [1, 8, 64], strides = [1, 1, 1]} : vector<1x8x1024xbf16> to vector<1x8x64xbf16>
    %201 = vector.extract_strided_slice %12 {offsets = [0, 0, 960], sizes = [1, 8, 64], strides = [1, 1, 1]} : vector<1x8x1024xbf16> to vector<1x8x64xbf16>
    "tpu.trace_start"() <{level = 10 : i32, message = "bqd,bkd->bqk"}> : () -> ()
    %cst_77 = arith.constant dense<0.000000e+00> : vector<1x8x8xf32>
    %202 = tpu.matmul %199, %200, %cst_77 {dimension_numbers = #tpu.dot_dimension_numbers<[2], [2], [1], [1], [0, 0, 0, 1, 1, 1], [0], [0]>} : vector<1x8x64xbf16>, vector<1x8x64xbf16>, vector<1x8x8xf32> -> vector<1x8x8xf32>
    "tpu.trace_stop"() : () -> ()
    %cst_78 = arith.constant dense<0xFF800000> : vector<1x8xf32>
    %203 = vector.multi_reduction <maximumf>, %202, %cst_78 [2] : vector<1x8x8xf32> to vector<1x8xf32>
    %204 = vector.shape_cast %203 : vector<1x8xf32> to vector<1x8x1xf32>
    %205 = vector.broadcast %204 : vector<1x8x1xf32> to vector<1x8x8xf32>
    %206 = arith.subf %202, %205 : vector<1x8x8xf32>
    %207 = math.exp %206 : vector<1x8x8xf32>
    %cst_79 = arith.constant dense<0.000000e+00> : vector<1x8xf32>
    %208 = vector.multi_reduction <add>, %207, %cst_79 [2] : vector<1x8x8xf32> to vector<1x8xf32>
    %209 = vector.shape_cast %208 : vector<1x8xf32> to vector<1x8x1xf32>
    %210 = tpu.reciprocal %209 {approx = true} : vector<1x8x1xf32> -> vector<1x8x1xf32>
    %211 = vector.broadcast %210 : vector<1x8x1xf32> to vector<1x8x8xf32>
    %212 = arith.mulf %207, %211 : vector<1x8x8xf32>
    %213 = arith.truncf %212 : vector<1x8x8xf32> to vector<1x8x8xbf16>
    %c0_80 = arith.constant 0 : index
    %c7 = arith.constant 7 : index
    %c0_81 = arith.constant 0 : index
    %c0_82 = arith.constant 0 : index
    %214 = vector.load %arg15[%c0_80, %c7, %c0_81, %c0_82] : memref<1x8x8x8xbf16, #tpu.memory_space<vmem>>, vector<1x1x8x8xbf16>
    %215 = vector.shape_cast %214 : vector<1x1x8x8xbf16> to vector<1x8x8xbf16>
    %216 = vector.shape_cast %213 : vector<1x8x8xbf16> to vector<1x1x8x8xbf16>
    tpu.vector_store %arg15[%c0_80, %c7, %c0_81, %c0_82], %216 {strides = array<i32>} : memref<1x8x8x8xbf16, #tpu.memory_space<vmem>>, vector<1x1x8x8xbf16>,
    %217 = arith.truncf %212 : vector<1x8x8xf32> to vector<1x8x8xbf16>
    "tpu.trace_start"() <{level = 10 : i32, message = "bqk,bkd->bqd"}> : () -> ()
    %cst_83 = arith.constant dense<0.000000e+00> : vector<1x8x64xf32>
    %218 = tpu.matmul %217, %201, %cst_83 {dimension_numbers = #tpu.dot_dimension_numbers<[2], [1], [1], [2], [0, 0, 0, 1, 1, 2], [0], [0]>} : vector<1x8x8xbf16>, vector<1x8x64xbf16>, vector<1x8x64xf32> -> vector<1x8x64xf32>
    "tpu.trace_stop"() : () -> ()
    %219 = vector.shape_cast %218 : vector<1x8x64xf32> to vector<8x64xf32>
    %220 = arith.truncf %219 : vector<8x64xf32> to vector<8x64xbf16>
    %c448 = arith.constant 448 : index
    %c0_84 = arith.constant 0 : index
    %221 = vector.load %arg6[%c448, %c0_84] : memref<512x512xbf16, #tpu.memory_space<vmem>>, vector<64x512xbf16>
    %cst_85 = arith.constant dense<0.000000e+00> : vector<8x512xf32>
    %222 = tpu.matmul %220, %221, %cst_85 {dimension_numbers = #tpu.dot_dimension_numbers<[1], [0], [0], [1], [0, 0, 1, 1], [], []>} : vector<8x64xbf16>, vector<64x512xbf16>, vector<8x512xf32> -> vector<8x512xf32>
    %223 = arith.addf %197, %222 : vector<8x512xf32>
    %c0_86 = arith.constant 0 : index
    %c0_87 = arith.constant 0 : index
    %224 = vector.load %arg8[%c0_86, %c0_87] : memref<1x512xf32, #tpu.memory_space<vmem>>, vector<1x512xf32>
    %c0_88 = arith.constant 0 : index
    %c0_89 = arith.constant 0 : index
    %225 = vector.load %arg9[%c0_88, %c0_89] : memref<1x512xf32, #tpu.memory_space<vmem>>, vector<1x512xf32>
    %cst_90 = arith.constant dense<0.000000e+00> : vector<8xf32>
    %226 = vector.multi_reduction <add>, %223, %cst_90 [1] : vector<8x512xf32> to vector<8xf32>
    %227 = vector.shape_cast %226 : vector<8xf32> to vector<8x1xf32>
    %cst_91 = arith.constant 5.120000e+02 : f32
    %228 = vector.broadcast %cst_91 : f32 to vector<8x1xf32>
    %229 = arith.divf %227, %228 : vector<8x1xf32>
    %230 = vector.broadcast %229 : vector<8x1xf32> to vector<8x512xf32>
    %231 = arith.subf %223, %230 : vector<8x512xf32>
    %232 = arith.mulf %231, %231 : vector<8x512xf32>
    %cst_92 = arith.constant dense<0.000000e+00> : vector<8xf32>
    %233 = vector.multi_reduction <add>, %232, %cst_92 [1] : vector<8x512xf32> to vector<8xf32>
    %234 = vector.shape_cast %233 : vector<8xf32> to vector<8x1xf32>
    %cst_93 = arith.constant 5.120000e+02 : f32
    %235 = vector.broadcast %cst_93 : f32 to vector<8x1xf32>
    %236 = arith.divf %234, %235 : vector<8x1xf32>
    %237 = vector.broadcast %229 : vector<8x1xf32> to vector<8x512xf32>
    %238 = arith.subf %223, %237 : vector<8x512xf32>
    %cst_94 = arith.constant 9.99999974E-6 : f32
    %239 = vector.broadcast %cst_94 : f32 to vector<8x1xf32>
    %240 = arith.addf %236, %239 : vector<8x1xf32>
    %241 = math.rsqrt %240 : vector<8x1xf32>
    %242 = vector.broadcast %241 : vector<8x1xf32> to vector<8x512xf32>
    %243 = arith.mulf %238, %242 : vector<8x512xf32>
    %244 = vector.broadcast %224 : vector<1x512xf32> to vector<8x512xf32>
    %245 = arith.mulf %243, %244 : vector<8x512xf32>
    %246 = vector.broadcast %225 : vector<1x512xf32> to vector<8x512xf32>
    %247 = arith.addf %245, %246 : vector<8x512xf32>
    %248 = arith.truncf %247 : vector<8x512xf32> to vector<8x512xbf16>
    %c0_95 = arith.constant 0 : index
    %c0_96 = arith.constant 0 : index
    %249 = vector.load %arg10[%c0_95, %c0_96] : memref<512x512xbf16, #tpu.memory_space<vmem>>, vector<512x512xbf16>
    %cst_97 = arith.constant dense<0.000000e+00> : vector<8x512xf32>
    %250 = tpu.matmul %248, %249, %cst_97 {dimension_numbers = #tpu.dot_dimension_numbers<[1], [0], [0], [1], [0, 0, 1, 1], [], []>} : vector<8x512xbf16>, vector<512x512xbf16>, vector<8x512xf32> -> vector<8x512xf32>
    %c0_98 = arith.constant 0 : index
    %c0_99 = arith.constant 0 : index
    %251 = vector.load %arg11[%c0_98, %c0_99] : memref<1x512xf32, #tpu.memory_space<vmem>>, vector<1x512xf32>
    %252 = vector.broadcast %251 : vector<1x512xf32> to vector<8x512xf32>
    %253 = arith.addf %250, %252 : vector<8x512xf32>
    %cst_100 = arith.constant 0.000000e+00 : f32
    %254 = vector.broadcast %cst_100 : f32 to vector<8x512xf32>
    %255 = arith.maximumf %253, %254 : vector<8x512xf32>
    %256 = arith.addf %255, %247 : vector<8x512xf32>
    %c0_101 = arith.constant 0 : index
    %c0_102 = arith.constant 0 : index
    %257 = vector.load %arg12[%c0_101, %c0_102] : memref<1x512xf32, #tpu.memory_space<vmem>>, vector<1x512xf32>
    %c0_103 = arith.constant 0 : index
    %c0_104 = arith.constant 0 : index
    %258 = vector.load %arg13[%c0_103, %c0_104] : memref<1x512xf32, #tpu.memory_space<vmem>>, vector<1x512xf32>
    %cst_105 = arith.constant dense<0.000000e+00> : vector<8xf32>
    %259 = vector.multi_reduction <add>, %256, %cst_105 [1] : vector<8x512xf32> to vector<8xf32>
    %260 = vector.shape_cast %259 : vector<8xf32> to vector<8x1xf32>
    %cst_106 = arith.constant 5.120000e+02 : f32
    %261 = vector.broadcast %cst_106 : f32 to vector<8x1xf32>
    %262 = arith.divf %260, %261 : vector<8x1xf32>
    %263 = vector.broadcast %262 : vector<8x1xf32> to vector<8x512xf32>
    %264 = arith.subf %256, %263 : vector<8x512xf32>
    %265 = arith.mulf %264, %264 : vector<8x512xf32>
    %cst_107 = arith.constant dense<0.000000e+00> : vector<8xf32>
    %266 = vector.multi_reduction <add>, %265, %cst_107 [1] : vector<8x512xf32> to vector<8xf32>
    %267 = vector.shape_cast %266 : vector<8xf32> to vector<8x1xf32>
    %cst_108 = arith.constant 5.120000e+02 : f32
    %268 = vector.broadcast %cst_108 : f32 to vector<8x1xf32>
    %269 = arith.divf %267, %268 : vector<8x1xf32>
    %270 = vector.broadcast %262 : vector<8x1xf32> to vector<8x512xf32>
    %271 = arith.subf %256, %270 : vector<8x512xf32>
    %cst_109 = arith.constant 9.99999974E-6 : f32
    %272 = vector.broadcast %cst_109 : f32 to vector<8x1xf32>
    %273 = arith.addf %269, %272 : vector<8x1xf32>
    %274 = math.rsqrt %273 : vector<8x1xf32>
    %275 = vector.broadcast %274 : vector<8x1xf32> to vector<8x512xf32>
    %276 = arith.mulf %271, %275 : vector<8x512xf32>
    %277 = vector.broadcast %257 : vector<1x512xf32> to vector<8x512xf32>
    %278 = arith.mulf %276, %277 : vector<8x512xf32>
    %279 = vector.broadcast %258 : vector<1x512xf32> to vector<8x512xf32>
    %280 = arith.addf %278, %279 : vector<8x512xf32>
    %281 = vector.shape_cast %280 : vector<8x512xf32> to vector<1x8x512xf32>
    %c0_110 = arith.constant 0 : index
    %c0_111 = arith.constant 0 : index
    %c0_112 = arith.constant 0 : index
    %282 = vector.load %arg14[%c0_110, %c0_111, %c0_112] : memref<1x8x512xf32, #tpu.memory_space<vmem>>, vector<1x8x512xf32>
    tpu.vector_store %arg14[%c0_110, %c0_111, %c0_112], %281 {strides = array<i32>} : memref<1x8x512xf32, #tpu.memory_space<vmem>>, vector<1x8x512xf32>,
    return
  }
  func.func @transform_0(%arg0: i32, %arg1: i32) -> (i32, i32, i32) {
    %c0_i32 = arith.constant 0 : i32
    %c0_i32_0 = arith.constant 0 : i32
    %c0_i32_1 = arith.constant 0 : i32
    return %arg0, %c0_i32, %c0_i32_0 : i32, i32, i32
  }
  func.func @transform_1(%arg0: i32, %arg1: i32) -> (i32, i32, i32) {
    %c0_i32 = arith.constant 0 : i32
    %c0_i32_0 = arith.constant 0 : i32
    return %arg0, %arg1, %c0_i32 : i32, i32, i32
  }
  func.func @transform_2(%arg0: i32, %arg1: i32) -> (i32, i32) {
    %c0_i32 = arith.constant 0 : i32
    %c0_i32_0 = arith.constant 0 : i32
    %c0_i32_1 = arith.constant 0 : i32
    return %c0_i32, %c0_i32_0 : i32, i32
  }
  func.func @transform_3(%arg0: i32, %arg1: i32) -> (i32, i32) {
    %c0_i32 = arith.constant 0 : i32
    %c0_i32_0 = arith.constant 0 : i32
    %c0_i32_1 = arith.constant 0 : i32
    return %c0_i32, %c0_i32_0 : i32, i32
  }
  func.func @transform_4(%arg0: i32, %arg1: i32) -> (i32, i32) {
    %c0_i32 = arith.constant 0 : i32
    %c0_i32_0 = arith.constant 0 : i32
    %c0_i32_1 = arith.constant 0 : i32
    return %c0_i32, %c0_i32_0 : i32, i32
  }
  func.func @transform_5(%arg0: i32, %arg1: i32) -> (i32, i32) {
    %c0_i32 = arith.constant 0 : i32
    %c0_i32_0 = arith.constant 0 : i32
    %c0_i32_1 = arith.constant 0 : i32
    return %c0_i32, %c0_i32_0 : i32, i32
  }
  func.func @transform_6(%arg0: i32, %arg1: i32) -> (i32, i32) {
    %c0_i32 = arith.constant 0 : i32
    %c0_i32_0 = arith.constant 0 : i32
    %c0_i32_1 = arith.constant 0 : i32
    return %c0_i32, %c0_i32_0 : i32, i32
  }
  func.func @transform_7(%arg0: i32, %arg1: i32) -> (i32, i32) {
    %c0_i32 = arith.constant 0 : i32
    %c0_i32_0 = arith.constant 0 : i32
    %c0_i32_1 = arith.constant 0 : i32
    return %c0_i32, %c0_i32_0 : i32, i32
  }
  func.func @transform_8(%arg0: i32, %arg1: i32) -> (i32, i32) {
    %c0_i32 = arith.constant 0 : i32
    %c0_i32_0 = arith.constant 0 : i32
    %c0_i32_1 = arith.constant 0 : i32
    return %c0_i32, %c0_i32_0 : i32, i32
  }
  func.func @transform_9(%arg0: i32, %arg1: i32) -> (i32, i32) {
    %c0_i32 = arith.constant 0 : i32
    %c0_i32_0 = arith.constant 0 : i32
    %c0_i32_1 = arith.constant 0 : i32
    return %c0_i32, %c0_i32_0 : i32, i32
  }
  func.func @transform_10(%arg0: i32, %arg1: i32) -> (i32, i32) {
    %c0_i32 = arith.constant 0 : i32
    %c0_i32_0 = arith.constant 0 : i32
    %c0_i32_1 = arith.constant 0 : i32
    return %c0_i32, %c0_i32_0 : i32, i32
  }
  func.func @transform_11(%arg0: i32, %arg1: i32) -> (i32, i32) {
    %c0_i32 = arith.constant 0 : i32
    %c0_i32_0 = arith.constant 0 : i32
    %c0_i32_1 = arith.constant 0 : i32
    return %c0_i32, %c0_i32_0 : i32, i32
  }
  func.func @transform_12(%arg0: i32, %arg1: i32) -> (i32, i32, i32) {
    %c0_i32 = arith.constant 0 : i32
    %c0_i32_0 = arith.constant 0 : i32
    return %arg0, %arg1, %c0_i32 : i32, i32, i32
  }
  func.func @transform_13(%arg0: i32, %arg1: i32) -> (i32, i32, i32, i32) {
    %c0_i32 = arith.constant 0 : i32
    %c0_i32_0 = arith.constant 0 : i32
    %c0_i32_1 = arith.constant 0 : i32
    return %arg0, %c0_i32, %arg1, %c0_i32_0 : i32, i32, i32, i32
  }
}

</mosaic_0001>

<llo_original>
// kernel: tpu_custom_call.1
$region0: #{tpu_custom_call.1}
  #allocation0 [shape = 'u32[]', space=smem, size = 0x4, offset = 0x4, fixed_abs, tag = 'smem constant byte address 0x4 - core index']
  #allocation1 [shape = 'u32[144,128]{1,0:T(1,128)}', space=vmem, size = 0x12000, scoped, tag = 'internal scratch']
  #allocation2 [shape = 'bf16[1,8,1024]{2,1,0:T(8,128)(2,1)}', space=vmem, size = 0x4000, scoped, tag = 'scratch operand']
  %s0 = inlined_call_operand.hbm [shape: f32[2,8,512], index: 0, kind: input, shape index: {}]
  %s1 = inlined_call_operand.hbm [shape: f32[2,8,512], index: 1, kind: input, shape index: {}]
  %s2 = inlined_call_operand.hbm [shape: bf16[512,1536], index: 2, kind: input, shape index: {}]
  %s3 = inlined_call_operand.hbm [shape: f32[1,1536], index: 3, kind: input, shape index: {}]
  %s4 = inlined_call_operand.hbm [shape: bf16[512,512], index: 4, kind: input, shape index: {}]
  %s5 = inlined_call_operand.hbm [shape: f32[1,512], index: 5, kind: input, shape index: {}]
  %s6 = inlined_call_operand.hbm [shape: f32[1,512], index: 6, kind: input, shape index: {}]
  %s7 = inlined_call_operand.hbm [shape: f32[1,512], index: 7, kind: input, shape index: {}]
  %s8 = inlined_call_operand.hbm [shape: bf16[512,512], index: 8, kind: input, shape index: {}]
  %s9 = inlined_call_operand.hbm [shape: f32[1,512], index: 9, kind: input, shape index: {}]
  %s10 = inlined_call_operand.hbm [shape: f32[1,512], index: 10, kind: input, shape index: {}]
  %s11 = inlined_call_operand.hbm [shape: f32[1,512], index: 11, kind: input, shape index: {}]
  %s12 = inlined_call_operand.hbm [shape: f32[2,8,512], index: 12, kind: output, shape index: {0}]
  %s13 = inlined_call_operand.hbm [shape: bf16[2,8,8,8], index: 13, kind: output, shape index: {1}]
  %14 = xla_tuple %s12, %s13
  %s15 = sld [smem:[#allocation0]]
  $region141: #{tpu_custom_call.1} parent=0
    _
  %s17 = ssub.s32 1, %s15
  %s18 = scalar_select 0, %s17, %s15
  $region1: #{tpu_custom_call.1} parent=0
    #allocation3 [shape = 'u8[32768]{0}', space=vmem, size = 0x8000, scoped, tag = 'input window, operand 0']
    #allocation4 [shape = 's32[2]{0}', space=sflag, size = 0x8, scoped, tag = 'scoped memory for tpu_custom_call.1']
    #allocation5 [shape = 's32[2]{0}', space=sflag, size = 0x8, scoped, tag = 'scoped memory for tpu_custom_call.1']
    #allocation6 [shape = 'u8[32768]{0}', space=vmem, size = 0x8000, scoped, tag = 'input window, operand 1']
    #allocation7 [shape = 's32[2]{0}', space=sflag, size = 0x8, scoped, tag = 'scoped memory for tpu_custom_call.1']
    #allocation8 [shape = 'u8[1572864]{0}', space=vmem, size = 0x180000, scoped, tag = 'input window, operand 2, single buffered']
    #allocation9 [shape = 'u8[6144]{0}', space=vmem, size = 0x1800, scoped, tag = 'input window, operand 3, single buffered']
    #allocation10 [shape = 's32[1]{0}', space=sflag, size = 0x4, scoped, tag = 'scoped memory for tpu_custom_call.1']
    #allocation11 [shape = 'u8[524288]{0}', space=vmem, size = 0x80000, scoped, tag = 'input window, operand 4, single buffered']
    #allocation12 [shape = 'u8[2048]{0}', space=vmem, size = 0x800, scoped, tag = 'input window, operand 5, single buffered']
    #allocation13 [shape = 's32[1]{0}', space=sflag, size = 0x4, scoped, tag = 'scoped memory for tpu_custom_call.1']
    #allocation14 [shape = 'u8[2048]{0}', space=vmem, size = 0x800, scoped, tag = 'input window, operand 6, single buffered']
    #allocation15 [shape = 'u8[2048]{0}', space=vmem, size = 0x800, scoped, tag = 'input window, operand 7, single buffered']
    #allocation16 [shape = 's32[1]{0}', space=sflag, size = 0x4, scoped, tag = 'scoped memory for tpu_custom_call.1']
    #allocation17 [shape = 'u8[524288]{0}', space=vmem, size = 0x80000, scoped, tag = 'input window, operand 8, single buffered']
    #allocation18 [shape = 'u8[2048]{0}', space=vmem, size = 0x800, scoped, tag = 'input window, operand 9, single buffered']
    #allocation19 [shape = 's32[1]{0}', space=sflag, size = 0x4, scoped, tag = 'scoped memory for tpu_custom_call.1']
    #allocation20 [shape = 'u8[2048]{0}', space=vmem, size = 0x800, scoped, tag = 'input window, operand 10, single buffered']
    #allocation21 [shape = 'u8[2048]{0}', space=vmem, size = 0x800, scoped, tag = 'input window, operand 11, single buffered']
    #allocation22 [shape = 's32[1]{0}', space=sflag, size = 0x4, scoped, tag = 'scoped memory for tpu_custom_call.1']
    #allocation23 [shape = 'u8[32768]{0}', space=vmem, size = 0x8000, scoped, tag = 'output window, operand 0']
    #allocation24 [shape = 'u8[32768]{0}', space=vmem, size = 0x8000, scoped, tag = 'output window, operand 1']
    #allocation25 [shape = 's32[2]{0}', space=sflag, size = 0x8, scoped, tag = 'scoped memory for tpu_custom_call.1']
    %19 = vsyncpa [#allocation4], 0
    %s20 = scalar_lea.sflag [#allocation4], 1
    %21 = vsyncpa %s20, 0
    %22 = vsyncpa [#allocation7], 0
    %s23 = scalar_lea.sflag [#allocation7], 1
    %24 = vsyncpa %s23, 0
    %25 = vsyncpa [#allocation10], 0
    %26 = vsyncpa [#allocation13], 0
    %27 = vsyncpa [#allocation16], 0
    %28 = vsyncpa [#allocation19], 0
    %29 = vsyncpa [#allocation22], 0
    %30 = vsyncpa [#allocation5], 0
    %s31 = scalar_lea.sflag [#allocation5], 1
    %32 = vsyncpa %s31, 0
    %33 = vsyncpa [#allocation25], 0
    %s34 = scalar_lea.sflag [#allocation25], 1
    %35 = vsyncpa %s34, 0
    loop: start=0, step=1, limit=4
    $region2: #{tpu_custom_call.1} parent=1 // loop_pre_header
      _
    $region3: #{tpu_custom_call.1} parent=1 // loop_header
      %s37 = sphi 0, %s41
      %p38 = scmp.ge.s32.totalorder %s37, 4
      %s44 = sphi 0, %s56
      %s45 = sphi 0, %s52
      %s46 = sphi 0, %s44
      %s47 = sphi 0, %s45
      %s48 = sphi 0, %s46
      %s49 = sphi 0, %s47
      %s59 = sphi 0, %s61
      %s62 = sphi 0, %s59
      %s63 = sphi 0, %s62
      %s79 = sphi 0, %s63
      %s87 = sphi 0, %s89
      %s90 = sphi 0, %s87
      %s91 = sphi 0, %s90
      %s107 = sphi 0, %s91
      %s111 = sphi 0, %s111
      %s113 = sphi 0, %s111
      %s114 = sphi 0, %s113
      %s128 = sphi 0, %s114
      %s132 = sphi 0, %s132
      %s134 = sphi 0, %s132
      %s135 = sphi 0, %s134
      %s149 = sphi 0, %s135
      %s153 = sphi 0, %s153
      %s155 = sphi 0, %s153
      %s156 = sphi 0, %s155
      %s170 = sphi 0, %s156
      %s174 = sphi 0, %s174
      %s176 = sphi 0, %s174
      %s177 = sphi 0, %s176
      %s191 = sphi 0, %s177
      %s195 = sphi 0, %s195
      %s197 = sphi 0, %s195
      %s198 = sphi 0, %s197
      %s212 = sphi 0, %s198
      %s216 = sphi 0, %s216
      %s218 = sphi 0, %s216
      %s219 = sphi 0, %s218
      %s233 = sphi 0, %s219
      %s237 = sphi 0, %s237
      %s239 = sphi 0, %s237
      %s240 = sphi 0, %s239
      %s254 = sphi 0, %s240
      %s258 = sphi 0, %s258
      %s260 = sphi 0, %s258
      %s261 = sphi 0, %s260
      %s275 = sphi 0, %s261
      %s279 = sphi 0, %s279
      %s281 = sphi 0, %s279
      %s282 = sphi 0, %s281
      %s296 = sphi 0, %s282
      %s300 = sphi 0, %s300
      %s302 = sphi 0, %s300
      %s303 = sphi 0, %s302
      %s317 = sphi 0, %s303
      %s325 = sphi 0, %s327
      %s328 = sphi 0, %s325
      %s329 = sphi 0, %s328
      %s345 = sphi 0, %s329
      %s353 = sphi 0, %s355
      %s356 = sphi 0, %s353
      %s357 = sphi 0, %s356
      %s373 = sphi 0, %s357
    $region4: #{tpu_custom_call.1} parent=1 // loop_header_branch
      %40 = sbr.rel (%p38) target = $region8
    $region5: #{tpu_custom_call.1} parent=1 // loop_body
      %s42 = ssub.s32 %s37, 1
      %s43 = ssub.s32 %s37, 2
      %s50 = sadd.s32 1, %s45
      %p51 = scmp.ge.s32.totalorder %s50, 1
      %s52 = scalar_select %p51, 0, %s50
      %s53 = sadd.s32 1, %s44
      %s54 = scalar_select %p51, %s53, %s44
      %p55 = scmp.ge.s32.totalorder %s54, 2
      %s56 = scalar_select %p55, 0, %s54
      %s57 = ssub.s32 %s44, %s56
      %p58 = scmp.eq.s32.totalorder %s57, 0
      %s60 = sadd.s32 %s59, 1
      %s61 = scalar_select %p58, %s59, %s60
      %p64 = pneg %p58
      %p65 = scmp.eq.s32.totalorder %s37, 1
      %p66 = por %p64, %p65
      %p67 = scmp.ne.s32.totalorder %s59, %s62
      %p68 = scmp.eq.s32.totalorder %s37, 0
      %p69 = por %p67, %p68
      %p70 = scmp.ne.s32.totalorder %s59, %s62
      %p71 = scmp.eq.s32.totalorder %s42, 1
      %p72 = por %p70, %p71
      %p73 = scmp.ne.s32.totalorder %s62, %s63
      %p74 = scmp.eq.s32.totalorder %s42, 0
      %p75 = por %p73, %p74
      %p76 = scmp.ne.s32.totalorder %s62, %s63
      %p77 = scmp.eq.s32.totalorder %s43, 1
      %p78 = por %p76, %p77
      %p80 = scmp.ne.s32.totalorder %s63, %s79
      %p81 = scmp.eq.s32.totalorder %s43, 0
      %p82 = por %p80, %p81
      %s83 = ssub.s32 %s44, %s56
      %s84 = ssub.s32 %s45, %s52
      %s85 = sor.u32 %s83, %s84
      %p86 = scmp.eq.s32.totalorder %s85, 0
      %s88 = sadd.s32 %s87, 1
      %s89 = scalar_select %p86, %s87, %s88
      %p92 = pneg %p86
      %p93 = scmp.eq.s32.totalorder %s37, 1
      %p94 = por %p92, %p93
      %p95 = scmp.ne.s32.totalorder %s87, %s90
      %p96 = scmp.eq.s32.totalorder %s37, 0
      %p97 = por %p95, %p96
      %p98 = scmp.ne.s32.totalorder %s87, %s90
      %p99 = scmp.eq.s32.totalorder %s42, 1
      %p100 = por %p98, %p99
      %p101 = scmp.ne.s32.totalorder %s90, %s91
      %p102 = scmp.eq.s32.totalorder %s42, 0
      %p103 = por %p101, %p102
      %p104 = scmp.ne.s32.totalorder %s90, %s91
      %p105 = scmp.eq.s32.totalorder %s43, 1
      %p106 = por %p104, %p105
      %p108 = scmp.ne.s32.totalorder %s91, %s107
      %p109 = scmp.eq.s32.totalorder %s43, 0
      %p110 = por %p108, %p109
      %s112 = sadd.s32 %s111, 1
      %p115 = scmp.eq.s32.totalorder %s37, 1
      %p116 = scmp.ne.s32.totalorder %s111, %s113
      %p117 = scmp.eq.s32.totalorder %s37, 0
      %p118 = por %p116, %p117
      %p119 = scmp.ne.s32.totalorder %s111, %s113
      %p120 = scmp.eq.s32.totalorder %s42, 1
      %p121 = por %p119, %p120
      %p122 = scmp.ne.s32.totalorder %s113, %s114
      %p123 = scmp.eq.s32.totalorder %s42, 0
      %p124 = por %p122, %p123
      %p125 = scmp.ne.s32.totalorder %s113, %s114
      %p126 = scmp.eq.s32.totalorder %s43, 1
      %p127 = por %p125, %p126
      %p129 = scmp.ne.s32.totalorder %s114, %s128
      %p130 = scmp.eq.s32.totalorder %s43, 0
      %p131 = por %p129, %p130
      %s133 = sadd.s32 %s132, 1
      %p136 = scmp.eq.s32.totalorder %s37, 1
      %p137 = scmp.ne.s32.totalorder %s132, %s134
      %p138 = scmp.eq.s32.totalorder %s37, 0
      %p139 = por %p137, %p138
      %p140 = scmp.ne.s32.totalorder %s132, %s134
      %p141 = scmp.eq.s32.totalorder %s42, 1
      %p142 = por %p140, %p141
      %p143 = scmp.ne.s32.totalorder %s134, %s135
      %p144 = scmp.eq.s32.totalorder %s42, 0
      %p145 = por %p143, %p144
      %p146 = scmp.ne.s32.totalorder %s134, %s135
      %p147 = scmp.eq.s32.totalorder %s43, 1
      %p148 = por %p146, %p147
      %p150 = scmp.ne.s32.totalorder %s135, %s149
      %p151 = scmp.eq.s32.totalorder %s43, 0
      %p152 = por %p150, %p151
      %s154 = sadd.s32 %s153, 1
      %p157 = scmp.eq.s32.totalorder %s37, 1
      %p158 = scmp.ne.s32.totalorder %s153, %s155
      %p159 = scmp.eq.s32.totalorder %s37, 0
      %p160 = por %p158, %p159
      %p161 = scmp.ne.s32.totalorder %s153, %s155
      %p162 = scmp.eq.s32.totalorder %s42, 1
      %p163 = por %p161, %p162
      %p164 = scmp.ne.s32.totalorder %s155, %s156
      %p165 = scmp.eq.s32.totalorder %s42, 0
      %p166 = por %p164, %p165
      %p167 = scmp.ne.s32.totalorder %s155, %s156
      %p168 = scmp.eq.s32.totalorder %s43, 1
      %p169 = por %p167, %p168
      %p171 = scmp.ne.s32.totalorder %s156, %s170
      %p172 = scmp.eq.s32.totalorder %s43, 0
      %p173 = por %p171, %p172
      %s175 = sadd.s32 %s174, 1
      %p178 = scmp.eq.s32.totalorder %s37, 1
      %p179 = scmp.ne.s32.totalorder %s174, %s176
      %p180 = scmp.eq.s32.totalorder %s37, 0
      %p181 = por %p179, %p180
      %p182 = scmp.ne.s32.totalorder %s174, %s176
      %p183 = scmp.eq.s32.totalorder %s42, 1
      %p184 = por %p182, %p183
      %p185 = scmp.ne.s32.totalorder %s176, %s177
      %p186 = scmp.eq.s32.totalorder %s42, 0
      %p187 = por %p185, %p186
      %p188 = scmp.ne.s32.totalorder %s176, %s177
      %p189 = scmp.eq.s32.totalorder %s43, 1
      %p190 = por %p188, %p189
      %p192 = scmp.ne.s32.totalorder %s177, %s191
      %p193 = scmp.eq.s32.totalorder %s43, 0
      %p194 = por %p192, %p193
      %s196 = sadd.s32 %s195, 1
      %p199 = scmp.eq.s32.totalorder %s37, 1
      %p200 = scmp.ne.s32.totalorder %s195, %s197
      %p201 = scmp.eq.s32.totalorder %s37, 0
      %p202 = por %p200, %p201
      %p203 = scmp.ne.s32.totalorder %s195, %s197
      %p204 = scmp.eq.s32.totalorder %s42, 1
      %p205 = por %p203, %p204
      %p206 = scmp.ne.s32.totalorder %s197, %s198
      %p207 = scmp.eq.s32.totalorder %s42, 0
      %p208 = por %p206, %p207
      %p209 = scmp.ne.s32.totalorder %s197, %s198
      %p210 = scmp.eq.s32.totalorder %s43, 1
      %p211 = por %p209, %p210
      %p213 = scmp.ne.s32.totalorder %s198, %s212
      %p214 = scmp.eq.s32.totalorder %s43, 0
      %p215 = por %p213, %p214
      %s217 = sadd.s32 %s216, 1
      %p220 = scmp.eq.s32.totalorder %s37, 1
      %p221 = scmp.ne.s32.totalorder %s216, %s218
      %p222 = scmp.eq.s32.totalorder %s37, 0
      %p223 = por %p221, %p222
      %p224 = scmp.ne.s32.totalorder %s216, %s218
      %p225 = scmp.eq.s32.totalorder %s42, 1
      %p226 = por %p224, %p225
      %p227 = scmp.ne.s32.totalorder %s218, %s219
      %p228 = scmp.eq.s32.totalorder %s42, 0
      %p229 = por %p227, %p228
      %p230 = scmp.ne.s32.totalorder %s218, %s219
      %p231 = scmp.eq.s32.totalorder %s43, 1
      %p232 = por %p230, %p231
      %p234 = scmp.ne.s32.totalorder %s219, %s233
      %p235 = scmp.eq.s32.totalorder %s43, 0
      %p236 = por %p234, %p235
      %s238 = sadd.s32 %s237, 1
      %p241 = scmp.eq.s32.totalorder %s37, 1
      %p242 = scmp.ne.s32.totalorder %s237, %s239
      %p243 = scmp.eq.s32.totalorder %s37, 0
      %p244 = por %p242, %p243
      %p245 = scmp.ne.s32.totalorder %s237, %s239
      %p246 = scmp.eq.s32.totalorder %s42, 1
      %p247 = por %p245, %p246
      %p248 = scmp.ne.s32.totalorder %s239, %s240
      %p249 = scmp.eq.s32.totalorder %s42, 0
      %p250 = por %p248, %p249
      %p251 = scmp.ne.s32.totalorder %s239, %s240
      %p252 = scmp.eq.s32.totalorder %s43, 1
      %p253 = por %p251, %p252
      %p255 = scmp.ne.s32.totalorder %s240, %s254
      %p256 = scmp.eq.s32.totalorder %s43, 0
      %p257 = por %p255, %p256
      %s259 = sadd.s32 %s258, 1
      %p262 = scmp.eq.s32.totalorder %s37, 1
      %p263 = scmp.ne.s32.totalorder %s258, %s260
      %p264 = scmp.eq.s32.totalorder %s37, 0
      %p265 = por %p263, %p264
      %p266 = scmp.ne.s32.totalorder %s258, %s260
      %p267 = scmp.eq.s32.totalorder %s42, 1
      %p268 = por %p266, %p267
      %p269 = scmp.ne.s32.totalorder %s260, %s261
      %p270 = scmp.eq.s32.totalorder %s42, 0
      %p271 = por %p269, %p270
      %p272 = scmp.ne.s32.totalorder %s260, %s261
      %p273 = scmp.eq.s32.totalorder %s43, 1
      %p274 = por %p272, %p273
      %p276 = scmp.ne.s32.totalorder %s261, %s275
      %p277 = scmp.eq.s32.totalorder %s43, 0
      %p278 = por %p276, %p277
      %s280 = sadd.s32 %s279, 1
      %p283 = scmp.eq.s32.totalorder %s37, 1
      %p284 = scmp.ne.s32.totalorder %s279, %s281
      %p285 = scmp.eq.s32.totalorder %s37, 0
      %p286 = por %p284, %p285
      %p287 = scmp.ne.s32.totalorder %s279, %s281
      %p288 = scmp.eq.s32.totalorder %s42, 1
      %p289 = por %p287, %p288
      %p290 = scmp.ne.s32.totalorder %s281, %s282
      %p291 = scmp.eq.s32.totalorder %s42, 0
      %p292 = por %p290, %p291
      %p293 = scmp.ne.s32.totalorder %s281, %s282
      %p294 = scmp.eq.s32.totalorder %s43, 1
      %p295 = por %p293, %p294
      %p297 = scmp.ne.s32.totalorder %s282, %s296
      %p298 = scmp.eq.s32.totalorder %s43, 0
      %p299 = por %p297, %p298
      %s301 = sadd.s32 %s300, 1
      %p304 = scmp.eq.s32.totalorder %s37, 1
      %p305 = scmp.ne.s32.totalorder %s300, %s302
      %p306 = scmp.eq.s32.totalorder %s37, 0
      %p307 = por %p305, %p306
      %p308 = scmp.ne.s32.totalorder %s300, %s302
      %p309 = scmp.eq.s32.totalorder %s42, 1
      %p310 = por %p308, %p309
      %p311 = scmp.ne.s32.totalorder %s302, %s303
      %p312 = scmp.eq.s32.totalorder %s42, 0
      %p313 = por %p311, %p312
      %p314 = scmp.ne.s32.totalorder %s302, %s303
      %p315 = scmp.eq.s32.totalorder %s43, 1
      %p316 = por %p314, %p315
      %p318 = scmp.ne.s32.totalorder %s303, %s317
      %p319 = scmp.eq.s32.totalorder %s43, 0
      %p320 = por %p318, %p319
      %s321 = ssub.s32 %s44, %s56
      %s322 = ssub.s32 %s45, %s52
      %s323 = sor.u32 %s321, %s322
      %p324 = scmp.eq.s32.totalorder %s323, 0
      %s326 = sadd.s32 %s325, 1
      %s327 = scalar_select %p324, %s325, %s326
      %p330 = pneg %p324
      %p331 = scmp.eq.s32.totalorder %s37, 1
      %p332 = por %p330, %p331
      %p333 = scmp.ne.s32.totalorder %s325, %s328
      %p334 = scmp.eq.s32.totalorder %s37, 0
      %p335 = por %p333, %p334
      %p336 = scmp.ne.s32.totalorder %s325, %s328
      %p337 = scmp.eq.s32.totalorder %s42, 1
      %p338 = por %p336, %p337
      %p339 = scmp.ne.s32.totalorder %s328, %s329
      %p340 = scmp.eq.s32.totalorder %s42, 0
      %p341 = por %p339, %p340
      %p342 = scmp.ne.s32.totalorder %s328, %s329
      %p343 = scmp.eq.s32.totalorder %s43, 1
      %p344 = por %p342, %p343
      %p346 = scmp.ne.s32.totalorder %s329, %s345
      %p347 = scmp.eq.s32.totalorder %s43, 0
      %p348 = por %p346, %p347
      %s349 = ssub.s32 %s44, %s56
      %s350 = ssub.s32 %s45, %s52
      %s351 = sor.u32 %s349, %s350
      %p352 = scmp.eq.s32.totalorder %s351, 0
      %s354 = sadd.s32 %s353, 1
      %s355 = scalar_select %p352, %s353, %s354
      %p358 = pneg %p352
      %p359 = scmp.eq.s32.totalorder %s37, 1
      %p360 = por %p358, %p359
      %p361 = scmp.ne.s32.totalorder %s353, %s356
      %p362 = scmp.eq.s32.totalorder %s37, 0
      %p363 = por %p361, %p362
      %p364 = scmp.ne.s32.totalorder %s353, %s356
      %p365 = scmp.eq.s32.totalorder %s42, 1
      %p366 = por %p364, %p365
      %p367 = scmp.ne.s32.totalorder %s356, %s357
      %p368 = scmp.eq.s32.totalorder %s42, 0
      %p369 = por %p367, %p368
      %p370 = scmp.ne.s32.totalorder %s356, %s357
      %p371 = scmp.eq.s32.totalorder %s43, 1
      %p372 = por %p370, %p371
      %p374 = scmp.ne.s32.totalorder %s357, %s373
      %p375 = scmp.eq.s32.totalorder %s43, 0
      %p376 = por %p374, %p375
      %p377 = scmp.le.s32.totalorder 1, %s37
      %p378 = scmp.lt.s32.totalorder %s37, 3
      %p379 = pnand %p377, %p378
      %p380 = pneg %p379
      // Predicated region
      $region9: #{tpu_custom_call.1} parent=5 // pred_check
        _
      $region10: #{tpu_custom_call.1} parent=5 // pred_check_branch
        %382 = sbr.rel (%p379) target = $region12
      $region11: #{tpu_custom_call.1} parent=5 // pred_region
        %s383 = ssub.s32 %s37, 1
        // Predicated region
        $region13: #{tpu_custom_call.1} parent=11 // pred_check
          %p384 = pneg %p124
        $region14: #{tpu_custom_call.1} parent=11 // pred_check_branch
          %386 = sbr.rel (%p384) target = $region16
        $region15: #{tpu_custom_call.1} parent=11 // pred_region
          %s388 = ssub.s32 49152, 49152
          %389 = vsyncadd [#allocation7], %s388
          %s390 = sshll.u32 [#allocation8], 4
          %s391 = int_to_ptr.vmem [resolvable:$true] %s390
          %396 = dma.hbm_to_vmem [thread:$0]  %s2, 49152, %s391, [#allocation7], 768, 768, 48
        $region16: #{tpu_custom_call.1} parent=11 // pred_fallthru
          _
        // Predicated region
        $region17: #{tpu_custom_call.1} parent=11 // pred_check
          %p397 = pneg %p145
        $region18: #{tpu_custom_call.1} parent=11 // pred_check_branch
          %399 = sbr.rel (%p397) target = $region20
        $region19: #{tpu_custom_call.1} parent=11 // pred_region
          %s401 = ssub.s32 192, 192
          %402 = vsyncadd [#allocation10], %s401
          %s404 = sshll.u32 [#allocation9], 4
          %s405 = int_to_ptr.vmem [resolvable:$true] %s404
          %407 = dma.hbm_to_vmem [thread:$0]  %s3, 192, %s405, [#allocation10]
        $region20: #{tpu_custom_call.1} parent=11 // pred_fallthru
          _
        // Predicated region
        $region21: #{tpu_custom_call.1} parent=11 // pred_check
          %p408 = pneg %p166
        $region22: #{tpu_custom_call.1} parent=11 // pred_check_branch
          %410 = sbr.rel (%p408) target = $region24
        $region23: #{tpu_custom_call.1} parent=11 // pred_region
          %s412 = ssub.s32 16384, 16384
          %413 = vsyncadd [#allocation10], %s412
          %s414 = sshll.u32 [#allocation11], 4
          %s415 = int_to_ptr.vmem [resolvable:$true] %s414
          %420 = dma.hbm_to_vmem [thread:$0]  %s4, 16384, %s415, [#allocation10], 256, 256, 16
        $region24: #{tpu_custom_call.1} parent=11 // pred_fallthru
          _
        // Predicated region
        $region25: #{tpu_custom_call.1} parent=11 // pred_check
          %p421 = pneg %p187
        $region26: #{tpu_custom_call.1} parent=11 // pred_check_branch
          %423 = sbr.rel (%p421) target = $region28
        $region27: #{tpu_custom_call.1} parent=11 // pred_region
          %s425 = ssub.s32 64, 64
          %426 = vsyncadd [#allocation13], %s425
          %s428 = sshll.u32 [#allocation12], 4
          %s429 = int_to_ptr.vmem [resolvable:$true] %s428
          %431 = dma.hbm_to_vmem [thread:$0]  %s5, 64, %s429, [#allocation13]
        $region28: #{tpu_custom_call.1} parent=11 // pred_fallthru
          _
        // Predicated region
        $region29: #{tpu_custom_call.1} parent=11 // pred_check
          %p432 = pneg %p208
        $region30: #{tpu_custom_call.1} parent=11 // pred_check_branch
          %434 = sbr.rel (%p432) target = $region32
        $region31: #{tpu_custom_call.1} parent=11 // pred_region
          %s436 = ssub.s32 64, 64
          %437 = vsyncadd [#allocation13], %s436
          %s439 = sshll.u32 [#allocation14], 4
          %s440 = int_to_ptr.vmem [resolvable:$true] %s439
          %442 = dma.hbm_to_vmem [thread:$0]  %s6, 64, %s440, [#allocation13]
        $region32: #{tpu_custom_call.1} parent=11 // pred_fallthru
          _
        // Predicated region
        $region33: #{tpu_custom_call.1} parent=11 // pred_check
          %p443 = pneg %p229
        $region34: #{tpu_custom_call.1} parent=11 // pred_check_branch
          %445 = sbr.rel (%p443) target = $region36
        $region35: #{tpu_custom_call.1} parent=11 // pred_region
          %s447 = ssub.s32 64, 64
          %448 = vsyncadd [#allocation16], %s447
          %s450 = sshll.u32 [#allocation15], 4
          %s451 = int_to_ptr.vmem [resolvable:$true] %s450
          %453 = dma.hbm_to_vmem [thread:$0]  %s7, 64, %s451, [#allocation16]
        $region36: #{tpu_custom_call.1} parent=11 // pred_fallthru
          _
        // Predicated region
        $region37: #{tpu_custom_call.1} parent=11 // pred_check
          %p454 = pneg %p250
        $region38: #{tpu_custom_call.1} parent=11 // pred_check_branch
          %456 = sbr.rel (%p454) target = $region40
        $region39: #{tpu_custom_call.1} parent=11 // pred_region
          %s458 = ssub.s32 16384, 16384
          %459 = vsyncadd [#allocation16], %s458
          %s460 = sshll.u32 [#allocation17], 4
          %s461 = int_to_ptr.vmem [resolvable:$true] %s460
          %466 = dma.hbm_to_vmem [thread:$0]  %s8, 16384, %s461, [#allocation16], 256, 256, 16
        $region40: #{tpu_custom_call.1} parent=11 // pred_fallthru
          _
        // Predicated region
        $region41: #{tpu_custom_call.1} parent=11 // pred_check
          %p467 = pneg %p271
        $region42: #{tpu_custom_call.1} parent=11 // pred_check_branch
          %469 = sbr.rel (%p467) target = $region44
        $region43: #{tpu_custom_call.1} parent=11 // pred_region
          %s471 = ssub.s32 64, 64
          %472 = vsyncadd [#allocation19], %s471
          %s474 = sshll.u32 [#allocation18], 4
          %s475 = int_to_ptr.vmem [resolvable:$true] %s474
          %477 = dma.hbm_to_vmem [thread:$0]  %s9, 64, %s475, [#allocation19]
        $region44: #{tpu_custom_call.1} parent=11 // pred_fallthru
          _
        // Predicated region
        $region45: #{tpu_custom_call.1} parent=11 // pred_check
          %p478 = pneg %p292
        $region46: #{tpu_custom_call.1} parent=11 // pred_check_branch
          %480 = sbr.rel (%p478) target = $region48
        $region47: #{tpu_custom_call.1} parent=11 // pred_region
          %s482 = ssub.s32 64, 64
          %483 = vsyncadd [#allocation19], %s482
          %s485 = sshll.u32 [#allocation20], 4
          %s486 = int_to_ptr.vmem [resolvable:$true] %s485
          %488 = dma.hbm_to_vmem [thread:$0]  %s10, 64, %s486, [#allocation19]
        $region48: #{tpu_custom_call.1} parent=11 // pred_fallthru
          _
        // Predicated region
        $region49: #{tpu_custom_call.1} parent=11 // pred_check
          %p489 = pneg %p313
        $region50: #{tpu_custom_call.1} parent=11 // pred_check_branch
          %491 = sbr.rel (%p489) target = $region52
        $region51: #{tpu_custom_call.1} parent=11 // pred_region
          %s493 = ssub.s32 64, 64
          %494 = vsyncadd [#allocation22], %s493
          %s496 = sshll.u32 [#allocation21], 4
          %s497 = int_to_ptr.vmem [resolvable:$true] %s496
          %499 = dma.hbm_to_vmem [thread:$0]  %s11, 64, %s497, [#allocation22]
        $region52: #{tpu_custom_call.1} parent=11 // pred_fallthru
          _
      $region12: #{tpu_custom_call.1} parent=5 // pred_fallthru
        _
      %p500 = scmp.lt.s32.totalorder %s37, 2
      // Predicated region
      $region53: #{tpu_custom_call.1} parent=5 // pred_check
        %p501 = pneg %p500
      $region54: #{tpu_custom_call.1} parent=5 // pred_check_branch
        %503 = sbr.rel (%p501) target = $region56
      $region55: #{tpu_custom_call.1} parent=5 // pred_region
        // Predicated region
        $region57: #{tpu_custom_call.1} parent=55 // pred_check
          %p504 = pneg %p69
        $region58: #{tpu_custom_call.1} parent=55 // pred_check_branch
          %506 = sbr.rel (%p504) target = $region60
        $region59: #{tpu_custom_call.1} parent=55 // pred_region
          %s507 = sand.u32 %s59, 1
          %s508 = scalar_lea.sflag [#allocation4], %s507
          %s509 = sand.u32 %s59, 1
          %s510 = smul.addr %s509, 32
          %s511 = scalar_lea.vmem [#allocation3], %s510
          %s513 = ssub.s32 512, 512
          %514 = vsyncadd %s508, %s513
          %s515 = smul.addr %s44, 4
          %s516 = smul.addr %s515, 128
          %s517 = scalar_lea.hbm %s0, %s516
          %s519 = sshll.u32 %s511, 4
          %s520 = int_to_ptr.vmem [resolvable:$true] %s519
          %522 = dma.hbm_to_vmem [thread:$0]  %s517, 512, %s520, %s508
        $region60: #{tpu_custom_call.1} parent=55 // pred_fallthru
          _
        // Predicated region
        $region61: #{tpu_custom_call.1} parent=55 // pred_check
          %p523 = pneg %p97
        $region62: #{tpu_custom_call.1} parent=55 // pred_check_branch
          %525 = sbr.rel (%p523) target = $region64
        $region63: #{tpu_custom_call.1} parent=55 // pred_region
          %s526 = sand.u32 %s37, 1
          %s527 = scalar_lea.sflag [#allocation7], %s526
          %s528 = sand.u32 %s87, 1
          %s529 = smul.addr %s528, 32
          %s530 = scalar_lea.vmem [#allocation6], %s529
          %s532 = ssub.s32 512, 512
          %533 = vsyncadd %s527, %s532
          %s534 = smul.addr %s45, 4
          %s535 = smul.addr %s44, 4
          %s536 = sadd.s32 %s534, %s535
          %s537 = smul.addr %s536, 128
          %s538 = scalar_lea.hbm %s1, %s537
          %s540 = sshll.u32 %s530, 4
          %s541 = int_to_ptr.vmem [resolvable:$true] %s540
          %543 = dma.hbm_to_vmem [thread:$0]  %s538, 512, %s541, %s527
        $region64: #{tpu_custom_call.1} parent=55 // pred_fallthru
          _
      $region56: #{tpu_custom_call.1} parent=5 // pred_fallthru
        _
      %p544 = scmp.le.s32.totalorder 1, %s37
      %p545 = scmp.lt.s32.totalorder %s37, 3
      %p546 = pnand %p544, %p545
      %p547 = pneg %p546
      // Predicated region
      $region65: #{tpu_custom_call.1} parent=5 // pred_check
        _
      $region66: #{tpu_custom_call.1} parent=5 // pred_check_branch
        %549 = sbr.rel (%p546) target = $region68
      $region67: #{tpu_custom_call.1} parent=5 // pred_region
        %s550 = ssub.s32 %s37, 1
        %s551 = sand.u32 %s62, 1
        %s552 = scalar_lea.sflag [#allocation4], %s551
        %s553 = sand.u32 %s62, 1
        %s554 = smul.addr %s553, 32
        %s555 = scalar_lea.vmem [#allocation3], %s554
        // Predicated region
        $region69: #{tpu_custom_call.1} parent=67 // pred_check
          %p556 = pneg %p75
        $region70: #{tpu_custom_call.1} parent=67 // pred_check_branch
          %558 = sbr.rel (%p556) target = $region72
        $region71: #{tpu_custom_call.1} parent=67 // pred_region
          %559 = dma.done %s552, 512
        $region72: #{tpu_custom_call.1} parent=67 // pred_fallthru
          _
        %s560 = sand.u32 %s42, 1
        %s561 = scalar_lea.sflag [#allocation7], %s560
        %s562 = sand.u32 %s90, 1
        %s563 = smul.addr %s562, 32
        %s564 = scalar_lea.vmem [#allocation6], %s563
        // Predicated region
        $region73: #{tpu_custom_call.1} parent=67 // pred_check
          %p565 = pneg %p103
        $region74: #{tpu_custom_call.1} parent=67 // pred_check_branch
          %567 = sbr.rel (%p565) target = $region76
        $region75: #{tpu_custom_call.1} parent=67 // pred_region
          %568 = dma.done %s561, 512
        $region76: #{tpu_custom_call.1} parent=67 // pred_fallthru
          _
        // Predicated region
        $region77: #{tpu_custom_call.1} parent=67 // pred_check
          %p569 = pneg %p124
        $region78: #{tpu_custom_call.1} parent=67 // pred_check_branch
          %571 = sbr.rel (%p569) target = $region80
        $region79: #{tpu_custom_call.1} parent=67 // pred_region
          %572 = dma.done [#allocation7], 49152
        $region80: #{tpu_custom_call.1} parent=67 // pred_fallthru
          _
        // Predicated region
        $region81: #{tpu_custom_call.1} parent=67 // pred_check
          %p573 = pneg %p145
        $region82: #{tpu_custom_call.1} parent=67 // pred_check_branch
          %575 = sbr.rel (%p573) target = $region84
        $region83: #{tpu_custom_call.1} parent=67 // pred_region
          %576 = dma.done [#allocation10], 192
        $region84: #{tpu_custom_call.1} parent=67 // pred_fallthru
          _
        // Predicated region
        $region85: #{tpu_custom_call.1} parent=67 // pred_check
          %p577 = pneg %p166
        $region86: #{tpu_custom_call.1} parent=67 // pred_check_branch
          %579 = sbr.rel (%p577) target = $region88
        $region87: #{tpu_custom_call.1} parent=67 // pred_region
          %580 = dma.done [#allocation10], 16384
        $region88: #{tpu_custom_call.1} parent=67 // pred_fallthru
          _
        // Predicated region
        $region89: #{tpu_custom_call.1} parent=67 // pred_check
          %p581 = pneg %p187
        $region90: #{tpu_custom_call.1} parent=67 // pred_check_branch
          %583 = sbr.rel (%p581) target = $region92
        $region91: #{tpu_custom_call.1} parent=67 // pred_region
          %584 = dma.done [#allocation13], 64
        $region92: #{tpu_custom_call.1} parent=67 // pred_fallthru
          _
        // Predicated region
        $region93: #{tpu_custom_call.1} parent=67 // pred_check
          %p585 = pneg %p208
        $region94: #{tpu_custom_call.1} parent=67 // pred_check_branch
          %587 = sbr.rel (%p585) target = $region96
        $region95: #{tpu_custom_call.1} parent=67 // pred_region
          %588 = dma.done [#allocation13], 64
        $region96: #{tpu_custom_call.1} parent=67 // pred_fallthru
          _
        // Predicated region
        $region97: #{tpu_custom_call.1} parent=67 // pred_check
          %p589 = pneg %p229
        $region98: #{tpu_custom_call.1} parent=67 // pred_check_branch
          %591 = sbr.rel (%p589) target = $region100
        $region99: #{tpu_custom_call.1} parent=67 // pred_region
          %592 = dma.done [#allocation16], 64
        $region100: #{tpu_custom_call.1} parent=67 // pred_fallthru
          _
        // Predicated region
        $region101: #{tpu_custom_call.1} parent=67 // pred_check
          %p593 = pneg %p250
        $region102: #{tpu_custom_call.1} parent=67 // pred_check_branch
          %595 = sbr.rel (%p593) target = $region104
        $region103: #{tpu_custom_call.1} parent=67 // pred_region
          %596 = dma.done [#allocation16], 16384
        $region104: #{tpu_custom_call.1} parent=67 // pred_fallthru
          _
        // Predicated region
        $region105: #{tpu_custom_call.1} parent=67 // pred_check
          %p597 = pneg %p271
        $region106: #{tpu_custom_call.1} parent=67 // pred_check_branch
          %599 = sbr.rel (%p597) target = $region108
        $region107: #{tpu_custom_call.1} parent=67 // pred_region
          %600 = dma.done [#allocation19], 64
        $region108: #{tpu_custom_call.1} parent=67 // pred_fallthru
          _
        // Predicated region
        $region109: #{tpu_custom_call.1} parent=67 // pred_check
          %p601 = pneg %p292
        $region110: #{tpu_custom_call.1} parent=67 // pred_check_branch
          %603 = sbr.rel (%p601) target = $region112
        $region111: #{tpu_custom_call.1} parent=67 // pred_region
          %604 = dma.done [#allocation19], 64
        $region112: #{tpu_custom_call.1} parent=67 // pred_fallthru
          _
        // Predicated region
        $region113: #{tpu_custom_call.1} parent=67 // pred_check
          %p605 = pneg %p313
        $region114: #{tpu_custom_call.1} parent=67 // pred_check_branch
          %607 = sbr.rel (%p605) target = $region116
        $region115: #{tpu_custom_call.1} parent=67 // pred_region
          %608 = dma.done [#allocation22], 64
        $region116: #{tpu_custom_call.1} parent=67 // pred_fallthru
          _
        %s609 = sand.u32 %s62, 1
        %s610 = scalar_lea.sflag [#allocation4], %s609
        %s611 = sand.u32 %s62, 1
        %s612 = smul.addr %s611, 32
        %s613 = scalar_lea.vmem [#allocation3], %s612
        %p614 = pneg %p75
        %p615 = pneg %p72
        %s616 = sand.u32 %s42, 1
        %s617 = scalar_lea.sflag [#allocation7], %s616
        %s618 = sand.u32 %s90, 1
        %s619 = smul.addr %s618, 32
        %s620 = scalar_lea.vmem [#allocation6], %s619
        %p621 = pneg %p103
        %p622 = pneg %p100
        %p623 = pneg %p124
        %p624 = pneg %p121
        %p625 = pneg %p145
        %p626 = pneg %p142
        %p627 = pneg %p166
        %p628 = pneg %p163
        %p629 = pneg %p187
        %p630 = pneg %p184
        %p631 = pneg %p208
        %p632 = pneg %p205
        %p633 = pneg %p229
        %p634 = pneg %p226
        %p635 = pneg %p250
        %p636 = pneg %p247
        %p637 = pneg %p271
        %p638 = pneg %p268
        %p639 = pneg %p292
        %p640 = pneg %p289
        %p641 = pneg %p313
        %p642 = pneg %p310
        %p643 = pneg %p341
        %p644 = pneg %p338
        %s645 = sand.u32 %s328, 1
        %s646 = scalar_lea.sflag [#allocation5], %s645
        %s647 = sand.u32 %s328, 1
        %s648 = smul.addr %s647, 32
        %s649 = scalar_lea.vmem [#allocation23], %s648
        %p650 = pneg %p369
        %p651 = pneg %p366
        %s652 = sand.u32 %s356, 1
        %s653 = scalar_lea.sflag [#allocation25], %s652
        %s654 = sand.u32 %s356, 1
        %s655 = smul.addr %s654, 32
        %s656 = scalar_lea.vmem [#allocation24], %s655
        %p658 = scmp.eq.s32.totalorder %s47, 0
        // Predicated region
        $region117: #{tpu_custom_call.1} parent=67 // pred_check
          %p659 = pneg %p658
        $region118: #{tpu_custom_call.1} parent=67 // pred_check_branch
          %661 = sbr.rel (%p659) target = $region120
        $region119: #{tpu_custom_call.1} parent=67 // pred_region
          %v662 = vld [vmem:[%s555] sm:$0xff]
          %v663 = vld [vmem:[%s555 + $0x8] sm:$0xff]
          %v664 = vld [vmem:[%s555 + $0x10] sm:$0xff]
          %v665 = vld [vmem:[%s555 + $0x18] sm:$0xff]
          %v666 = vpack.c.bf16 %v662, %v662
          %v667 = vpack.c.bf16 %v663, %v663
          %v668 = vpack.c.bf16 %v664, %v664
          %v669 = vpack.c.bf16 %v665, %v665
          %v670 = vld [vmem:[#allocation8 + $0x10] sm:$0xff]
          %v671 = vld [vmem:[#allocation8 + $0x18] sm:$0xff]
          %v672 = vld [vmem:[#allocation8 + $0x20] sm:$0xff]
          %v673 = vld [vmem:[#allocation8 + $0x28] sm:$0xff]
          %v674 = vld [vmem:[#allocation8 + $0x40] sm:$0xff]
          %v675 = vld [vmem:[#allocation8 + $0x48] sm:$0xff]
          %v676 = vld [vmem:[#allocation8 + $0x50] sm:$0xff]
          %v677 = vld [vmem:[#allocation8 + $0x58] sm:$0xff]
          %v678 = vld [vmem:[#allocation8 + $0x70] sm:$0xff]
          %v679 = vld [vmem:[#allocation8 + $0x78] sm:$0xff]
          %v680 = vld [vmem:[#allocation8 + $0x80] sm:$0xff]
          %v681 = vld [vmem:[#allocation8 + $0x88] sm:$0xff]
          %v682 = vld [vmem:[#allocation8 + $0xa0] sm:$0xff]
          %v683 = vld [vmem:[#allocation8 + $0xa8] sm:$0xff]
          %v684 = vld [vmem:[#allocation8 + $0xb0] sm:$0xff]
          %v685 = vld [vmem:[#allocation8 + $0xb8] sm:$0xff]
          %v686 = vld [vmem:[#allocation8 + $0xd0] sm:$0xff]
          %v687 = vld [vmem:[#allocation8 + $0xd8] sm:$0xff]
          %v688 = vld [vmem:[#allocation8 + $0xe0] sm:$0xff]
          %v689 = vld [vmem:[#allocation8 + $0xe8] sm:$0xff]
          %v690 = vld [vmem:[#allocation8 + $0x100] sm:$0xff]
          %v691 = vld [vmem:[#allocation8 + $0x108] sm:$0xff]
          %v692 = vld [vmem:[#allocation8 + $0x110] sm:$0xff]
          %v693 = vld [vmem:[#allocation8 + $0x118] sm:$0xff]
          %v694 = vld [vmem:[#allocation8 + $0x130] sm:$0xff]
          %v695 = vld [vmem:[#allocation8 + $0x138] sm:$0xff]
          %v696 = vld [vmem:[#allocation8 + $0x140] sm:$0xff]
          %v697 = vld [vmem:[#allocation8 + $0x148] sm:$0xff]
          %v698 = vld [vmem:[#allocation8 + $0x160] sm:$0xff]
          %v699 = vld [vmem:[#allocation8 + $0x168] sm:$0xff]
          %v700 = vld [vmem:[#allocation8 + $0x170] sm:$0xff]
          %v701 = vld [vmem:[#allocation8 + $0x178] sm:$0xff]
          %v702 = vld [vmem:[#allocation8 + $0x190] sm:$0xff]
          %v703 = vld [vmem:[#allocation8 + $0x198] sm:$0xff]
          %v704 = vld [vmem:[#allocation8 + $0x1a0] sm:$0xff]
          %v705 = vld [vmem:[#allocation8 + $0x1a8] sm:$0xff]
          %v706 = vld [vmem:[#allocation8 + $0x1c0] sm:$0xff]
          %v707 = vld [vmem:[#allocation8 + $0x1c8] sm:$0xff]
          %v708 = vld [vmem:[#allocation8 + $0x1d0] sm:$0xff]
          %v709 = vld [vmem:[#allocation8 + $0x1d8] sm:$0xff]
          %v710 = vld [vmem:[#allocation8 + $0x1f0] sm:$0xff]
          %v711 = vld [vmem:[#allocation8 + $0x1f8] sm:$0xff]
          %v712 = vld [vmem:[#allocation8 + $0x200] sm:$0xff]
          %v713 = vld [vmem:[#allocation8 + $0x208] sm:$0xff]
          %v714 = vld [vmem:[#allocation8 + $0x220] sm:$0xff]
          %v715 = vld [vmem:[#allocation8 + $0x228] sm:$0xff]
          %v716 = vld [vmem:[#allocation8 + $0x230] sm:$0xff]
          %v717 = vld [vmem:[#allocation8 + $0x238] sm:$0xff]
          %v718 = vld [vmem:[#allocation8 + $0x250] sm:$0xff]
          %v719 = vld [vmem:[#allocation8 + $0x258] sm:$0xff]
          %v720 = vld [vmem:[#allocation8 + $0x260] sm:$0xff]
          %v721 = vld [vmem:[#allocation8 + $0x268] sm:$0xff]
          %v722 = vld [vmem:[#allocation8 + $0x280] sm:$0xff]
          %v723 = vld [vmem:[#allocation8 + $0x288] sm:$0xff]
          %v724 = vld [vmem:[#allocation8 + $0x290] sm:$0xff]
          %v725 = vld [vmem:[#allocation8 + $0x298] sm:$0xff]
          %v726 = vld [vmem:[#allocation8 + $0x2b0] sm:$0xff]
          %v727 = vld [vmem:[#allocation8 + $0x2b8] sm:$0xff]
          %v728 = vld [vmem:[#allocation8 + $0x2c0] sm:$0xff]
          %v729 = vld [vmem:[#allocation8 + $0x2c8] sm:$0xff]
          %v730 = vld [vmem:[#allocation8 + $0x2e0] sm:$0xff]
          %v731 = vld [vmem:[#allocation8 + $0x2e8] sm:$0xff]
          %v732 = vld [vmem:[#allocation8 + $0x2f0] sm:$0xff]
          %v733 = vld [vmem:[#allocation8 + $0x2f8] sm:$0xff]
          %v734 = vld [vmem:[#allocation8 + $0x310] sm:$0xff]
          %v735 = vld [vmem:[#allocation8 + $0x318] sm:$0xff]
          %v736 = vld [vmem:[#allocation8 + $0x320] sm:$0xff]
          %v737 = vld [vmem:[#allocation8 + $0x328] sm:$0xff]
          %v738 = vld [vmem:[#allocation8 + $0x340] sm:$0xff]
          %v739 = vld [vmem:[#allocation8 + $0x348] sm:$0xff]
          %v740 = vld [vmem:[#allocation8 + $0x350] sm:$0xff]
          %v741 = vld [vmem:[#allocation8 + $0x358] sm:$0xff]
          %v742 = vld [vmem:[#allocation8 + $0x370] sm:$0xff]
          %v743 = vld [vmem:[#allocation8 + $0x378] sm:$0xff]
          %v744 = vld [vmem:[#allocation8 + $0x380] sm:$0xff]
          %v745 = vld [vmem:[#allocation8 + $0x388] sm:$0xff]
          %v746 = vld [vmem:[#allocation8 + $0x3a0] sm:$0xff]
          %v747 = vld [vmem:[#allocation8 + $0x3a8] sm:$0xff]
          %v748 = vld [vmem:[#allocation8 + $0x3b0] sm:$0xff]
          %v749 = vld [vmem:[#allocation8 + $0x3b8] sm:$0xff]
          %v750 = vld [vmem:[#allocation8 + $0x3d0] sm:$0xff]
          %v751 = vld [vmem:[#allocation8 + $0x3d8] sm:$0xff]
          %v752 = vld [vmem:[#allocation8 + $0x3e0] sm:$0xff]
          %v753 = vld [vmem:[#allocation8 + $0x3e8] sm:$0xff]
          %v754 = vld [vmem:[#allocation8 + $0x400] sm:$0xff]
          %v755 = vld [vmem:[#allocation8 + $0x408] sm:$0xff]
          %v756 = vld [vmem:[#allocation8 + $0x410] sm:$0xff]
          %v757 = vld [vmem:[#allocation8 + $0x418] sm:$0xff]
          %v758 = vld [vmem:[#allocation8 + $0x430] sm:$0xff]
          %v759 = vld [vmem:[#allocation8 + $0x438] sm:$0xff]
          %v760 = vld [vmem:[#allocation8 + $0x440] sm:$0xff]
          %v761 = vld [vmem:[#allocation8 + $0x448] sm:$0xff]
          %v762 = vld [vmem:[#allocation8 + $0x460] sm:$0xff]
          %v763 = vld [vmem:[#allocation8 + $0x468] sm:$0xff]
          %v764 = vld [vmem:[#allocation8 + $0x470] sm:$0xff]
          %v765 = vld [vmem:[#allocation8 + $0x478] sm:$0xff]
          %v766 = vld [vmem:[#allocation8 + $0x490] sm:$0xff]
          %v767 = vld [vmem:[#allocation8 + $0x498] sm:$0xff]
          %v768 = vld [vmem:[#allocation8 + $0x4a0] sm:$0xff]
          %v769 = vld [vmem:[#allocation8 + $0x4a8] sm:$0xff]
          %v770 = vld [vmem:[#allocation8 + $0x4c0] sm:$0xff]
          %v771 = vld [vmem:[#allocation8 + $0x4c8] sm:$0xff]
          %v772 = vld [vmem:[#allocation8 + $0x4d0] sm:$0xff]
          %v773 = vld [vmem:[#allocation8 + $0x4d8] sm:$0xff]
          %v774 = vld [vmem:[#allocation8 + $0x4f0] sm:$0xff]
          %v775 = vld [vmem:[#allocation8 + $0x4f8] sm:$0xff]
          %v776 = vld [vmem:[#allocation8 + $0x500] sm:$0xff]
          %v777 = vld [vmem:[#allocation8 + $0x508] sm:$0xff]
          %v778 = vld [vmem:[#allocation8 + $0x520] sm:$0xff]
          %v779 = vld [vmem:[#allocation8 + $0x528] sm:$0xff]
          %v780 = vld [vmem:[#allocation8 + $0x530] sm:$0xff]
          %v781 = vld [vmem:[#allocation8 + $0x538] sm:$0xff]
          %v782 = vld [vmem:[#allocation8 + $0x550] sm:$0xff]
          %v783 = vld [vmem:[#allocation8 + $0x558] sm:$0xff]
          %v784 = vld [vmem:[#allocation8 + $0x560] sm:$0xff]
          %v785 = vld [vmem:[#allocation8 + $0x568] sm:$0xff]
          %v786 = vld [vmem:[#allocation8 + $0x580] sm:$0xff]
          %v787 = vld [vmem:[#allocation8 + $0x588] sm:$0xff]
          %v788 = vld [vmem:[#allocation8 + $0x590] sm:$0xff]
          %v789 = vld [vmem:[#allocation8 + $0x598] sm:$0xff]
          %v790 = vld [vmem:[#allocation8 + $0x5b0] sm:$0xff]
          %v791 = vld [vmem:[#allocation8 + $0x5b8] sm:$0xff]
          %v792 = vld [vmem:[#allocation8 + $0x5c0] sm:$0xff]
          %v793 = vld [vmem:[#allocation8 + $0x5c8] sm:$0xff]
          %v794 = vld [vmem:[#allocation8 + $0x5e0] sm:$0xff]
          %v795 = vld [vmem:[#allocation8 + $0x5e8] sm:$0xff]
          %v796 = vld [vmem:[#allocation8 + $0x5f0] sm:$0xff]
          %v797 = vld [vmem:[#allocation8 + $0x5f8] sm:$0xff]
          %v798 = vld [vmem:[#allocation8 + $0x610] sm:$0xff]
          %v799 = vld [vmem:[#allocation8 + $0x618] sm:$0xff]
          %v800 = vld [vmem:[#allocation8 + $0x620] sm:$0xff]
          %v801 = vld [vmem:[#allocation8 + $0x628] sm:$0xff]
          %v802 = vld [vmem:[#allocation8 + $0x640] sm:$0xff]
          %v803 = vld [vmem:[#allocation8 + $0x648] sm:$0xff]
          %v804 = vld [vmem:[#allocation8 + $0x650] sm:$0xff]
          %v805 = vld [vmem:[#allocation8 + $0x658] sm:$0xff]
          %v806 = vld [vmem:[#allocation8 + $0x670] sm:$0xff]
          %v807 = vld [vmem:[#allocation8 + $0x678] sm:$0xff]
          %v808 = vld [vmem:[#allocation8 + $0x680] sm:$0xff]
          %v809 = vld [vmem:[#allocation8 + $0x688] sm:$0xff]
          %v810 = vld [vmem:[#allocation8 + $0x6a0] sm:$0xff]
          %v811 = vld [vmem:[#allocation8 + $0x6a8] sm:$0xff]
          %v812 = vld [vmem:[#allocation8 + $0x6b0] sm:$0xff]
          %v813 = vld [vmem:[#allocation8 + $0x6b8] sm:$0xff]
          %v814 = vld [vmem:[#allocation8 + $0x6d0] sm:$0xff]
          %v815 = vld [vmem:[#allocation8 + $0x6d8] sm:$0xff]
          %v816 = vld [vmem:[#allocation8 + $0x6e0] sm:$0xff]
          %v817 = vld [vmem:[#allocation8 + $0x6e8] sm:$0xff]
          %v818 = vld [vmem:[#allocation8 + $0x700] sm:$0xff]
          %v819 = vld [vmem:[#allocation8 + $0x708] sm:$0xff]
          %v820 = vld [vmem:[#allocation8 + $0x710] sm:$0xff]
          %v821 = vld [vmem:[#allocation8 + $0x718] sm:$0xff]
          %v822 = vld [vmem:[#allocation8 + $0x730] sm:$0xff]
          %v823 = vld [vmem:[#allocation8 + $0x738] sm:$0xff]
          %v824 = vld [vmem:[#allocation8 + $0x740] sm:$0xff]
          %v825 = vld [vmem:[#allocation8 + $0x748] sm:$0xff]
          %v826 = vld [vmem:[#allocation8 + $0x760] sm:$0xff]
          %v827 = vld [vmem:[#allocation8 + $0x768] sm:$0xff]
          %v828 = vld [vmem:[#allocation8 + $0x770] sm:$0xff]
          %v829 = vld [vmem:[#allocation8 + $0x778] sm:$0xff]
          %v830 = vld [vmem:[#allocation8 + $0x790] sm:$0xff]
          %v831 = vld [vmem:[#allocation8 + $0x798] sm:$0xff]
          %v832 = vld [vmem:[#allocation8 + $0x7a0] sm:$0xff]
          %v833 = vld [vmem:[#allocation8 + $0x7a8] sm:$0xff]
          %v834 = vld [vmem:[#allocation8 + $0x7c0] sm:$0xff]
          %v835 = vld [vmem:[#allocation8 + $0x7c8] sm:$0xff]
          %v836 = vld [vmem:[#allocation8 + $0x7d0] sm:$0xff]
          %v837 = vld [vmem:[#allocation8 + $0x7d8] sm:$0xff]
          %v838 = vld [vmem:[#allocation8 + $0x7f0] sm:$0xff]
          %v839 = vld [vmem:[#allocation8 + $0x7f8] sm:$0xff]
          %v840 = vld [vmem:[#allocation8 + $0x800] sm:$0xff]
          %v841 = vld [vmem:[#allocation8 + $0x808] sm:$0xff]
          %v842 = vld [vmem:[#allocation8 + $0x820] sm:$0xff]
          %v843 = vld [vmem:[#allocation8 + $0x828] sm:$0xff]
          %v844 = vld [vmem:[#allocation8 + $0x830] sm:$0xff]
          %v845 = vld [vmem:[#allocation8 + $0x838] sm:$0xff]
          %v846 = vld [vmem:[#allocation8 + $0x850] sm:$0xff]
          %v847 = vld [vmem:[#allocation8 + $0x858] sm:$0xff]
          %v848 = vld [vmem:[#allocation8 + $0x860] sm:$0xff]
          %v849 = vld [vmem:[#allocation8 + $0x868] sm:$0xff]
          %v850 = vld [vmem:[#allocation8 + $0x880] sm:$0xff]
          %v851 = vld [vmem:[#allocation8 + $0x888] sm:$0xff]
          %v852 = vld [vmem:[#allocation8 + $0x890] sm:$0xff]
          %v853 = vld [vmem:[#allocation8 + $0x898] sm:$0xff]
          %v854 = vld [vmem:[#allocation8 + $0x8b0] sm:$0xff]
          %v855 = vld [vmem:[#allocation8 + $0x8b8] sm:$0xff]
          %v856 = vld [vmem:[#allocation8 + $0x8c0] sm:$0xff]
          %v857 = vld [vmem:[#allocation8 + $0x8c8] sm:$0xff]
          %v858 = vld [vmem:[#allocation8 + $0x8e0] sm:$0xff]
          %v859 = vld [vmem:[#allocation8 + $0x8e8] sm:$0xff]
          %v860 = vld [vmem:[#allocation8 + $0x8f0] sm:$0xff]
          %v861 = vld [vmem:[#allocation8 + $0x8f8] sm:$0xff]
          %v862 = vld [vmem:[#allocation8 + $0x910] sm:$0xff]
          %v863 = vld [vmem:[#allocation8 + $0x918] sm:$0xff]
          %v864 = vld [vmem:[#allocation8 + $0x920] sm:$0xff]
          %v865 = vld [vmem:[#allocation8 + $0x928] sm:$0xff]
          %v866 = vld [vmem:[#allocation8 + $0x940] sm:$0xff]
          %v867 = vld [vmem:[#allocation8 + $0x948] sm:$0xff]
          %v868 = vld [vmem:[#allocation8 + $0x950] sm:$0xff]
          %v869 = vld [vmem:[#allocation8 + $0x958] sm:$0xff]
          %v870 = vld [vmem:[#allocation8 + $0x970] sm:$0xff]
          %v871 = vld [vmem:[#allocation8 + $0x978] sm:$0xff]
          %v872 = vld [vmem:[#allocation8 + $0x980] sm:$0xff]
          %v873 = vld [vmem:[#allocation8 + $0x988] sm:$0xff]
          %v874 = vld [vmem:[#allocation8 + $0x9a0] sm:$0xff]
          %v875 = vld [vmem:[#allocation8 + $0x9a8] sm:$0xff]
          %v876 = vld [vmem:[#allocation8 + $0x9b0] sm:$0xff]
          %v877 = vld [vmem:[#allocation8 + $0x9b8] sm:$0xff]
          %v878 = vld [vmem:[#allocation8 + $0x9d0] sm:$0xff]
          %v879 = vld [vmem:[#allocation8 + $0x9d8] sm:$0xff]
          %v880 = vld [vmem:[#allocation8 + $0x9e0] sm:$0xff]
          %v881 = vld [vmem:[#allocation8 + $0x9e8] sm:$0xff]
          %v882 = vld [vmem:[#allocation8 + $0xa00] sm:$0xff]
          %v883 = vld [vmem:[#allocation8 + $0xa08] sm:$0xff]
          %v884 = vld [vmem:[#allocation8 + $0xa10] sm:$0xff]
          %v885 = vld [vmem:[#allocation8 + $0xa18] sm:$0xff]
          %v886 = vld [vmem:[#allocation8 + $0xa30] sm:$0xff]
          %v887 = vld [vmem:[#allocation8 + $0xa38] sm:$0xff]
          %v888 = vld [vmem:[#allocation8 + $0xa40] sm:$0xff]
          %v889 = vld [vmem:[#allocation8 + $0xa48] sm:$0xff]
          %v890 = vld [vmem:[#allocation8 + $0xa60] sm:$0xff]
          %v891 = vld [vmem:[#allocation8 + $0xa68] sm:$0xff]
          %v892 = vld [vmem:[#allocation8 + $0xa70] sm:$0xff]
          %v893 = vld [vmem:[#allocation8 + $0xa78] sm:$0xff]
          %v894 = vld [vmem:[#allocation8 + $0xa90] sm:$0xff]
          %v895 = vld [vmem:[#allocation8 + $0xa98] sm:$0xff]
          %v896 = vld [vmem:[#allocation8 + $0xaa0] sm:$0xff]
          %v897 = vld [vmem:[#allocation8 + $0xaa8] sm:$0xff]
          %v898 = vld [vmem:[#allocation8 + $0xac0] sm:$0xff]
          %v899 = vld [vmem:[#allocation8 + $0xac8] sm:$0xff]
          %v900 = vld [vmem:[#allocation8 + $0xad0] sm:$0xff]
          %v901 = vld [vmem:[#allocation8 + $0xad8] sm:$0xff]
          %v902 = vld [vmem:[#allocation8 + $0xaf0] sm:$0xff]
          %v903 = vld [vmem:[#allocation8 + $0xaf8] sm:$0xff]
          %v904 = vld [vmem:[#allocation8 + $0xb00] sm:$0xff]
          %v905 = vld [vmem:[#allocation8 + $0xb08] sm:$0xff]
          %v906 = vld [vmem:[#allocation8 + $0xb20] sm:$0xff]
          %v907 = vld [vmem:[#allocation8 + $0xb28] sm:$0xff]
          %v908 = vld [vmem:[#allocation8 + $0xb30] sm:$0xff]
          %v909 = vld [vmem:[#allocation8 + $0xb38] sm:$0xff]
          %v910 = vld [vmem:[#allocation8 + $0xb50] sm:$0xff]
          %v911 = vld [vmem:[#allocation8 + $0xb58] sm:$0xff]
          %v912 = vld [vmem:[#allocation8 + $0xb60] sm:$0xff]
          %v913 = vld [vmem:[#allocation8 + $0xb68] sm:$0xff]
          %v914 = vld [vmem:[#allocation8 + $0xb80] sm:$0xff]
          %v915 = vld [vmem:[#allocation8 + $0xb88] sm:$0xff]
          %v916 = vld [vmem:[#allocation8 + $0xb90] sm:$0xff]
          %v917 = vld [vmem:[#allocation8 + $0xb98] sm:$0xff]
          %v918 = vld [vmem:[#allocation8 + $0xbb0] sm:$0xff]
          %v919 = vld [vmem:[#allocation8 + $0xbb8] sm:$0xff]
          %v920 = vld [vmem:[#allocation8 + $0xbc0] sm:$0xff]
          %v921 = vld [vmem:[#allocation8 + $0xbc8] sm:$0xff]
          %v922 = vld [vmem:[#allocation8 + $0xbe0] sm:$0xff]
          %v923 = vld [vmem:[#allocation8 + $0xbe8] sm:$0xff]
          %v924 = vld [vmem:[#allocation8 + $0xbf0] sm:$0xff]
          %v925 = vld [vmem:[#allocation8 + $0xbf8] sm:$0xff]
          %v926 = vld [vmem:[#allocation9 + $0x4] sm:$0xff]
          %v928 = vlaneseq
          %v929 = vshrl.u32 %v928, 7
          %v930 = vsub.s32 0, %v929
          %v931 = vrot.slane %v926, %v930
          %v932 = vlaneseq
          %v933 = vshrl.u32 %v932, 7
          %v934 = vsub.s32 1, %v933
          %v935 = vrot.slane %v926, %v934
          %v936 = vlaneseq
          %v937 = vshrl.u32 %v936, 7
          %v938 = vsub.s32 2, %v937
          %v939 = vrot.slane %v926, %v938
          %v940 = vlaneseq
          %v941 = vshrl.u32 %v940, 7
          %v942 = vsub.s32 3, %v941
          %v943 = vrot.slane %v926, %v942
          %v944 = vlaneseq
          %v945 = vshrl.u32 %v944, 7
          %v946 = vsub.s32 4, %v945
          %v947 = vrot.slane %v926, %v946
          %v948 = vlaneseq
          %v949 = vshrl.u32 %v948, 7
          %v950 = vsub.s32 5, %v949
          %v951 = vrot.slane %v926, %v950
          %v952 = vlaneseq
          %v953 = vshrl.u32 %v952, 7
          %v954 = vsub.s32 6, %v953
          %v955 = vrot.slane %v926, %v954
          %v956 = vlaneseq
          %v957 = vshrl.u32 %v956, 7
          %v958 = vsub.s32 7, %v957
          %v959 = vrot.slane %v926, %v958
          %v1224 = vunpack.c.l.b16 %v670
          %v1225 = vunpack.c.h.b16 %v670
          %v1226 = vunpack.c.l.b16 %v671
          %v1227 = vunpack.c.h.b16 %v671
          %v1228 = vunpack.c.l.b16 %v672
          %v1229 = vunpack.c.h.b16 %v672
          %v1230 = vunpack.c.l.b16 %v673
          %v1231 = vunpack.c.h.b16 %v673
          %v1232 = vunpack.c.l.b16 %v674
          %v1233 = vunpack.c.h.b16 %v674
          %v1234 = vunpack.c.l.b16 %v675
          %v1235 = vunpack.c.h.b16 %v675
          %v1236 = vunpack.c.l.b16 %v676
          %v1237 = vunpack.c.h.b16 %v676
          %v1238 = vunpack.c.l.b16 %v677
          %v1239 = vunpack.c.h.b16 %v677
          %v1240 = vunpack.c.l.b16 %v678
          %v1241 = vunpack.c.h.b16 %v678
          %v1242 = vunpack.c.l.b16 %v679
          %v1243 = vunpack.c.h.b16 %v679
          %v1244 = vunpack.c.l.b16 %v680
          %v1245 = vunpack.c.h.b16 %v680
          %v1246 = vunpack.c.l.b16 %v681
          %v1247 = vunpack.c.h.b16 %v681
          %v1248 = vunpack.c.l.b16 %v682
          %v1249 = vunpack.c.h.b16 %v682
          %v1250 = vunpack.c.l.b16 %v683
          %v1251 = vunpack.c.h.b16 %v683
          %v1252 = vunpack.c.l.b16 %v684
          %v1253 = vunpack.c.h.b16 %v684
          %v1254 = vunpack.c.l.b16 %v685
          %v1255 = vunpack.c.h.b16 %v685
          %v1256 = vunpack.c.l.b16 %v686
          %v1257 = vunpack.c.h.b16 %v686
          %v1258 = vunpack.c.l.b16 %v687
          %v1259 = vunpack.c.h.b16 %v687
          %v1260 = vunpack.c.l.b16 %v688
          %v1261 = vunpack.c.h.b16 %v688
          %v1262 = vunpack.c.l.b16 %v689
          %v1263 = vunpack.c.h.b16 %v689
          %v1264 = vunpack.c.l.b16 %v690
          %v1265 = vunpack.c.h.b16 %v690
          %v1266 = vunpack.c.l.b16 %v691
          %v1267 = vunpack.c.h.b16 %v691
          %v1268 = vunpack.c.l.b16 %v692
          %v1269 = vunpack.c.h.b16 %v692
          %v1270 = vunpack.c.l.b16 %v693
          %v1271 = vunpack.c.h.b16 %v693
          %v1272 = vunpack.c.l.b16 %v694
          %v1273 = vunpack.c.h.b16 %v694
          %v1274 = vunpack.c.l.b16 %v695
          %v1275 = vunpack.c.h.b16 %v695
          %v1276 = vunpack.c.l.b16 %v696
          %v1277 = vunpack.c.h.b16 %v696
          %v1278 = vunpack.c.l.b16 %v697
          %v1279 = vunpack.c.h.b16 %v697
          %v1280 = vunpack.c.l.b16 %v698
          %v1281 = vunpack.c.h.b16 %v698
          %v1282 = vunpack.c.l.b16 %v699
          %v1283 = vunpack.c.h.b16 %v699
          %v1284 = vunpack.c.l.b16 %v700
          %v1285 = vunpack.c.h.b16 %v700
          %v1286 = vunpack.c.l.b16 %v701
          %v1287 = vunpack.c.h.b16 %v701
          %v1288 = vunpack.c.l.b16 %v702
          %v1289 = vunpack.c.h.b16 %v702
          %v1290 = vunpack.c.l.b16 %v703
          %v1291 = vunpack.c.h.b16 %v703
          %v1292 = vunpack.c.l.b16 %v704
          %v1293 = vunpack.c.h.b16 %v704
          %v1294 = vunpack.c.l.b16 %v705
          %v1295 = vunpack.c.h.b16 %v705
          %v1296 = vunpack.c.l.b16 %v706
          %v1297 = vunpack.c.h.b16 %v706
          %v1298 = vunpack.c.l.b16 %v707
          %v1299 = vunpack.c.h.b16 %v707
          %v1300 = vunpack.c.l.b16 %v708
          %v1301 = vunpack.c.h.b16 %v708
          %v1302 = vunpack.c.l.b16 %v709
          %v1303 = vunpack.c.h.b16 %v709
          %v1304 = vunpack.c.l.b16 %v710
          %v1305 = vunpack.c.h.b16 %v710
          %v1306 = vunpack.c.l.b16 %v711
          %v1307 = vunpack.c.h.b16 %v711
          %v1308 = vunpack.c.l.b16 %v712
          %v1309 = vunpack.c.h.b16 %v712
          %v1310 = vunpack.c.l.b16 %v713
          %v1311 = vunpack.c.h.b16 %v713
          %v1312 = vunpack.c.l.b16 %v714
          %v1313 = vunpack.c.h.b16 %v714
          %v1314 = vunpack.c.l.b16 %v715
          %v1315 = vunpack.c.h.b16 %v715
          %v1316 = vunpack.c.l.b16 %v716
          %v1317 = vunpack.c.h.b16 %v716
          %v1318 = vunpack.c.l.b16 %v717
          %v1319 = vunpack.c.h.b16 %v717
          %v1320 = vunpack.c.l.b16 %v718
          %v1321 = vunpack.c.h.b16 %v718
          %v1322 = vunpack.c.l.b16 %v719
          %v1323 = vunpack.c.h.b16 %v719
          %v1324 = vunpack.c.l.b16 %v720
          %v1325 = vunpack.c.h.b16 %v720
          %v1326 = vunpack.c.l.b16 %v721
          %v1327 = vunpack.c.h.b16 %v721
          %v1328 = vunpack.c.l.b16 %v722
          %v1329 = vunpack.c.h.b16 %v722
          %v1330 = vunpack.c.l.b16 %v723
          %v1331 = vunpack.c.h.b16 %v723
          %v1332 = vunpack.c.l.b16 %v724
          %v1333 = vunpack.c.h.b16 %v724
          %v1334 = vunpack.c.l.b16 %v725
          %v1335 = vunpack.c.h.b16 %v725
          %v1336 = vunpack.c.l.b16 %v726
          %v1337 = vunpack.c.h.b16 %v726
          %v1338 = vunpack.c.l.b16 %v727
          %v1339 = vunpack.c.h.b16 %v727
          %v1340 = vunpack.c.l.b16 %v728
          %v1341 = vunpack.c.h.b16 %v728
          %v1342 = vunpack.c.l.b16 %v729
          %v1343 = vunpack.c.h.b16 %v729
          %v1344 = vunpack.c.l.b16 %v730
          %v1345 = vunpack.c.h.b16 %v730
          %v1346 = vunpack.c.l.b16 %v731
          %v1347 = vunpack.c.h.b16 %v731
          %v1348 = vunpack.c.l.b16 %v732
          %v1349 = vunpack.c.h.b16 %v732
          %v1350 = vunpack.c.l.b16 %v733
          %v1351 = vunpack.c.h.b16 %v733
          %v1352 = vunpack.c.l.b16 %v734
          %v1353 = vunpack.c.h.b16 %v734
          %v1354 = vunpack.c.l.b16 %v735
          %v1355 = vunpack.c.h.b16 %v735
          %v1356 = vunpack.c.l.b16 %v736
          %v1357 = vunpack.c.h.b16 %v736
          %v1358 = vunpack.c.l.b16 %v737
          %v1359 = vunpack.c.h.b16 %v737
          %v1360 = vunpack.c.l.b16 %v738
          %v1361 = vunpack.c.h.b16 %v738
          %v1362 = vunpack.c.l.b16 %v739
          %v1363 = vunpack.c.h.b16 %v739
          %v1364 = vunpack.c.l.b16 %v740
          %v1365 = vunpack.c.h.b16 %v740
          %v1366 = vunpack.c.l.b16 %v741
          %v1367 = vunpack.c.h.b16 %v741
          %v1368 = vunpack.c.l.b16 %v742
          %v1369 = vunpack.c.h.b16 %v742
          %v1370 = vunpack.c.l.b16 %v743
          %v1371 = vunpack.c.h.b16 %v743
          %v1372 = vunpack.c.l.b16 %v744
          %v1373 = vunpack.c.h.b16 %v744
          %v1374 = vunpack.c.l.b16 %v745
          %v1375 = vunpack.c.h.b16 %v745
          %v1376 = vunpack.c.l.b16 %v746
          %v1377 = vunpack.c.h.b16 %v746
          %v1378 = vunpack.c.l.b16 %v747
          %v1379 = vunpack.c.h.b16 %v747
          %v1380 = vunpack.c.l.b16 %v748
          %v1381 = vunpack.c.h.b16 %v748
          %v1382 = vunpack.c.l.b16 %v749
          %v1383 = vunpack.c.h.b16 %v749
          %v1384 = vunpack.c.l.b16 %v750
          %v1385 = vunpack.c.h.b16 %v750
          %v1386 = vunpack.c.l.b16 %v751
          %v1387 = vunpack.c.h.b16 %v751
          %v1388 = vunpack.c.l.b16 %v752
          %v1389 = vunpack.c.h.b16 %v752
          %v1390 = vunpack.c.l.b16 %v753
          %v1391 = vunpack.c.h.b16 %v753
          %v1392 = vunpack.c.l.b16 %v754
          %v1393 = vunpack.c.h.b16 %v754
          %v1394 = vunpack.c.l.b16 %v755
          %v1395 = vunpack.c.h.b16 %v755
          %v1396 = vunpack.c.l.b16 %v756
          %v1397 = vunpack.c.h.b16 %v756
          %v1398 = vunpack.c.l.b16 %v757
          %v1399 = vunpack.c.h.b16 %v757
          %v1400 = vunpack.c.l.b16 %v758
          %v1401 = vunpack.c.h.b16 %v758
          %v1402 = vunpack.c.l.b16 %v759
          %v1403 = vunpack.c.h.b16 %v759
          %v1404 = vunpack.c.l.b16 %v760
          %v1405 = vunpack.c.h.b16 %v760
          %v1406 = vunpack.c.l.b16 %v761
          %v1407 = vunpack.c.h.b16 %v761
          %v1408 = vunpack.c.l.b16 %v762
          %v1409 = vunpack.c.h.b16 %v762
          %v1410 = vunpack.c.l.b16 %v763
          %v1411 = vunpack.c.h.b16 %v763
          %v1412 = vunpack.c.l.b16 %v764
          %v1413 = vunpack.c.h.b16 %v764
          %v1414 = vunpack.c.l.b16 %v765
          %v1415 = vunpack.c.h.b16 %v765
          %v1416 = vunpack.c.l.b16 %v766
          %v1417 = vunpack.c.h.b16 %v766
          %v1418 = vunpack.c.l.b16 %v767
          %v1419 = vunpack.c.h.b16 %v767
          %v1420 = vunpack.c.l.b16 %v768
          %v1421 = vunpack.c.h.b16 %v768
          %v1422 = vunpack.c.l.b16 %v769
          %v1423 = vunpack.c.h.b16 %v769
          %v1424 = vunpack.c.l.b16 %v770
          %v1425 = vunpack.c.h.b16 %v770
          %v1426 = vunpack.c.l.b16 %v771
          %v1427 = vunpack.c.h.b16 %v771
          %v1428 = vunpack.c.l.b16 %v772
          %v1429 = vunpack.c.h.b16 %v772
          %v1430 = vunpack.c.l.b16 %v773
          %v1431 = vunpack.c.h.b16 %v773
          %v1432 = vunpack.c.l.b16 %v774
          %v1433 = vunpack.c.h.b16 %v774
          %v1434 = vunpack.c.l.b16 %v775
          %v1435 = vunpack.c.h.b16 %v775
          %v1436 = vunpack.c.l.b16 %v776
          %v1437 = vunpack.c.h.b16 %v776
          %v1438 = vunpack.c.l.b16 %v777
          %v1439 = vunpack.c.h.b16 %v777
          %v1440 = vunpack.c.l.b16 %v778
          %v1441 = vunpack.c.h.b16 %v778
          %v1442 = vunpack.c.l.b16 %v779
          %v1443 = vunpack.c.h.b16 %v779
          %v1444 = vunpack.c.l.b16 %v780
          %v1445 = vunpack.c.h.b16 %v780
          %v1446 = vunpack.c.l.b16 %v781
          %v1447 = vunpack.c.h.b16 %v781
          %v1448 = vunpack.c.l.b16 %v782
          %v1449 = vunpack.c.h.b16 %v782
          %v1450 = vunpack.c.l.b16 %v783
          %v1451 = vunpack.c.h.b16 %v783
          %v1452 = vunpack.c.l.b16 %v784
          %v1453 = vunpack.c.h.b16 %v784
          %v1454 = vunpack.c.l.b16 %v785
          %v1455 = vunpack.c.h.b16 %v785
          %v1456 = vunpack.c.l.b16 %v786
          %v1457 = vunpack.c.h.b16 %v786
          %v1458 = vunpack.c.l.b16 %v787
          %v1459 = vunpack.c.h.b16 %v787
          %v1460 = vunpack.c.l.b16 %v788
          %v1461 = vunpack.c.h.b16 %v788
          %v1462 = vunpack.c.l.b16 %v789
          %v1463 = vunpack.c.h.b16 %v789
          %v1464 = vunpack.c.l.b16 %v790
          %v1465 = vunpack.c.h.b16 %v790
          %v1466 = vunpack.c.l.b16 %v791
          %v1467 = vunpack.c.h.b16 %v791
          %v1468 = vunpack.c.l.b16 %v792
          %v1469 = vunpack.c.h.b16 %v792
          %v1470 = vunpack.c.l.b16 %v793
          %v1471 = vunpack.c.h.b16 %v793
          %v1472 = vunpack.c.l.b16 %v794
          %v1473 = vunpack.c.h.b16 %v794
          %v1474 = vunpack.c.l.b16 %v795
          %v1475 = vunpack.c.h.b16 %v795
          %v1476 = vunpack.c.l.b16 %v796
          %v1477 = vunpack.c.h.b16 %v796
          %v1478 = vunpack.c.l.b16 %v797
          %v1479 = vunpack.c.h.b16 %v797
          %v1480 = vunpack.c.l.b16 %v798
          %v1481 = vunpack.c.h.b16 %v798
          %v1482 = vunpack.c.l.b16 %v799
          %v1483 = vunpack.c.h.b16 %v799
          %v1484 = vunpack.c.l.b16 %v800
          %v1485 = vunpack.c.h.b16 %v800
          %v1486 = vunpack.c.l.b16 %v801
          %v1487 = vunpack.c.h.b16 %v801
          %v1488 = vunpack.c.l.b16 %v802
          %v1489 = vunpack.c.h.b16 %v802
          %v1490 = vunpack.c.l.b16 %v803
          %v1491 = vunpack.c.h.b16 %v803
          %v1492 = vunpack.c.l.b16 %v804
          %v1493 = vunpack.c.h.b16 %v804
          %v1494 = vunpack.c.l.b16 %v805
          %v1495 = vunpack.c.h.b16 %v805
          %v1496 = vunpack.c.l.b16 %v806
          %v1497 = vunpack.c.h.b16 %v806
          %v1498 = vunpack.c.l.b16 %v807
          %v1499 = vunpack.c.h.b16 %v807
          %v1500 = vunpack.c.l.b16 %v808
          %v1501 = vunpack.c.h.b16 %v808
          %v1502 = vunpack.c.l.b16 %v809
          %v1503 = vunpack.c.h.b16 %v809
          %v1504 = vunpack.c.l.b16 %v810
          %v1505 = vunpack.c.h.b16 %v810
          %v1506 = vunpack.c.l.b16 %v811
          %v1507 = vunpack.c.h.b16 %v811
          %v1508 = vunpack.c.l.b16 %v812
          %v1509 = vunpack.c.h.b16 %v812
          %v1510 = vunpack.c.l.b16 %v813
          %v1511 = vunpack.c.h.b16 %v813
          %v1512 = vunpack.c.l.b16 %v814
          %v1513 = vunpack.c.h.b16 %v814
          %v1514 = vunpack.c.l.b16 %v815
          %v1515 = vunpack.c.h.b16 %v815
          %v1516 = vunpack.c.l.b16 %v816
          %v1517 = vunpack.c.h.b16 %v816
          %v1518 = vunpack.c.l.b16 %v817
          %v1519 = vunpack.c.h.b16 %v817
          %v1520 = vunpack.c.l.b16 %v818
          %v1521 = vunpack.c.h.b16 %v818
          %v1522 = vunpack.c.l.b16 %v819
          %v1523 = vunpack.c.h.b16 %v819
          %v1524 = vunpack.c.l.b16 %v820
          %v1525 = vunpack.c.h.b16 %v820
          %v1526 = vunpack.c.l.b16 %v821
          %v1527 = vunpack.c.h.b16 %v821
          %v1528 = vunpack.c.l.b16 %v822
          %v1529 = vunpack.c.h.b16 %v822
          %v1530 = vunpack.c.l.b16 %v823
          %v1531 = vunpack.c.h.b16 %v823
          %v1532 = vunpack.c.l.b16 %v824
          %v1533 = vunpack.c.h.b16 %v824
          %v1534 = vunpack.c.l.b16 %v825
          %v1535 = vunpack.c.h.b16 %v825
          %v1536 = vunpack.c.l.b16 %v826
          %v1537 = vunpack.c.h.b16 %v826
          %v1538 = vunpack.c.l.b16 %v827
          %v1539 = vunpack.c.h.b16 %v827
          %v1540 = vunpack.c.l.b16 %v828
          %v1541 = vunpack.c.h.b16 %v828
          %v1542 = vunpack.c.l.b16 %v829
          %v1543 = vunpack.c.h.b16 %v829
          %v1544 = vunpack.c.l.b16 %v830
          %v1545 = vunpack.c.h.b16 %v830
          %v1546 = vunpack.c.l.b16 %v831
          %v1547 = vunpack.c.h.b16 %v831
          %v1548 = vunpack.c.l.b16 %v832
          %v1549 = vunpack.c.h.b16 %v832
          %v1550 = vunpack.c.l.b16 %v833
          %v1551 = vunpack.c.h.b16 %v833
          %v1552 = vunpack.c.l.b16 %v834
          %v1553 = vunpack.c.h.b16 %v834
          %v1554 = vunpack.c.l.b16 %v835
          %v1555 = vunpack.c.h.b16 %v835
          %v1556 = vunpack.c.l.b16 %v836
          %v1557 = vunpack.c.h.b16 %v836
          %v1558 = vunpack.c.l.b16 %v837
          %v1559 = vunpack.c.h.b16 %v837
          %v1560 = vunpack.c.l.b16 %v838
          %v1561 = vunpack.c.h.b16 %v838
          %v1562 = vunpack.c.l.b16 %v839
          %v1563 = vunpack.c.h.b16 %v839
          %v1564 = vunpack.c.l.b16 %v840
          %v1565 = vunpack.c.h.b16 %v840
          %v1566 = vunpack.c.l.b16 %v841
          %v1567 = vunpack.c.h.b16 %v841
          %v1568 = vunpack.c.l.b16 %v842
          %v1569 = vunpack.c.h.b16 %v842
          %v1570 = vunpack.c.l.b16 %v843
          %v1571 = vunpack.c.h.b16 %v843
          %v1572 = vunpack.c.l.b16 %v844
          %v1573 = vunpack.c.h.b16 %v844
          %v1574 = vunpack.c.l.b16 %v845
          %v1575 = vunpack.c.h.b16 %v845
          %v1576 = vunpack.c.l.b16 %v846
          %v1577 = vunpack.c.h.b16 %v846
          %v1578 = vunpack.c.l.b16 %v847
          %v1579 = vunpack.c.h.b16 %v847
          %v1580 = vunpack.c.l.b16 %v848
          %v1581 = vunpack.c.h.b16 %v848
          %v1582 = vunpack.c.l.b16 %v849
          %v1583 = vunpack.c.h.b16 %v849
          %v1584 = vunpack.c.l.b16 %v850
          %v1585 = vunpack.c.h.b16 %v850
          %v1586 = vunpack.c.l.b16 %v851
          %v1587 = vunpack.c.h.b16 %v851
          %v1588 = vunpack.c.l.b16 %v852
          %v1589 = vunpack.c.h.b16 %v852
          %v1590 = vunpack.c.l.b16 %v853
          %v1591 = vunpack.c.h.b16 %v853
          %v1592 = vunpack.c.l.b16 %v854
          %v1593 = vunpack.c.h.b16 %v854
          %v1594 = vunpack.c.l.b16 %v855
          %v1595 = vunpack.c.h.b16 %v855
          %v1596 = vunpack.c.l.b16 %v856
          %v1597 = vunpack.c.h.b16 %v856
          %v1598 = vunpack.c.l.b16 %v857
          %v1599 = vunpack.c.h.b16 %v857
          %v1600 = vunpack.c.l.b16 %v858
          %v1601 = vunpack.c.h.b16 %v858
          %v1602 = vunpack.c.l.b16 %v859
          %v1603 = vunpack.c.h.b16 %v859
          %v1604 = vunpack.c.l.b16 %v860
          %v1605 = vunpack.c.h.b16 %v860
          %v1606 = vunpack.c.l.b16 %v861
          %v1607 = vunpack.c.h.b16 %v861
          %v1608 = vunpack.c.l.b16 %v862
          %v1609 = vunpack.c.h.b16 %v862
          %v1610 = vunpack.c.l.b16 %v863
          %v1611 = vunpack.c.h.b16 %v863
          %v1612 = vunpack.c.l.b16 %v864
          %v1613 = vunpack.c.h.b16 %v864
          %v1614 = vunpack.c.l.b16 %v865
          %v1615 = vunpack.c.h.b16 %v865
          %v1616 = vunpack.c.l.b16 %v866
          %v1617 = vunpack.c.h.b16 %v866
          %v1618 = vunpack.c.l.b16 %v867
          %v1619 = vunpack.c.h.b16 %v867
          %v1620 = vunpack.c.l.b16 %v868
          %v1621 = vunpack.c.h.b16 %v868
          %v1622 = vunpack.c.l.b16 %v869
          %v1623 = vunpack.c.h.b16 %v869
          %v1624 = vunpack.c.l.b16 %v870
          %v1625 = vunpack.c.h.b16 %v870
          %v1626 = vunpack.c.l.b16 %v871
          %v1627 = vunpack.c.h.b16 %v871
          %v1628 = vunpack.c.l.b16 %v872
          %v1629 = vunpack.c.h.b16 %v872
          %v1630 = vunpack.c.l.b16 %v873
          %v1631 = vunpack.c.h.b16 %v873
          %v1632 = vunpack.c.l.b16 %v874
          %v1633 = vunpack.c.h.b16 %v874
          %v1634 = vunpack.c.l.b16 %v875
          %v1635 = vunpack.c.h.b16 %v875
          %v1636 = vunpack.c.l.b16 %v876
          %v1637 = vunpack.c.h.b16 %v876
          %v1638 = vunpack.c.l.b16 %v877
          %v1639 = vunpack.c.h.b16 %v877
          %v1640 = vunpack.c.l.b16 %v878
          %v1641 = vunpack.c.h.b16 %v878
          %v1642 = vunpack.c.l.b16 %v879
          %v1643 = vunpack.c.h.b16 %v879
          %v1644 = vunpack.c.l.b16 %v880
          %v1645 = vunpack.c.h.b16 %v880
          %v1646 = vunpack.c.l.b16 %v881
          %v1647 = vunpack.c.h.b16 %v881
          %v1648 = vunpack.c.l.b16 %v882
          %v1649 = vunpack.c.h.b16 %v882
          %v1650 = vunpack.c.l.b16 %v883
          %v1651 = vunpack.c.h.b16 %v883
          %v1652 = vunpack.c.l.b16 %v884
          %v1653 = vunpack.c.h.b16 %v884
          %v1654 = vunpack.c.l.b16 %v885
          %v1655 = vunpack.c.h.b16 %v885
          %v1656 = vunpack.c.l.b16 %v886
          %v1657 = vunpack.c.h.b16 %v886
          %v1658 = vunpack.c.l.b16 %v887
          %v1659 = vunpack.c.h.b16 %v887
          %v1660 = vunpack.c.l.b16 %v888
          %v1661 = vunpack.c.h.b16 %v888
          %v1662 = vunpack.c.l.b16 %v889
          %v1663 = vunpack.c.h.b16 %v889
          %v1664 = vunpack.c.l.b16 %v890
          %v1665 = vunpack.c.h.b16 %v890
          %v1666 = vunpack.c.l.b16 %v891
          %v1667 = vunpack.c.h.b16 %v891
          %v1668 = vunpack.c.l.b16 %v892
          %v1669 = vunpack.c.h.b16 %v892
          %v1670 = vunpack.c.l.b16 %v893
          %v1671 = vunpack.c.h.b16 %v893
          %v1672 = vunpack.c.l.b16 %v894
          %v1673 = vunpack.c.h.b16 %v894
          %v1674 = vunpack.c.l.b16 %v895
          %v1675 = vunpack.c.h.b16 %v895
          %v1676 = vunpack.c.l.b16 %v896
          %v1677 = vunpack.c.h.b16 %v896
          %v1678 = vunpack.c.l.b16 %v897
          %v1679 = vunpack.c.h.b16 %v897
          %v1680 = vunpack.c.l.b16 %v898
          %v1681 = vunpack.c.h.b16 %v898
          %v1682 = vunpack.c.l.b16 %v899
          %v1683 = vunpack.c.h.b16 %v899
          %v1684 = vunpack.c.l.b16 %v900
          %v1685 = vunpack.c.h.b16 %v900
          %v1686 = vunpack.c.l.b16 %v901
          %v1687 = vunpack.c.h.b16 %v901
          %v1688 = vunpack.c.l.b16 %v902
          %v1689 = vunpack.c.h.b16 %v902
          %v1690 = vunpack.c.l.b16 %v903
          %v1691 = vunpack.c.h.b16 %v903
          %v1692 = vunpack.c.l.b16 %v904
          %v1693 = vunpack.c.h.b16 %v904
          %v1694 = vunpack.c.l.b16 %v905
          %v1695 = vunpack.c.h.b16 %v905
          %v1696 = vunpack.c.l.b16 %v906
          %v1697 = vunpack.c.h.b16 %v906
          %v1698 = vunpack.c.l.b16 %v907
          %v1699 = vunpack.c.h.b16 %v907
          %v1700 = vunpack.c.l.b16 %v908
          %v1701 = vunpack.c.h.b16 %v908
          %v1702 = vunpack.c.l.b16 %v909
          %v1703 = vunpack.c.h.b16 %v909
          %v1704 = vunpack.c.l.b16 %v910
          %v1705 = vunpack.c.h.b16 %v910
          %v1706 = vunpack.c.l.b16 %v911
          %v1707 = vunpack.c.h.b16 %v911
          %v1708 = vunpack.c.l.b16 %v912
          %v1709 = vunpack.c.h.b16 %v912
          %v1710 = vunpack.c.l.b16 %v913
          %v1711 = vunpack.c.h.b16 %v913
          %v1712 = vunpack.c.l.b16 %v914
          %v1713 = vunpack.c.h.b16 %v914
          %v1714 = vunpack.c.l.b16 %v915
          %v1715 = vunpack.c.h.b16 %v915
          %v1716 = vunpack.c.l.b16 %v916
          %v1717 = vunpack.c.h.b16 %v916
          %v1718 = vunpack.c.l.b16 %v917
          %v1719 = vunpack.c.h.b16 %v917
          %v1720 = vunpack.c.l.b16 %v918
          %v1721 = vunpack.c.h.b16 %v918
          %v1722 = vunpack.c.l.b16 %v919
          %v1723 = vunpack.c.h.b16 %v919
          %v1724 = vunpack.c.l.b16 %v920
          %v1725 = vunpack.c.h.b16 %v920
          %v1726 = vunpack.c.l.b16 %v921
          %v1727 = vunpack.c.h.b16 %v921
          %v1728 = vunpack.c.l.b16 %v922
          %v1729 = vunpack.c.h.b16 %v922
          %v1730 = vunpack.c.l.b16 %v923
          %v1731 = vunpack.c.h.b16 %v923
          %v1732 = vunpack.c.l.b16 %v924
          %v1733 = vunpack.c.h.b16 %v924
          %v1734 = vunpack.c.l.b16 %v925
          %v1735 = vunpack.c.h.b16 %v925
          %v1736 = vpack.c.b16 %v1232, %v1224
          %v1737 = vpack.c.b16 %v1233, %v1225
          %v1738 = vpack.c.b16 %v1234, %v1226
          %v1739 = vpack.c.b16 %v1235, %v1227
          %v1740 = vpack.c.b16 %v1236, %v1228
          %v1741 = vpack.c.b16 %v1237, %v1229
          %v1742 = vpack.c.b16 %v1238, %v1230
          %v1743 = vpack.c.b16 %v1239, %v1231
          %v1744 = vpack.c.b16 %v1248, %v1240
          %v1745 = vpack.c.b16 %v1249, %v1241
          %v1746 = vpack.c.b16 %v1250, %v1242
          %v1747 = vpack.c.b16 %v1251, %v1243
          %v1748 = vpack.c.b16 %v1252, %v1244
          %v1749 = vpack.c.b16 %v1253, %v1245
          %v1750 = vpack.c.b16 %v1254, %v1246
          %v1751 = vpack.c.b16 %v1255, %v1247
          %v1752 = vpack.c.b16 %v1264, %v1256
          %v1753 = vpack.c.b16 %v1265, %v1257
          %v1754 = vpack.c.b16 %v1266, %v1258
          %v1755 = vpack.c.b16 %v1267, %v1259
          %v1756 = vpack.c.b16 %v1268, %v1260
          %v1757 = vpack.c.b16 %v1269, %v1261
          %v1758 = vpack.c.b16 %v1270, %v1262
          %v1759 = vpack.c.b16 %v1271, %v1263
          %v1760 = vpack.c.b16 %v1280, %v1272
          %v1761 = vpack.c.b16 %v1281, %v1273
          %v1762 = vpack.c.b16 %v1282, %v1274
          %v1763 = vpack.c.b16 %v1283, %v1275
          %v1764 = vpack.c.b16 %v1284, %v1276
          %v1765 = vpack.c.b16 %v1285, %v1277
          %v1766 = vpack.c.b16 %v1286, %v1278
          %v1767 = vpack.c.b16 %v1287, %v1279
          %v1768 = vpack.c.b16 %v1296, %v1288
          %v1769 = vpack.c.b16 %v1297, %v1289
          %v1770 = vpack.c.b16 %v1298, %v1290
          %v1771 = vpack.c.b16 %v1299, %v1291
          %v1772 = vpack.c.b16 %v1300, %v1292
          %v1773 = vpack.c.b16 %v1301, %v1293
          %v1774 = vpack.c.b16 %v1302, %v1294
          %v1775 = vpack.c.b16 %v1303, %v1295
          %v1776 = vpack.c.b16 %v1312, %v1304
          %v1777 = vpack.c.b16 %v1313, %v1305
          %v1778 = vpack.c.b16 %v1314, %v1306
          %v1779 = vpack.c.b16 %v1315, %v1307
          %v1780 = vpack.c.b16 %v1316, %v1308
          %v1781 = vpack.c.b16 %v1317, %v1309
          %v1782 = vpack.c.b16 %v1318, %v1310
          %v1783 = vpack.c.b16 %v1319, %v1311
          %v1784 = vpack.c.b16 %v1328, %v1320
          %v1785 = vpack.c.b16 %v1329, %v1321
          %v1786 = vpack.c.b16 %v1330, %v1322
          %v1787 = vpack.c.b16 %v1331, %v1323
          %v1788 = vpack.c.b16 %v1332, %v1324
          %v1789 = vpack.c.b16 %v1333, %v1325
          %v1790 = vpack.c.b16 %v1334, %v1326
          %v1791 = vpack.c.b16 %v1335, %v1327
          %v1792 = vpack.c.b16 %v1344, %v1336
          %v1793 = vpack.c.b16 %v1345, %v1337
          %v1794 = vpack.c.b16 %v1346, %v1338
          %v1795 = vpack.c.b16 %v1347, %v1339
          %v1796 = vpack.c.b16 %v1348, %v1340
          %v1797 = vpack.c.b16 %v1349, %v1341
          %v1798 = vpack.c.b16 %v1350, %v1342
          %v1799 = vpack.c.b16 %v1351, %v1343
          %v1800 = vpack.c.b16 %v1360, %v1352
          %v1801 = vpack.c.b16 %v1361, %v1353
          %v1802 = vpack.c.b16 %v1362, %v1354
          %v1803 = vpack.c.b16 %v1363, %v1355
          %v1804 = vpack.c.b16 %v1364, %v1356
          %v1805 = vpack.c.b16 %v1365, %v1357
          %v1806 = vpack.c.b16 %v1366, %v1358
          %v1807 = vpack.c.b16 %v1367, %v1359
          %v1808 = vpack.c.b16 %v1376, %v1368
          %v1809 = vpack.c.b16 %v1377, %v1369
          %v1810 = vpack.c.b16 %v1378, %v1370
          %v1811 = vpack.c.b16 %v1379, %v1371
          %v1812 = vpack.c.b16 %v1380, %v1372
          %v1813 = vpack.c.b16 %v1381, %v1373
          %v1814 = vpack.c.b16 %v1382, %v1374
          %v1815 = vpack.c.b16 %v1383, %v1375
          %v1816 = vpack.c.b16 %v1392, %v1384
          %v1817 = vpack.c.b16 %v1393, %v1385
          %v1818 = vpack.c.b16 %v1394, %v1386
          %v1819 = vpack.c.b16 %v1395, %v1387
          %v1820 = vpack.c.b16 %v1396, %v1388
          %v1821 = vpack.c.b16 %v1397, %v1389
          %v1822 = vpack.c.b16 %v1398, %v1390
          %v1823 = vpack.c.b16 %v1399, %v1391
          %v1824 = vpack.c.b16 %v1408, %v1400
          %v1825 = vpack.c.b16 %v1409, %v1401
          %v1826 = vpack.c.b16 %v1410, %v1402
          %v1827 = vpack.c.b16 %v1411, %v1403
          %v1828 = vpack.c.b16 %v1412, %v1404
          %v1829 = vpack.c.b16 %v1413, %v1405
          %v1830 = vpack.c.b16 %v1414, %v1406
          %v1831 = vpack.c.b16 %v1415, %v1407
          %v1832 = vpack.c.b16 %v1424, %v1416
          %v1833 = vpack.c.b16 %v1425, %v1417
          %v1834 = vpack.c.b16 %v1426, %v1418
          %v1835 = vpack.c.b16 %v1427, %v1419
          %v1836 = vpack.c.b16 %v1428, %v1420
          %v1837 = vpack.c.b16 %v1429, %v1421
          %v1838 = vpack.c.b16 %v1430, %v1422
          %v1839 = vpack.c.b16 %v1431, %v1423
          %v1840 = vpack.c.b16 %v1440, %v1432
          %v1841 = vpack.c.b16 %v1441, %v1433
          %v1842 = vpack.c.b16 %v1442, %v1434
          %v1843 = vpack.c.b16 %v1443, %v1435
          %v1844 = vpack.c.b16 %v1444, %v1436
          %v1845 = vpack.c.b16 %v1445, %v1437
          %v1846 = vpack.c.b16 %v1446, %v1438
          %v1847 = vpack.c.b16 %v1447, %v1439
          %v1848 = vpack.c.b16 %v1456, %v1448
          %v1849 = vpack.c.b16 %v1457, %v1449
          %v1850 = vpack.c.b16 %v1458, %v1450
          %v1851 = vpack.c.b16 %v1459, %v1451
          %v1852 = vpack.c.b16 %v1460, %v1452
          %v1853 = vpack.c.b16 %v1461, %v1453
          %v1854 = vpack.c.b16 %v1462, %v1454
          %v1855 = vpack.c.b16 %v1463, %v1455
          %v1856 = vpack.c.b16 %v1472, %v1464
          %v1857 = vpack.c.b16 %v1473, %v1465
          %v1858 = vpack.c.b16 %v1474, %v1466
          %v1859 = vpack.c.b16 %v1475, %v1467
          %v1860 = vpack.c.b16 %v1476, %v1468
          %v1861 = vpack.c.b16 %v1477, %v1469
          %v1862 = vpack.c.b16 %v1478, %v1470
          %v1863 = vpack.c.b16 %v1479, %v1471
          %v1864 = vpack.c.b16 %v1488, %v1480
          %v1865 = vpack.c.b16 %v1489, %v1481
          %v1866 = vpack.c.b16 %v1490, %v1482
          %v1867 = vpack.c.b16 %v1491, %v1483
          %v1868 = vpack.c.b16 %v1492, %v1484
          %v1869 = vpack.c.b16 %v1493, %v1485
          %v1870 = vpack.c.b16 %v1494, %v1486
          %v1871 = vpack.c.b16 %v1495, %v1487
          %v1872 = vpack.c.b16 %v1504, %v1496
          %v1873 = vpack.c.b16 %v1505, %v1497
          %v1874 = vpack.c.b16 %v1506, %v1498
          %v1875 = vpack.c.b16 %v1507, %v1499
          %v1876 = vpack.c.b16 %v1508, %v1500
          %v1877 = vpack.c.b16 %v1509, %v1501
          %v1878 = vpack.c.b16 %v1510, %v1502
          %v1879 = vpack.c.b16 %v1511, %v1503
          %v1880 = vpack.c.b16 %v1520, %v1512
          %v1881 = vpack.c.b16 %v1521, %v1513
          %v1882 = vpack.c.b16 %v1522, %v1514
          %v1883 = vpack.c.b16 %v1523, %v1515
          %v1884 = vpack.c.b16 %v1524, %v1516
          %v1885 = vpack.c.b16 %v1525, %v1517
          %v1886 = vpack.c.b16 %v1526, %v1518
          %v1887 = vpack.c.b16 %v1527, %v1519
          %v1888 = vpack.c.b16 %v1536, %v1528
          %v1889 = vpack.c.b16 %v1537, %v1529
          %v1890 = vpack.c.b16 %v1538, %v1530
          %v1891 = vpack.c.b16 %v1539, %v1531
          %v1892 = vpack.c.b16 %v1540, %v1532
          %v1893 = vpack.c.b16 %v1541, %v1533
          %v1894 = vpack.c.b16 %v1542, %v1534
          %v1895 = vpack.c.b16 %v1543, %v1535
          %v1896 = vpack.c.b16 %v1552, %v1544
          %v1897 = vpack.c.b16 %v1553, %v1545
          %v1898 = vpack.c.b16 %v1554, %v1546
          %v1899 = vpack.c.b16 %v1555, %v1547
          %v1900 = vpack.c.b16 %v1556, %v1548
          %v1901 = vpack.c.b16 %v1557, %v1549
          %v1902 = vpack.c.b16 %v1558, %v1550
          %v1903 = vpack.c.b16 %v1559, %v1551
          %v1904 = vpack.c.b16 %v1568, %v1560
          %v1905 = vpack.c.b16 %v1569, %v1561
          %v1906 = vpack.c.b16 %v1570, %v1562
          %v1907 = vpack.c.b16 %v1571, %v1563
          %v1908 = vpack.c.b16 %v1572, %v1564
          %v1909 = vpack.c.b16 %v1573, %v1565
          %v1910 = vpack.c.b16 %v1574, %v1566
          %v1911 = vpack.c.b16 %v1575, %v1567
          %v1912 = vpack.c.b16 %v1584, %v1576
          %v1913 = vpack.c.b16 %v1585, %v1577
          %v1914 = vpack.c.b16 %v1586, %v1578
          %v1915 = vpack.c.b16 %v1587, %v1579
          %v1916 = vpack.c.b16 %v1588, %v1580
          %v1917 = vpack.c.b16 %v1589, %v1581
          %v1918 = vpack.c.b16 %v1590, %v1582
          %v1919 = vpack.c.b16 %v1591, %v1583
          %v1920 = vpack.c.b16 %v1600, %v1592
          %v1921 = vpack.c.b16 %v1601, %v1593
          %v1922 = vpack.c.b16 %v1602, %v1594
          %v1923 = vpack.c.b16 %v1603, %v1595
          %v1924 = vpack.c.b16 %v1604, %v1596
          %v1925 = vpack.c.b16 %v1605, %v1597
          %v1926 = vpack.c.b16 %v1606, %v1598
          %v1927 = vpack.c.b16 %v1607, %v1599
          %v1928 = vpack.c.b16 %v1616, %v1608
          %v1929 = vpack.c.b16 %v1617, %v1609
          %v1930 = vpack.c.b16 %v1618, %v1610
          %v1931 = vpack.c.b16 %v1619, %v1611
          %v1932 = vpack.c.b16 %v1620, %v1612
          %v1933 = vpack.c.b16 %v1621, %v1613
          %v1934 = vpack.c.b16 %v1622, %v1614
          %v1935 = vpack.c.b16 %v1623, %v1615
          %v1936 = vpack.c.b16 %v1632, %v1624
          %v1937 = vpack.c.b16 %v1633, %v1625
          %v1938 = vpack.c.b16 %v1634, %v1626
          %v1939 = vpack.c.b16 %v1635, %v1627
          %v1940 = vpack.c.b16 %v1636, %v1628
          %v1941 = vpack.c.b16 %v1637, %v1629
          %v1942 = vpack.c.b16 %v1638, %v1630
          %v1943 = vpack.c.b16 %v1639, %v1631
          %v1944 = vpack.c.b16 %v1648, %v1640
          %v1945 = vpack.c.b16 %v1649, %v1641
          %v1946 = vpack.c.b16 %v1650, %v1642
          %v1947 = vpack.c.b16 %v1651, %v1643
          %v1948 = vpack.c.b16 %v1652, %v1644
          %v1949 = vpack.c.b16 %v1653, %v1645
          %v1950 = vpack.c.b16 %v1654, %v1646
          %v1951 = vpack.c.b16 %v1655, %v1647
          %v1952 = vpack.c.b16 %v1664, %v1656
          %v1953 = vpack.c.b16 %v1665, %v1657
          %v1954 = vpack.c.b16 %v1666, %v1658
          %v1955 = vpack.c.b16 %v1667, %v1659
          %v1956 = vpack.c.b16 %v1668, %v1660
          %v1957 = vpack.c.b16 %v1669, %v1661
          %v1958 = vpack.c.b16 %v1670, %v1662
          %v1959 = vpack.c.b16 %v1671, %v1663
          %v1960 = vpack.c.b16 %v1680, %v1672
          %v1961 = vpack.c.b16 %v1681, %v1673
          %v1962 = vpack.c.b16 %v1682, %v1674
          %v1963 = vpack.c.b16 %v1683, %v1675
          %v1964 = vpack.c.b16 %v1684, %v1676
          %v1965 = vpack.c.b16 %v1685, %v1677
          %v1966 = vpack.c.b16 %v1686, %v1678
          %v1967 = vpack.c.b16 %v1687, %v1679
          %v1968 = vpack.c.b16 %v1696, %v1688
          %v1969 = vpack.c.b16 %v1697, %v1689
          %v1970 = vpack.c.b16 %v1698, %v1690
          %v1971 = vpack.c.b16 %v1699, %v1691
          %v1972 = vpack.c.b16 %v1700, %v1692
          %v1973 = vpack.c.b16 %v1701, %v1693
          %v1974 = vpack.c.b16 %v1702, %v1694
          %v1975 = vpack.c.b16 %v1703, %v1695
          %v1976 = vpack.c.b16 %v1712, %v1704
          %v1977 = vpack.c.b16 %v1713, %v1705
          %v1978 = vpack.c.b16 %v1714, %v1706
          %v1979 = vpack.c.b16 %v1715, %v1707
          %v1980 = vpack.c.b16 %v1716, %v1708
          %v1981 = vpack.c.b16 %v1717, %v1709
          %v1982 = vpack.c.b16 %v1718, %v1710
          %v1983 = vpack.c.b16 %v1719, %v1711
          %v1984 = vpack.c.b16 %v1728, %v1720
          %v1985 = vpack.c.b16 %v1729, %v1721
          %v1986 = vpack.c.b16 %v1730, %v1722
          %v1987 = vpack.c.b16 %v1731, %v1723
          %v1988 = vpack.c.b16 %v1732, %v1724
          %v1989 = vpack.c.b16 %v1733, %v1725
          %v1990 = vpack.c.b16 %v1734, %v1726
          %v1991 = vpack.c.b16 %v1735, %v1727
          %2248 = vmatprep.subr.bf16.mxu0 %v1737
          %2249 = vmatpush1.bf16.msra.mxu0 %v1736
          %2250 = vmatprep.subr.bf16.mxu0 %v1745
          %2251 = vmatpush1.bf16.msra.mxu0 %v1744
          %2252 = vmatprep.subr.bf16.mxu0 %v1753
          %2253 = vmatpush1.bf16.msra.mxu0 %v1752
          %2254 = vmatprep.subr.bf16.mxu0 %v1761
          %2255 = vmatpush1.bf16.msra.mxu0 %v1760
          %2256 = vmatprep.subr.bf16.mxu0 %v1769
          %2257 = vmatpush1.bf16.msra.mxu0 %v1768
          %2258 = vmatprep.subr.bf16.mxu0 %v1777
          %2259 = vmatpush1.bf16.msra.mxu0 %v1776
          %2260 = vmatprep.subr.bf16.mxu0 %v1785
          %2261 = vmatpush1.bf16.msra.mxu0 %v1784
          %2262 = vmatprep.subr.bf16.mxu0 %v1793
          %2263 = vmatpush1.bf16.msra.mxu0 %v1792
          %2264 = vmatprep.subr.bf16.mxu0 %v1801
          %2265 = vmatpush1.bf16.msra.mxu0 %v1800
          %2266 = vmatprep.subr.bf16.mxu0 %v1809
          %2267 = vmatpush1.bf16.msra.mxu0 %v1808
          %2268 = vmatprep.subr.bf16.mxu0 %v1817
          %2269 = vmatpush1.bf16.msra.mxu0 %v1816
          %2270 = vmatprep.subr.bf16.mxu0 %v1825
          %2271 = vmatpush1.bf16.msra.mxu0 %v1824
          %2272 = vmatprep.subr.bf16.mxu0 %v1833
          %2273 = vmatpush1.bf16.msra.mxu0 %v1832
          %2274 = vmatprep.subr.bf16.mxu0 %v1841
          %2275 = vmatpush1.bf16.msra.mxu0 %v1840
          %2276 = vmatprep.subr.bf16.mxu0 %v1849
          %2277 = vmatpush1.bf16.msra.mxu0 %v1848
          %2278 = vmatprep.subr.bf16.mxu0 %v1857
          %2279 = vmatpush1.bf16.msra.mxu0 %v1856
          %2280 = vmatprep.mubr.bf16.mxu0 %v667
          %2281 = vmatmul.mubr.bf16.gmra.mrb[0].mxu0 %v666
          %v2282 = vpop.f32.mrb[0].mxu0
          %v2283 = vadd.f32 %v931, %v2282
          %v2284 = vpop.f32.mrb[0].mxu0
          %v2285 = vadd.f32 %v935, %v2284
          %v2286 = vpop.f32.mrb[0].mxu0
          %v2287 = vpop.f32.mrb[0].mxu0
          %2288 = vdwg.mxu0
          %2289 = vmatprep.subr.bf16.mxu0 %v1865
          %2290 = vmatpush1.bf16.msra.mxu0 %v1864
          %2291 = vmatprep.subr.bf16.mxu0 %v1873
          %2292 = vmatpush1.bf16.msra.mxu0 %v1872
          %2293 = vmatprep.subr.bf16.mxu0 %v1881
          %2294 = vmatpush1.bf16.msra.mxu0 %v1880
          %2295 = vmatprep.subr.bf16.mxu0 %v1889
          %2296 = vmatpush1.bf16.msra.mxu0 %v1888
          %2297 = vmatprep.subr.bf16.mxu0 %v1897
          %2298 = vmatpush1.bf16.msra.mxu0 %v1896
          %2299 = vmatprep.subr.bf16.mxu0 %v1905
          %2300 = vmatpush1.bf16.msra.mxu0 %v1904
          %2301 = vmatprep.subr.bf16.mxu0 %v1913
          %2302 = vmatpush1.bf16.msra.mxu0 %v1912
          %2303 = vmatprep.subr.bf16.mxu0 %v1921
          %2304 = vmatpush1.bf16.msra.mxu0 %v1920
          %2305 = vmatprep.subr.bf16.mxu0 %v1929
          %2306 = vmatpush1.bf16.msra.mxu0 %v1928
          %2307 = vmatprep.subr.bf16.mxu0 %v1937
          %2308 = vmatpush1.bf16.msra.mxu0 %v1936
          %2309 = vmatprep.subr.bf16.mxu0 %v1945
          %2310 = vmatpush1.bf16.msra.mxu0 %v1944
          %2311 = vmatprep.subr.bf16.mxu0 %v1953
          %2312 = vmatpush1.bf16.msra.mxu0 %v1952
          %2313 = vmatprep.subr.bf16.mxu0 %v1961
          %2314 = vmatpush1.bf16.msra.mxu0 %v1960
          %2315 = vmatprep.subr.bf16.mxu0 %v1969
          %2316 = vmatpush1.bf16.msra.mxu0 %v1968
          %2317 = vmatprep.subr.bf16.mxu0 %v1977
          %2318 = vmatpush1.bf16.msra.mxu0 %v1976
          %2319 = vmatprep.subr.bf16.mxu0 %v1985
          %2320 = vmatpush1.bf16.msra.mxu0 %v1984
          %2321 = vmatprep.mubr.bf16.mxu0 %v669
          %2322 = vmatmul.mubr.bf16.gmra.mrb[0].mxu0 %v668
          %v2323 = vpop.f32.mrb[0].mxu0
          %v2324 = vadd.f32 %v2283, %v2323
          %v2325 = vpop.f32.mrb[0].mxu0
          %v2326 = vadd.f32 %v2285, %v2325
          %v2327 = vpop.f32.mrb[0].mxu0
          %v2328 = vpop.f32.mrb[0].mxu0
          %2329 = vdwg.mxu0
          %2330 = vmatprep.subr.bf16.mxu0 %v1739
          %2331 = vmatpush1.bf16.msra.mxu0 %v1738
          %2332 = vmatprep.subr.bf16.mxu0 %v1747
          %2333 = vmatpush1.bf16.msra.mxu0 %v1746
          %2334 = vmatprep.subr.bf16.mxu0 %v1755
          %2335 = vmatpush1.bf16.msra.mxu0 %v1754
          %2336 = vmatprep.subr.bf16.mxu0 %v1763
          %2337 = vmatpush1.bf16.msra.mxu0 %v1762
          %2338 = vmatprep.subr.bf16.mxu0 %v1771
          %2339 = vmatpush1.bf16.msra.mxu0 %v1770
          %2340 = vmatprep.subr.bf16.mxu0 %v1779
          %2341 = vmatpush1.bf16.msra.mxu0 %v1778
          %2342 = vmatprep.subr.bf16.mxu0 %v1787
          %2343 = vmatpush1.bf16.msra.mxu0 %v1786
          %2344 = vmatprep.subr.bf16.mxu0 %v1795
          %2345 = vmatpush1.bf16.msra.mxu0 %v1794
          %2346 = vmatprep.subr.bf16.mxu0 %v1803
          %2347 = vmatpush1.bf16.msra.mxu0 %v1802
          %2348 = vmatprep.subr.bf16.mxu0 %v1811
          %2349 = vmatpush1.bf16.msra.mxu0 %v1810
          %2350 = vmatprep.subr.bf16.mxu0 %v1819
          %2351 = vmatpush1.bf16.msra.mxu0 %v1818
          %2352 = vmatprep.subr.bf16.mxu0 %v1827
          %2353 = vmatpush1.bf16.msra.mxu0 %v1826
          %2354 = vmatprep.subr.bf16.mxu0 %v1835
          %2355 = vmatpush1.bf16.msra.mxu0 %v1834
          %2356 = vmatprep.subr.bf16.mxu0 %v1843
          %2357 = vmatpush1.bf16.msra.mxu0 %v1842
          %2358 = vmatprep.subr.bf16.mxu0 %v1851
          %2359 = vmatpush1.bf16.msra.mxu0 %v1850
          %2360 = vmatprep.subr.bf16.mxu0 %v1859
          %2361 = vmatpush1.bf16.msra.mxu0 %v1858
          %2362 = vmatprep.mubr.bf16.mxu0 %v667
          %2363 = vmatmul.mubr.bf16.gmra.mrb[0].mxu0 %v666
          %v2364 = vpop.f32.mrb[0].mxu0
          %v2365 = vadd.f32 %v939, %v2364
          %v2366 = vpop.f32.mrb[0].mxu0
          %v2367 = vadd.f32 %v943, %v2366
          %v2368 = vpop.f32.mrb[0].mxu0
          %v2369 = vpop.f32.mrb[0].mxu0
          %2370 = vdwg.mxu0
          %2371 = vmatprep.subr.bf16.mxu0 %v1867
          %2372 = vmatpush1.bf16.msra.mxu0 %v1866
          %2373 = vmatprep.subr.bf16.mxu0 %v1875
          %2374 = vmatpush1.bf16.msra.mxu0 %v1874
          %2375 = vmatprep.subr.bf16.mxu0 %v1883
          %2376 = vmatpush1.bf16.msra.mxu0 %v1882
          %2377 = vmatprep.subr.bf16.mxu0 %v1891
          %2378 = vmatpush1.bf16.msra.mxu0 %v1890
          %2379 = vmatprep.subr.bf16.mxu0 %v1899
          %2380 = vmatpush1.bf16.msra.mxu0 %v1898
          %2381 = vmatprep.subr.bf16.mxu0 %v1907
          %2382 = vmatpush1.bf16.msra.mxu0 %v1906
          %2383 = vmatprep.subr.bf16.mxu0 %v1915
          %2384 = vmatpush1.bf16.msra.mxu0 %v1914
          %2385 = vmatprep.subr.bf16.mxu0 %v1923
          %2386 = vmatpush1.bf16.msra.mxu0 %v1922
          %2387 = vmatprep.subr.bf16.mxu0 %v1931
          %2388 = vmatpush1.bf16.msra.mxu0 %v1930
          %2389 = vmatprep.subr.bf16.mxu0 %v1939
          %2390 = vmatpush1.bf16.msra.mxu0 %v1938
          %2391 = vmatprep.subr.bf16.mxu0 %v1947
          %2392 = vmatpush1.bf16.msra.mxu0 %v1946
          %2393 = vmatprep.subr.bf16.mxu0 %v1955
          %2394 = vmatpush1.bf16.msra.mxu0 %v1954
          %2395 = vmatprep.subr.bf16.mxu0 %v1963
          %2396 = vmatpush1.bf16.msra.mxu0 %v1962
          %2397 = vmatprep.subr.bf16.mxu0 %v1971
          %2398 = vmatpush1.bf16.msra.mxu0 %v1970
          %2399 = vmatprep.subr.bf16.mxu0 %v1979
          %2400 = vmatpush1.bf16.msra.mxu0 %v1978
          %2401 = vmatprep.subr.bf16.mxu0 %v1987
          %2402 = vmatpush1.bf16.msra.mxu0 %v1986
          %2403 = vmatprep.mubr.bf16.mxu0 %v669
          %2404 = vmatmul.mubr.bf16.gmra.mrb[0].mxu0 %v668
          %v2405 = vpop.f32.mrb[0].mxu0
          %v2406 = vadd.f32 %v2365, %v2405
          %v2407 = vpop.f32.mrb[0].mxu0
          %v2408 = vadd.f32 %v2367, %v2407
          %v2409 = vpop.f32.mrb[0].mxu0
          %v2410 = vpop.f32.mrb[0].mxu0
          %2411 = vdwg.mxu0
          %2412 = vmatprep.subr.bf16.mxu0 %v1741
          %2413 = vmatpush1.bf16.msra.mxu0 %v1740
          %2414 = vmatprep.subr.bf16.mxu0 %v1749
          %2415 = vmatpush1.bf16.msra.mxu0 %v1748
          %2416 = vmatprep.subr.bf16.mxu0 %v1757
          %2417 = vmatpush1.bf16.msra.mxu0 %v1756
          %2418 = vmatprep.subr.bf16.mxu0 %v1765
          %2419 = vmatpush1.bf16.msra.mxu0 %v1764
          %2420 = vmatprep.subr.bf16.mxu0 %v1773
          %2421 = vmatpush1.bf16.msra.mxu0 %v1772
          %2422 = vmatprep.subr.bf16.mxu0 %v1781
          %2423 = vmatpush1.bf16.msra.mxu0 %v1780
          %2424 = vmatprep.subr.bf16.mxu0 %v1789
          %2425 = vmatpush1.bf16.msra.mxu0 %v1788
          %2426 = vmatprep.subr.bf16.mxu0 %v1797
          %2427 = vmatpush1.bf16.msra.mxu0 %v1796
          %2428 = vmatprep.subr.bf16.mxu0 %v1805
          %2429 = vmatpush1.bf16.msra.mxu0 %v1804
          %2430 = vmatprep.subr.bf16.mxu0 %v1813
          %2431 = vmatpush1.bf16.msra.mxu0 %v1812
          %2432 = vmatprep.subr.bf16.mxu0 %v1821
          %2433 = vmatpush1.bf16.msra.mxu0 %v1820
          %2434 = vmatprep.subr.bf16.mxu0 %v1829
          %2435 = vmatpush1.bf16.msra.mxu0 %v1828
          %2436 = vmatprep.subr.bf16.mxu0 %v1837
          %2437 = vmatpush1.bf16.msra.mxu0 %v1836
          %2438 = vmatprep.subr.bf16.mxu0 %v1845
          %2439 = vmatpush1.bf16.msra.mxu0 %v1844
          %2440 = vmatprep.subr.bf16.mxu0 %v1853
          %2441 = vmatpush1.bf16.msra.mxu0 %v1852
          %2442 = vmatprep.subr.bf16.mxu0 %v1861
          %2443 = vmatpush1.bf16.msra.mxu0 %v1860
          %2444 = vmatprep.mubr.bf16.mxu0 %v667
          %2445 = vmatmul.mubr.bf16.gmra.mrb[0].mxu0 %v666
          %v2446 = vpop.f32.mrb[0].mxu0
          %v2447 = vadd.f32 %v947, %v2446
          %v2448 = vpop.f32.mrb[0].mxu0
          %v2449 = vadd.f32 %v951, %v2448
          %v2450 = vpop.f32.mrb[0].mxu0
          %v2451 = vpop.f32.mrb[0].mxu0
          %2452 = vdwg.mxu0
          %2453 = vmatprep.subr.bf16.mxu0 %v1869
          %2454 = vmatpush1.bf16.msra.mxu0 %v1868
          %2455 = vmatprep.subr.bf16.mxu0 %v1877
          %2456 = vmatpush1.bf16.msra.mxu0 %v1876
          %2457 = vmatprep.subr.bf16.mxu0 %v1885
          %2458 = vmatpush1.bf16.msra.mxu0 %v1884
          %2459 = vmatprep.subr.bf16.mxu0 %v1893
          %2460 = vmatpush1.bf16.msra.mxu0 %v1892
          %2461 = vmatprep.subr.bf16.mxu0 %v1901
          %2462 = vmatpush1.bf16.msra.mxu0 %v1900
          %2463 = vmatprep.subr.bf16.mxu0 %v1909
          %2464 = vmatpush1.bf16.msra.mxu0 %v1908
          %2465 = vmatprep.subr.bf16.mxu0 %v1917
          %2466 = vmatpush1.bf16.msra.mxu0 %v1916
          %2467 = vmatprep.subr.bf16.mxu0 %v1925
          %2468 = vmatpush1.bf16.msra.mxu0 %v1924
          %2469 = vmatprep.subr.bf16.mxu0 %v1933
          %2470 = vmatpush1.bf16.msra.mxu0 %v1932
          %2471 = vmatprep.subr.bf16.mxu0 %v1941
          %2472 = vmatpush1.bf16.msra.mxu0 %v1940
          %2473 = vmatprep.subr.bf16.mxu0 %v1949
          %2474 = vmatpush1.bf16.msra.mxu0 %v1948
          %2475 = vmatprep.subr.bf16.mxu0 %v1957
          %2476 = vmatpush1.bf16.msra.mxu0 %v1956
          %2477 = vmatprep.subr.bf16.mxu0 %v1965
          %2478 = vmatpush1.bf16.msra.mxu0 %v1964
          %2479 = vmatprep.subr.bf16.mxu0 %v1973
          %2480 = vmatpush1.bf16.msra.mxu0 %v1972
          %2481 = vmatprep.subr.bf16.mxu0 %v1981
          %2482 = vmatpush1.bf16.msra.mxu0 %v1980
          %2483 = vmatprep.subr.bf16.mxu0 %v1989
          %2484 = vmatpush1.bf16.msra.mxu0 %v1988
          %2485 = vmatprep.mubr.bf16.mxu0 %v669
          %2486 = vmatmul.mubr.bf16.gmra.mrb[0].mxu0 %v668
          %v2487 = vpop.f32.mrb[0].mxu0
          %v2488 = vadd.f32 %v2447, %v2487
          %v2489 = vpop.f32.mrb[0].mxu0
          %v2490 = vadd.f32 %v2449, %v2489
          %v2491 = vpop.f32.mrb[0].mxu0
          %v2492 = vpop.f32.mrb[0].mxu0
          %2493 = vdwg.mxu0
          %2494 = vmatprep.subr.bf16.mxu0 %v1743
          %2495 = vmatpush1.bf16.msra.mxu0 %v1742
          %2496 = vmatprep.subr.bf16.mxu0 %v1751
          %2497 = vmatpush1.bf16.msra.mxu0 %v1750
          %2498 = vmatprep.subr.bf16.mxu0 %v1759
          %2499 = vmatpush1.bf16.msra.mxu0 %v1758
          %2500 = vmatprep.subr.bf16.mxu0 %v1767
          %2501 = vmatpush1.bf16.msra.mxu0 %v1766
          %2502 = vmatprep.subr.bf16.mxu0 %v1775
          %2503 = vmatpush1.bf16.msra.mxu0 %v1774
          %2504 = vmatprep.subr.bf16.mxu0 %v1783
          %2505 = vmatpush1.bf16.msra.mxu0 %v1782
          %2506 = vmatprep.subr.bf16.mxu0 %v1791
          %2507 = vmatpush1.bf16.msra.mxu0 %v1790
          %2508 = vmatprep.subr.bf16.mxu0 %v1799
          %2509 = vmatpush1.bf16.msra.mxu0 %v1798
          %2510 = vmatprep.subr.bf16.mxu0 %v1807
          %2511 = vmatpush1.bf16.msra.mxu0 %v1806
          %2512 = vmatprep.subr.bf16.mxu0 %v1815
          %2513 = vmatpush1.bf16.msra.mxu0 %v1814
          %2514 = vmatprep.subr.bf16.mxu0 %v1823
          %2515 = vmatpush1.bf16.msra.mxu0 %v1822
          %2516 = vmatprep.subr.bf16.mxu0 %v1831
          %2517 = vmatpush1.bf16.msra.mxu0 %v1830
          %2518 = vmatprep.subr.bf16.mxu0 %v1839
          %2519 = vmatpush1.bf16.msra.mxu0 %v1838
          %2520 = vmatprep.subr.bf16.mxu0 %v1847
          %2521 = vmatpush1.bf16.msra.mxu0 %v1846
          %2522 = vmatprep.subr.bf16.mxu0 %v1855
          %2523 = vmatpush1.bf16.msra.mxu0 %v1854
          %2524 = vmatprep.subr.bf16.mxu0 %v1863
          %2525 = vmatpush1.bf16.msra.mxu0 %v1862
          %2526 = vmatprep.mubr.bf16.mxu0 %v667
          %2527 = vmatmul.mubr.bf16.gmra.mrb[0].mxu0 %v666
          %v2528 = vpop.f32.mrb[0].mxu0
          %v2529 = vadd.f32 %v955, %v2528
          %v2530 = vpop.f32.mrb[0].mxu0
          %v2531 = vadd.f32 %v959, %v2530
          %v2532 = vpop.f32.mrb[0].mxu0
          %v2533 = vpop.f32.mrb[0].mxu0
          %2534 = vdwg.mxu0
          %2535 = vmatprep.subr.bf16.mxu0 %v1871
          %2536 = vmatpush1.bf16.msra.mxu0 %v1870
          %2537 = vmatprep.subr.bf16.mxu0 %v1879
          %2538 = vmatpush1.bf16.msra.mxu0 %v1878
          %2539 = vmatprep.subr.bf16.mxu0 %v1887
          %2540 = vmatpush1.bf16.msra.mxu0 %v1886
          %2541 = vmatprep.subr.bf16.mxu0 %v1895
          %2542 = vmatpush1.bf16.msra.mxu0 %v1894
          %2543 = vmatprep.subr.bf16.mxu0 %v1903
          %2544 = vmatpush1.bf16.msra.mxu0 %v1902
          %2545 = vmatprep.subr.bf16.mxu0 %v1911
          %2546 = vmatpush1.bf16.msra.mxu0 %v1910
          %2547 = vmatprep.subr.bf16.mxu0 %v1919
          %2548 = vmatpush1.bf16.msra.mxu0 %v1918
          %2549 = vmatprep.subr.bf16.mxu0 %v1927
          %2550 = vmatpush1.bf16.msra.mxu0 %v1926
          %2551 = vmatprep.subr.bf16.mxu0 %v1935
          %2552 = vmatpush1.bf16.msra.mxu0 %v1934
          %2553 = vmatprep.subr.bf16.mxu0 %v1943
          %2554 = vmatpush1.bf16.msra.mxu0 %v1942
          %2555 = vmatprep.subr.bf16.mxu0 %v1951
          %2556 = vmatpush1.bf16.msra.mxu0 %v1950
          %2557 = vmatprep.subr.bf16.mxu0 %v1959
          %2558 = vmatpush1.bf16.msra.mxu0 %v1958
          %2559 = vmatprep.subr.bf16.mxu0 %v1967
          %2560 = vmatpush1.bf16.msra.mxu0 %v1966
          %2561 = vmatprep.subr.bf16.mxu0 %v1975
          %2562 = vmatpush1.bf16.msra.mxu0 %v1974
          %2563 = vmatprep.subr.bf16.mxu0 %v1983
          %2564 = vmatpush1.bf16.msra.mxu0 %v1982
          %2565 = vmatprep.subr.bf16.mxu0 %v1991
          %2566 = vmatpush1.bf16.msra.mxu0 %v1990
          %2567 = vmatprep.mubr.bf16.mxu0 %v669
          %2568 = vmatmul.mubr.bf16.gmra.mrb[0].mxu0 %v668
          %v2569 = vpop.f32.mrb[0].mxu0
          %v2570 = vadd.f32 %v2529, %v2569
          %v2571 = vpop.f32.mrb[0].mxu0
          %v2572 = vadd.f32 %v2531, %v2571
          %v2573 = vpop.f32.mrb[0].mxu0
          %v2574 = vpop.f32.mrb[0].mxu0
          %2575 = vdwg.mxu0
          %v2576 = vpack.c.bf16 %v2324, %v2324
          %v2577 = vpack.c.bf16 %v2326, %v2326
          %v2578 = vpack.c.bf16 %v2406, %v2406
          %v2579 = vpack.c.bf16 %v2408, %v2408
          %v2580 = vpack.c.bf16 %v2488, %v2488
          %v2581 = vpack.c.bf16 %v2490, %v2490
          %v2582 = vpack.c.bf16 %v2570, %v2570
          %v2583 = vpack.c.bf16 %v2572, %v2572
          %v2592 = vunpack.c.l.b16 %v2576
          %v2593 = vunpack.c.l.b16 %v2577
          %v2594 = vunpack.c.l.b16 %v2578
          %v2595 = vunpack.c.l.b16 %v2579
          %v2596 = vunpack.c.l.b16 %v2580
          %v2597 = vunpack.c.l.b16 %v2581
          %v2598 = vunpack.c.l.b16 %v2582
          %v2599 = vunpack.c.l.b16 %v2583
          %v2600 = vpack.c.b16 %v2593, %v2592
          %v2601 = vpack.c.b16 %v2595, %v2594
          %v2602 = vpack.c.b16 %v2597, %v2596
          %v2603 = vpack.c.b16 %v2599, %v2598
          %2608 = vst [vmem:[#allocation2] sm:$0xff] %v2600
          %2609 = vst [vmem:[#allocation2 + $0x8] sm:$0xff] %v2601
          %2610 = vst [vmem:[#allocation2 + $0x10] sm:$0xff] %v2602
          %2611 = vst [vmem:[#allocation2 + $0x18] sm:$0xff] %v2603
        $region120: #{tpu_custom_call.1} parent=67 // pred_fallthru
          _
        %v2612 = vld [vmem:[%s564] sm:$0xff]
        %v2613 = vld [vmem:[%s564 + $0x8] sm:$0xff]
        %v2614 = vld [vmem:[%s564 + $0x10] sm:$0xff]
        %v2615 = vld [vmem:[%s564 + $0x18] sm:$0xff]
        %v2616 = vpack.c.bf16 %v2612, %v2612
        %v2617 = vpack.c.bf16 %v2613, %v2613
        %v2618 = vpack.c.bf16 %v2614, %v2614
        %v2619 = vpack.c.bf16 %v2615, %v2615
        %v2620 = vld [vmem:[#allocation8] sm:$0xff]
        %v2621 = vld [vmem:[#allocation8 + $0x8] sm:$0xff]
        %v2622 = vld [vmem:[#allocation8 + $0x30] sm:$0xff]
        %v2623 = vld [vmem:[#allocation8 + $0x38] sm:$0xff]
        %v2624 = vld [vmem:[#allocation8 + $0x60] sm:$0xff]
        %v2625 = vld [vmem:[#allocation8 + $0x68] sm:$0xff]
        %v2626 = vld [vmem:[#allocation8 + $0x90] sm:$0xff]
        %v2627 = vld [vmem:[#allocation8 + $0x98] sm:$0xff]
        %v2628 = vld [vmem:[#allocation8 + $0xc0] sm:$0xff]
        %v2629 = vld [vmem:[#allocation8 + $0xc8] sm:$0xff]
        %v2630 = vld [vmem:[#allocation8 + $0xf0] sm:$0xff]
        %v2631 = vld [vmem:[#allocation8 + $0xf8] sm:$0xff]
        %v2632 = vld [vmem:[#allocation8 + $0x120] sm:$0xff]
        %v2633 = vld [vmem:[#allocation8 + $0x128] sm:$0xff]
        %v2634 = vld [vmem:[#allocation8 + $0x150] sm:$0xff]
        %v2635 = vld [vmem:[#allocation8 + $0x158] sm:$0xff]
        %v2636 = vld [vmem:[#allocation8 + $0x180] sm:$0xff]
        %v2637 = vld [vmem:[#allocation8 + $0x188] sm:$0xff]
        %v2638 = vld [vmem:[#allocation8 + $0x1b0] sm:$0xff]
        %v2639 = vld [vmem:[#allocation8 + $0x1b8] sm:$0xff]
        %v2640 = vld [vmem:[#allocation8 + $0x1e0] sm:$0xff]
        %v2641 = vld [vmem:[#allocation8 + $0x1e8] sm:$0xff]
        %v2642 = vld [vmem:[#allocation8 + $0x210] sm:$0xff]
        %v2643 = vld [vmem:[#allocation8 + $0x218] sm:$0xff]
        %v2644 = vld [vmem:[#allocation8 + $0x240] sm:$0xff]
        %v2645 = vld [vmem:[#allocation8 + $0x248] sm:$0xff]
        %v2646 = vld [vmem:[#allocation8 + $0x270] sm:$0xff]
        %v2647 = vld [vmem:[#allocation8 + $0x278] sm:$0xff]
        %v2648 = vld [vmem:[#allocation8 + $0x2a0] sm:$0xff]
        %v2649 = vld [vmem:[#allocation8 + $0x2a8] sm:$0xff]
        %v2650 = vld [vmem:[#allocation8 + $0x2d0] sm:$0xff]
        %v2651 = vld [vmem:[#allocation8 + $0x2d8] sm:$0xff]
        %v2652 = vld [vmem:[#allocation8 + $0x300] sm:$0xff]
        %v2653 = vld [vmem:[#allocation8 + $0x308] sm:$0xff]
        %v2654 = vld [vmem:[#allocation8 + $0x330] sm:$0xff]
        %v2655 = vld [vmem:[#allocation8 + $0x338] sm:$0xff]
        %v2656 = vld [vmem:[#allocation8 + $0x360] sm:$0xff]
        %v2657 = vld [vmem:[#allocation8 + $0x368] sm:$0xff]
        %v2658 = vld [vmem:[#allocation8 + $0x390] sm:$0xff]
        %v2659 = vld [vmem:[#allocation8 + $0x398] sm:$0xff]
        %v2660 = vld [vmem:[#allocation8 + $0x3c0] sm:$0xff]
        %v2661 = vld [vmem:[#allocation8 + $0x3c8] sm:$0xff]
        %v2662 = vld [vmem:[#allocation8 + $0x3f0] sm:$0xff]
        %v2663 = vld [vmem:[#allocation8 + $0x3f8] sm:$0xff]
        %v2664 = vld [vmem:[#allocation8 + $0x420] sm:$0xff]
        %v2665 = vld [vmem:[#allocation8 + $0x428] sm:$0xff]
        %v2666 = vld [vmem:[#allocation8 + $0x450] sm:$0xff]
        %v2667 = vld [vmem:[#allocation8 + $0x458] sm:$0xff]
        %v2668 = vld [vmem:[#allocation8 + $0x480] sm:$0xff]
        %v2669 = vld [vmem:[#allocation8 + $0x488] sm:$0xff]
        %v2670 = vld [vmem:[#allocation8 + $0x4b0] sm:$0xff]
        %v2671 = vld [vmem:[#allocation8 + $0x4b8] sm:$0xff]
        %v2672 = vld [vmem:[#allocation8 + $0x4e0] sm:$0xff]
        %v2673 = vld [vmem:[#allocation8 + $0x4e8] sm:$0xff]
        %v2674 = vld [vmem:[#allocation8 + $0x510] sm:$0xff]
        %v2675 = vld [vmem:[#allocation8 + $0x518] sm:$0xff]
        %v2676 = vld [vmem:[#allocation8 + $0x540] sm:$0xff]
        %v2677 = vld [vmem:[#allocation8 + $0x548] sm:$0xff]
        %v2678 = vld [vmem:[#allocation8 + $0x570] sm:$0xff]
        %v2679 = vld [vmem:[#allocation8 + $0x578] sm:$0xff]
        %v2680 = vld [vmem:[#allocation8 + $0x5a0] sm:$0xff]
        %v2681 = vld [vmem:[#allocation8 + $0x5a8] sm:$0xff]
        %v2682 = vld [vmem:[#allocation8 + $0x5d0] sm:$0xff]
        %v2683 = vld [vmem:[#allocation8 + $0x5d8] sm:$0xff]
        %v2684 = vld [vmem:[#allocation8 + $0x600] sm:$0xff]
        %v2685 = vld [vmem:[#allocation8 + $0x608] sm:$0xff]
        %v2686 = vld [vmem:[#allocation8 + $0x630] sm:$0xff]
        %v2687 = vld [vmem:[#allocation8 + $0x638] sm:$0xff]
        %v2688 = vld [vmem:[#allocation8 + $0x660] sm:$0xff]
        %v2689 = vld [vmem:[#allocation8 + $0x668] sm:$0xff]
        %v2690 = vld [vmem:[#allocation8 + $0x690] sm:$0xff]
        %v2691 = vld [vmem:[#allocation8 + $0x698] sm:$0xff]
        %v2692 = vld [vmem:[#allocation8 + $0x6c0] sm:$0xff]
        %v2693 = vld [vmem:[#allocation8 + $0x6c8] sm:$0xff]
        %v2694 = vld [vmem:[#allocation8 + $0x6f0] sm:$0xff]
        %v2695 = vld [vmem:[#allocation8 + $0x6f8] sm:$0xff]
        %v2696 = vld [vmem:[#allocation8 + $0x720] sm:$0xff]
        %v2697 = vld [vmem:[#allocation8 + $0x728] sm:$0xff]
        %v2698 = vld [vmem:[#allocation8 + $0x750] sm:$0xff]
        %v2699 = vld [vmem:[#allocation8 + $0x758] sm:$0xff]
        %v2700 = vld [vmem:[#allocation8 + $0x780] sm:$0xff]
        %v2701 = vld [vmem:[#allocation8 + $0x788] sm:$0xff]
        %v2702 = vld [vmem:[#allocation8 + $0x7b0] sm:$0xff]
        %v2703 = vld [vmem:[#allocation8 + $0x7b8] sm:$0xff]
        %v2704 = vld [vmem:[#allocation8 + $0x7e0] sm:$0xff]
        %v2705 = vld [vmem:[#allocation8 + $0x7e8] sm:$0xff]
        %v2706 = vld [vmem:[#allocation8 + $0x810] sm:$0xff]
        %v2707 = vld [vmem:[#allocation8 + $0x818] sm:$0xff]
        %v2708 = vld [vmem:[#allocation8 + $0x840] sm:$0xff]
        %v2709 = vld [vmem:[#allocation8 + $0x848] sm:$0xff]
        %v2710 = vld [vmem:[#allocation8 + $0x870] sm:$0xff]
        %v2711 = vld [vmem:[#allocation8 + $0x878] sm:$0xff]
        %v2712 = vld [vmem:[#allocation8 + $0x8a0] sm:$0xff]
        %v2713 = vld [vmem:[#allocation8 + $0x8a8] sm:$0xff]
        %v2714 = vld [vmem:[#allocation8 + $0x8d0] sm:$0xff]
        %v2715 = vld [vmem:[#allocation8 + $0x8d8] sm:$0xff]
        %v2716 = vld [vmem:[#allocation8 + $0x900] sm:$0xff]
        %v2717 = vld [vmem:[#allocation8 + $0x908] sm:$0xff]
        %v2718 = vld [vmem:[#allocation8 + $0x930] sm:$0xff]
        %v2719 = vld [vmem:[#allocation8 + $0x938] sm:$0xff]
        %v2720 = vld [vmem:[#allocation8 + $0x960] sm:$0xff]
        %v2721 = vld [vmem:[#allocation8 + $0x968] sm:$0xff]
        %v2722 = vld [vmem:[#allocation8 + $0x990] sm:$0xff]
        %v2723 = vld [vmem:[#allocation8 + $0x998] sm:$0xff]
        %v2724 = vld [vmem:[#allocation8 + $0x9c0] sm:$0xff]
        %v2725 = vld [vmem:[#allocation8 + $0x9c8] sm:$0xff]
        %v2726 = vld [vmem:[#allocation8 + $0x9f0] sm:$0xff]
        %v2727 = vld [vmem:[#allocation8 + $0x9f8] sm:$0xff]
        %v2728 = vld [vmem:[#allocation8 + $0xa20] sm:$0xff]
        %v2729 = vld [vmem:[#allocation8 + $0xa28] sm:$0xff]
        %v2730 = vld [vmem:[#allocation8 + $0xa50] sm:$0xff]
        %v2731 = vld [vmem:[#allocation8 + $0xa58] sm:$0xff]
        %v2732 = vld [vmem:[#allocation8 + $0xa80] sm:$0xff]
        %v2733 = vld [vmem:[#allocation8 + $0xa88] sm:$0xff]
        %v2734 = vld [vmem:[#allocation8 + $0xab0] sm:$0xff]
        %v2735 = vld [vmem:[#allocation8 + $0xab8] sm:$0xff]
        %v2736 = vld [vmem:[#allocation8 + $0xae0] sm:$0xff]
        %v2737 = vld [vmem:[#allocation8 + $0xae8] sm:$0xff]
        %v2738 = vld [vmem:[#allocation8 + $0xb10] sm:$0xff]
        %v2739 = vld [vmem:[#allocation8 + $0xb18] sm:$0xff]
        %v2740 = vld [vmem:[#allocation8 + $0xb40] sm:$0xff]
        %v2741 = vld [vmem:[#allocation8 + $0xb48] sm:$0xff]
        %v2742 = vld [vmem:[#allocation8 + $0xb70] sm:$0xff]
        %v2743 = vld [vmem:[#allocation8 + $0xb78] sm:$0xff]
        %v2744 = vld [vmem:[#allocation8 + $0xba0] sm:$0xff]
        %v2745 = vld [vmem:[#allocation8 + $0xba8] sm:$0xff]
        %v2746 = vld [vmem:[#allocation8 + $0xbd0] sm:$0xff]
        %v2747 = vld [vmem:[#allocation8 + $0xbd8] sm:$0xff]
        %v2748 = vld [vmem:[#allocation9] sm:$0xf]
        %v2750 = vlaneseq
        %v2751 = vshrl.u32 %v2750, 7
        %v2752 = vsub.s32 0, %v2751
        %v2753 = vrot.slane %v2748, %v2752
        %v2754 = vlaneseq
        %v2755 = vshrl.u32 %v2754, 7
        %v2756 = vsub.s32 1, %v2755
        %v2757 = vrot.slane %v2748, %v2756
        %v2758 = vlaneseq
        %v2759 = vshrl.u32 %v2758, 7
        %v2760 = vsub.s32 2, %v2759
        %v2761 = vrot.slane %v2748, %v2760
        %v2762 = vlaneseq
        %v2763 = vshrl.u32 %v2762, 7
        %v2764 = vsub.s32 3, %v2763
        %v2765 = vrot.slane %v2748, %v2764
        %v2898 = vunpack.c.l.b16 %v2620
        %v2899 = vunpack.c.h.b16 %v2620
        %v2900 = vunpack.c.l.b16 %v2621
        %v2901 = vunpack.c.h.b16 %v2621
        %v2902 = vunpack.c.l.b16 %v2622
        %v2903 = vunpack.c.h.b16 %v2622
        %v2904 = vunpack.c.l.b16 %v2623
        %v2905 = vunpack.c.h.b16 %v2623
        %v2906 = vunpack.c.l.b16 %v2624
        %v2907 = vunpack.c.h.b16 %v2624
        %v2908 = vunpack.c.l.b16 %v2625
        %v2909 = vunpack.c.h.b16 %v2625
        %v2910 = vunpack.c.l.b16 %v2626
        %v2911 = vunpack.c.h.b16 %v2626
        %v2912 = vunpack.c.l.b16 %v2627
        %v2913 = vunpack.c.h.b16 %v2627
        %v2914 = vunpack.c.l.b16 %v2628
        %v2915 = vunpack.c.h.b16 %v2628
        %v2916 = vunpack.c.l.b16 %v2629
        %v2917 = vunpack.c.h.b16 %v2629
        %v2918 = vunpack.c.l.b16 %v2630
        %v2919 = vunpack.c.h.b16 %v2630
        %v2920 = vunpack.c.l.b16 %v2631
        %v2921 = vunpack.c.h.b16 %v2631
        %v2922 = vunpack.c.l.b16 %v2632
        %v2923 = vunpack.c.h.b16 %v2632
        %v2924 = vunpack.c.l.b16 %v2633
        %v2925 = vunpack.c.h.b16 %v2633
        %v2926 = vunpack.c.l.b16 %v2634
        %v2927 = vunpack.c.h.b16 %v2634
        %v2928 = vunpack.c.l.b16 %v2635
        %v2929 = vunpack.c.h.b16 %v2635
        %v2930 = vunpack.c.l.b16 %v2636
        %v2931 = vunpack.c.h.b16 %v2636
        %v2932 = vunpack.c.l.b16 %v2637
        %v2933 = vunpack.c.h.b16 %v2637
        %v2934 = vunpack.c.l.b16 %v2638
        %v2935 = vunpack.c.h.b16 %v2638
        %v2936 = vunpack.c.l.b16 %v2639
        %v2937 = vunpack.c.h.b16 %v2639
        %v2938 = vunpack.c.l.b16 %v2640
        %v2939 = vunpack.c.h.b16 %v2640
        %v2940 = vunpack.c.l.b16 %v2641
        %v2941 = vunpack.c.h.b16 %v2641
        %v2942 = vunpack.c.l.b16 %v2642
        %v2943 = vunpack.c.h.b16 %v2642
        %v2944 = vunpack.c.l.b16 %v2643
        %v2945 = vunpack.c.h.b16 %v2643
        %v2946 = vunpack.c.l.b16 %v2644
        %v2947 = vunpack.c.h.b16 %v2644
        %v2948 = vunpack.c.l.b16 %v2645
        %v2949 = vunpack.c.h.b16 %v2645
        %v2950 = vunpack.c.l.b16 %v2646
        %v2951 = vunpack.c.h.b16 %v2646
        %v2952 = vunpack.c.l.b16 %v2647
        %v2953 = vunpack.c.h.b16 %v2647
        %v2954 = vunpack.c.l.b16 %v2648
        %v2955 = vunpack.c.h.b16 %v2648
        %v2956 = vunpack.c.l.b16 %v2649
        %v2957 = vunpack.c.h.b16 %v2649
        %v2958 = vunpack.c.l.b16 %v2650
        %v2959 = vunpack.c.h.b16 %v2650
        %v2960 = vunpack.c.l.b16 %v2651
        %v2961 = vunpack.c.h.b16 %v2651
        %v2962 = vunpack.c.l.b16 %v2652
        %v2963 = vunpack.c.h.b16 %v2652
        %v2964 = vunpack.c.l.b16 %v2653
        %v2965 = vunpack.c.h.b16 %v2653
        %v2966 = vunpack.c.l.b16 %v2654
        %v2967 = vunpack.c.h.b16 %v2654
        %v2968 = vunpack.c.l.b16 %v2655
        %v2969 = vunpack.c.h.b16 %v2655
        %v2970 = vunpack.c.l.b16 %v2656
        %v2971 = vunpack.c.h.b16 %v2656
        %v2972 = vunpack.c.l.b16 %v2657
        %v2973 = vunpack.c.h.b16 %v2657
        %v2974 = vunpack.c.l.b16 %v2658
        %v2975 = vunpack.c.h.b16 %v2658
        %v2976 = vunpack.c.l.b16 %v2659
        %v2977 = vunpack.c.h.b16 %v2659
        %v2978 = vunpack.c.l.b16 %v2660
        %v2979 = vunpack.c.h.b16 %v2660
        %v2980 = vunpack.c.l.b16 %v2661
        %v2981 = vunpack.c.h.b16 %v2661
        %v2982 = vunpack.c.l.b16 %v2662
        %v2983 = vunpack.c.h.b16 %v2662
        %v2984 = vunpack.c.l.b16 %v2663
        %v2985 = vunpack.c.h.b16 %v2663
        %v2986 = vunpack.c.l.b16 %v2664
        %v2987 = vunpack.c.h.b16 %v2664
        %v2988 = vunpack.c.l.b16 %v2665
        %v2989 = vunpack.c.h.b16 %v2665
        %v2990 = vunpack.c.l.b16 %v2666
        %v2991 = vunpack.c.h.b16 %v2666
        %v2992 = vunpack.c.l.b16 %v2667
        %v2993 = vunpack.c.h.b16 %v2667
        %v2994 = vunpack.c.l.b16 %v2668
        %v2995 = vunpack.c.h.b16 %v2668
        %v2996 = vunpack.c.l.b16 %v2669
        %v2997 = vunpack.c.h.b16 %v2669
        %v2998 = vunpack.c.l.b16 %v2670
        %v2999 = vunpack.c.h.b16 %v2670
        %v3000 = vunpack.c.l.b16 %v2671
        %v3001 = vunpack.c.h.b16 %v2671
        %v3002 = vunpack.c.l.b16 %v2672
        %v3003 = vunpack.c.h.b16 %v2672
        %v3004 = vunpack.c.l.b16 %v2673
        %v3005 = vunpack.c.h.b16 %v2673
        %v3006 = vunpack.c.l.b16 %v2674
        %v3007 = vunpack.c.h.b16 %v2674
        %v3008 = vunpack.c.l.b16 %v2675
        %v3009 = vunpack.c.h.b16 %v2675
        %v3010 = vunpack.c.l.b16 %v2676
        %v3011 = vunpack.c.h.b16 %v2676
        %v3012 = vunpack.c.l.b16 %v2677
        %v3013 = vunpack.c.h.b16 %v2677
        %v3014 = vunpack.c.l.b16 %v2678
        %v3015 = vunpack.c.h.b16 %v2678
        %v3016 = vunpack.c.l.b16 %v2679
        %v3017 = vunpack.c.h.b16 %v2679
        %v3018 = vunpack.c.l.b16 %v2680
        %v3019 = vunpack.c.h.b16 %v2680
        %v3020 = vunpack.c.l.b16 %v2681
        %v3021 = vunpack.c.h.b16 %v2681
        %v3022 = vunpack.c.l.b16 %v2682
        %v3023 = vunpack.c.h.b16 %v2682
        %v3024 = vunpack.c.l.b16 %v2683
        %v3025 = vunpack.c.h.b16 %v2683
        %v3026 = vunpack.c.l.b16 %v2684
        %v3027 = vunpack.c.h.b16 %v2684
        %v3028 = vunpack.c.l.b16 %v2685
        %v3029 = vunpack.c.h.b16 %v2685
        %v3030 = vunpack.c.l.b16 %v2686
        %v3031 = vunpack.c.h.b16 %v2686
        %v3032 = vunpack.c.l.b16 %v2687
        %v3033 = vunpack.c.h.b16 %v2687
        %v3034 = vunpack.c.l.b16 %v2688
        %v3035 = vunpack.c.h.b16 %v2688
        %v3036 = vunpack.c.l.b16 %v2689
        %v3037 = vunpack.c.h.b16 %v2689
        %v3038 = vunpack.c.l.b16 %v2690
        %v3039 = vunpack.c.h.b16 %v2690
        %v3040 = vunpack.c.l.b16 %v2691
        %v3041 = vunpack.c.h.b16 %v2691
        %v3042 = vunpack.c.l.b16 %v2692
        %v3043 = vunpack.c.h.b16 %v2692
        %v3044 = vunpack.c.l.b16 %v2693
        %v3045 = vunpack.c.h.b16 %v2693
        %v3046 = vunpack.c.l.b16 %v2694
        %v3047 = vunpack.c.h.b16 %v2694
        %v3048 = vunpack.c.l.b16 %v2695
        %v3049 = vunpack.c.h.b16 %v2695
        %v3050 = vunpack.c.l.b16 %v2696
        %v3051 = vunpack.c.h.b16 %v2696
        %v3052 = vunpack.c.l.b16 %v2697
        %v3053 = vunpack.c.h.b16 %v2697
        %v3054 = vunpack.c.l.b16 %v2698
        %v3055 = vunpack.c.h.b16 %v2698
        %v3056 = vunpack.c.l.b16 %v2699
        %v3057 = vunpack.c.h.b16 %v2699
        %v3058 = vunpack.c.l.b16 %v2700
        %v3059 = vunpack.c.h.b16 %v2700
        %v3060 = vunpack.c.l.b16 %v2701
        %v3061 = vunpack.c.h.b16 %v2701
        %v3062 = vunpack.c.l.b16 %v2702
        %v3063 = vunpack.c.h.b16 %v2702
        %v3064 = vunpack.c.l.b16 %v2703
        %v3065 = vunpack.c.h.b16 %v2703
        %v3066 = vunpack.c.l.b16 %v2704
        %v3067 = vunpack.c.h.b16 %v2704
        %v3068 = vunpack.c.l.b16 %v2705
        %v3069 = vunpack.c.h.b16 %v2705
        %v3070 = vunpack.c.l.b16 %v2706
        %v3071 = vunpack.c.h.b16 %v2706
        %v3072 = vunpack.c.l.b16 %v2707
        %v3073 = vunpack.c.h.b16 %v2707
        %v3074 = vunpack.c.l.b16 %v2708
        %v3075 = vunpack.c.h.b16 %v2708
        %v3076 = vunpack.c.l.b16 %v2709
        %v3077 = vunpack.c.h.b16 %v2709
        %v3078 = vunpack.c.l.b16 %v2710
        %v3079 = vunpack.c.h.b16 %v2710
        %v3080 = vunpack.c.l.b16 %v2711
        %v3081 = vunpack.c.h.b16 %v2711
        %v3082 = vunpack.c.l.b16 %v2712
        %v3083 = vunpack.c.h.b16 %v2712
        %v3084 = vunpack.c.l.b16 %v2713
        %v3085 = vunpack.c.h.b16 %v2713
        %v3086 = vunpack.c.l.b16 %v2714
        %v3087 = vunpack.c.h.b16 %v2714
        %v3088 = vunpack.c.l.b16 %v2715
        %v3089 = vunpack.c.h.b16 %v2715
        %v3090 = vunpack.c.l.b16 %v2716
        %v3091 = vunpack.c.h.b16 %v2716
        %v3092 = vunpack.c.l.b16 %v2717
        %v3093 = vunpack.c.h.b16 %v2717
        %v3094 = vunpack.c.l.b16 %v2718
        %v3095 = vunpack.c.h.b16 %v2718
        %v3096 = vunpack.c.l.b16 %v2719
        %v3097 = vunpack.c.h.b16 %v2719
        %v3098 = vunpack.c.l.b16 %v2720
        %v3099 = vunpack.c.h.b16 %v2720
        %v3100 = vunpack.c.l.b16 %v2721
        %v3101 = vunpack.c.h.b16 %v2721
        %v3102 = vunpack.c.l.b16 %v2722
        %v3103 = vunpack.c.h.b16 %v2722
        %v3104 = vunpack.c.l.b16 %v2723
        %v3105 = vunpack.c.h.b16 %v2723
        %v3106 = vunpack.c.l.b16 %v2724
        %v3107 = vunpack.c.h.b16 %v2724
        %v3108 = vunpack.c.l.b16 %v2725
        %v3109 = vunpack.c.h.b16 %v2725
        %v3110 = vunpack.c.l.b16 %v2726
        %v3111 = vunpack.c.h.b16 %v2726
        %v3112 = vunpack.c.l.b16 %v2727
        %v3113 = vunpack.c.h.b16 %v2727
        %v3114 = vunpack.c.l.b16 %v2728
        %v3115 = vunpack.c.h.b16 %v2728
        %v3116 = vunpack.c.l.b16 %v2729
        %v3117 = vunpack.c.h.b16 %v2729
        %v3118 = vunpack.c.l.b16 %v2730
        %v3119 = vunpack.c.h.b16 %v2730
        %v3120 = vunpack.c.l.b16 %v2731
        %v3121 = vunpack.c.h.b16 %v2731
        %v3122 = vunpack.c.l.b16 %v2732
        %v3123 = vunpack.c.h.b16 %v2732
        %v3124 = vunpack.c.l.b16 %v2733
        %v3125 = vunpack.c.h.b16 %v2733
        %v3126 = vunpack.c.l.b16 %v2734
        %v3127 = vunpack.c.h.b16 %v2734
        %v3128 = vunpack.c.l.b16 %v2735
        %v3129 = vunpack.c.h.b16 %v2735
        %v3130 = vunpack.c.l.b16 %v2736
        %v3131 = vunpack.c.h.b16 %v2736
        %v3132 = vunpack.c.l.b16 %v2737
        %v3133 = vunpack.c.h.b16 %v2737
        %v3134 = vunpack.c.l.b16 %v2738
        %v3135 = vunpack.c.h.b16 %v2738
        %v3136 = vunpack.c.l.b16 %v2739
        %v3137 = vunpack.c.h.b16 %v2739
        %v3138 = vunpack.c.l.b16 %v2740
        %v3139 = vunpack.c.h.b16 %v2740
        %v3140 = vunpack.c.l.b16 %v2741
        %v3141 = vunpack.c.h.b16 %v2741
        %v3142 = vunpack.c.l.b16 %v2742
        %v3143 = vunpack.c.h.b16 %v2742
        %v3144 = vunpack.c.l.b16 %v2743
        %v3145 = vunpack.c.h.b16 %v2743
        %v3146 = vunpack.c.l.b16 %v2744
        %v3147 = vunpack.c.h.b16 %v2744
        %v3148 = vunpack.c.l.b16 %v2745
        %v3149 = vunpack.c.h.b16 %v2745
        %v3150 = vunpack.c.l.b16 %v2746
        %v3151 = vunpack.c.h.b16 %v2746
        %v3152 = vunpack.c.l.b16 %v2747
        %v3153 = vunpack.c.h.b16 %v2747
        %v3154 = vpack.c.b16 %v2902, %v2898
        %v3155 = vpack.c.b16 %v2903, %v2899
        %v3156 = vpack.c.b16 %v2904, %v2900
        %v3157 = vpack.c.b16 %v2905, %v2901
        %v3158 = vpack.c.b16 %v2910, %v2906
        %v3159 = vpack.c.b16 %v2911, %v2907
        %v3160 = vpack.c.b16 %v2912, %v2908
        %v3161 = vpack.c.b16 %v2913, %v2909
        %v3162 = vpack.c.b16 %v2918, %v2914
        %v3163 = vpack.c.b16 %v2919, %v2915
        %v3164 = vpack.c.b16 %v2920, %v2916
        %v3165 = vpack.c.b16 %v2921, %v2917
        %v3166 = vpack.c.b16 %v2926, %v2922
        %v3167 = vpack.c.b16 %v2927, %v2923
        %v3168 = vpack.c.b16 %v2928, %v2924
        %v3169 = vpack.c.b16 %v2929, %v2925
        %v3170 = vpack.c.b16 %v2934, %v2930
        %v3171 = vpack.c.b16 %v2935, %v2931
        %v3172 = vpack.c.b16 %v2936, %v2932
        %v3173 = vpack.c.b16 %v2937, %v2933
        %v3174 = vpack.c.b16 %v2942, %v2938
        %v3175 = vpack.c.b16 %v2943, %v2939
        %v3176 = vpack.c.b16 %v2944, %v2940
        %v3177 = vpack.c.b16 %v2945, %v2941
        %v3178 = vpack.c.b16 %v2950, %v2946
        %v3179 = vpack.c.b16 %v2951, %v2947
        %v3180 = vpack.c.b16 %v2952, %v2948
        %v3181 = vpack.c.b16 %v2953, %v2949
        %v3182 = vpack.c.b16 %v2958, %v2954
        %v3183 = vpack.c.b16 %v2959, %v2955
        %v3184 = vpack.c.b16 %v2960, %v2956
        %v3185 = vpack.c.b16 %v2961, %v2957
        %v3186 = vpack.c.b16 %v2966, %v2962
        %v3187 = vpack.c.b16 %v2967, %v2963
        %v3188 = vpack.c.b16 %v2968, %v2964
        %v3189 = vpack.c.b16 %v2969, %v2965
        %v3190 = vpack.c.b16 %v2974, %v2970
        %v3191 = vpack.c.b16 %v2975, %v2971
        %v3192 = vpack.c.b16 %v2976, %v2972
        %v3193 = vpack.c.b16 %v2977, %v2973
        %v3194 = vpack.c.b16 %v2982, %v2978
        %v3195 = vpack.c.b16 %v2983, %v2979
        %v3196 = vpack.c.b16 %v2984, %v2980
        %v3197 = vpack.c.b16 %v2985, %v2981
        %v3198 = vpack.c.b16 %v2990, %v2986
        %v3199 = vpack.c.b16 %v2991, %v2987
        %v3200 = vpack.c.b16 %v2992, %v2988
        %v3201 = vpack.c.b16 %v2993, %v2989
        %v3202 = vpack.c.b16 %v2998, %v2994
        %v3203 = vpack.c.b16 %v2999, %v2995
        %v3204 = vpack.c.b16 %v3000, %v2996
        %v3205 = vpack.c.b16 %v3001, %v2997
        %v3206 = vpack.c.b16 %v3006, %v3002
        %v3207 = vpack.c.b16 %v3007, %v3003
        %v3208 = vpack.c.b16 %v3008, %v3004
        %v3209 = vpack.c.b16 %v3009, %v3005
        %v3210 = vpack.c.b16 %v3014, %v3010
        %v3211 = vpack.c.b16 %v3015, %v3011
        %v3212 = vpack.c.b16 %v3016, %v3012
        %v3213 = vpack.c.b16 %v3017, %v3013
        %v3214 = vpack.c.b16 %v3022, %v3018
        %v3215 = vpack.c.b16 %v3023, %v3019
        %v3216 = vpack.c.b16 %v3024, %v3020
        %v3217 = vpack.c.b16 %v3025, %v3021
        %v3218 = vpack.c.b16 %v3030, %v3026
        %v3219 = vpack.c.b16 %v3031, %v3027
        %v3220 = vpack.c.b16 %v3032, %v3028
        %v3221 = vpack.c.b16 %v3033, %v3029
        %v3222 = vpack.c.b16 %v3038, %v3034
        %v3223 = vpack.c.b16 %v3039, %v3035
        %v3224 = vpack.c.b16 %v3040, %v3036
        %v3225 = vpack.c.b16 %v3041, %v3037
        %v3226 = vpack.c.b16 %v3046, %v3042
        %v3227 = vpack.c.b16 %v3047, %v3043
        %v3228 = vpack.c.b16 %v3048, %v3044
        %v3229 = vpack.c.b16 %v3049, %v3045
        %v3230 = vpack.c.b16 %v3054, %v3050
        %v3231 = vpack.c.b16 %v3055, %v3051
        %v3232 = vpack.c.b16 %v3056, %v3052
        %v3233 = vpack.c.b16 %v3057, %v3053
        %v3234 = vpack.c.b16 %v3062, %v3058
        %v3235 = vpack.c.b16 %v3063, %v3059
        %v3236 = vpack.c.b16 %v3064, %v3060
        %v3237 = vpack.c.b16 %v3065, %v3061
        %v3238 = vpack.c.b16 %v3070, %v3066
        %v3239 = vpack.c.b16 %v3071, %v3067
        %v3240 = vpack.c.b16 %v3072, %v3068
        %v3241 = vpack.c.b16 %v3073, %v3069
        %v3242 = vpack.c.b16 %v3078, %v3074
        %v3243 = vpack.c.b16 %v3079, %v3075
        %v3244 = vpack.c.b16 %v3080, %v3076
        %v3245 = vpack.c.b16 %v3081, %v3077
        %v3246 = vpack.c.b16 %v3086, %v3082
        %v3247 = vpack.c.b16 %v3087, %v3083
        %v3248 = vpack.c.b16 %v3088, %v3084
        %v3249 = vpack.c.b16 %v3089, %v3085
        %v3250 = vpack.c.b16 %v3094, %v3090
        %v3251 = vpack.c.b16 %v3095, %v3091
        %v3252 = vpack.c.b16 %v3096, %v3092
        %v3253 = vpack.c.b16 %v3097, %v3093
        %v3254 = vpack.c.b16 %v3102, %v3098
        %v3255 = vpack.c.b16 %v3103, %v3099
        %v3256 = vpack.c.b16 %v3104, %v3100
        %v3257 = vpack.c.b16 %v3105, %v3101
        %v3258 = vpack.c.b16 %v3110, %v3106
        %v3259 = vpack.c.b16 %v3111, %v3107
        %v3260 = vpack.c.b16 %v3112, %v3108
        %v3261 = vpack.c.b16 %v3113, %v3109
        %v3262 = vpack.c.b16 %v3118, %v3114
        %v3263 = vpack.c.b16 %v3119, %v3115
        %v3264 = vpack.c.b16 %v3120, %v3116
        %v3265 = vpack.c.b16 %v3121, %v3117
        %v3266 = vpack.c.b16 %v3126, %v3122
        %v3267 = vpack.c.b16 %v3127, %v3123
        %v3268 = vpack.c.b16 %v3128, %v3124
        %v3269 = vpack.c.b16 %v3129, %v3125
        %v3270 = vpack.c.b16 %v3134, %v3130
        %v3271 = vpack.c.b16 %v3135, %v3131
        %v3272 = vpack.c.b16 %v3136, %v3132
        %v3273 = vpack.c.b16 %v3137, %v3133
        %v3274 = vpack.c.b16 %v3142, %v3138
        %v3275 = vpack.c.b16 %v3143, %v3139
        %v3276 = vpack.c.b16 %v3144, %v3140
        %v3277 = vpack.c.b16 %v3145, %v3141
        %v3278 = vpack.c.b16 %v3150, %v3146
        %v3279 = vpack.c.b16 %v3151, %v3147
        %v3280 = vpack.c.b16 %v3152, %v3148
        %v3281 = vpack.c.b16 %v3153, %v3149
        %3410 = vmatprep.subr.bf16.mxu0 %v3155
        %3411 = vmatpush1.bf16.msra.mxu0 %v3154
        %3412 = vmatprep.subr.bf16.mxu0 %v3159
        %3413 = vmatpush1.bf16.msra.mxu0 %v3158
        %3414 = vmatprep.subr.bf16.mxu0 %v3163
        %3415 = vmatpush1.bf16.msra.mxu0 %v3162
        %3416 = vmatprep.subr.bf16.mxu0 %v3167
        %3417 = vmatpush1.bf16.msra.mxu0 %v3166
        %3418 = vmatprep.subr.bf16.mxu0 %v3171
        %3419 = vmatpush1.bf16.msra.mxu0 %v3170
        %3420 = vmatprep.subr.bf16.mxu0 %v3175
        %3421 = vmatpush1.bf16.msra.mxu0 %v3174
        %3422 = vmatprep.subr.bf16.mxu0 %v3179
        %3423 = vmatpush1.bf16.msra.mxu0 %v3178
        %3424 = vmatprep.subr.bf16.mxu0 %v3183
        %3425 = vmatpush1.bf16.msra.mxu0 %v3182
        %3426 = vmatprep.subr.bf16.mxu0 %v3187
        %3427 = vmatpush1.bf16.msra.mxu0 %v3186
        %3428 = vmatprep.subr.bf16.mxu0 %v3191
        %3429 = vmatpush1.bf16.msra.mxu0 %v3190
        %3430 = vmatprep.subr.bf16.mxu0 %v3195
        %3431 = vmatpush1.bf16.msra.mxu0 %v3194
        %3432 = vmatprep.subr.bf16.mxu0 %v3199
        %3433 = vmatpush1.bf16.msra.mxu0 %v3198
        %3434 = vmatprep.subr.bf16.mxu0 %v3203
        %3435 = vmatpush1.bf16.msra.mxu0 %v3202
        %3436 = vmatprep.subr.bf16.mxu0 %v3207
        %3437 = vmatpush1.bf16.msra.mxu0 %v3206
        %3438 = vmatprep.subr.bf16.mxu0 %v3211
        %3439 = vmatpush1.bf16.msra.mxu0 %v3210
        %3440 = vmatprep.subr.bf16.mxu0 %v3215
        %3441 = vmatpush1.bf16.msra.mxu0 %v3214
        %3442 = vmatprep.mubr.bf16.mxu0 %v2617
        %3443 = vmatmul.mubr.bf16.gmra.mrb[0].mxu0 %v2616
        %v3444 = vpop.f32.mrb[0].mxu0
        %v3445 = vadd.f32 %v2753, %v3444
        %v3446 = vpop.f32.mrb[0].mxu0
        %v3447 = vadd.f32 %v2757, %v3446
        %v3448 = vpop.f32.mrb[0].mxu0
        %v3449 = vpop.f32.mrb[0].mxu0
        %3450 = vdwg.mxu0
        %3451 = vmatprep.subr.bf16.mxu0 %v3219
        %3452 = vmatpush1.bf16.msra.mxu0 %v3218
        %3453 = vmatprep.subr.bf16.mxu0 %v3223
        %3454 = vmatpush1.bf16.msra.mxu0 %v3222
        %3455 = vmatprep.subr.bf16.mxu0 %v3227
        %3456 = vmatpush1.bf16.msra.mxu0 %v3226
        %3457 = vmatprep.subr.bf16.mxu0 %v3231
        %3458 = vmatpush1.bf16.msra.mxu0 %v3230
        %3459 = vmatprep.subr.bf16.mxu0 %v3235
        %3460 = vmatpush1.bf16.msra.mxu0 %v3234
        %3461 = vmatprep.subr.bf16.mxu0 %v3239
        %3462 = vmatpush1.bf16.msra.mxu0 %v3238
        %3463 = vmatprep.subr.bf16.mxu0 %v3243
        %3464 = vmatpush1.bf16.msra.mxu0 %v3242
        %3465 = vmatprep.subr.bf16.mxu0 %v3247
        %3466 = vmatpush1.bf16.msra.mxu0 %v3246
        %3467 = vmatprep.subr.bf16.mxu0 %v3251
        %3468 = vmatpush1.bf16.msra.mxu0 %v3250
        %3469 = vmatprep.subr.bf16.mxu0 %v3255
        %3470 = vmatpush1.bf16.msra.mxu0 %v3254
        %3471 = vmatprep.subr.bf16.mxu0 %v3259
        %3472 = vmatpush1.bf16.msra.mxu0 %v3258
        %3473 = vmatprep.subr.bf16.mxu0 %v3263
        %3474 = vmatpush1.bf16.msra.mxu0 %v3262
        %3475 = vmatprep.subr.bf16.mxu0 %v3267
        %3476 = vmatpush1.bf16.msra.mxu0 %v3266
        %3477 = vmatprep.subr.bf16.mxu0 %v3271
        %3478 = vmatpush1.bf16.msra.mxu0 %v3270
        %3479 = vmatprep.subr.bf16.mxu0 %v3275
        %3480 = vmatpush1.bf16.msra.mxu0 %v3274
        %3481 = vmatprep.subr.bf16.mxu0 %v3279
        %3482 = vmatpush1.bf16.msra.mxu0 %v3278
        %3483 = vmatprep.mubr.bf16.mxu0 %v2619
        %3484 = vmatmul.mubr.bf16.gmra.mrb[0].mxu0 %v2618
        %v3485 = vpop.f32.mrb[0].mxu0
        %v3486 = vadd.f32 %v3445, %v3485
        %v3487 = vpop.f32.mrb[0].mxu0
        %v3488 = vadd.f32 %v3447, %v3487
        %v3489 = vpop.f32.mrb[0].mxu0
        %v3490 = vpop.f32.mrb[0].mxu0
        %3491 = vdwg.mxu0
        %3492 = vmatprep.subr.bf16.mxu0 %v3157
        %3493 = vmatpush1.bf16.msra.mxu0 %v3156
        %3494 = vmatprep.subr.bf16.mxu0 %v3161
        %3495 = vmatpush1.bf16.msra.mxu0 %v3160
        %3496 = vmatprep.subr.bf16.mxu0 %v3165
        %3497 = vmatpush1.bf16.msra.mxu0 %v3164
        %3498 = vmatprep.subr.bf16.mxu0 %v3169
        %3499 = vmatpush1.bf16.msra.mxu0 %v3168
        %3500 = vmatprep.subr.bf16.mxu0 %v3173
        %3501 = vmatpush1.bf16.msra.mxu0 %v3172
        %3502 = vmatprep.subr.bf16.mxu0 %v3177
        %3503 = vmatpush1.bf16.msra.mxu0 %v3176
        %3504 = vmatprep.subr.bf16.mxu0 %v3181
        %3505 = vmatpush1.bf16.msra.mxu0 %v3180
        %3506 = vmatprep.subr.bf16.mxu0 %v3185
        %3507 = vmatpush1.bf16.msra.mxu0 %v3184
        %3508 = vmatprep.subr.bf16.mxu0 %v3189
        %3509 = vmatpush1.bf16.msra.mxu0 %v3188
        %3510 = vmatprep.subr.bf16.mxu0 %v3193
        %3511 = vmatpush1.bf16.msra.mxu0 %v3192
        %3512 = vmatprep.subr.bf16.mxu0 %v3197
        %3513 = vmatpush1.bf16.msra.mxu0 %v3196
        %3514 = vmatprep.subr.bf16.mxu0 %v3201
        %3515 = vmatpush1.bf16.msra.mxu0 %v3200
        %3516 = vmatprep.subr.bf16.mxu0 %v3205
        %3517 = vmatpush1.bf16.msra.mxu0 %v3204
        %3518 = vmatprep.subr.bf16.mxu0 %v3209
        %3519 = vmatpush1.bf16.msra.mxu0 %v3208
        %3520 = vmatprep.subr.bf16.mxu0 %v3213
        %3521 = vmatpush1.bf16.msra.mxu0 %v3212
        %3522 = vmatprep.subr.bf16.mxu0 %v3217
        %3523 = vmatpush1.bf16.msra.mxu0 %v3216
        %3524 = vmatprep.mubr.bf16.mxu0 %v2617
        %3525 = vmatmul.mubr.bf16.gmra.mrb[0].mxu0 %v2616
        %v3526 = vpop.f32.mrb[0].mxu0
        %v3527 = vadd.f32 %v2761, %v3526
        %v3528 = vpop.f32.mrb[0].mxu0
        %v3529 = vadd.f32 %v2765, %v3528
        %v3530 = vpop.f32.mrb[0].mxu0
        %v3531 = vpop.f32.mrb[0].mxu0
        %3532 = vdwg.mxu0
        %3533 = vmatprep.subr.bf16.mxu0 %v3221
        %3534 = vmatpush1.bf16.msra.mxu0 %v3220
        %3535 = vmatprep.subr.bf16.mxu0 %v3225
        %3536 = vmatpush1.bf16.msra.mxu0 %v3224
        %3537 = vmatprep.subr.bf16.mxu0 %v3229
        %3538 = vmatpush1.bf16.msra.mxu0 %v3228
        %3539 = vmatprep.subr.bf16.mxu0 %v3233
        %3540 = vmatpush1.bf16.msra.mxu0 %v3232
        %3541 = vmatprep.subr.bf16.mxu0 %v3237
        %3542 = vmatpush1.bf16.msra.mxu0 %v3236
        %3543 = vmatprep.subr.bf16.mxu0 %v3241
        %3544 = vmatpush1.bf16.msra.mxu0 %v3240
        %3545 = vmatprep.subr.bf16.mxu0 %v3245
        %3546 = vmatpush1.bf16.msra.mxu0 %v3244
        %3547 = vmatprep.subr.bf16.mxu0 %v3249
        %3548 = vmatpush1.bf16.msra.mxu0 %v3248
        %3549 = vmatprep.subr.bf16.mxu0 %v3253
        %3550 = vmatpush1.bf16.msra.mxu0 %v3252
        %3551 = vmatprep.subr.bf16.mxu0 %v3257
        %3552 = vmatpush1.bf16.msra.mxu0 %v3256
        %3553 = vmatprep.subr.bf16.mxu0 %v3261
        %3554 = vmatpush1.bf16.msra.mxu0 %v3260
        %3555 = vmatprep.subr.bf16.mxu0 %v3265
        %3556 = vmatpush1.bf16.msra.mxu0 %v3264
        %3557 = vmatprep.subr.bf16.mxu0 %v3269
        %3558 = vmatpush1.bf16.msra.mxu0 %v3268
        %3559 = vmatprep.subr.bf16.mxu0 %v3273
        %3560 = vmatpush1.bf16.msra.mxu0 %v3272
        %3561 = vmatprep.subr.bf16.mxu0 %v3277
        %3562 = vmatpush1.bf16.msra.mxu0 %v3276
        %3563 = vmatprep.subr.bf16.mxu0 %v3281
        %3564 = vmatpush1.bf16.msra.mxu0 %v3280
        %3565 = vmatprep.mubr.bf16.mxu0 %v2619
        %3566 = vmatmul.mubr.bf16.gmra.mrb[0].mxu0 %v2618
        %v3567 = vpop.f32.mrb[0].mxu0
        %v3568 = vadd.f32 %v3527, %v3567
        %v3569 = vpop.f32.mrb[0].mxu0
        %v3570 = vadd.f32 %v3529, %v3569
        %v3571 = vpop.f32.mrb[0].mxu0
        %v3572 = vpop.f32.mrb[0].mxu0
        %3573 = vdwg.mxu0
        %v3574 = vpack.c.bf16 %v3486, %v3486
        %v3575 = vpack.c.bf16 %v3488, %v3488
        %v3576 = vpack.c.bf16 %v3568, %v3568
        %v3577 = vpack.c.bf16 %v3570, %v3570
        %v3578 = vld [vmem:[#allocation2] sm:$0xff]
        %v3579 = vld [vmem:[#allocation2 + $0x8] sm:$0xff]
        %v3580 = vld [vmem:[#allocation2 + $0x10] sm:$0xff]
        %v3581 = vld [vmem:[#allocation2 + $0x18] sm:$0xff]
        %v3582 = vld [vmem:[#allocation12] sm:$0xf]
        %v3584 = vlaneseq
        %v3585 = vshrl.u32 %v3584, 7
        %v3586 = vsub.s32 0, %v3585
        %v3587 = vrot.slane %v3582, %v3586
        %v3588 = vlaneseq
        %v3589 = vshrl.u32 %v3588, 7
        %v3590 = vsub.s32 1, %v3589
        %v3591 = vrot.slane %v3582, %v3590
        %v3592 = vlaneseq
        %v3593 = vshrl.u32 %v3592, 7
        %v3594 = vsub.s32 2, %v3593
        %v3595 = vrot.slane %v3582, %v3594
        %v3596 = vlaneseq
        %v3597 = vshrl.u32 %v3596, 7
        %v3598 = vsub.s32 3, %v3597
        %v3599 = vrot.slane %v3582, %v3598
        %v3604 = vadd.f32 %v2612, %v3587
        %v3605 = vadd.f32 %v2613, %v3591
        %v3606 = vadd.f32 %v2614, %v3595
        %v3607 = vadd.f32 %v2615, %v3599
        %vm3608 = vcmask 523264
        %v3610 = vsel %vm3608, %v3574, 0
        %v3613 = vsel %vm3608, %v3578, 0
        %3615 = vmatprep.subr.bf16.mxu0 0
        %3616 = vmatpush1.bf16.xpose.msra.mxu0 %v3613
        %3617 = vmatprep.subr.bf16.mxu0 0
        %3618 = vmatpush1.bf16.xpose.msra.mxu0 0
        %3619 = vmatprep.subr.bf16.mxu0 0
        %3620 = vmatpush1.bf16.xpose.msra.mxu0 0
        %3621 = vmatprep.subr.bf16.mxu0 0
        %3622 = vmatpush1.bf16.xpose.msra.mxu0 0
        %3623 = vmatprep.subr.bf16.mxu0 0
        %3624 = vmatpush1.bf16.xpose.msra.mxu0 0
        %3625 = vmatprep.subr.bf16.mxu0 0
        %3626 = vmatpush1.bf16.xpose.msra.mxu0 0
        %3627 = vmatprep.subr.bf16.mxu0 0
        %3628 = vmatpush1.bf16.xpose.msra.mxu0 0
        %3629 = vmatprep.subr.bf16.mxu0 0
        %3630 = vmatpush1.bf16.xpose.msra.mxu0 0
        %3631 = vmatprep.subr.bf16.mxu0 0
        %3632 = vmatpush1.bf16.xpose.msra.mxu0 0
        %3633 = vmatprep.subr.bf16.mxu0 0
        %3634 = vmatpush1.bf16.xpose.msra.mxu0 0
        %3635 = vmatprep.subr.bf16.mxu0 0
        %3636 = vmatpush1.bf16.xpose.msra.mxu0 0
        %3637 = vmatprep.subr.bf16.mxu0 0
        %3638 = vmatpush1.bf16.xpose.msra.mxu0 0
        %3639 = vmatprep.subr.bf16.mxu0 0
        %3640 = vmatpush1.bf16.xpose.msra.mxu0 0
        %3641 = vmatprep.subr.bf16.mxu0 0
        %3642 = vmatpush1.bf16.xpose.msra.mxu0 0
        %3643 = vmatprep.subr.bf16.mxu0 0
        %3644 = vmatpush1.bf16.xpose.msra.mxu0 0
        %3645 = vmatprep.subr.bf16.mxu0 0
        %3646 = vmatpush1.bf16.xpose.msra.mxu0 0
        %3647 = vmatprep.mubr.bf16.mxu0 0
        %3648 = vmatmul.mubr.bf16.gmra.mrb[0].mxu0 %v3610
        %v3649 = vpop.f32.mrb[0].mxu0
        %v3650 = vadd.f32 0.0, %v3649
        %v3651 = vpop.f32.mrb[0].mxu0
        %v3652 = vpop.f32.mrb[0].mxu0
        %v3653 = vpop.f32.mrb[0].mxu0
        %3654 = vdwg.mxu0
        %vm3655 = vcmask 64512
        %v3656 = vsel %vm3655, %v3650, -inf
        %3657 = vmax.xlane.f32.xlu0 %v3656
        %v3658 = vpop.xlane.xlu0 %3657
        %v3659 = vsub.f32 %v3650, %v3658
        %v3660 = vmul.f32 %v3659, 1.442695
        %v3661 = vpow.pop %v3660
        %v3662 = vsel %vm3655, %v3661, 0.0
        %3663 = vadd.xlane.f32.xlu0 %v3662
        %v3664 = vpop.xlane.xlu0 %3663
        %v3665 = vrcp.pop %v3664
        %v3666 = vmul.f32 %v3661, %v3665
        %v3667 = vpack.c.bf16 %v3666, %v3666
        %vm3668 = vcmask 60416
        %3669 = vst.msk [vmem:[%s656] sm:$0xf] %vm3668, %v3667
        %v3671 = vsel %vm3655, %v3667, 0
        %vm3673 = vcmask 1043456
        %v3675 = vsel %vm3673, %v3580, 0
        %3677 = vmatprep.subr.bf16.mxu0 0
        %3678 = vmatpush1.bf16.msra.mxu0 %v3675
        %3679 = vmatprep.subr.bf16.mxu0 0
        %3680 = vmatpush1.bf16.msra.mxu0 0
        %3681 = vmatprep.subr.bf16.mxu0 0
        %3682 = vmatpush1.bf16.msra.mxu0 0
        %3683 = vmatprep.subr.bf16.mxu0 0
        %3684 = vmatpush1.bf16.msra.mxu0 0
        %3685 = vmatprep.subr.bf16.mxu0 0
        %3686 = vmatpush1.bf16.msra.mxu0 0
        %3687 = vmatprep.subr.bf16.mxu0 0
        %3688 = vmatpush1.bf16.msra.mxu0 0
        %3689 = vmatprep.subr.bf16.mxu0 0
        %3690 = vmatpush1.bf16.msra.mxu0 0
        %3691 = vmatprep.subr.bf16.mxu0 0
        %3692 = vmatpush1.bf16.msra.mxu0 0
        %3693 = vmatprep.subr.bf16.mxu0 0
        %3694 = vmatpush1.bf16.msra.mxu0 0
        %3695 = vmatprep.subr.bf16.mxu0 0
        %3696 = vmatpush1.bf16.msra.mxu0 0
        %3697 = vmatprep.subr.bf16.mxu0 0
        %3698 = vmatpush1.bf16.msra.mxu0 0
        %3699 = vmatprep.subr.bf16.mxu0 0
        %3700 = vmatpush1.bf16.msra.mxu0 0
        %3701 = vmatprep.subr.bf16.mxu0 0
        %3702 = vmatpush1.bf16.msra.mxu0 0
        %3703 = vmatprep.subr.bf16.mxu0 0
        %3704 = vmatpush1.bf16.msra.mxu0 0
        %3705 = vmatprep.subr.bf16.mxu0 0
        %3706 = vmatpush1.bf16.msra.mxu0 0
        %3707 = vmatprep.subr.bf16.mxu0 0
        %3708 = vmatpush1.bf16.msra.mxu0 0
        %3709 = vmatprep.mubr.bf16.mxu0 0
        %3710 = vmatmul.mubr.bf16.gmra.mrb[0].mxu0 %v3671
        %v3711 = vpop.f32.mrb[0].mxu0
        %v3712 = vadd.f32 0.0, %v3711
        %v3713 = vpop.f32.mrb[0].mxu0
        %v3714 = vpop.f32.mrb[0].mxu0
        %v3715 = vpop.f32.mrb[0].mxu0
        %3716 = vdwg.mxu0
        %v3717 = vpack.c.bf16 %v3712, %v3712
        %v3718 = vld [vmem:[#allocation11] sm:$0xff]
        %v3719 = vld [vmem:[#allocation11 + $0x8] sm:$0xff]
        %v3720 = vld [vmem:[#allocation11 + $0x10] sm:$0xff]
        %v3721 = vld [vmem:[#allocation11 + $0x18] sm:$0xff]
        %v3722 = vld [vmem:[#allocation11 + $0x20] sm:$0xff]
        %v3723 = vld [vmem:[#allocation11 + $0x28] sm:$0xff]
        %v3724 = vld [vmem:[#allocation11 + $0x30] sm:$0xff]
        %v3725 = vld [vmem:[#allocation11 + $0x38] sm:$0xff]
        %v3726 = vld [vmem:[#allocation11 + $0x40] sm:$0xff]
        %v3727 = vld [vmem:[#allocation11 + $0x48] sm:$0xff]
        %v3728 = vld [vmem:[#allocation11 + $0x50] sm:$0xff]
        %v3729 = vld [vmem:[#allocation11 + $0x58] sm:$0xff]
        %v3730 = vld [vmem:[#allocation11 + $0x60] sm:$0xff]
        %v3731 = vld [vmem:[#allocation11 + $0x68] sm:$0xff]
        %v3732 = vld [vmem:[#allocation11 + $0x70] sm:$0xff]
        %v3733 = vld [vmem:[#allocation11 + $0x78] sm:$0xff]
        %v3750 = vunpack.c.l.b16 %v3718
        %v3751 = vunpack.c.h.b16 %v3718
        %v3752 = vunpack.c.l.b16 %v3719
        %v3753 = vunpack.c.h.b16 %v3719
        %v3754 = vunpack.c.l.b16 %v3720
        %v3755 = vunpack.c.h.b16 %v3720
        %v3756 = vunpack.c.l.b16 %v3721
        %v3757 = vunpack.c.h.b16 %v3721
        %v3758 = vunpack.c.l.b16 %v3722
        %v3759 = vunpack.c.h.b16 %v3722
        %v3760 = vunpack.c.l.b16 %v3723
        %v3761 = vunpack.c.h.b16 %v3723
        %v3762 = vunpack.c.l.b16 %v3724
        %v3763 = vunpack.c.h.b16 %v3724
        %v3764 = vunpack.c.l.b16 %v3725
        %v3765 = vunpack.c.h.b16 %v3725
        %v3766 = vunpack.c.l.b16 %v3726
        %v3767 = vunpack.c.h.b16 %v3726
        %v3768 = vunpack.c.l.b16 %v3727
        %v3769 = vunpack.c.h.b16 %v3727
        %v3770 = vunpack.c.l.b16 %v3728
        %v3771 = vunpack.c.h.b16 %v3728
        %v3772 = vunpack.c.l.b16 %v3729
        %v3773 = vunpack.c.h.b16 %v3729
        %v3774 = vunpack.c.l.b16 %v3730
        %v3775 = vunpack.c.h.b16 %v3730
        %v3776 = vunpack.c.l.b16 %v3731
        %v3777 = vunpack.c.h.b16 %v3731
        %v3778 = vunpack.c.l.b16 %v3732
        %v3779 = vunpack.c.h.b16 %v3732
        %v3780 = vunpack.c.l.b16 %v3733
        %v3781 = vunpack.c.h.b16 %v3733
        %v3782 = vpack.c.b16 %v3754, %v3750
        %v3783 = vpack.c.b16 %v3755, %v3751
        %v3784 = vpack.c.b16 %v3756, %v3752
        %v3785 = vpack.c.b16 %v3757, %v3753
        %v3786 = vpack.c.b16 %v3762, %v3758
        %v3787 = vpack.c.b16 %v3763, %v3759
        %v3788 = vpack.c.b16 %v3764, %v3760
        %v3789 = vpack.c.b16 %v3765, %v3761
        %v3790 = vpack.c.b16 %v3770, %v3766
        %v3791 = vpack.c.b16 %v3771, %v3767
        %v3792 = vpack.c.b16 %v3772, %v3768
        %v3793 = vpack.c.b16 %v3773, %v3769
        %v3794 = vpack.c.b16 %v3778, %v3774
        %v3795 = vpack.c.b16 %v3779, %v3775
        %v3796 = vpack.c.b16 %v3780, %v3776
        %v3797 = vpack.c.b16 %v3781, %v3777
        %v3815 = vsel %vm3608, %v3717, 0
        %3817 = vmatprep.subr.bf16.mxu0 %v3783
        %3818 = vmatpush1.bf16.msra.mxu0 %v3782
        %3819 = vmatprep.subr.bf16.mxu0 %v3787
        %3820 = vmatpush1.bf16.msra.mxu0 %v3786
        %3821 = vmatprep.subr.bf16.mxu0 %v3791
        %3822 = vmatpush1.bf16.msra.mxu0 %v3790
        %3823 = vmatprep.subr.bf16.mxu0 %v3795
        %3824 = vmatpush1.bf16.msra.mxu0 %v3794
        %3825 = vmatprep.subr.bf16.mxu0 0
        %3826 = vmatpush1.bf16.msra.mxu0 0
        %3827 = vmatprep.subr.bf16.mxu0 0
        %3828 = vmatpush1.bf16.msra.mxu0 0
        %3829 = vmatprep.subr.bf16.mxu0 0
        %3830 = vmatpush1.bf16.msra.mxu0 0
        %3831 = vmatprep.subr.bf16.mxu0 0
        %3832 = vmatpush1.bf16.msra.mxu0 0
        %3833 = vmatprep.subr.bf16.mxu0 0
        %3834 = vmatpush1.bf16.msra.mxu0 0
        %3835 = vmatprep.subr.bf16.mxu0 0
        %3836 = vmatpush1.bf16.msra.mxu0 0
        %3837 = vmatprep.subr.bf16.mxu0 0
        %3838 = vmatpush1.bf16.msra.mxu0 0
        %3839 = vmatprep.subr.bf16.mxu0 0
        %3840 = vmatpush1.bf16.msra.mxu0 0
        %3841 = vmatprep.subr.bf16.mxu0 0
        %3842 = vmatpush1.bf16.msra.mxu0 0
        %3843 = vmatprep.subr.bf16.mxu0 0
        %3844 = vmatpush1.bf16.msra.mxu0 0
        %3845 = vmatprep.subr.bf16.mxu0 0
        %3846 = vmatpush1.bf16.msra.mxu0 0
        %3847 = vmatprep.subr.bf16.mxu0 0
        %3848 = vmatpush1.bf16.msra.mxu0 0
        %3849 = vmatprep.mubr.bf16.mxu0 0
        %3850 = vmatmul.mubr.bf16.gmra.mrb[0].mxu0 %v3815
        %v3851 = vpop.f32.mrb[0].mxu0
        %v3852 = vadd.f32 0.0, %v3851
        %v3853 = vpop.f32.mrb[0].mxu0
        %v3854 = vadd.f32 0.0, %v3853
        %v3855 = vpop.f32.mrb[0].mxu0
        %v3856 = vpop.f32.mrb[0].mxu0
        %3857 = vdwg.mxu0
        %3858 = vmatprep.subr.bf16.mxu0 %v3785
        %3859 = vmatpush1.bf16.msra.mxu0 %v3784
        %3860 = vmatprep.subr.bf16.mxu0 %v3789
        %3861 = vmatpush1.bf16.msra.mxu0 %v3788
        %3862 = vmatprep.subr.bf16.mxu0 %v3793
        %3863 = vmatpush1.bf16.msra.mxu0 %v3792
        %3864 = vmatprep.subr.bf16.mxu0 %v3797
        %3865 = vmatpush1.bf16.msra.mxu0 %v3796
        %3866 = vmatprep.subr.bf16.mxu0 0
        %3867 = vmatpush1.bf16.msra.mxu0 0
        %3868 = vmatprep.subr.bf16.mxu0 0
        %3869 = vmatpush1.bf16.msra.mxu0 0
        %3870 = vmatprep.subr.bf16.mxu0 0
        %3871 = vmatpush1.bf16.msra.mxu0 0
        %3872 = vmatprep.subr.bf16.mxu0 0
        %3873 = vmatpush1.bf16.msra.mxu0 0
        %3874 = vmatprep.subr.bf16.mxu0 0
        %3875 = vmatpush1.bf16.msra.mxu0 0
        %3876 = vmatprep.subr.bf16.mxu0 0
        %3877 = vmatpush1.bf16.msra.mxu0 0
        %3878 = vmatprep.subr.bf16.mxu0 0
        %3879 = vmatpush1.bf16.msra.mxu0 0
        %3880 = vmatprep.subr.bf16.mxu0 0
        %3881 = vmatpush1.bf16.msra.mxu0 0
        %3882 = vmatprep.subr.bf16.mxu0 0
        %3883 = vmatpush1.bf16.msra.mxu0 0
        %3884 = vmatprep.subr.bf16.mxu0 0
        %3885 = vmatpush1.bf16.msra.mxu0 0
        %3886 = vmatprep.subr.bf16.mxu0 0
        %3887 = vmatpush1.bf16.msra.mxu0 0
        %3888 = vmatprep.subr.bf16.mxu0 0
        %3889 = vmatpush1.bf16.msra.mxu0 0
        %3890 = vmatprep.mubr.bf16.mxu0 0
        %3891 = vmatmul.mubr.bf16.gmra.mrb[0].mxu0 %v3815
        %v3892 = vpop.f32.mrb[0].mxu0
        %v3893 = vadd.f32 0.0, %v3892
        %v3894 = vpop.f32.mrb[0].mxu0
        %v3895 = vadd.f32 0.0, %v3894
        %v3896 = vpop.f32.mrb[0].mxu0
        %v3897 = vpop.f32.mrb[0].mxu0
        %3898 = vdwg.mxu0
        %v3899 = vadd.f32 %v3604, %v3852
        %v3900 = vadd.f32 %v3605, %v3854
        %v3901 = vadd.f32 %v3606, %v3893
        %v3902 = vadd.f32 %v3607, %v3895
        %3904 = vrot.lane.b32.xlu0 %v3574, 64
        %v3905 = vpop.permute.xlu0 %3904
        %v3907 = vunpack.c.l.b16 %v3578
        %v3908 = vpack.c.b16 %v3907, %v3907
        %3909 = vrot.lane.b32.xlu0 %v3908, 64
        %v3910 = vpop.permute.xlu0 %3909
        %v3912 = vsel %vm3608, %v3905, 0
        %v3915 = vsel %vm3608, %v3910, 0
        %3917 = vmatprep.subr.bf16.mxu0 0
        %3918 = vmatpush1.bf16.xpose.msra.mxu0 %v3915
        %3919 = vmatprep.subr.bf16.mxu0 0
        %3920 = vmatpush1.bf16.xpose.msra.mxu0 0
        %3921 = vmatprep.subr.bf16.mxu0 0
        %3922 = vmatpush1.bf16.xpose.msra.mxu0 0
        %3923 = vmatprep.subr.bf16.mxu0 0
        %3924 = vmatpush1.bf16.xpose.msra.mxu0 0
        %3925 = vmatprep.subr.bf16.mxu0 0
        %3926 = vmatpush1.bf16.xpose.msra.mxu0 0
        %3927 = vmatprep.subr.bf16.mxu0 0
        %3928 = vmatpush1.bf16.xpose.msra.mxu0 0
        %3929 = vmatprep.subr.bf16.mxu0 0
        %3930 = vmatpush1.bf16.xpose.msra.mxu0 0
        %3931 = vmatprep.subr.bf16.mxu0 0
        %3932 = vmatpush1.bf16.xpose.msra.mxu0 0
        %3933 = vmatprep.subr.bf16.mxu0 0
        %3934 = vmatpush1.bf16.xpose.msra.mxu0 0
        %3935 = vmatprep.subr.bf16.mxu0 0
        %3936 = vmatpush1.bf16.xpose.msra.mxu0 0
        %3937 = vmatprep.subr.bf16.mxu0 0
        %3938 = vmatpush1.bf16.xpose.msra.mxu0 0
        %3939 = vmatprep.subr.bf16.mxu0 0
        %3940 = vmatpush1.bf16.xpose.msra.mxu0 0
        %3941 = vmatprep.subr.bf16.mxu0 0
        %3942 = vmatpush1.bf16.xpose.msra.mxu0 0
        %3943 = vmatprep.subr.bf16.mxu0 0
        %3944 = vmatpush1.bf16.xpose.msra.mxu0 0
        %3945 = vmatprep.subr.bf16.mxu0 0
        %3946 = vmatpush1.bf16.xpose.msra.mxu0 0
        %3947 = vmatprep.subr.bf16.mxu0 0
        %3948 = vmatpush1.bf16.xpose.msra.mxu0 0
        %3949 = vmatprep.mubr.bf16.mxu0 0
        %3950 = vmatmul.mubr.bf16.gmra.mrb[0].mxu0 %v3912
        %v3951 = vpop.f32.mrb[0].mxu0
        %v3952 = vadd.f32 0.0, %v3951
        %v3953 = vpop.f32.mrb[0].mxu0
        %v3954 = vpop.f32.mrb[0].mxu0
        %v3955 = vpop.f32.mrb[0].mxu0
        %3956 = vdwg.mxu0
        %v3957 = vsel %vm3655, %v3952, -inf
        %3958 = vmax.xlane.f32.xlu0 %v3957
        %v3959 = vpop.xlane.xlu0 %3958
        %v3960 = vsub.f32 %v3952, %v3959
        %v3961 = vmul.f32 %v3960, 1.442695
        %v3962 = vpow.pop %v3961
        %v3963 = vsel %vm3655, %v3962, 0.0
        %3964 = vadd.xlane.f32.xlu0 %v3963
        %v3965 = vpop.xlane.xlu0 %3964
        %v3966 = vrcp.pop %v3965
        %v3967 = vmul.f32 %v3962, %v3966
        %v3968 = vpack.c.bf16 %v3967, %v3967
        %s3969 = scalar_lea.vmem %s656, 4 [#allocation24]
        %3970 = vst.msk [vmem:[%s3969] sm:$0xf] %vm3668, %v3968
        %v3972 = vunpack.c.l.b16 %v3580
        %v3973 = vpack.c.b16 %v3972, %v3972
        %3974 = vrot.lane.b32.xlu0 %v3973, 64
        %v3975 = vpop.permute.xlu0 %3974
        %v3977 = vsel %vm3655, %v3968, 0
        %v3980 = vsel %vm3673, %v3975, 0
        %3982 = vmatprep.subr.bf16.mxu0 0
        %3983 = vmatpush1.bf16.msra.mxu0 %v3980
        %3984 = vmatprep.subr.bf16.mxu0 0
        %3985 = vmatpush1.bf16.msra.mxu0 0
        %3986 = vmatprep.subr.bf16.mxu0 0
        %3987 = vmatpush1.bf16.msra.mxu0 0
        %3988 = vmatprep.subr.bf16.mxu0 0
        %3989 = vmatpush1.bf16.msra.mxu0 0
        %3990 = vmatprep.subr.bf16.mxu0 0
        %3991 = vmatpush1.bf16.msra.mxu0 0
        %3992 = vmatprep.subr.bf16.mxu0 0
        %3993 = vmatpush1.bf16.msra.mxu0 0
        %3994 = vmatprep.subr.bf16.mxu0 0
        %3995 = vmatpush1.bf16.msra.mxu0 0
        %3996 = vmatprep.subr.bf16.mxu0 0
        %3997 = vmatpush1.bf16.msra.mxu0 0
        %3998 = vmatprep.subr.bf16.mxu0 0
        %3999 = vmatpush1.bf16.msra.mxu0 0
        %4000 = vmatprep.subr.bf16.mxu0 0
        %4001 = vmatpush1.bf16.msra.mxu0 0
        %4002 = vmatprep.subr.bf16.mxu0 0
        %4003 = vmatpush1.bf16.msra.mxu0 0
        %4004 = vmatprep.subr.bf16.mxu0 0
        %4005 = vmatpush1.bf16.msra.mxu0 0
        %4006 = vmatprep.subr.bf16.mxu0 0
        %4007 = vmatpush1.bf16.msra.mxu0 0
        %4008 = vmatprep.subr.bf16.mxu0 0
        %4009 = vmatpush1.bf16.msra.mxu0 0
        %4010 = vmatprep.subr.bf16.mxu0 0
        %4011 = vmatpush1.bf16.msra.mxu0 0
        %4012 = vmatprep.subr.bf16.mxu0 0
        %4013 = vmatpush1.bf16.msra.mxu0 0
        %4014 = vmatprep.mubr.bf16.mxu0 0
        %4015 = vmatmul.mubr.bf16.gmra.mrb[0].mxu0 %v3977
        %v4016 = vpop.f32.mrb[0].mxu0
        %v4017 = vadd.f32 0.0, %v4016
        %v4018 = vpop.f32.mrb[0].mxu0
        %v4019 = vpop.f32.mrb[0].mxu0
        %v4020 = vpop.f32.mrb[0].mxu0
        %4021 = vdwg.mxu0
        %v4022 = vpack.c.bf16 %v4017, %v4017
        %v4023 = vld [vmem:[#allocation11 + $0x80] sm:$0xff]
        %v4024 = vld [vmem:[#allocation11 + $0x88] sm:$0xff]
        %v4025 = vld [vmem:[#allocation11 + $0x90] sm:$0xff]
        %v4026 = vld [vmem:[#allocation11 + $0x98] sm:$0xff]
        %v4027 = vld [vmem:[#allocation11 + $0xa0] sm:$0xff]
        %v4028 = vld [vmem:[#allocation11 + $0xa8] sm:$0xff]
        %v4029 = vld [vmem:[#allocation11 + $0xb0] sm:$0xff]
        %v4030 = vld [vmem:[#allocation11 + $0xb8] sm:$0xff]
        %v4031 = vld [vmem:[#allocation11 + $0xc0] sm:$0xff]
        %v4032 = vld [vmem:[#allocation11 + $0xc8] sm:$0xff]
        %v4033 = vld [vmem:[#allocation11 + $0xd0] sm:$0xff]
        %v4034 = vld [vmem:[#allocation11 + $0xd8] sm:$0xff]
        %v4035 = vld [vmem:[#allocation11 + $0xe0] sm:$0xff]
        %v4036 = vld [vmem:[#allocation11 + $0xe8] sm:$0xff]
        %v4037 = vld [vmem:[#allocation11 + $0xf0] sm:$0xff]
        %v4038 = vld [vmem:[#allocation11 + $0xf8] sm:$0xff]
        %v4055 = vunpack.c.l.b16 %v4023
        %v4056 = vunpack.c.h.b16 %v4023
        %v4057 = vunpack.c.l.b16 %v4024
        %v4058 = vunpack.c.h.b16 %v4024
        %v4059 = vunpack.c.l.b16 %v4025
        %v4060 = vunpack.c.h.b16 %v4025
        %v4061 = vunpack.c.l.b16 %v4026
        %v4062 = vunpack.c.h.b16 %v4026
        %v4063 = vunpack.c.l.b16 %v4027
        %v4064 = vunpack.c.h.b16 %v4027
        %v4065 = vunpack.c.l.b16 %v4028
        %v4066 = vunpack.c.h.b16 %v4028
        %v4067 = vunpack.c.l.b16 %v4029
        %v4068 = vunpack.c.h.b16 %v4029
        %v4069 = vunpack.c.l.b16 %v4030
        %v4070 = vunpack.c.h.b16 %v4030
        %v4071 = vunpack.c.l.b16 %v4031
        %v4072 = vunpack.c.h.b16 %v4031
        %v4073 = vunpack.c.l.b16 %v4032
        %v4074 = vunpack.c.h.b16 %v4032
        %v4075 = vunpack.c.l.b16 %v4033
        %v4076 = vunpack.c.h.b16 %v4033
        %v4077 = vunpack.c.l.b16 %v4034
        %v4078 = vunpack.c.h.b16 %v4034
        %v4079 = vunpack.c.l.b16 %v4035
        %v4080 = vunpack.c.h.b16 %v4035
        %v4081 = vunpack.c.l.b16 %v4036
        %v4082 = vunpack.c.h.b16 %v4036
        %v4083 = vunpack.c.l.b16 %v4037
        %v4084 = vunpack.c.h.b16 %v4037
        %v4085 = vunpack.c.l.b16 %v4038
        %v4086 = vunpack.c.h.b16 %v4038
        %v4087 = vpack.c.b16 %v4059, %v4055
        %v4088 = vpack.c.b16 %v4060, %v4056
        %v4089 = vpack.c.b16 %v4061, %v4057
        %v4090 = vpack.c.b16 %v4062, %v4058
        %v4091 = vpack.c.b16 %v4067, %v4063
        %v4092 = vpack.c.b16 %v4068, %v4064
        %v4093 = vpack.c.b16 %v4069, %v4065
        %v4094 = vpack.c.b16 %v4070, %v4066
        %v4095 = vpack.c.b16 %v4075, %v4071
        %v4096 = vpack.c.b16 %v4076, %v4072
        %v4097 = vpack.c.b16 %v4077, %v4073
        %v4098 = vpack.c.b16 %v4078, %v4074
        %v4099 = vpack.c.b16 %v4083, %v4079
        %v4100 = vpack.c.b16 %v4084, %v4080
        %v4101 = vpack.c.b16 %v4085, %v4081
        %v4102 = vpack.c.b16 %v4086, %v4082
        %v4120 = vsel %vm3608, %v4022, 0
        %4122 = vmatprep.subr.bf16.mxu0 %v4088
        %4123 = vmatpush1.bf16.msra.mxu0 %v4087
        %4124 = vmatprep.subr.bf16.mxu0 %v4092
        %4125 = vmatpush1.bf16.msra.mxu0 %v4091
        %4126 = vmatprep.subr.bf16.mxu0 %v4096
        %4127 = vmatpush1.bf16.msra.mxu0 %v4095
        %4128 = vmatprep.subr.bf16.mxu0 %v4100
        %4129 = vmatpush1.bf16.msra.mxu0 %v4099
        %4130 = vmatprep.subr.bf16.mxu0 0
        %4131 = vmatpush1.bf16.msra.mxu0 0
        %4132 = vmatprep.subr.bf16.mxu0 0
        %4133 = vmatpush1.bf16.msra.mxu0 0
        %4134 = vmatprep.subr.bf16.mxu0 0
        %4135 = vmatpush1.bf16.msra.mxu0 0
        %4136 = vmatprep.subr.bf16.mxu0 0
        %4137 = vmatpush1.bf16.msra.mxu0 0
        %4138 = vmatprep.subr.bf16.mxu0 0
        %4139 = vmatpush1.bf16.msra.mxu0 0
        %4140 = vmatprep.subr.bf16.mxu0 0
        %4141 = vmatpush1.bf16.msra.mxu0 0
        %4142 = vmatprep.subr.bf16.mxu0 0
        %4143 = vmatpush1.bf16.msra.mxu0 0
        %4144 = vmatprep.subr.bf16.mxu0 0
        %4145 = vmatpush1.bf16.msra.mxu0 0
        %4146 = vmatprep.subr.bf16.mxu0 0
        %4147 = vmatpush1.bf16.msra.mxu0 0
        %4148 = vmatprep.subr.bf16.mxu0 0
        %4149 = vmatpush1.bf16.msra.mxu0 0
        %4150 = vmatprep.subr.bf16.mxu0 0
        %4151 = vmatpush1.bf16.msra.mxu0 0
        %4152 = vmatprep.subr.bf16.mxu0 0
        %4153 = vmatpush1.bf16.msra.mxu0 0
        %4154 = vmatprep.mubr.bf16.mxu0 0
        %4155 = vmatmul.mubr.bf16.gmra.mrb[0].mxu0 %v4120
        %v4156 = vpop.f32.mrb[0].mxu0
        %v4157 = vadd.f32 0.0, %v4156
        %v4158 = vpop.f32.mrb[0].mxu0
        %v4159 = vadd.f32 0.0, %v4158
        %v4160 = vpop.f32.mrb[0].mxu0
        %v4161 = vpop.f32.mrb[0].mxu0
        %4162 = vdwg.mxu0
        %4163 = vmatprep.subr.bf16.mxu0 %v4090
        %4164 = vmatpush1.bf16.msra.mxu0 %v4089
        %4165 = vmatprep.subr.bf16.mxu0 %v4094
        %4166 = vmatpush1.bf16.msra.mxu0 %v4093
        %4167 = vmatprep.subr.bf16.mxu0 %v4098
        %4168 = vmatpush1.bf16.msra.mxu0 %v4097
        %4169 = vmatprep.subr.bf16.mxu0 %v4102
        %4170 = vmatpush1.bf16.msra.mxu0 %v4101
        %4171 = vmatprep.subr.bf16.mxu0 0
        %4172 = vmatpush1.bf16.msra.mxu0 0
        %4173 = vmatprep.subr.bf16.mxu0 0
        %4174 = vmatpush1.bf16.msra.mxu0 0
        %4175 = vmatprep.subr.bf16.mxu0 0
        %4176 = vmatpush1.bf16.msra.mxu0 0
        %4177 = vmatprep.subr.bf16.mxu0 0
        %4178 = vmatpush1.bf16.msra.mxu0 0
        %4179 = vmatprep.subr.bf16.mxu0 0
        %4180 = vmatpush1.bf16.msra.mxu0 0
        %4181 = vmatprep.subr.bf16.mxu0 0
        %4182 = vmatpush1.bf16.msra.mxu0 0
        %4183 = vmatprep.subr.bf16.mxu0 0
        %4184 = vmatpush1.bf16.msra.mxu0 0
        %4185 = vmatprep.subr.bf16.mxu0 0
        %4186 = vmatpush1.bf16.msra.mxu0 0
        %4187 = vmatprep.subr.bf16.mxu0 0
        %4188 = vmatpush1.bf16.msra.mxu0 0
        %4189 = vmatprep.subr.bf16.mxu0 0
        %4190 = vmatpush1.bf16.msra.mxu0 0
        %4191 = vmatprep.subr.bf16.mxu0 0
        %4192 = vmatpush1.bf16.msra.mxu0 0
        %4193 = vmatprep.subr.bf16.mxu0 0
        %4194 = vmatpush1.bf16.msra.mxu0 0
        %4195 = vmatprep.mubr.bf16.mxu0 0
        %4196 = vmatmul.mubr.bf16.gmra.mrb[0].mxu0 %v4120
        %v4197 = vpop.f32.mrb[0].mxu0
        %v4198 = vadd.f32 0.0, %v4197
        %v4199 = vpop.f32.mrb[0].mxu0
        %v4200 = vadd.f32 0.0, %v4199
        %v4201 = vpop.f32.mrb[0].mxu0
        %v4202 = vpop.f32.mrb[0].mxu0
        %4203 = vdwg.mxu0
        %v4204 = vadd.f32 %v3899, %v4157
        %v4205 = vadd.f32 %v3900, %v4159
        %v4206 = vadd.f32 %v3901, %v4198
        %v4207 = vadd.f32 %v3902, %v4200
        %v4208 = vrot.slane %v3578, 4
        %v4210 = vsel %vm3608, %v3575, 0
        %v4213 = vsel %vm3608, %v4208, 0
        %4215 = vmatprep.subr.bf16.mxu0 0
        %4216 = vmatpush1.bf16.xpose.msra.mxu0 %v4213
        %4217 = vmatprep.subr.bf16.mxu0 0
        %4218 = vmatpush1.bf16.xpose.msra.mxu0 0
        %4219 = vmatprep.subr.bf16.mxu0 0
        %4220 = vmatpush1.bf16.xpose.msra.mxu0 0
        %4221 = vmatprep.subr.bf16.mxu0 0
        %4222 = vmatpush1.bf16.xpose.msra.mxu0 0
        %4223 = vmatprep.subr.bf16.mxu0 0
        %4224 = vmatpush1.bf16.xpose.msra.mxu0 0
        %4225 = vmatprep.subr.bf16.mxu0 0
        %4226 = vmatpush1.bf16.xpose.msra.mxu0 0
        %4227 = vmatprep.subr.bf16.mxu0 0
        %4228 = vmatpush1.bf16.xpose.msra.mxu0 0
        %4229 = vmatprep.subr.bf16.mxu0 0
        %4230 = vmatpush1.bf16.xpose.msra.mxu0 0
        %4231 = vmatprep.subr.bf16.mxu0 0
        %4232 = vmatpush1.bf16.xpose.msra.mxu0 0
        %4233 = vmatprep.subr.bf16.mxu0 0
        %4234 = vmatpush1.bf16.xpose.msra.mxu0 0
        %4235 = vmatprep.subr.bf16.mxu0 0
        %4236 = vmatpush1.bf16.xpose.msra.mxu0 0
        %4237 = vmatprep.subr.bf16.mxu0 0
        %4238 = vmatpush1.bf16.xpose.msra.mxu0 0
        %4239 = vmatprep.subr.bf16.mxu0 0
        %4240 = vmatpush1.bf16.xpose.msra.mxu0 0
        %4241 = vmatprep.subr.bf16.mxu0 0
        %4242 = vmatpush1.bf16.xpose.msra.mxu0 0
        %4243 = vmatprep.subr.bf16.mxu0 0
        %4244 = vmatpush1.bf16.xpose.msra.mxu0 0
        %4245 = vmatprep.subr.bf16.mxu0 0
        %4246 = vmatpush1.bf16.xpose.msra.mxu0 0
        %4247 = vmatprep.mubr.bf16.mxu0 0
        %4248 = vmatmul.mubr.bf16.gmra.mrb[0].mxu0 %v4210
        %v4249 = vpop.f32.mrb[0].mxu0
        %v4250 = vadd.f32 0.0, %v4249
        %v4251 = vpop.f32.mrb[0].mxu0
        %v4252 = vpop.f32.mrb[0].mxu0
        %v4253 = vpop.f32.mrb[0].mxu0
        %4254 = vdwg.mxu0
        %v4255 = vsel %vm3655, %v4250, -inf
        %4256 = vmax.xlane.f32.xlu0 %v4255
        %v4257 = vpop.xlane.xlu0 %4256
        %v4258 = vsub.f32 %v4250, %v4257
        %v4259 = vmul.f32 %v4258, 1.442695
        %v4260 = vpow.pop %v4259
        %v4261 = vsel %vm3655, %v4260, 0.0
        %4262 = vadd.xlane.f32.xlu0 %v4261
        %v4263 = vpop.xlane.xlu0 %4262
        %v4264 = vrcp.pop %v4263
        %v4265 = vmul.f32 %v4260, %v4264
        %v4266 = vpack.c.bf16 %v4265, %v4265
        %s4267 = scalar_lea.vmem %s656, 8 [#allocation24]
        %4268 = vst.msk [vmem:[%s4267] sm:$0xf] %vm3668, %v4266
        %v4269 = vrot.slane %v3580, 4
        %v4271 = vsel %vm3655, %v4266, 0
        %v4274 = vsel %vm3673, %v4269, 0
        %4276 = vmatprep.subr.bf16.mxu0 0
        %4277 = vmatpush1.bf16.msra.mxu0 %v4274
        %4278 = vmatprep.subr.bf16.mxu0 0
        %4279 = vmatpush1.bf16.msra.mxu0 0
        %4280 = vmatprep.subr.bf16.mxu0 0
        %4281 = vmatpush1.bf16.msra.mxu0 0
        %4282 = vmatprep.subr.bf16.mxu0 0
        %4283 = vmatpush1.bf16.msra.mxu0 0
        %4284 = vmatprep.subr.bf16.mxu0 0
        %4285 = vmatpush1.bf16.msra.mxu0 0
        %4286 = vmatprep.subr.bf16.mxu0 0
        %4287 = vmatpush1.bf16.msra.mxu0 0
        %4288 = vmatprep.subr.bf16.mxu0 0
        %4289 = vmatpush1.bf16.msra.mxu0 0
        %4290 = vmatprep.subr.bf16.mxu0 0
        %4291 = vmatpush1.bf16.msra.mxu0 0
        %4292 = vmatprep.subr.bf16.mxu0 0
        %4293 = vmatpush1.bf16.msra.mxu0 0
        %4294 = vmatprep.subr.bf16.mxu0 0
        %4295 = vmatpush1.bf16.msra.mxu0 0
        %4296 = vmatprep.subr.bf16.mxu0 0
        %4297 = vmatpush1.bf16.msra.mxu0 0
        %4298 = vmatprep.subr.bf16.mxu0 0
        %4299 = vmatpush1.bf16.msra.mxu0 0
        %4300 = vmatprep.subr.bf16.mxu0 0
        %4301 = vmatpush1.bf16.msra.mxu0 0
        %4302 = vmatprep.subr.bf16.mxu0 0
        %4303 = vmatpush1.bf16.msra.mxu0 0
        %4304 = vmatprep.subr.bf16.mxu0 0
        %4305 = vmatpush1.bf16.msra.mxu0 0
        %4306 = vmatprep.subr.bf16.mxu0 0
        %4307 = vmatpush1.bf16.msra.mxu0 0
        %4308 = vmatprep.mubr.bf16.mxu0 0
        %4309 = vmatmul.mubr.bf16.gmra.mrb[0].mxu0 %v4271
        %v4310 = vpop.f32.mrb[0].mxu0
        %v4311 = vadd.f32 0.0, %v4310
        %v4312 = vpop.f32.mrb[0].mxu0
        %v4313 = vpop.f32.mrb[0].mxu0
        %v4314 = vpop.f32.mrb[0].mxu0
        %4315 = vdwg.mxu0
        %v4316 = vpack.c.bf16 %v4311, %v4311
        %v4317 = vld [vmem:[#allocation11 + $0x100] sm:$0xff]
        %v4318 = vld [vmem:[#allocation11 + $0x108] sm:$0xff]
        %v4319 = vld [vmem:[#allocation11 + $0x110] sm:$0xff]
        %v4320 = vld [vmem:[#allocation11 + $0x118] sm:$0xff]
        %v4321 = vld [vmem:[#allocation11 + $0x120] sm:$0xff]
        %v4322 = vld [vmem:[#allocation11 + $0x128] sm:$0xff]
        %v4323 = vld [vmem:[#allocation11 + $0x130] sm:$0xff]
        %v4324 = vld [vmem:[#allocation11 + $0x138] sm:$0xff]
        %v4325 = vld [vmem:[#allocation11 + $0x140] sm:$0xff]
        %v4326 = vld [vmem:[#allocation11 + $0x148] sm:$0xff]
        %v4327 = vld [vmem:[#allocation11 + $0x150] sm:$0xff]
        %v4328 = vld [vmem:[#allocation11 + $0x158] sm:$0xff]
        %v4329 = vld [vmem:[#allocation11 + $0x160] sm:$0xff]
        %v4330 = vld [vmem:[#allocation11 + $0x168] sm:$0xff]
        %v4331 = vld [vmem:[#allocation11 + $0x170] sm:$0xff]
        %v4332 = vld [vmem:[#allocation11 + $0x178] sm:$0xff]
        %v4349 = vunpack.c.l.b16 %v4317
        %v4350 = vunpack.c.h.b16 %v4317
        %v4351 = vunpack.c.l.b16 %v4318
        %v4352 = vunpack.c.h.b16 %v4318
        %v4353 = vunpack.c.l.b16 %v4319
        %v4354 = vunpack.c.h.b16 %v4319
        %v4355 = vunpack.c.l.b16 %v4320
        %v4356 = vunpack.c.h.b16 %v4320
        %v4357 = vunpack.c.l.b16 %v4321
        %v4358 = vunpack.c.h.b16 %v4321
        %v4359 = vunpack.c.l.b16 %v4322
        %v4360 = vunpack.c.h.b16 %v4322
        %v4361 = vunpack.c.l.b16 %v4323
        %v4362 = vunpack.c.h.b16 %v4323
        %v4363 = vunpack.c.l.b16 %v4324
        %v4364 = vunpack.c.h.b16 %v4324
        %v4365 = vunpack.c.l.b16 %v4325
        %v4366 = vunpack.c.h.b16 %v4325
        %v4367 = vunpack.c.l.b16 %v4326
        %v4368 = vunpack.c.h.b16 %v4326
        %v4369 = vunpack.c.l.b16 %v4327
        %v4370 = vunpack.c.h.b16 %v4327
        %v4371 = vunpack.c.l.b16 %v4328
        %v4372 = vunpack.c.h.b16 %v4328
        %v4373 = vunpack.c.l.b16 %v4329
        %v4374 = vunpack.c.h.b16 %v4329
        %v4375 = vunpack.c.l.b16 %v4330
        %v4376 = vunpack.c.h.b16 %v4330
        %v4377 = vunpack.c.l.b16 %v4331
        %v4378 = vunpack.c.h.b16 %v4331
        %v4379 = vunpack.c.l.b16 %v4332
        %v4380 = vunpack.c.h.b16 %v4332
        %v4381 = vpack.c.b16 %v4353, %v4349
        %v4382 = vpack.c.b16 %v4354, %v4350
        %v4383 = vpack.c.b16 %v4355, %v4351
        %v4384 = vpack.c.b16 %v4356, %v4352
        %v4385 = vpack.c.b16 %v4361, %v4357
        %v4386 = vpack.c.b16 %v4362, %v4358
        %v4387 = vpack.c.b16 %v4363, %v4359
        %v4388 = vpack.c.b16 %v4364, %v4360
        %v4389 = vpack.c.b16 %v4369, %v4365
        %v4390 = vpack.c.b16 %v4370, %v4366
        %v4391 = vpack.c.b16 %v4371, %v4367
        %v4392 = vpack.c.b16 %v4372, %v4368
        %v4393 = vpack.c.b16 %v4377, %v4373
        %v4394 = vpack.c.b16 %v4378, %v4374
        %v4395 = vpack.c.b16 %v4379, %v4375
        %v4396 = vpack.c.b16 %v4380, %v4376
        %v4414 = vsel %vm3608, %v4316, 0
        %4416 = vmatprep.subr.bf16.mxu0 %v4382
        %4417 = vmatpush1.bf16.msra.mxu0 %v4381
        %4418 = vmatprep.subr.bf16.mxu0 %v4386
        %4419 = vmatpush1.bf16.msra.mxu0 %v4385
        %4420 = vmatprep.subr.bf16.mxu0 %v4390
        %4421 = vmatpush1.bf16.msra.mxu0 %v4389
        %4422 = vmatprep.subr.bf16.mxu0 %v4394
        %4423 = vmatpush1.bf16.msra.mxu0 %v4393
        %4424 = vmatprep.subr.bf16.mxu0 0
        %4425 = vmatpush1.bf16.msra.mxu0 0
        %4426 = vmatprep.subr.bf16.mxu0 0
        %4427 = vmatpush1.bf16.msra.mxu0 0
        %4428 = vmatprep.subr.bf16.mxu0 0
        %4429 = vmatpush1.bf16.msra.mxu0 0
        %4430 = vmatprep.subr.bf16.mxu0 0
        %4431 = vmatpush1.bf16.msra.mxu0 0
        %4432 = vmatprep.subr.bf16.mxu0 0
        %4433 = vmatpush1.bf16.msra.mxu0 0
        %4434 = vmatprep.subr.bf16.mxu0 0
        %4435 = vmatpush1.bf16.msra.mxu0 0
        %4436 = vmatprep.subr.bf16.mxu0 0
        %4437 = vmatpush1.bf16.msra.mxu0 0
        %4438 = vmatprep.subr.bf16.mxu0 0
        %4439 = vmatpush1.bf16.msra.mxu0 0
        %4440 = vmatprep.subr.bf16.mxu0 0
        %4441 = vmatpush1.bf16.msra.mxu0 0
        %4442 = vmatprep.subr.bf16.mxu0 0
        %4443 = vmatpush1.bf16.msra.mxu0 0
        %4444 = vmatprep.subr.bf16.mxu0 0
        %4445 = vmatpush1.bf16.msra.mxu0 0
        %4446 = vmatprep.subr.bf16.mxu0 0
        %4447 = vmatpush1.bf16.msra.mxu0 0
        %4448 = vmatprep.mubr.bf16.mxu0 0
        %4449 = vmatmul.mubr.bf16.gmra.mrb[0].mxu0 %v4414
        %v4450 = vpop.f32.mrb[0].mxu0
        %v4451 = vadd.f32 0.0, %v4450
        %v4452 = vpop.f32.mrb[0].mxu0
        %v4453 = vadd.f32 0.0, %v4452
        %v4454 = vpop.f32.mrb[0].mxu0
        %v4455 = vpop.f32.mrb[0].mxu0
        %4456 = vdwg.mxu0
        %4457 = vmatprep.subr.bf16.mxu0 %v4384
        %4458 = vmatpush1.bf16.msra.mxu0 %v4383
        %4459 = vmatprep.subr.bf16.mxu0 %v4388
        %4460 = vmatpush1.bf16.msra.mxu0 %v4387
        %4461 = vmatprep.subr.bf16.mxu0 %v4392
        %4462 = vmatpush1.bf16.msra.mxu0 %v4391
        %4463 = vmatprep.subr.bf16.mxu0 %v4396
        %4464 = vmatpush1.bf16.msra.mxu0 %v4395
        %4465 = vmatprep.subr.bf16.mxu0 0
        %4466 = vmatpush1.bf16.msra.mxu0 0
        %4467 = vmatprep.subr.bf16.mxu0 0
        %4468 = vmatpush1.bf16.msra.mxu0 0
        %4469 = vmatprep.subr.bf16.mxu0 0
        %4470 = vmatpush1.bf16.msra.mxu0 0
        %4471 = vmatprep.subr.bf16.mxu0 0
        %4472 = vmatpush1.bf16.msra.mxu0 0
        %4473 = vmatprep.subr.bf16.mxu0 0
        %4474 = vmatpush1.bf16.msra.mxu0 0
        %4475 = vmatprep.subr.bf16.mxu0 0
        %4476 = vmatpush1.bf16.msra.mxu0 0
        %4477 = vmatprep.subr.bf16.mxu0 0
        %4478 = vmatpush1.bf16.msra.mxu0 0
        %4479 = vmatprep.subr.bf16.mxu0 0
        %4480 = vmatpush1.bf16.msra.mxu0 0
        %4481 = vmatprep.subr.bf16.mxu0 0
        %4482 = vmatpush1.bf16.msra.mxu0 0
        %4483 = vmatprep.subr.bf16.mxu0 0
        %4484 = vmatpush1.bf16.msra.mxu0 0
        %4485 = vmatprep.subr.bf16.mxu0 0
        %4486 = vmatpush1.bf16.msra.mxu0 0
        %4487 = vmatprep.subr.bf16.mxu0 0
        %4488 = vmatpush1.bf16.msra.mxu0 0
        %4489 = vmatprep.mubr.bf16.mxu0 0
        %4490 = vmatmul.mubr.bf16.gmra.mrb[0].mxu0 %v4414
        %v4491 = vpop.f32.mrb[0].mxu0
        %v4492 = vadd.f32 0.0, %v4491
        %v4493 = vpop.f32.mrb[0].mxu0
        %v4494 = vadd.f32 0.0, %v4493
        %v4495 = vpop.f32.mrb[0].mxu0
        %v4496 = vpop.f32.mrb[0].mxu0
        %4497 = vdwg.mxu0
        %v4498 = vadd.f32 %v4204, %v4451
        %v4499 = vadd.f32 %v4205, %v4453
        %v4500 = vadd.f32 %v4206, %v4492
        %v4501 = vadd.f32 %v4207, %v4494
        %4502 = vrot.lane.b32.xlu0 %v3578, 64
        %v4503 = vpop.permute.xlu0 %4502
        %v4504 = vrot.slane %v4503, 4
        %4506 = vrot.lane.b32.xlu0 %v3575, 64
        %v4507 = vpop.permute.xlu0 %4506
        %v4509 = vsel %vm3608, %v4507, 0
        %v4512 = vsel %vm3608, %v4504, 0
        %4514 = vmatprep.subr.bf16.mxu0 0
        %4515 = vmatpush1.bf16.xpose.msra.mxu0 %v4512
        %4516 = vmatprep.subr.bf16.mxu0 0
        %4517 = vmatpush1.bf16.xpose.msra.mxu0 0
        %4518 = vmatprep.subr.bf16.mxu0 0
        %4519 = vmatpush1.bf16.xpose.msra.mxu0 0
        %4520 = vmatprep.subr.bf16.mxu0 0
        %4521 = vmatpush1.bf16.xpose.msra.mxu0 0
        %4522 = vmatprep.subr.bf16.mxu0 0
        %4523 = vmatpush1.bf16.xpose.msra.mxu0 0
        %4524 = vmatprep.subr.bf16.mxu0 0
        %4525 = vmatpush1.bf16.xpose.msra.mxu0 0
        %4526 = vmatprep.subr.bf16.mxu0 0
        %4527 = vmatpush1.bf16.xpose.msra.mxu0 0
        %4528 = vmatprep.subr.bf16.mxu0 0
        %4529 = vmatpush1.bf16.xpose.msra.mxu0 0
        %4530 = vmatprep.subr.bf16.mxu0 0
        %4531 = vmatpush1.bf16.xpose.msra.mxu0 0
        %4532 = vmatprep.subr.bf16.mxu0 0
        %4533 = vmatpush1.bf16.xpose.msra.mxu0 0
        %4534 = vmatprep.subr.bf16.mxu0 0
        %4535 = vmatpush1.bf16.xpose.msra.mxu0 0
        %4536 = vmatprep.subr.bf16.mxu0 0
        %4537 = vmatpush1.bf16.xpose.msra.mxu0 0
        %4538 = vmatprep.subr.bf16.mxu0 0
        %4539 = vmatpush1.bf16.xpose.msra.mxu0 0
        %4540 = vmatprep.subr.bf16.mxu0 0
        %4541 = vmatpush1.bf16.xpose.msra.mxu0 0
        %4542 = vmatprep.subr.bf16.mxu0 0
        %4543 = vmatpush1.bf16.xpose.msra.mxu0 0
        %4544 = vmatprep.subr.bf16.mxu0 0
        %4545 = vmatpush1.bf16.xpose.msra.mxu0 0
        %4546 = vmatprep.mubr.bf16.mxu0 0
        %4547 = vmatmul.mubr.bf16.gmra.mrb[0].mxu0 %v4509
        %v4548 = vpop.f32.mrb[0].mxu0
        %v4549 = vadd.f32 0.0, %v4548
        %v4550 = vpop.f32.mrb[0].mxu0
        %v4551 = vpop.f32.mrb[0].mxu0
        %v4552 = vpop.f32.mrb[0].mxu0
        %4553 = vdwg.mxu0
        %v4554 = vsel %vm3655, %v4549, -inf
        %4555 = vmax.xlane.f32.xlu0 %v4554
        %v4556 = vpop.xlane.xlu0 %4555
        %v4557 = vsub.f32 %v4549, %v4556
        %v4558 = vmul.f32 %v4557, 1.442695
        %v4559 = vpow.pop %v4558
        %v4560 = vsel %vm3655, %v4559, 0.0
        %4561 = vadd.xlane.f32.xlu0 %v4560
        %v4562 = vpop.xlane.xlu0 %4561
        %v4563 = vrcp.pop %v4562
        %v4564 = vmul.f32 %v4559, %v4563
        %v4565 = vpack.c.bf16 %v4564, %v4564
        %s4566 = scalar_lea.vmem %s656, 12 [#allocation24]
        %4567 = vst.msk [vmem:[%s4566] sm:$0xf] %vm3668, %v4565
        %4568 = vrot.lane.b32.xlu0 %v3580, 64
        %v4569 = vpop.permute.xlu0 %4568
        %v4570 = vrot.slane %v4569, 4
        %v4572 = vsel %vm3655, %v4565, 0
        %v4575 = vsel %vm3673, %v4570, 0
        %4577 = vmatprep.subr.bf16.mxu0 0
        %4578 = vmatpush1.bf16.msra.mxu0 %v4575
        %4579 = vmatprep.subr.bf16.mxu0 0
        %4580 = vmatpush1.bf16.msra.mxu0 0
        %4581 = vmatprep.subr.bf16.mxu0 0
        %4582 = vmatpush1.bf16.msra.mxu0 0
        %4583 = vmatprep.subr.bf16.mxu0 0
        %4584 = vmatpush1.bf16.msra.mxu0 0
        %4585 = vmatprep.subr.bf16.mxu0 0
        %4586 = vmatpush1.bf16.msra.mxu0 0
        %4587 = vmatprep.subr.bf16.mxu0 0
        %4588 = vmatpush1.bf16.msra.mxu0 0
        %4589 = vmatprep.subr.bf16.mxu0 0
        %4590 = vmatpush1.bf16.msra.mxu0 0
        %4591 = vmatprep.subr.bf16.mxu0 0
        %4592 = vmatpush1.bf16.msra.mxu0 0
        %4593 = vmatprep.subr.bf16.mxu0 0
        %4594 = vmatpush1.bf16.msra.mxu0 0
        %4595 = vmatprep.subr.bf16.mxu0 0
        %4596 = vmatpush1.bf16.msra.mxu0 0
        %4597 = vmatprep.subr.bf16.mxu0 0
        %4598 = vmatpush1.bf16.msra.mxu0 0
        %4599 = vmatprep.subr.bf16.mxu0 0
        %4600 = vmatpush1.bf16.msra.mxu0 0
        %4601 = vmatprep.subr.bf16.mxu0 0
        %4602 = vmatpush1.bf16.msra.mxu0 0
        %4603 = vmatprep.subr.bf16.mxu0 0
        %4604 = vmatpush1.bf16.msra.mxu0 0
        %4605 = vmatprep.subr.bf16.mxu0 0
        %4606 = vmatpush1.bf16.msra.mxu0 0
        %4607 = vmatprep.subr.bf16.mxu0 0
        %4608 = vmatpush1.bf16.msra.mxu0 0
        %4609 = vmatprep.mubr.bf16.mxu0 0
        %4610 = vmatmul.mubr.bf16.gmra.mrb[0].mxu0 %v4572
        %v4611 = vpop.f32.mrb[0].mxu0
        %v4612 = vadd.f32 0.0, %v4611
        %v4613 = vpop.f32.mrb[0].mxu0
        %v4614 = vpop.f32.mrb[0].mxu0
        %v4615 = vpop.f32.mrb[0].mxu0
        %4616 = vdwg.mxu0
        %v4617 = vpack.c.bf16 %v4612, %v4612
        %v4618 = vld [vmem:[#allocation11 + $0x180] sm:$0xff]
        %v4619 = vld [vmem:[#allocation11 + $0x188] sm:$0xff]
        %v4620 = vld [vmem:[#allocation11 + $0x190] sm:$0xff]
        %v4621 = vld [vmem:[#allocation11 + $0x198] sm:$0xff]
        %v4622 = vld [vmem:[#allocation11 + $0x1a0] sm:$0xff]
        %v4623 = vld [vmem:[#allocation11 + $0x1a8] sm:$0xff]
        %v4624 = vld [vmem:[#allocation11 + $0x1b0] sm:$0xff]
        %v4625 = vld [vmem:[#allocation11 + $0x1b8] sm:$0xff]
        %v4626 = vld [vmem:[#allocation11 + $0x1c0] sm:$0xff]
        %v4627 = vld [vmem:[#allocation11 + $0x1c8] sm:$0xff]
        %v4628 = vld [vmem:[#allocation11 + $0x1d0] sm:$0xff]
        %v4629 = vld [vmem:[#allocation11 + $0x1d8] sm:$0xff]
        %v4630 = vld [vmem:[#allocation11 + $0x1e0] sm:$0xff]
        %v4631 = vld [vmem:[#allocation11 + $0x1e8] sm:$0xff]
        %v4632 = vld [vmem:[#allocation11 + $0x1f0] sm:$0xff]
        %v4633 = vld [vmem:[#allocation11 + $0x1f8] sm:$0xff]
        %v4650 = vunpack.c.l.b16 %v4618
        %v4651 = vunpack.c.h.b16 %v4618
        %v4652 = vunpack.c.l.b16 %v4619
        %v4653 = vunpack.c.h.b16 %v4619
        %v4654 = vunpack.c.l.b16 %v4620
        %v4655 = vunpack.c.h.b16 %v4620
        %v4656 = vunpack.c.l.b16 %v4621
        %v4657 = vunpack.c.h.b16 %v4621
        %v4658 = vunpack.c.l.b16 %v4622
        %v4659 = vunpack.c.h.b16 %v4622
        %v4660 = vunpack.c.l.b16 %v4623
        %v4661 = vunpack.c.h.b16 %v4623
        %v4662 = vunpack.c.l.b16 %v4624
        %v4663 = vunpack.c.h.b16 %v4624
        %v4664 = vunpack.c.l.b16 %v4625
        %v4665 = vunpack.c.h.b16 %v4625
        %v4666 = vunpack.c.l.b16 %v4626
        %v4667 = vunpack.c.h.b16 %v4626
        %v4668 = vunpack.c.l.b16 %v4627
        %v4669 = vunpack.c.h.b16 %v4627
        %v4670 = vunpack.c.l.b16 %v4628
        %v4671 = vunpack.c.h.b16 %v4628
        %v4672 = vunpack.c.l.b16 %v4629
        %v4673 = vunpack.c.h.b16 %v4629
        %v4674 = vunpack.c.l.b16 %v4630
        %v4675 = vunpack.c.h.b16 %v4630
        %v4676 = vunpack.c.l.b16 %v4631
        %v4677 = vunpack.c.h.b16 %v4631
        %v4678 = vunpack.c.l.b16 %v4632
        %v4679 = vunpack.c.h.b16 %v4632
        %v4680 = vunpack.c.l.b16 %v4633
        %v4681 = vunpack.c.h.b16 %v4633
        %v4682 = vpack.c.b16 %v4654, %v4650
        %v4683 = vpack.c.b16 %v4655, %v4651
        %v4684 = vpack.c.b16 %v4656, %v4652
        %v4685 = vpack.c.b16 %v4657, %v4653
        %v4686 = vpack.c.b16 %v4662, %v4658
        %v4687 = vpack.c.b16 %v4663, %v4659
        %v4688 = vpack.c.b16 %v4664, %v4660
        %v4689 = vpack.c.b16 %v4665, %v4661
        %v4690 = vpack.c.b16 %v4670, %v4666
        %v4691 = vpack.c.b16 %v4671, %v4667
        %v4692 = vpack.c.b16 %v4672, %v4668
        %v4693 = vpack.c.b16 %v4673, %v4669
        %v4694 = vpack.c.b16 %v4678, %v4674
        %v4695 = vpack.c.b16 %v4679, %v4675
        %v4696 = vpack.c.b16 %v4680, %v4676
        %v4697 = vpack.c.b16 %v4681, %v4677
        %v4715 = vsel %vm3608, %v4617, 0
        %4717 = vmatprep.subr.bf16.mxu0 %v4683
        %4718 = vmatpush1.bf16.msra.mxu0 %v4682
        %4719 = vmatprep.subr.bf16.mxu0 %v4687
        %4720 = vmatpush1.bf16.msra.mxu0 %v4686
        %4721 = vmatprep.subr.bf16.mxu0 %v4691
        %4722 = vmatpush1.bf16.msra.mxu0 %v4690
        %4723 = vmatprep.subr.bf16.mxu0 %v4695
        %4724 = vmatpush1.bf16.msra.mxu0 %v4694
        %4725 = vmatprep.subr.bf16.mxu0 0
        %4726 = vmatpush1.bf16.msra.mxu0 0
        %4727 = vmatprep.subr.bf16.mxu0 0
        %4728 = vmatpush1.bf16.msra.mxu0 0
        %4729 = vmatprep.subr.bf16.mxu0 0
        %4730 = vmatpush1.bf16.msra.mxu0 0
        %4731 = vmatprep.subr.bf16.mxu0 0
        %4732 = vmatpush1.bf16.msra.mxu0 0
        %4733 = vmatprep.subr.bf16.mxu0 0
        %4734 = vmatpush1.bf16.msra.mxu0 0
        %4735 = vmatprep.subr.bf16.mxu0 0
        %4736 = vmatpush1.bf16.msra.mxu0 0
        %4737 = vmatprep.subr.bf16.mxu0 0
        %4738 = vmatpush1.bf16.msra.mxu0 0
        %4739 = vmatprep.subr.bf16.mxu0 0
        %4740 = vmatpush1.bf16.msra.mxu0 0
        %4741 = vmatprep.subr.bf16.mxu0 0
        %4742 = vmatpush1.bf16.msra.mxu0 0
        %4743 = vmatprep.subr.bf16.mxu0 0
        %4744 = vmatpush1.bf16.msra.mxu0 0
        %4745 = vmatprep.subr.bf16.mxu0 0
        %4746 = vmatpush1.bf16.msra.mxu0 0
        %4747 = vmatprep.subr.bf16.mxu0 0
        %4748 = vmatpush1.bf16.msra.mxu0 0
        %4749 = vmatprep.mubr.bf16.mxu0 0
        %4750 = vmatmul.mubr.bf16.gmra.mrb[0].mxu0 %v4715
        %v4751 = vpop.f32.mrb[0].mxu0
        %v4752 = vadd.f32 0.0, %v4751
        %v4753 = vpop.f32.mrb[0].mxu0
        %v4754 = vadd.f32 0.0, %v4753
        %v4755 = vpop.f32.mrb[0].mxu0
        %v4756 = vpop.f32.mrb[0].mxu0
        %4757 = vdwg.mxu0
        %4758 = vmatprep.subr.bf16.mxu0 %v4685
        %4759 = vmatpush1.bf16.msra.mxu0 %v4684
        %4760 = vmatprep.subr.bf16.mxu0 %v4689
        %4761 = vmatpush1.bf16.msra.mxu0 %v4688
        %4762 = vmatprep.subr.bf16.mxu0 %v4693
        %4763 = vmatpush1.bf16.msra.mxu0 %v4692
        %4764 = vmatprep.subr.bf16.mxu0 %v4697
        %4765 = vmatpush1.bf16.msra.mxu0 %v4696
        %4766 = vmatprep.subr.bf16.mxu0 0
        %4767 = vmatpush1.bf16.msra.mxu0 0
        %4768 = vmatprep.subr.bf16.mxu0 0
        %4769 = vmatpush1.bf16.msra.mxu0 0
        %4770 = vmatprep.subr.bf16.mxu0 0
        %4771 = vmatpush1.bf16.msra.mxu0 0
        %4772 = vmatprep.subr.bf16.mxu0 0
        %4773 = vmatpush1.bf16.msra.mxu0 0
        %4774 = vmatprep.subr.bf16.mxu0 0
        %4775 = vmatpush1.bf16.msra.mxu0 0
        %4776 = vmatprep.subr.bf16.mxu0 0
        %4777 = vmatpush1.bf16.msra.mxu0 0
        %4778 = vmatprep.subr.bf16.mxu0 0
        %4779 = vmatpush1.bf16.msra.mxu0 0
        %4780 = vmatprep.subr.bf16.mxu0 0
        %4781 = vmatpush1.bf16.msra.mxu0 0
        %4782 = vmatprep.subr.bf16.mxu0 0
        %4783 = vmatpush1.bf16.msra.mxu0 0
        %4784 = vmatprep.subr.bf16.mxu0 0
        %4785 = vmatpush1.bf16.msra.mxu0 0
        %4786 = vmatprep.subr.bf16.mxu0 0
        %4787 = vmatpush1.bf16.msra.mxu0 0
        %4788 = vmatprep.subr.bf16.mxu0 0
        %4789 = vmatpush1.bf16.msra.mxu0 0
        %4790 = vmatprep.mubr.bf16.mxu0 0
        %4791 = vmatmul.mubr.bf16.gmra.mrb[0].mxu0 %v4715
        %v4792 = vpop.f32.mrb[0].mxu0
        %v4793 = vadd.f32 0.0, %v4792
        %v4794 = vpop.f32.mrb[0].mxu0
        %v4795 = vadd.f32 0.0, %v4794
        %v4796 = vpop.f32.mrb[0].mxu0
        %v4797 = vpop.f32.mrb[0].mxu0
        %4798 = vdwg.mxu0
        %v4799 = vadd.f32 %v4498, %v4752
        %v4800 = vadd.f32 %v4499, %v4754
        %v4801 = vadd.f32 %v4500, %v4793
        %v4802 = vadd.f32 %v4501, %v4795
        %v4804 = vsel %vm3608, %v3576, 0
        %v4807 = vsel %vm3608, %v3579, 0
        %4809 = vmatprep.subr.bf16.mxu0 0
        %4810 = vmatpush1.bf16.xpose.msra.mxu0 %v4807
        %4811 = vmatprep.subr.bf16.mxu0 0
        %4812 = vmatpush1.bf16.xpose.msra.mxu0 0
        %4813 = vmatprep.subr.bf16.mxu0 0
        %4814 = vmatpush1.bf16.xpose.msra.mxu0 0
        %4815 = vmatprep.subr.bf16.mxu0 0
        %4816 = vmatpush1.bf16.xpose.msra.mxu0 0
        %4817 = vmatprep.subr.bf16.mxu0 0
        %4818 = vmatpush1.bf16.xpose.msra.mxu0 0
        %4819 = vmatprep.subr.bf16.mxu0 0
        %4820 = vmatpush1.bf16.xpose.msra.mxu0 0
        %4821 = vmatprep.subr.bf16.mxu0 0
        %4822 = vmatpush1.bf16.xpose.msra.mxu0 0
        %4823 = vmatprep.subr.bf16.mxu0 0
        %4824 = vmatpush1.bf16.xpose.msra.mxu0 0
        %4825 = vmatprep.subr.bf16.mxu0 0
        %4826 = vmatpush1.bf16.xpose.msra.mxu0 0
        %4827 = vmatprep.subr.bf16.mxu0 0
        %4828 = vmatpush1.bf16.xpose.msra.mxu0 0
        %4829 = vmatprep.subr.bf16.mxu0 0
        %4830 = vmatpush1.bf16.xpose.msra.mxu0 0
        %4831 = vmatprep.subr.bf16.mxu0 0
        %4832 = vmatpush1.bf16.xpose.msra.mxu0 0
        %4833 = vmatprep.subr.bf16.mxu0 0
        %4834 = vmatpush1.bf16.xpose.msra.mxu0 0
        %4835 = vmatprep.subr.bf16.mxu0 0
        %4836 = vmatpush1.bf16.xpose.msra.mxu0 0
        %4837 = vmatprep.subr.bf16.mxu0 0
        %4838 = vmatpush1.bf16.xpose.msra.mxu0 0
        %4839 = vmatprep.subr.bf16.mxu0 0
        %4840 = vmatpush1.bf16.xpose.msra.mxu0 0
        %4841 = vmatprep.mubr.bf16.mxu0 0
        %4842 = vmatmul.mubr.bf16.gmra.mrb[0].mxu0 %v4804
        %v4843 = vpop.f32.mrb[0].mxu0
        %v4844 = vadd.f32 0.0, %v4843
        %v4845 = vpop.f32.mrb[0].mxu0
        %v4846 = vpop.f32.mrb[0].mxu0
        %v4847 = vpop.f32.mrb[0].mxu0
        %4848 = vdwg.mxu0
        %v4849 = vsel %vm3655, %v4844, -inf
        %4850 = vmax.xlane.f32.xlu0 %v4849
        %v4851 = vpop.xlane.xlu0 %4850
        %v4852 = vsub.f32 %v4844, %v4851
        %v4853 = vmul.f32 %v4852, 1.442695
        %v4854 = vpow.pop %v4853
        %v4855 = vsel %vm3655, %v4854, 0.0
        %4856 = vadd.xlane.f32.xlu0 %v4855
        %v4857 = vpop.xlane.xlu0 %4856
        %v4858 = vrcp.pop %v4857
        %v4859 = vmul.f32 %v4854, %v4858
        %v4860 = vpack.c.bf16 %v4859, %v4859
        %s4861 = scalar_lea.vmem %s656, 16 [#allocation24]
        %4862 = vst.msk [vmem:[%s4861] sm:$0xf] %vm3668, %v4860
        %v4864 = vsel %vm3655, %v4860, 0
        %v4867 = vsel %vm3673, %v3581, 0
        %4869 = vmatprep.subr.bf16.mxu0 0
        %4870 = vmatpush1.bf16.msra.mxu0 %v4867
        %4871 = vmatprep.subr.bf16.mxu0 0
        %4872 = vmatpush1.bf16.msra.mxu0 0
        %4873 = vmatprep.subr.bf16.mxu0 0
        %4874 = vmatpush1.bf16.msra.mxu0 0
        %4875 = vmatprep.subr.bf16.mxu0 0
        %4876 = vmatpush1.bf16.msra.mxu0 0
        %4877 = vmatprep.subr.bf16.mxu0 0
        %4878 = vmatpush1.bf16.msra.mxu0 0
        %4879 = vmatprep.subr.bf16.mxu0 0
        %4880 = vmatpush1.bf16.msra.mxu0 0
        %4881 = vmatprep.subr.bf16.mxu0 0
        %4882 = vmatpush1.bf16.msra.mxu0 0
        %4883 = vmatprep.subr.bf16.mxu0 0
        %4884 = vmatpush1.bf16.msra.mxu0 0
        %4885 = vmatprep.subr.bf16.mxu0 0
        %4886 = vmatpush1.bf16.msra.mxu0 0
        %4887 = vmatprep.subr.bf16.mxu0 0
        %4888 = vmatpush1.bf16.msra.mxu0 0
        %4889 = vmatprep.subr.bf16.mxu0 0
        %4890 = vmatpush1.bf16.msra.mxu0 0
        %4891 = vmatprep.subr.bf16.mxu0 0
        %4892 = vmatpush1.bf16.msra.mxu0 0
        %4893 = vmatprep.subr.bf16.mxu0 0
        %4894 = vmatpush1.bf16.msra.mxu0 0
        %4895 = vmatprep.subr.bf16.mxu0 0
        %4896 = vmatpush1.bf16.msra.mxu0 0
        %4897 = vmatprep.subr.bf16.mxu0 0
        %4898 = vmatpush1.bf16.msra.mxu0 0
        %4899 = vmatprep.subr.bf16.mxu0 0
        %4900 = vmatpush1.bf16.msra.mxu0 0
        %4901 = vmatprep.mubr.bf16.mxu0 0
        %4902 = vmatmul.mubr.bf16.gmra.mrb[0].mxu0 %v4864
        %v4903 = vpop.f32.mrb[0].mxu0
        %v4904 = vadd.f32 0.0, %v4903
        %v4905 = vpop.f32.mrb[0].mxu0
        %v4906 = vpop.f32.mrb[0].mxu0
        %v4907 = vpop.f32.mrb[0].mxu0
        %4908 = vdwg.mxu0
        %v4909 = vpack.c.bf16 %v4904, %v4904
        %v4910 = vld [vmem:[#allocation11 + $0x200] sm:$0xff]
        %v4911 = vld [vmem:[#allocation11 + $0x208] sm:$0xff]
        %v4912 = vld [vmem:[#allocation11 + $0x210] sm:$0xff]
        %v4913 = vld [vmem:[#allocation11 + $0x218] sm:$0xff]
        %v4914 = vld [vmem:[#allocation11 + $0x220] sm:$0xff]
        %v4915 = vld [vmem:[#allocation11 + $0x228] sm:$0xff]
        %v4916 = vld [vmem:[#allocation11 + $0x230] sm:$0xff]
        %v4917 = vld [vmem:[#allocation11 + $0x238] sm:$0xff]
        %v4918 = vld [vmem:[#allocation11 + $0x240] sm:$0xff]
        %v4919 = vld [vmem:[#allocation11 + $0x248] sm:$0xff]
        %v4920 = vld [vmem:[#allocation11 + $0x250] sm:$0xff]
        %v4921 = vld [vmem:[#allocation11 + $0x258] sm:$0xff]
        %v4922 = vld [vmem:[#allocation11 + $0x260] sm:$0xff]
        %v4923 = vld [vmem:[#allocation11 + $0x268] sm:$0xff]
        %v4924 = vld [vmem:[#allocation11 + $0x270] sm:$0xff]
        %v4925 = vld [vmem:[#allocation11 + $0x278] sm:$0xff]
        %v4942 = vunpack.c.l.b16 %v4910
        %v4943 = vunpack.c.h.b16 %v4910
        %v4944 = vunpack.c.l.b16 %v4911
        %v4945 = vunpack.c.h.b16 %v4911
        %v4946 = vunpack.c.l.b16 %v4912
        %v4947 = vunpack.c.h.b16 %v4912
        %v4948 = vunpack.c.l.b16 %v4913
        %v4949 = vunpack.c.h.b16 %v4913
        %v4950 = vunpack.c.l.b16 %v4914
        %v4951 = vunpack.c.h.b16 %v4914
        %v4952 = vunpack.c.l.b16 %v4915
        %v4953 = vunpack.c.h.b16 %v4915
        %v4954 = vunpack.c.l.b16 %v4916
        %v4955 = vunpack.c.h.b16 %v4916
        %v4956 = vunpack.c.l.b16 %v4917
        %v4957 = vunpack.c.h.b16 %v4917
        %v4958 = vunpack.c.l.b16 %v4918
        %v4959 = vunpack.c.h.b16 %v4918
        %v4960 = vunpack.c.l.b16 %v4919
        %v4961 = vunpack.c.h.b16 %v4919
        %v4962 = vunpack.c.l.b16 %v4920
        %v4963 = vunpack.c.h.b16 %v4920
        %v4964 = vunpack.c.l.b16 %v4921
        %v4965 = vunpack.c.h.b16 %v4921
        %v4966 = vunpack.c.l.b16 %v4922
        %v4967 = vunpack.c.h.b16 %v4922
        %v4968 = vunpack.c.l.b16 %v4923
        %v4969 = vunpack.c.h.b16 %v4923
        %v4970 = vunpack.c.l.b16 %v4924
        %v4971 = vunpack.c.h.b16 %v4924
        %v4972 = vunpack.c.l.b16 %v4925
        %v4973 = vunpack.c.h.b16 %v4925
        %v4974 = vpack.c.b16 %v4946, %v4942
        %v4975 = vpack.c.b16 %v4947, %v4943
        %v4976 = vpack.c.b16 %v4948, %v4944
        %v4977 = vpack.c.b16 %v4949, %v4945
        %v4978 = vpack.c.b16 %v4954, %v4950
        %v4979 = vpack.c.b16 %v4955, %v4951
        %v4980 = vpack.c.b16 %v4956, %v4952
        %v4981 = vpack.c.b16 %v4957, %v4953
        %v4982 = vpack.c.b16 %v4962, %v4958
        %v4983 = vpack.c.b16 %v4963, %v4959
        %v4984 = vpack.c.b16 %v4964, %v4960
        %v4985 = vpack.c.b16 %v4965, %v4961
        %v4986 = vpack.c.b16 %v4970, %v4966
        %v4987 = vpack.c.b16 %v4971, %v4967
        %v4988 = vpack.c.b16 %v4972, %v4968
        %v4989 = vpack.c.b16 %v4973, %v4969
        %v5007 = vsel %vm3608, %v4909, 0
        %5009 = vmatprep.subr.bf16.mxu0 %v4975
        %5010 = vmatpush1.bf16.msra.mxu0 %v4974
        %5011 = vmatprep.subr.bf16.mxu0 %v4979
        %5012 = vmatpush1.bf16.msra.mxu0 %v4978
        %5013 = vmatprep.subr.bf16.mxu0 %v4983
        %5014 = vmatpush1.bf16.msra.mxu0 %v4982
        %5015 = vmatprep.subr.bf16.mxu0 %v4987
        %5016 = vmatpush1.bf16.msra.mxu0 %v4986
        %5017 = vmatprep.subr.bf16.mxu0 0
        %5018 = vmatpush1.bf16.msra.mxu0 0
        %5019 = vmatprep.subr.bf16.mxu0 0
        %5020 = vmatpush1.bf16.msra.mxu0 0
        %5021 = vmatprep.subr.bf16.mxu0 0
        %5022 = vmatpush1.bf16.msra.mxu0 0
        %5023 = vmatprep.subr.bf16.mxu0 0
        %5024 = vmatpush1.bf16.msra.mxu0 0
        %5025 = vmatprep.subr.bf16.mxu0 0
        %5026 = vmatpush1.bf16.msra.mxu0 0
        %5027 = vmatprep.subr.bf16.mxu0 0
        %5028 = vmatpush1.bf16.msra.mxu0 0
        %5029 = vmatprep.subr.bf16.mxu0 0
        %5030 = vmatpush1.bf16.msra.mxu0 0
        %5031 = vmatprep.subr.bf16.mxu0 0
        %5032 = vmatpush1.bf16.msra.mxu0 0
        %5033 = vmatprep.subr.bf16.mxu0 0
        %5034 = vmatpush1.bf16.msra.mxu0 0
        %5035 = vmatprep.subr.bf16.mxu0 0
        %5036 = vmatpush1.bf16.msra.mxu0 0
        %5037 = vmatprep.subr.bf16.mxu0 0
        %5038 = vmatpush1.bf16.msra.mxu0 0
        %5039 = vmatprep.subr.bf16.mxu0 0
        %5040 = vmatpush1.bf16.msra.mxu0 0
        %5041 = vmatprep.mubr.bf16.mxu0 0
        %5042 = vmatmul.mubr.bf16.gmra.mrb[0].mxu0 %v5007
        %v5043 = vpop.f32.mrb[0].mxu0
        %v5044 = vadd.f32 0.0, %v5043
        %v5045 = vpop.f32.mrb[0].mxu0
        %v5046 = vadd.f32 0.0, %v5045
        %v5047 = vpop.f32.mrb[0].mxu0
        %v5048 = vpop.f32.mrb[0].mxu0
        %5049 = vdwg.mxu0
        %5050 = vmatprep.subr.bf16.mxu0 %v4977
        %5051 = vmatpush1.bf16.msra.mxu0 %v4976
        %5052 = vmatprep.subr.bf16.mxu0 %v4981
        %5053 = vmatpush1.bf16.msra.mxu0 %v4980
        %5054 = vmatprep.subr.bf16.mxu0 %v4985
        %5055 = vmatpush1.bf16.msra.mxu0 %v4984
        %5056 = vmatprep.subr.bf16.mxu0 %v4989
        %5057 = vmatpush1.bf16.msra.mxu0 %v4988
        %5058 = vmatprep.subr.bf16.mxu0 0
        %5059 = vmatpush1.bf16.msra.mxu0 0
        %5060 = vmatprep.subr.bf16.mxu0 0
        %5061 = vmatpush1.bf16.msra.mxu0 0
        %5062 = vmatprep.subr.bf16.mxu0 0
        %5063 = vmatpush1.bf16.msra.mxu0 0
        %5064 = vmatprep.subr.bf16.mxu0 0
        %5065 = vmatpush1.bf16.msra.mxu0 0
        %5066 = vmatprep.subr.bf16.mxu0 0
        %5067 = vmatpush1.bf16.msra.mxu0 0
        %5068 = vmatprep.subr.bf16.mxu0 0
        %5069 = vmatpush1.bf16.msra.mxu0 0
        %5070 = vmatprep.subr.bf16.mxu0 0
        %5071 = vmatpush1.bf16.msra.mxu0 0
        %5072 = vmatprep.subr.bf16.mxu0 0
        %5073 = vmatpush1.bf16.msra.mxu0 0
        %5074 = vmatprep.subr.bf16.mxu0 0
        %5075 = vmatpush1.bf16.msra.mxu0 0
        %5076 = vmatprep.subr.bf16.mxu0 0
        %5077 = vmatpush1.bf16.msra.mxu0 0
        %5078 = vmatprep.subr.bf16.mxu0 0
        %5079 = vmatpush1.bf16.msra.mxu0 0
        %5080 = vmatprep.subr.bf16.mxu0 0
        %5081 = vmatpush1.bf16.msra.mxu0 0
        %5082 = vmatprep.mubr.bf16.mxu0 0
        %5083 = vmatmul.mubr.bf16.gmra.mrb[0].mxu0 %v5007
        %v5084 = vpop.f32.mrb[0].mxu0
        %v5085 = vadd.f32 0.0, %v5084
        %v5086 = vpop.f32.mrb[0].mxu0
        %v5087 = vadd.f32 0.0, %v5086
        %v5088 = vpop.f32.mrb[0].mxu0
        %v5089 = vpop.f32.mrb[0].mxu0
        %5090 = vdwg.mxu0
        %v5091 = vadd.f32 %v4799, %v5044
        %v5092 = vadd.f32 %v4800, %v5046
        %v5093 = vadd.f32 %v4801, %v5085
        %v5094 = vadd.f32 %v4802, %v5087
        %5096 = vrot.lane.b32.xlu0 %v3576, 64
        %v5097 = vpop.permute.xlu0 %5096
        %v5099 = vunpack.c.l.b16 %v3579
        %v5100 = vpack.c.b16 %v5099, %v5099
        %5101 = vrot.lane.b32.xlu0 %v5100, 64
        %v5102 = vpop.permute.xlu0 %5101
        %v5104 = vsel %vm3608, %v5097, 0
        %v5107 = vsel %vm3608, %v5102, 0
        %5109 = vmatprep.subr.bf16.mxu0 0
        %5110 = vmatpush1.bf16.xpose.msra.mxu0 %v5107
        %5111 = vmatprep.subr.bf16.mxu0 0
        %5112 = vmatpush1.bf16.xpose.msra.mxu0 0
        %5113 = vmatprep.subr.bf16.mxu0 0
        %5114 = vmatpush1.bf16.xpose.msra.mxu0 0
        %5115 = vmatprep.subr.bf16.mxu0 0
        %5116 = vmatpush1.bf16.xpose.msra.mxu0 0
        %5117 = vmatprep.subr.bf16.mxu0 0
        %5118 = vmatpush1.bf16.xpose.msra.mxu0 0
        %5119 = vmatprep.subr.bf16.mxu0 0
        %5120 = vmatpush1.bf16.xpose.msra.mxu0 0
        %5121 = vmatprep.subr.bf16.mxu0 0
        %5122 = vmatpush1.bf16.xpose.msra.mxu0 0
        %5123 = vmatprep.subr.bf16.mxu0 0
        %5124 = vmatpush1.bf16.xpose.msra.mxu0 0
        %5125 = vmatprep.subr.bf16.mxu0 0
        %5126 = vmatpush1.bf16.xpose.msra.mxu0 0
        %5127 = vmatprep.subr.bf16.mxu0 0
        %5128 = vmatpush1.bf16.xpose.msra.mxu0 0
        %5129 = vmatprep.subr.bf16.mxu0 0
        %5130 = vmatpush1.bf16.xpose.msra.mxu0 0
        %5131 = vmatprep.subr.bf16.mxu0 0
        %5132 = vmatpush1.bf16.xpose.msra.mxu0 0
        %5133 = vmatprep.subr.bf16.mxu0 0
        %5134 = vmatpush1.bf16.xpose.msra.mxu0 0
        %5135 = vmatprep.subr.bf16.mxu0 0
        %5136 = vmatpush1.bf16.xpose.msra.mxu0 0
        %5137 = vmatprep.subr.bf16.mxu0 0
        %5138 = vmatpush1.bf16.xpose.msra.mxu0 0
        %5139 = vmatprep.subr.bf16.mxu0 0
        %5140 = vmatpush1.bf16.xpose.msra.mxu0 0
        %5141 = vmatprep.mubr.bf16.mxu0 0
        %5142 = vmatmul.mubr.bf16.gmra.mrb[0].mxu0 %v5104
        %v5143 = vpop.f32.mrb[0].mxu0
        %v5144 = vadd.f32 0.0, %v5143
        %v5145 = vpop.f32.mrb[0].mxu0
        %v5146 = vpop.f32.mrb[0].mxu0
        %v5147 = vpop.f32.mrb[0].mxu0
        %5148 = vdwg.mxu0
        %v5149 = vsel %vm3655, %v5144, -inf
        %5150 = vmax.xlane.f32.xlu0 %v5149
        %v5151 = vpop.xlane.xlu0 %5150
        %v5152 = vsub.f32 %v5144, %v5151
        %v5153 = vmul.f32 %v5152, 1.442695
        %v5154 = vpow.pop %v5153
        %v5155 = vsel %vm3655, %v5154, 0.0
        %5156 = vadd.xlane.f32.xlu0 %v5155
        %v5157 = vpop.xlane.xlu0 %5156
        %v5158 = vrcp.pop %v5157
        %v5159 = vmul.f32 %v5154, %v5158
        %v5160 = vpack.c.bf16 %v5159, %v5159
        %s5161 = scalar_lea.vmem %s656, 20 [#allocation24]
        %5162 = vst.msk [vmem:[%s5161] sm:$0xf] %vm3668, %v5160
        %v5164 = vunpack.c.l.b16 %v3581
        %v5165 = vpack.c.b16 %v5164, %v5164
        %5166 = vrot.lane.b32.xlu0 %v5165, 64
        %v5167 = vpop.permute.xlu0 %5166
        %v5169 = vsel %vm3655, %v5160, 0
        %v5172 = vsel %vm3673, %v5167, 0
        %5174 = vmatprep.subr.bf16.mxu0 0
        %5175 = vmatpush1.bf16.msra.mxu0 %v5172
        %5176 = vmatprep.subr.bf16.mxu0 0
        %5177 = vmatpush1.bf16.msra.mxu0 0
        %5178 = vmatprep.subr.bf16.mxu0 0
        %5179 = vmatpush1.bf16.msra.mxu0 0
        %5180 = vmatprep.subr.bf16.mxu0 0
        %5181 = vmatpush1.bf16.msra.mxu0 0
        %5182 = vmatprep.subr.bf16.mxu0 0
        %5183 = vmatpush1.bf16.msra.mxu0 0
        %5184 = vmatprep.subr.bf16.mxu0 0
        %5185 = vmatpush1.bf16.msra.mxu0 0
        %5186 = vmatprep.subr.bf16.mxu0 0
        %5187 = vmatpush1.bf16.msra.mxu0 0
        %5188 = vmatprep.subr.bf16.mxu0 0
        %5189 = vmatpush1.bf16.msra.mxu0 0
        %5190 = vmatprep.subr.bf16.mxu0 0
        %5191 = vmatpush1.bf16.msra.mxu0 0
        %5192 = vmatprep.subr.bf16.mxu0 0
        %5193 = vmatpush1.bf16.msra.mxu0 0
        %5194 = vmatprep.subr.bf16.mxu0 0
        %5195 = vmatpush1.bf16.msra.mxu0 0
        %5196 = vmatprep.subr.bf16.mxu0 0
        %5197 = vmatpush1.bf16.msra.mxu0 0
        %5198 = vmatprep.subr.bf16.mxu0 0
        %5199 = vmatpush1.bf16.msra.mxu0 0
        %5200 = vmatprep.subr.bf16.mxu0 0
        %5201 = vmatpush1.bf16.msra.mxu0 0
        %5202 = vmatprep.subr.bf16.mxu0 0
        %5203 = vmatpush1.bf16.msra.mxu0 0
        %5204 = vmatprep.subr.bf16.mxu0 0
        %5205 = vmatpush1.bf16.msra.mxu0 0
        %5206 = vmatprep.mubr.bf16.mxu0 0
        %5207 = vmatmul.mubr.bf16.gmra.mrb[0].mxu0 %v5169
        %v5208 = vpop.f32.mrb[0].mxu0
        %v5209 = vadd.f32 0.0, %v5208
        %v5210 = vpop.f32.mrb[0].mxu0
        %v5211 = vpop.f32.mrb[0].mxu0
        %v5212 = vpop.f32.mrb[0].mxu0
        %5213 = vdwg.mxu0
        %v5214 = vpack.c.bf16 %v5209, %v5209
        %v5215 = vld [vmem:[#allocation11 + $0x280] sm:$0xff]
        %v5216 = vld [vmem:[#allocation11 + $0x288] sm:$0xff]
        %v5217 = vld [vmem:[#allocation11 + $0x290] sm:$0xff]
        %v5218 = vld [vmem:[#allocation11 + $0x298] sm:$0xff]
        %v5219 = vld [vmem:[#allocation11 + $0x2a0] sm:$0xff]
        %v5220 = vld [vmem:[#allocation11 + $0x2a8] sm:$0xff]
        %v5221 = vld [vmem:[#allocation11 + $0x2b0] sm:$0xff]
        %v5222 = vld [vmem:[#allocation11 + $0x2b8] sm:$0xff]
        %v5223 = vld [vmem:[#allocation11 + $0x2c0] sm:$0xff]
        %v5224 = vld [vmem:[#allocation11 + $0x2c8] sm:$0xff]
        %v5225 = vld [vmem:[#allocation11 + $0x2d0] sm:$0xff]
        %v5226 = vld [vmem:[#allocation11 + $0x2d8] sm:$0xff]
        %v5227 = vld [vmem:[#allocation11 + $0x2e0] sm:$0xff]
        %v5228 = vld [vmem:[#allocation11 + $0x2e8] sm:$0xff]
        %v5229 = vld [vmem:[#allocation11 + $0x2f0] sm:$0xff]
        %v5230 = vld [vmem:[#allocation11 + $0x2f8] sm:$0xff]
        %v5247 = vunpack.c.l.b16 %v5215
        %v5248 = vunpack.c.h.b16 %v5215
        %v5249 = vunpack.c.l.b16 %v5216
        %v5250 = vunpack.c.h.b16 %v5216
        %v5251 = vunpack.c.l.b16 %v5217
        %v5252 = vunpack.c.h.b16 %v5217
        %v5253 = vunpack.c.l.b16 %v5218
        %v5254 = vunpack.c.h.b16 %v5218
        %v5255 = vunpack.c.l.b16 %v5219
        %v5256 = vunpack.c.h.b16 %v5219
        %v5257 = vunpack.c.l.b16 %v5220
        %v5258 = vunpack.c.h.b16 %v5220
        %v5259 = vunpack.c.l.b16 %v5221
        %v5260 = vunpack.c.h.b16 %v5221
        %v5261 = vunpack.c.l.b16 %v5222
        %v5262 = vunpack.c.h.b16 %v5222
        %v5263 = vunpack.c.l.b16 %v5223
        %v5264 = vunpack.c.h.b16 %v5223
        %v5265 = vunpack.c.l.b16 %v5224
        %v5266 = vunpack.c.h.b16 %v5224
        %v5267 = vunpack.c.l.b16 %v5225
        %v5268 = vunpack.c.h.b16 %v5225
        %v5269 = vunpack.c.l.b16 %v5226
        %v5270 = vunpack.c.h.b16 %v5226
        %v5271 = vunpack.c.l.b16 %v5227
        %v5272 = vunpack.c.h.b16 %v5227
        %v5273 = vunpack.c.l.b16 %v5228
        %v5274 = vunpack.c.h.b16 %v5228
        %v5275 = vunpack.c.l.b16 %v5229
        %v5276 = vunpack.c.h.b16 %v5229
        %v5277 = vunpack.c.l.b16 %v5230
        %v5278 = vunpack.c.h.b16 %v5230
        %v5279 = vpack.c.b16 %v5251, %v5247
        %v5280 = vpack.c.b16 %v5252, %v5248
        %v5281 = vpack.c.b16 %v5253, %v5249
        %v5282 = vpack.c.b16 %v5254, %v5250
        %v5283 = vpack.c.b16 %v5259, %v5255
        %v5284 = vpack.c.b16 %v5260, %v5256
        %v5285 = vpack.c.b16 %v5261, %v5257
        %v5286 = vpack.c.b16 %v5262, %v5258
        %v5287 = vpack.c.b16 %v5267, %v5263
        %v5288 = vpack.c.b16 %v5268, %v5264
        %v5289 = vpack.c.b16 %v5269, %v5265
        %v5290 = vpack.c.b16 %v5270, %v5266
        %v5291 = vpack.c.b16 %v5275, %v5271
        %v5292 = vpack.c.b16 %v5276, %v5272
        %v5293 = vpack.c.b16 %v5277, %v5273
        %v5294 = vpack.c.b16 %v5278, %v5274
        %v5312 = vsel %vm3608, %v5214, 0
        %5314 = vmatprep.subr.bf16.mxu0 %v5280
        %5315 = vmatpush1.bf16.msra.mxu0 %v5279
        %5316 = vmatprep.subr.bf16.mxu0 %v5284
        %5317 = vmatpush1.bf16.msra.mxu0 %v5283
        %5318 = vmatprep.subr.bf16.mxu0 %v5288
        %5319 = vmatpush1.bf16.msra.mxu0 %v5287
        %5320 = vmatprep.subr.bf16.mxu0 %v5292
        %5321 = vmatpush1.bf16.msra.mxu0 %v5291
        %5322 = vmatprep.subr.bf16.mxu0 0
        %5323 = vmatpush1.bf16.msra.mxu0 0
        %5324 = vmatprep.subr.bf16.mxu0 0
        %5325 = vmatpush1.bf16.msra.mxu0 0
        %5326 = vmatprep.subr.bf16.mxu0 0
        %5327 = vmatpush1.bf16.msra.mxu0 0
        %5328 = vmatprep.subr.bf16.mxu0 0
        %5329 = vmatpush1.bf16.msra.mxu0 0
        %5330 = vmatprep.subr.bf16.mxu0 0
        %5331 = vmatpush1.bf16.msra.mxu0 0
        %5332 = vmatprep.subr.bf16.mxu0 0
        %5333 = vmatpush1.bf16.msra.mxu0 0
        %5334 = vmatprep.subr.bf16.mxu0 0
        %5335 = vmatpush1.bf16.msra.mxu0 0
        %5336 = vmatprep.subr.bf16.mxu0 0
        %5337 = vmatpush1.bf16.msra.mxu0 0
        %5338 = vmatprep.subr.bf16.mxu0 0
        %5339 = vmatpush1.bf16.msra.mxu0 0
        %5340 = vmatprep.subr.bf16.mxu0 0
        %5341 = vmatpush1.bf16.msra.mxu0 0
        %5342 = vmatprep.subr.bf16.mxu0 0
        %5343 = vmatpush1.bf16.msra.mxu0 0
        %5344 = vmatprep.subr.bf16.mxu0 0
        %5345 = vmatpush1.bf16.msra.mxu0 0
        %5346 = vmatprep.mubr.bf16.mxu0 0
        %5347 = vmatmul.mubr.bf16.gmra.mrb[0].mxu0 %v5312
        %v5348 = vpop.f32.mrb[0].mxu0
        %v5349 = vadd.f32 0.0, %v5348
        %v5350 = vpop.f32.mrb[0].mxu0
        %v5351 = vadd.f32 0.0, %v5350
        %v5352 = vpop.f32.mrb[0].mxu0
        %v5353 = vpop.f32.mrb[0].mxu0
        %5354 = vdwg.mxu0
        %5355 = vmatprep.subr.bf16.mxu0 %v5282
        %5356 = vmatpush1.bf16.msra.mxu0 %v5281
        %5357 = vmatprep.subr.bf16.mxu0 %v5286
        %5358 = vmatpush1.bf16.msra.mxu0 %v5285
        %5359 = vmatprep.subr.bf16.mxu0 %v5290
        %5360 = vmatpush1.bf16.msra.mxu0 %v5289
        %5361 = vmatprep.subr.bf16.mxu0 %v5294
        %5362 = vmatpush1.bf16.msra.mxu0 %v5293
        %5363 = vmatprep.subr.bf16.mxu0 0
        %5364 = vmatpush1.bf16.msra.mxu0 0
        %5365 = vmatprep.subr.bf16.mxu0 0
        %5366 = vmatpush1.bf16.msra.mxu0 0
        %5367 = vmatprep.subr.bf16.mxu0 0
        %5368 = vmatpush1.bf16.msra.mxu0 0
        %5369 = vmatprep.subr.bf16.mxu0 0
        %5370 = vmatpush1.bf16.msra.mxu0 0
        %5371 = vmatprep.subr.bf16.mxu0 0
        %5372 = vmatpush1.bf16.msra.mxu0 0
        %5373 = vmatprep.subr.bf16.mxu0 0
        %5374 = vmatpush1.bf16.msra.mxu0 0
        %5375 = vmatprep.subr.bf16.mxu0 0
        %5376 = vmatpush1.bf16.msra.mxu0 0
        %5377 = vmatprep.subr.bf16.mxu0 0
        %5378 = vmatpush1.bf16.msra.mxu0 0
        %5379 = vmatprep.subr.bf16.mxu0 0
        %5380 = vmatpush1.bf16.msra.mxu0 0
        %5381 = vmatprep.subr.bf16.mxu0 0
        %5382 = vmatpush1.bf16.msra.mxu0 0
        %5383 = vmatprep.subr.bf16.mxu0 0
        %5384 = vmatpush1.bf16.msra.mxu0 0
        %5385 = vmatprep.subr.bf16.mxu0 0
        %5386 = vmatpush1.bf16.msra.mxu0 0
        %5387 = vmatprep.mubr.bf16.mxu0 0
        %5388 = vmatmul.mubr.bf16.gmra.mrb[0].mxu0 %v5312
        %v5389 = vpop.f32.mrb[0].mxu0
        %v5390 = vadd.f32 0.0, %v5389
        %v5391 = vpop.f32.mrb[0].mxu0
        %v5392 = vadd.f32 0.0, %v5391
        %v5393 = vpop.f32.mrb[0].mxu0
        %v5394 = vpop.f32.mrb[0].mxu0
        %5395 = vdwg.mxu0
        %v5396 = vadd.f32 %v5091, %v5349
        %v5397 = vadd.f32 %v5092, %v5351
        %v5398 = vadd.f32 %v5093, %v5390
        %v5399 = vadd.f32 %v5094, %v5392
        %v5400 = vrot.slane %v3579, 4
        %v5402 = vsel %vm3608, %v3577, 0
        %v5405 = vsel %vm3608, %v5400, 0
        %5407 = vmatprep.subr.bf16.mxu0 0
        %5408 = vmatpush1.bf16.xpose.msra.mxu0 %v5405
        %5409 = vmatprep.subr.bf16.mxu0 0
        %5410 = vmatpush1.bf16.xpose.msra.mxu0 0
        %5411 = vmatprep.subr.bf16.mxu0 0
        %5412 = vmatpush1.bf16.xpose.msra.mxu0 0
        %5413 = vmatprep.subr.bf16.mxu0 0
        %5414 = vmatpush1.bf16.xpose.msra.mxu0 0
        %5415 = vmatprep.subr.bf16.mxu0 0
        %5416 = vmatpush1.bf16.xpose.msra.mxu0 0
        %5417 = vmatprep.subr.bf16.mxu0 0
        %5418 = vmatpush1.bf16.xpose.msra.mxu0 0
        %5419 = vmatprep.subr.bf16.mxu0 0
        %5420 = vmatpush1.bf16.xpose.msra.mxu0 0
        %5421 = vmatprep.subr.bf16.mxu0 0
        %5422 = vmatpush1.bf16.xpose.msra.mxu0 0
        %5423 = vmatprep.subr.bf16.mxu0 0
        %5424 = vmatpush1.bf16.xpose.msra.mxu0 0
        %5425 = vmatprep.subr.bf16.mxu0 0
        %5426 = vmatpush1.bf16.xpose.msra.mxu0 0
        %5427 = vmatprep.subr.bf16.mxu0 0
        %5428 = vmatpush1.bf16.xpose.msra.mxu0 0
        %5429 = vmatprep.subr.bf16.mxu0 0
        %5430 = vmatpush1.bf16.xpose.msra.mxu0 0
        %5431 = vmatprep.subr.bf16.mxu0 0
        %5432 = vmatpush1.bf16.xpose.msra.mxu0 0
        %5433 = vmatprep.subr.bf16.mxu0 0
        %5434 = vmatpush1.bf16.xpose.msra.mxu0 0
        %5435 = vmatprep.subr.bf16.mxu0 0
        %5436 = vmatpush1.bf16.xpose.msra.mxu0 0
        %5437 = vmatprep.subr.bf16.mxu0 0
        %5438 = vmatpush1.bf16.xpose.msra.mxu0 0
        %5439 = vmatprep.mubr.bf16.mxu0 0
        %5440 = vmatmul.mubr.bf16.gmra.mrb[0].mxu0 %v5402
        %v5441 = vpop.f32.mrb[0].mxu0
        %v5442 = vadd.f32 0.0, %v5441
        %v5443 = vpop.f32.mrb[0].mxu0
        %v5444 = vpop.f32.mrb[0].mxu0
        %v5445 = vpop.f32.mrb[0].mxu0
        %5446 = vdwg.mxu0
        %v5447 = vsel %vm3655, %v5442, -inf
        %5448 = vmax.xlane.f32.xlu0 %v5447
        %v5449 = vpop.xlane.xlu0 %5448
        %v5450 = vsub.f32 %v5442, %v5449
        %v5451 = vmul.f32 %v5450, 1.442695
        %v5452 = vpow.pop %v5451
        %v5453 = vsel %vm3655, %v5452, 0.0
        %5454 = vadd.xlane.f32.xlu0 %v5453
        %v5455 = vpop.xlane.xlu0 %5454
        %v5456 = vrcp.pop %v5455
        %v5457 = vmul.f32 %v5452, %v5456
        %v5458 = vpack.c.bf16 %v5457, %v5457
        %s5459 = scalar_lea.vmem %s656, 24 [#allocation24]
        %5460 = vst.msk [vmem:[%s5459] sm:$0xf] %vm3668, %v5458
        %v5461 = vrot.slane %v3581, 4
        %v5463 = vsel %vm3655, %v5458, 0
        %v5466 = vsel %vm3673, %v5461, 0
        %5468 = vmatprep.subr.bf16.mxu0 0
        %5469 = vmatpush1.bf16.msra.mxu0 %v5466
        %5470 = vmatprep.subr.bf16.mxu0 0
        %5471 = vmatpush1.bf16.msra.mxu0 0
        %5472 = vmatprep.subr.bf16.mxu0 0
        %5473 = vmatpush1.bf16.msra.mxu0 0
        %5474 = vmatprep.subr.bf16.mxu0 0
        %5475 = vmatpush1.bf16.msra.mxu0 0
        %5476 = vmatprep.subr.bf16.mxu0 0
        %5477 = vmatpush1.bf16.msra.mxu0 0
        %5478 = vmatprep.subr.bf16.mxu0 0
        %5479 = vmatpush1.bf16.msra.mxu0 0
        %5480 = vmatprep.subr.bf16.mxu0 0
        %5481 = vmatpush1.bf16.msra.mxu0 0
        %5482 = vmatprep.subr.bf16.mxu0 0
        %5483 = vmatpush1.bf16.msra.mxu0 0
        %5484 = vmatprep.subr.bf16.mxu0 0
        %5485 = vmatpush1.bf16.msra.mxu0 0
        %5486 = vmatprep.subr.bf16.mxu0 0
        %5487 = vmatpush1.bf16.msra.mxu0 0
        %5488 = vmatprep.subr.bf16.mxu0 0
        %5489 = vmatpush1.bf16.msra.mxu0 0
        %5490 = vmatprep.subr.bf16.mxu0 0
        %5491 = vmatpush1.bf16.msra.mxu0 0
        %5492 = vmatprep.subr.bf16.mxu0 0
        %5493 = vmatpush1.bf16.msra.mxu0 0
        %5494 = vmatprep.subr.bf16.mxu0 0
        %5495 = vmatpush1.bf16.msra.mxu0 0
        %5496 = vmatprep.subr.bf16.mxu0 0
        %5497 = vmatpush1.bf16.msra.mxu0 0
        %5498 = vmatprep.subr.bf16.mxu0 0
        %5499 = vmatpush1.bf16.msra.mxu0 0
        %5500 = vmatprep.mubr.bf16.mxu0 0
        %5501 = vmatmul.mubr.bf16.gmra.mrb[0].mxu0 %v5463
        %v5502 = vpop.f32.mrb[0].mxu0
        %v5503 = vadd.f32 0.0, %v5502
        %v5504 = vpop.f32.mrb[0].mxu0
        %v5505 = vpop.f32.mrb[0].mxu0
        %v5506 = vpop.f32.mrb[0].mxu0
        %5507 = vdwg.mxu0
        %v5508 = vpack.c.bf16 %v5503, %v5503
        %v5509 = vld [vmem:[#allocation11 + $0x300] sm:$0xff]
        %v5510 = vld [vmem:[#allocation11 + $0x308] sm:$0xff]
        %v5511 = vld [vmem:[#allocation11 + $0x310] sm:$0xff]
        %v5512 = vld [vmem:[#allocation11 + $0x318] sm:$0xff]
        %v5513 = vld [vmem:[#allocation11 + $0x320] sm:$0xff]
        %v5514 = vld [vmem:[#allocation11 + $0x328] sm:$0xff]
        %v5515 = vld [vmem:[#allocation11 + $0x330] sm:$0xff]
        %v5516 = vld [vmem:[#allocation11 + $0x338] sm:$0xff]
        %v5517 = vld [vmem:[#allocation11 + $0x340] sm:$0xff]
        %v5518 = vld [vmem:[#allocation11 + $0x348] sm:$0xff]
        %v5519 = vld [vmem:[#allocation11 + $0x350] sm:$0xff]
        %v5520 = vld [vmem:[#allocation11 + $0x358] sm:$0xff]
        %v5521 = vld [vmem:[#allocation11 + $0x360] sm:$0xff]
        %v5522 = vld [vmem:[#allocation11 + $0x368] sm:$0xff]
        %v5523 = vld [vmem:[#allocation11 + $0x370] sm:$0xff]
        %v5524 = vld [vmem:[#allocation11 + $0x378] sm:$0xff]
        %v5541 = vunpack.c.l.b16 %v5509
        %v5542 = vunpack.c.h.b16 %v5509
        %v5543 = vunpack.c.l.b16 %v5510
        %v5544 = vunpack.c.h.b16 %v5510
        %v5545 = vunpack.c.l.b16 %v5511
        %v5546 = vunpack.c.h.b16 %v5511
        %v5547 = vunpack.c.l.b16 %v5512
        %v5548 = vunpack.c.h.b16 %v5512
        %v5549 = vunpack.c.l.b16 %v5513
        %v5550 = vunpack.c.h.b16 %v5513
        %v5551 = vunpack.c.l.b16 %v5514
        %v5552 = vunpack.c.h.b16 %v5514
        %v5553 = vunpack.c.l.b16 %v5515
        %v5554 = vunpack.c.h.b16 %v5515
        %v5555 = vunpack.c.l.b16 %v5516
        %v5556 = vunpack.c.h.b16 %v5516
        %v5557 = vunpack.c.l.b16 %v5517
        %v5558 = vunpack.c.h.b16 %v5517
        %v5559 = vunpack.c.l.b16 %v5518
        %v5560 = vunpack.c.h.b16 %v5518
        %v5561 = vunpack.c.l.b16 %v5519
        %v5562 = vunpack.c.h.b16 %v5519
        %v5563 = vunpack.c.l.b16 %v5520
        %v5564 = vunpack.c.h.b16 %v5520
        %v5565 = vunpack.c.l.b16 %v5521
        %v5566 = vunpack.c.h.b16 %v5521
        %v5567 = vunpack.c.l.b16 %v5522
        %v5568 = vunpack.c.h.b16 %v5522
        %v5569 = vunpack.c.l.b16 %v5523
        %v5570 = vunpack.c.h.b16 %v5523
        %v5571 = vunpack.c.l.b16 %v5524
        %v5572 = vunpack.c.h.b16 %v5524
        %v5573 = vpack.c.b16 %v5545, %v5541
        %v5574 = vpack.c.b16 %v5546, %v5542
        %v5575 = vpack.c.b16 %v5547, %v5543
        %v5576 = vpack.c.b16 %v5548, %v5544
        %v5577 = vpack.c.b16 %v5553, %v5549
        %v5578 = vpack.c.b16 %v5554, %v5550
        %v5579 = vpack.c.b16 %v5555, %v5551
        %v5580 = vpack.c.b16 %v5556, %v5552
        %v5581 = vpack.c.b16 %v5561, %v5557
        %v5582 = vpack.c.b16 %v5562, %v5558
        %v5583 = vpack.c.b16 %v5563, %v5559
        %v5584 = vpack.c.b16 %v5564, %v5560
        %v5585 = vpack.c.b16 %v5569, %v5565
        %v5586 = vpack.c.b16 %v5570, %v5566
        %v5587 = vpack.c.b16 %v5571, %v5567
        %v5588 = vpack.c.b16 %v5572, %v5568
        %v5606 = vsel %vm3608, %v5508, 0
        %5608 = vmatprep.subr.bf16.mxu0 %v5574
        %5609 = vmatpush1.bf16.msra.mxu0 %v5573
        %5610 = vmatprep.subr.bf16.mxu0 %v5578
        %5611 = vmatpush1.bf16.msra.mxu0 %v5577
        %5612 = vmatprep.subr.bf16.mxu0 %v5582
        %5613 = vmatpush1.bf16.msra.mxu0 %v5581
        %5614 = vmatprep.subr.bf16.mxu0 %v5586
        %5615 = vmatpush1.bf16.msra.mxu0 %v5585
        %5616 = vmatprep.subr.bf16.mxu0 0
        %5617 = vmatpush1.bf16.msra.mxu0 0
        %5618 = vmatprep.subr.bf16.mxu0 0
        %5619 = vmatpush1.bf16.msra.mxu0 0
        %5620 = vmatprep.subr.bf16.mxu0 0
        %5621 = vmatpush1.bf16.msra.mxu0 0
        %5622 = vmatprep.subr.bf16.mxu0 0
        %5623 = vmatpush1.bf16.msra.mxu0 0
        %5624 = vmatprep.subr.bf16.mxu0 0
        %5625 = vmatpush1.bf16.msra.mxu0 0
        %5626 = vmatprep.subr.bf16.mxu0 0
        %5627 = vmatpush1.bf16.msra.mxu0 0
        %5628 = vmatprep.subr.bf16.mxu0 0
        %5629 = vmatpush1.bf16.msra.mxu0 0
        %5630 = vmatprep.subr.bf16.mxu0 0
        %5631 = vmatpush1.bf16.msra.mxu0 0
        %5632 = vmatprep.subr.bf16.mxu0 0
        %5633 = vmatpush1.bf16.msra.mxu0 0
        %5634 = vmatprep.subr.bf16.mxu0 0
        %5635 = vmatpush1.bf16.msra.mxu0 0
        %5636 = vmatprep.subr.bf16.mxu0 0
        %5637 = vmatpush1.bf16.msra.mxu0 0
        %5638 = vmatprep.subr.bf16.mxu0 0
        %5639 = vmatpush1.bf16.msra.mxu0 0
        %5640 = vmatprep.mubr.bf16.mxu0 0
        %5641 = vmatmul.mubr.bf16.gmra.mrb[0].mxu0 %v5606
        %v5642 = vpop.f32.mrb[0].mxu0
        %v5643 = vadd.f32 0.0, %v5642
        %v5644 = vpop.f32.mrb[0].mxu0
        %v5645 = vadd.f32 0.0, %v5644
        %v5646 = vpop.f32.mrb[0].mxu0
        %v5647 = vpop.f32.mrb[0].mxu0
        %5648 = vdwg.mxu0
        %5649 = vmatprep.subr.bf16.mxu0 %v5576
        %5650 = vmatpush1.bf16.msra.mxu0 %v5575
        %5651 = vmatprep.subr.bf16.mxu0 %v5580
        %5652 = vmatpush1.bf16.msra.mxu0 %v5579
        %5653 = vmatprep.subr.bf16.mxu0 %v5584
        %5654 = vmatpush1.bf16.msra.mxu0 %v5583
        %5655 = vmatprep.subr.bf16.mxu0 %v5588
        %5656 = vmatpush1.bf16.msra.mxu0 %v5587
        %5657 = vmatprep.subr.bf16.mxu0 0
        %5658 = vmatpush1.bf16.msra.mxu0 0
        %5659 = vmatprep.subr.bf16.mxu0 0
        %5660 = vmatpush1.bf16.msra.mxu0 0
        %5661 = vmatprep.subr.bf16.mxu0 0
        %5662 = vmatpush1.bf16.msra.mxu0 0
        %5663 = vmatprep.subr.bf16.mxu0 0
        %5664 = vmatpush1.bf16.msra.mxu0 0
        %5665 = vmatprep.subr.bf16.mxu0 0
        %5666 = vmatpush1.bf16.msra.mxu0 0
        %5667 = vmatprep.subr.bf16.mxu0 0
        %5668 = vmatpush1.bf16.msra.mxu0 0
        %5669 = vmatprep.subr.bf16.mxu0 0
        %5670 = vmatpush1.bf16.msra.mxu0 0
        %5671 = vmatprep.subr.bf16.mxu0 0
        %5672 = vmatpush1.bf16.msra.mxu0 0
        %5673 = vmatprep.subr.bf16.mxu0 0
        %5674 = vmatpush1.bf16.msra.mxu0 0
        %5675 = vmatprep.subr.bf16.mxu0 0
        %5676 = vmatpush1.bf16.msra.mxu0 0
        %5677 = vmatprep.subr.bf16.mxu0 0
        %5678 = vmatpush1.bf16.msra.mxu0 0
        %5679 = vmatprep.subr.bf16.mxu0 0
        %5680 = vmatpush1.bf16.msra.mxu0 0
        %5681 = vmatprep.mubr.bf16.mxu0 0
        %5682 = vmatmul.mubr.bf16.gmra.mrb[0].mxu0 %v5606
        %v5683 = vpop.f32.mrb[0].mxu0
        %v5684 = vadd.f32 0.0, %v5683
        %v5685 = vpop.f32.mrb[0].mxu0
        %v5686 = vadd.f32 0.0, %v5685
        %v5687 = vpop.f32.mrb[0].mxu0
        %v5688 = vpop.f32.mrb[0].mxu0
        %5689 = vdwg.mxu0
        %v5690 = vadd.f32 %v5396, %v5643
        %v5691 = vadd.f32 %v5397, %v5645
        %v5692 = vadd.f32 %v5398, %v5684
        %v5693 = vadd.f32 %v5399, %v5686
        %5694 = vrot.lane.b32.xlu0 %v3579, 64
        %v5695 = vpop.permute.xlu0 %5694
        %v5696 = vrot.slane %v5695, 4
        %5698 = vrot.lane.b32.xlu0 %v3577, 64
        %v5699 = vpop.permute.xlu0 %5698
        %v5701 = vsel %vm3608, %v5699, 0
        %v5704 = vsel %vm3608, %v5696, 0
        %5706 = vmatprep.subr.bf16.mxu0 0
        %5707 = vmatpush1.bf16.xpose.msra.mxu0 %v5704
        %5708 = vmatprep.subr.bf16.mxu0 0
        %5709 = vmatpush1.bf16.xpose.msra.mxu0 0
        %5710 = vmatprep.subr.bf16.mxu0 0
        %5711 = vmatpush1.bf16.xpose.msra.mxu0 0
        %5712 = vmatprep.subr.bf16.mxu0 0
        %5713 = vmatpush1.bf16.xpose.msra.mxu0 0
        %5714 = vmatprep.subr.bf16.mxu0 0
        %5715 = vmatpush1.bf16.xpose.msra.mxu0 0
        %5716 = vmatprep.subr.bf16.mxu0 0
        %5717 = vmatpush1.bf16.xpose.msra.mxu0 0
        %5718 = vmatprep.subr.bf16.mxu0 0
        %5719 = vmatpush1.bf16.xpose.msra.mxu0 0
        %5720 = vmatprep.subr.bf16.mxu0 0
        %5721 = vmatpush1.bf16.xpose.msra.mxu0 0
        %5722 = vmatprep.subr.bf16.mxu0 0
        %5723 = vmatpush1.bf16.xpose.msra.mxu0 0
        %5724 = vmatprep.subr.bf16.mxu0 0
        %5725 = vmatpush1.bf16.xpose.msra.mxu0 0
        %5726 = vmatprep.subr.bf16.mxu0 0
        %5727 = vmatpush1.bf16.xpose.msra.mxu0 0
        %5728 = vmatprep.subr.bf16.mxu0 0
        %5729 = vmatpush1.bf16.xpose.msra.mxu0 0
        %5730 = vmatprep.subr.bf16.mxu0 0
        %5731 = vmatpush1.bf16.xpose.msra.mxu0 0
        %5732 = vmatprep.subr.bf16.mxu0 0
        %5733 = vmatpush1.bf16.xpose.msra.mxu0 0
        %5734 = vmatprep.subr.bf16.mxu0 0
        %5735 = vmatpush1.bf16.xpose.msra.mxu0 0
        %5736 = vmatprep.subr.bf16.mxu0 0
        %5737 = vmatpush1.bf16.xpose.msra.mxu0 0
        %5738 = vmatprep.mubr.bf16.mxu0 0
        %5739 = vmatmul.mubr.bf16.gmra.mrb[0].mxu0 %v5701
        %v5740 = vpop.f32.mrb[0].mxu0
        %v5741 = vadd.f32 0.0, %v5740
        %v5742 = vpop.f32.mrb[0].mxu0
        %v5743 = vpop.f32.mrb[0].mxu0
        %v5744 = vpop.f32.mrb[0].mxu0
        %5745 = vdwg.mxu0
        %v5746 = vsel %vm3655, %v5741, -inf
        %5747 = vmax.xlane.f32.xlu0 %v5746
        %v5748 = vpop.xlane.xlu0 %5747
        %v5749 = vsub.f32 %v5741, %v5748
        %v5750 = vmul.f32 %v5749, 1.442695
        %v5751 = vpow.pop %v5750
        %v5752 = vsel %vm3655, %v5751, 0.0
        %5753 = vadd.xlane.f32.xlu0 %v5752
        %v5754 = vpop.xlane.xlu0 %5753
        %v5755 = vrcp.pop %v5754
        %v5756 = vmul.f32 %v5751, %v5755
        %v5757 = vpack.c.bf16 %v5756, %v5756
        %s5758 = scalar_lea.vmem %s656, 28 [#allocation24]
        %5759 = vst.msk [vmem:[%s5758] sm:$0xf] %vm3668, %v5757
        %5760 = vrot.lane.b32.xlu0 %v3581, 64
        %v5761 = vpop.permute.xlu0 %5760
        %v5762 = vrot.slane %v5761, 4
        %v5764 = vsel %vm3655, %v5757, 0
        %v5767 = vsel %vm3673, %v5762, 0
        %5769 = vmatprep.subr.bf16.mxu0 0
        %5770 = vmatpush1.bf16.msra.mxu0 %v5767
        %5771 = vmatprep.subr.bf16.mxu0 0
        %5772 = vmatpush1.bf16.msra.mxu0 0
        %5773 = vmatprep.subr.bf16.mxu0 0
        %5774 = vmatpush1.bf16.msra.mxu0 0
        %5775 = vmatprep.subr.bf16.mxu0 0
        %5776 = vmatpush1.bf16.msra.mxu0 0
        %5777 = vmatprep.subr.bf16.mxu0 0
        %5778 = vmatpush1.bf16.msra.mxu0 0
        %5779 = vmatprep.subr.bf16.mxu0 0
        %5780 = vmatpush1.bf16.msra.mxu0 0
        %5781 = vmatprep.subr.bf16.mxu0 0
        %5782 = vmatpush1.bf16.msra.mxu0 0
        %5783 = vmatprep.subr.bf16.mxu0 0
        %5784 = vmatpush1.bf16.msra.mxu0 0
        %5785 = vmatprep.subr.bf16.mxu0 0
        %5786 = vmatpush1.bf16.msra.mxu0 0
        %5787 = vmatprep.subr.bf16.mxu0 0
        %5788 = vmatpush1.bf16.msra.mxu0 0
        %5789 = vmatprep.subr.bf16.mxu0 0
        %5790 = vmatpush1.bf16.msra.mxu0 0
        %5791 = vmatprep.subr.bf16.mxu0 0
        %5792 = vmatpush1.bf16.msra.mxu0 0
        %5793 = vmatprep.subr.bf16.mxu0 0
        %5794 = vmatpush1.bf16.msra.mxu0 0
        %5795 = vmatprep.subr.bf16.mxu0 0
        %5796 = vmatpush1.bf16.msra.mxu0 0
        %5797 = vmatprep.subr.bf16.mxu0 0
        %5798 = vmatpush1.bf16.msra.mxu0 0
        %5799 = vmatprep.subr.bf16.mxu0 0
        %5800 = vmatpush1.bf16.msra.mxu0 0
        %5801 = vmatprep.mubr.bf16.mxu0 0
        %5802 = vmatmul.mubr.bf16.gmra.mrb[0].mxu0 %v5764
        %v5803 = vpop.f32.mrb[0].mxu0
        %v5804 = vadd.f32 0.0, %v5803
        %v5805 = vpop.f32.mrb[0].mxu0
        %v5806 = vpop.f32.mrb[0].mxu0
        %v5807 = vpop.f32.mrb[0].mxu0
        %5808 = vdwg.mxu0
        %v5809 = vpack.c.bf16 %v5804, %v5804
        %v5810 = vld [vmem:[#allocation11 + $0x380] sm:$0xff]
        %v5811 = vld [vmem:[#allocation11 + $0x388] sm:$0xff]
        %v5812 = vld [vmem:[#allocation11 + $0x390] sm:$0xff]
        %v5813 = vld [vmem:[#allocation11 + $0x398] sm:$0xff]
        %v5814 = vld [vmem:[#allocation11 + $0x3a0] sm:$0xff]
        %v5815 = vld [vmem:[#allocation11 + $0x3a8] sm:$0xff]
        %v5816 = vld [vmem:[#allocation11 + $0x3b0] sm:$0xff]
        %v5817 = vld [vmem:[#allocation11 + $0x3b8] sm:$0xff]
        %v5818 = vld [vmem:[#allocation11 + $0x3c0] sm:$0xff]
        %v5819 = vld [vmem:[#allocation11 + $0x3c8] sm:$0xff]
        %v5820 = vld [vmem:[#allocation11 + $0x3d0] sm:$0xff]
        %v5821 = vld [vmem:[#allocation11 + $0x3d8] sm:$0xff]
        %v5822 = vld [vmem:[#allocation11 + $0x3e0] sm:$0xff]
        %v5823 = vld [vmem:[#allocation11 + $0x3e8] sm:$0xff]
        %v5824 = vld [vmem:[#allocation11 + $0x3f0] sm:$0xff]
        %v5825 = vld [vmem:[#allocation11 + $0x3f8] sm:$0xff]
        %v5842 = vunpack.c.l.b16 %v5810
        %v5843 = vunpack.c.h.b16 %v5810
        %v5844 = vunpack.c.l.b16 %v5811
        %v5845 = vunpack.c.h.b16 %v5811
        %v5846 = vunpack.c.l.b16 %v5812
        %v5847 = vunpack.c.h.b16 %v5812
        %v5848 = vunpack.c.l.b16 %v5813
        %v5849 = vunpack.c.h.b16 %v5813
        %v5850 = vunpack.c.l.b16 %v5814
        %v5851 = vunpack.c.h.b16 %v5814
        %v5852 = vunpack.c.l.b16 %v5815
        %v5853 = vunpack.c.h.b16 %v5815
        %v5854 = vunpack.c.l.b16 %v5816
        %v5855 = vunpack.c.h.b16 %v5816
        %v5856 = vunpack.c.l.b16 %v5817
        %v5857 = vunpack.c.h.b16 %v5817
        %v5858 = vunpack.c.l.b16 %v5818
        %v5859 = vunpack.c.h.b16 %v5818
        %v5860 = vunpack.c.l.b16 %v5819
        %v5861 = vunpack.c.h.b16 %v5819
        %v5862 = vunpack.c.l.b16 %v5820
        %v5863 = vunpack.c.h.b16 %v5820
        %v5864 = vunpack.c.l.b16 %v5821
        %v5865 = vunpack.c.h.b16 %v5821
        %v5866 = vunpack.c.l.b16 %v5822
        %v5867 = vunpack.c.h.b16 %v5822
        %v5868 = vunpack.c.l.b16 %v5823
        %v5869 = vunpack.c.h.b16 %v5823
        %v5870 = vunpack.c.l.b16 %v5824
        %v5871 = vunpack.c.h.b16 %v5824
        %v5872 = vunpack.c.l.b16 %v5825
        %v5873 = vunpack.c.h.b16 %v5825
        %v5874 = vpack.c.b16 %v5846, %v5842
        %v5875 = vpack.c.b16 %v5847, %v5843
        %v5876 = vpack.c.b16 %v5848, %v5844
        %v5877 = vpack.c.b16 %v5849, %v5845
        %v5878 = vpack.c.b16 %v5854, %v5850
        %v5879 = vpack.c.b16 %v5855, %v5851
        %v5880 = vpack.c.b16 %v5856, %v5852
        %v5881 = vpack.c.b16 %v5857, %v5853
        %v5882 = vpack.c.b16 %v5862, %v5858
        %v5883 = vpack.c.b16 %v5863, %v5859
        %v5884 = vpack.c.b16 %v5864, %v5860
        %v5885 = vpack.c.b16 %v5865, %v5861
        %v5886 = vpack.c.b16 %v5870, %v5866
        %v5887 = vpack.c.b16 %v5871, %v5867
        %v5888 = vpack.c.b16 %v5872, %v5868
        %v5889 = vpack.c.b16 %v5873, %v5869
        %v5907 = vsel %vm3608, %v5809, 0
        %5909 = vmatprep.subr.bf16.mxu0 %v5875
        %5910 = vmatpush1.bf16.msra.mxu0 %v5874
        %5911 = vmatprep.subr.bf16.mxu0 %v5879
        %5912 = vmatpush1.bf16.msra.mxu0 %v5878
        %5913 = vmatprep.subr.bf16.mxu0 %v5883
        %5914 = vmatpush1.bf16.msra.mxu0 %v5882
        %5915 = vmatprep.subr.bf16.mxu0 %v5887
        %5916 = vmatpush1.bf16.msra.mxu0 %v5886
        %5917 = vmatprep.subr.bf16.mxu0 0
        %5918 = vmatpush1.bf16.msra.mxu0 0
        %5919 = vmatprep.subr.bf16.mxu0 0
        %5920 = vmatpush1.bf16.msra.mxu0 0
        %5921 = vmatprep.subr.bf16.mxu0 0
        %5922 = vmatpush1.bf16.msra.mxu0 0
        %5923 = vmatprep.subr.bf16.mxu0 0
        %5924 = vmatpush1.bf16.msra.mxu0 0
        %5925 = vmatprep.subr.bf16.mxu0 0
        %5926 = vmatpush1.bf16.msra.mxu0 0
        %5927 = vmatprep.subr.bf16.mxu0 0
        %5928 = vmatpush1.bf16.msra.mxu0 0
        %5929 = vmatprep.subr.bf16.mxu0 0
        %5930 = vmatpush1.bf16.msra.mxu0 0
        %5931 = vmatprep.subr.bf16.mxu0 0
        %5932 = vmatpush1.bf16.msra.mxu0 0
        %5933 = vmatprep.subr.bf16.mxu0 0
        %5934 = vmatpush1.bf16.msra.mxu0 0
        %5935 = vmatprep.subr.bf16.mxu0 0
        %5936 = vmatpush1.bf16.msra.mxu0 0
        %5937 = vmatprep.subr.bf16.mxu0 0
        %5938 = vmatpush1.bf16.msra.mxu0 0
        %5939 = vmatprep.subr.bf16.mxu0 0
        %5940 = vmatpush1.bf16.msra.mxu0 0
        %5941 = vmatprep.mubr.bf16.mxu0 0
        %5942 = vmatmul.mubr.bf16.gmra.mrb[0].mxu0 %v5907
        %v5943 = vpop.f32.mrb[0].mxu0
        %v5944 = vadd.f32 0.0, %v5943
        %v5945 = vpop.f32.mrb[0].mxu0
        %v5946 = vadd.f32 0.0, %v5945
        %v5947 = vpop.f32.mrb[0].mxu0
        %v5948 = vpop.f32.mrb[0].mxu0
        %5949 = vdwg.mxu0
        %5950 = vmatprep.subr.bf16.mxu0 %v5877
        %5951 = vmatpush1.bf16.msra.mxu0 %v5876
        %5952 = vmatprep.subr.bf16.mxu0 %v5881
        %5953 = vmatpush1.bf16.msra.mxu0 %v5880
        %5954 = vmatprep.subr.bf16.mxu0 %v5885
        %5955 = vmatpush1.bf16.msra.mxu0 %v5884
        %5956 = vmatprep.subr.bf16.mxu0 %v5889
        %5957 = vmatpush1.bf16.msra.mxu0 %v5888
        %5958 = vmatprep.subr.bf16.mxu0 0
        %5959 = vmatpush1.bf16.msra.mxu0 0
        %5960 = vmatprep.subr.bf16.mxu0 0
        %5961 = vmatpush1.bf16.msra.mxu0 0
        %5962 = vmatprep.subr.bf16.mxu0 0
        %5963 = vmatpush1.bf16.msra.mxu0 0
        %5964 = vmatprep.subr.bf16.mxu0 0
        %5965 = vmatpush1.bf16.msra.mxu0 0
        %5966 = vmatprep.subr.bf16.mxu0 0
        %5967 = vmatpush1.bf16.msra.mxu0 0
        %5968 = vmatprep.subr.bf16.mxu0 0
        %5969 = vmatpush1.bf16.msra.mxu0 0
        %5970 = vmatprep.subr.bf16.mxu0 0
        %5971 = vmatpush1.bf16.msra.mxu0 0
        %5972 = vmatprep.subr.bf16.mxu0 0
        %5973 = vmatpush1.bf16.msra.mxu0 0
        %5974 = vmatprep.subr.bf16.mxu0 0
        %5975 = vmatpush1.bf16.msra.mxu0 0
        %5976 = vmatprep.subr.bf16.mxu0 0
        %5977 = vmatpush1.bf16.msra.mxu0 0
        %5978 = vmatprep.subr.bf16.mxu0 0
        %5979 = vmatpush1.bf16.msra.mxu0 0
        %5980 = vmatprep.subr.bf16.mxu0 0
        %5981 = vmatpush1.bf16.msra.mxu0 0
        %5982 = vmatprep.mubr.bf16.mxu0 0
        %5983 = vmatmul.mubr.bf16.gmra.mrb[0].mxu0 %v5907
        %v5984 = vpop.f32.mrb[0].mxu0
        %v5985 = vadd.f32 0.0, %v5984
        %v5986 = vpop.f32.mrb[0].mxu0
        %v5987 = vadd.f32 0.0, %v5986
        %v5988 = vpop.f32.mrb[0].mxu0
        %v5989 = vpop.f32.mrb[0].mxu0
        %5990 = vdwg.mxu0
        %v5991 = vadd.f32 %v5690, %v5944
        %v5992 = vadd.f32 %v5691, %v5946
        %v5993 = vadd.f32 %v5692, %v5985
        %v5994 = vadd.f32 %v5693, %v5987
        %v5995 = vld [vmem:[#allocation14] sm:$0xf]
        %v5996 = vld [vmem:[#allocation15] sm:$0xf]
        %v5997 = vadd.f32 %v5991, %v5992
        %v5998 = vadd.f32 %v5997, %v5993
        %v5999 = vadd.f32 %v5998, %v5994
        %6000 = vadd.xlane.f32.xlu0 %v5999
        %v6001 = vpop.xlane.xlu0 %6000
        %v6002 = vrcp.pop 512.0
        %v6003 = vmul.f32 %v6001, %v6002
        %v6004 = vsub.f32 %v5991, %v6003
        %v6005 = vsub.f32 %v5992, %v6003
        %v6006 = vsub.f32 %v5993, %v6003
        %v6007 = vsub.f32 %v5994, %v6003
        %v6008 = vmul.f32 %v6004, %v6004
        %v6009 = vmul.f32 %v6005, %v6005
        %v6010 = vmul.f32 %v6006, %v6006
        %v6011 = vmul.f32 %v6007, %v6007
        %v6012 = vadd.f32 %v6008, %v6009
        %v6013 = vadd.f32 %v6012, %v6010
        %v6014 = vadd.f32 %v6013, %v6011
        %6015 = vadd.xlane.f32.xlu0 %v6014
        %v6016 = vpop.xlane.xlu0 %6015
        %v6017 = vmul.f32 %v6016, %v6002
        %v6018 = vadd.f32 %v6017, 1e-05
        %v6019 = vrsqrt.pop %v6018
        %v6020 = vmul.f32 %v6004, %v6019
        %v6021 = vmul.f32 %v6005, %v6019
        %v6022 = vmul.f32 %v6006, %v6019
        %v6023 = vmul.f32 %v6007, %v6019
        %v6025 = vlaneseq
        %v6026 = vshrl.u32 %v6025, 7
        %v6027 = vsub.s32 0, %v6026
        %v6028 = vrot.slane %v5995, %v6027
        %v6029 = vlaneseq
        %v6030 = vshrl.u32 %v6029, 7
        %v6031 = vsub.s32 1, %v6030
        %v6032 = vrot.slane %v5995, %v6031
        %v6033 = vlaneseq
        %v6034 = vshrl.u32 %v6033, 7
        %v6035 = vsub.s32 2, %v6034
        %v6036 = vrot.slane %v5995, %v6035
        %v6037 = vlaneseq
        %v6038 = vshrl.u32 %v6037, 7
        %v6039 = vsub.s32 3, %v6038
        %v6040 = vrot.slane %v5995, %v6039
        %v6045 = vmul.f32 %v6020, %v6028
        %v6046 = vmul.f32 %v6021, %v6032
        %v6047 = vmul.f32 %v6022, %v6036
        %v6048 = vmul.f32 %v6023, %v6040
        %v6050 = vlaneseq
        %v6051 = vshrl.u32 %v6050, 7
        %v6052 = vsub.s32 0, %v6051
        %v6053 = vrot.slane %v5996, %v6052
        %v6054 = vlaneseq
        %v6055 = vshrl.u32 %v6054, 7
        %v6056 = vsub.s32 1, %v6055
        %v6057 = vrot.slane %v5996, %v6056
        %v6058 = vlaneseq
        %v6059 = vshrl.u32 %v6058, 7
        %v6060 = vsub.s32 2, %v6059
        %v6061 = vrot.slane %v5996, %v6060
        %v6062 = vlaneseq
        %v6063 = vshrl.u32 %v6062, 7
        %v6064 = vsub.s32 3, %v6063
        %v6065 = vrot.slane %v5996, %v6064
        %v6070 = vadd.f32 %v6045, %v6053
        %v6071 = vadd.f32 %v6046, %v6057
        %v6072 = vadd.f32 %v6047, %v6061
        %v6073 = vadd.f32 %v6048, %v6065
        %v6074 = vpack.c.bf16 %v6070, %v6070
        %v6075 = vpack.c.bf16 %v6071, %v6071
        %v6076 = vpack.c.bf16 %v6072, %v6072
        %v6077 = vpack.c.bf16 %v6073, %v6073
        %v6078 = vld [vmem:[#allocation17] sm:$0xff]
        %v6079 = vld [vmem:[#allocation17 + $0x8] sm:$0xff]
        %v6080 = vld [vmem:[#allocation17 + $0x10] sm:$0xff]
        %v6081 = vld [vmem:[#allocation17 + $0x18] sm:$0xff]
        %v6082 = vld [vmem:[#allocation17 + $0x20] sm:$0xff]
        %v6083 = vld [vmem:[#allocation17 + $0x28] sm:$0xff]
        %v6084 = vld [vmem:[#allocation17 + $0x30] sm:$0xff]
        %v6085 = vld [vmem:[#allocation17 + $0x38] sm:$0xff]
        %v6086 = vld [vmem:[#allocation17 + $0x40] sm:$0xff]
        %v6087 = vld [vmem:[#allocation17 + $0x48] sm:$0xff]
        %v6088 = vld [vmem:[#allocation17 + $0x50] sm:$0xff]
        %v6089 = vld [vmem:[#allocation17 + $0x58] sm:$0xff]
        %v6090 = vld [vmem:[#allocation17 + $0x60] sm:$0xff]
        %v6091 = vld [vmem:[#allocation17 + $0x68] sm:$0xff]
        %v6092 = vld [vmem:[#allocation17 + $0x70] sm:$0xff]
        %v6093 = vld [vmem:[#allocation17 + $0x78] sm:$0xff]
        %v6094 = vld [vmem:[#allocation17 + $0x80] sm:$0xff]
        %v6095 = vld [vmem:[#allocation17 + $0x88] sm:$0xff]
        %v6096 = vld [vmem:[#allocation17 + $0x90] sm:$0xff]
        %v6097 = vld [vmem:[#allocation17 + $0x98] sm:$0xff]
        %v6098 = vld [vmem:[#allocation17 + $0xa0] sm:$0xff]
        %v6099 = vld [vmem:[#allocation17 + $0xa8] sm:$0xff]
        %v6100 = vld [vmem:[#allocation17 + $0xb0] sm:$0xff]
        %v6101 = vld [vmem:[#allocation17 + $0xb8] sm:$0xff]
        %v6102 = vld [vmem:[#allocation17 + $0xc0] sm:$0xff]
        %v6103 = vld [vmem:[#allocation17 + $0xc8] sm:$0xff]
        %v6104 = vld [vmem:[#allocation17 + $0xd0] sm:$0xff]
        %v6105 = vld [vmem:[#allocation17 + $0xd8] sm:$0xff]
        %v6106 = vld [vmem:[#allocation17 + $0xe0] sm:$0xff]
        %v6107 = vld [vmem:[#allocation17 + $0xe8] sm:$0xff]
        %v6108 = vld [vmem:[#allocation17 + $0xf0] sm:$0xff]
        %v6109 = vld [vmem:[#allocation17 + $0xf8] sm:$0xff]
        %v6110 = vld [vmem:[#allocation17 + $0x100] sm:$0xff]
        %v6111 = vld [vmem:[#allocation17 + $0x108] sm:$0xff]
        %v6112 = vld [vmem:[#allocation17 + $0x110] sm:$0xff]
        %v6113 = vld [vmem:[#allocation17 + $0x118] sm:$0xff]
        %v6114 = vld [vmem:[#allocation17 + $0x120] sm:$0xff]
        %v6115 = vld [vmem:[#allocation17 + $0x128] sm:$0xff]
        %v6116 = vld [vmem:[#allocation17 + $0x130] sm:$0xff]
        %v6117 = vld [vmem:[#allocation17 + $0x138] sm:$0xff]
        %v6118 = vld [vmem:[#allocation17 + $0x140] sm:$0xff]
        %v6119 = vld [vmem:[#allocation17 + $0x148] sm:$0xff]
        %v6120 = vld [vmem:[#allocation17 + $0x150] sm:$0xff]
        %v6121 = vld [vmem:[#allocation17 + $0x158] sm:$0xff]
        %v6122 = vld [vmem:[#allocation17 + $0x160] sm:$0xff]
        %v6123 = vld [vmem:[#allocation17 + $0x168] sm:$0xff]
        %v6124 = vld [vmem:[#allocation17 + $0x170] sm:$0xff]
        %v6125 = vld [vmem:[#allocation17 + $0x178] sm:$0xff]
        %v6126 = vld [vmem:[#allocation17 + $0x180] sm:$0xff]
        %v6127 = vld [vmem:[#allocation17 + $0x188] sm:$0xff]
        %v6128 = vld [vmem:[#allocation17 + $0x190] sm:$0xff]
        %v6129 = vld [vmem:[#allocation17 + $0x198] sm:$0xff]
        %v6130 = vld [vmem:[#allocation17 + $0x1a0] sm:$0xff]
        %v6131 = vld [vmem:[#allocation17 + $0x1a8] sm:$0xff]
        %v6132 = vld [vmem:[#allocation17 + $0x1b0] sm:$0xff]
        %v6133 = vld [vmem:[#allocation17 + $0x1b8] sm:$0xff]
        %v6134 = vld [vmem:[#allocation17 + $0x1c0] sm:$0xff]
        %v6135 = vld [vmem:[#allocation17 + $0x1c8] sm:$0xff]
        %v6136 = vld [vmem:[#allocation17 + $0x1d0] sm:$0xff]
        %v6137 = vld [vmem:[#allocation17 + $0x1d8] sm:$0xff]
        %v6138 = vld [vmem:[#allocation17 + $0x1e0] sm:$0xff]
        %v6139 = vld [vmem:[#allocation17 + $0x1e8] sm:$0xff]
        %v6140 = vld [vmem:[#allocation17 + $0x1f0] sm:$0xff]
        %v6141 = vld [vmem:[#allocation17 + $0x1f8] sm:$0xff]
        %v6142 = vld [vmem:[#allocation17 + $0x200] sm:$0xff]
        %v6143 = vld [vmem:[#allocation17 + $0x208] sm:$0xff]
        %v6144 = vld [vmem:[#allocation17 + $0x210] sm:$0xff]
        %v6145 = vld [vmem:[#allocation17 + $0x218] sm:$0xff]
        %v6146 = vld [vmem:[#allocation17 + $0x220] sm:$0xff]
        %v6147 = vld [vmem:[#allocation17 + $0x228] sm:$0xff]
        %v6148 = vld [vmem:[#allocation17 + $0x230] sm:$0xff]
        %v6149 = vld [vmem:[#allocation17 + $0x238] sm:$0xff]
        %v6150 = vld [vmem:[#allocation17 + $0x240] sm:$0xff]
        %v6151 = vld [vmem:[#allocation17 + $0x248] sm:$0xff]
        %v6152 = vld [vmem:[#allocation17 + $0x250] sm:$0xff]
        %v6153 = vld [vmem:[#allocation17 + $0x258] sm:$0xff]
        %v6154 = vld [vmem:[#allocation17 + $0x260] sm:$0xff]
        %v6155 = vld [vmem:[#allocation17 + $0x268] sm:$0xff]
        %v6156 = vld [vmem:[#allocation17 + $0x270] sm:$0xff]
        %v6157 = vld [vmem:[#allocation17 + $0x278] sm:$0xff]
        %v6158 = vld [vmem:[#allocation17 + $0x280] sm:$0xff]
        %v6159 = vld [vmem:[#allocation17 + $0x288] sm:$0xff]
        %v6160 = vld [vmem:[#allocation17 + $0x290] sm:$0xff]
        %v6161 = vld [vmem:[#allocation17 + $0x298] sm:$0xff]
        %v6162 = vld [vmem:[#allocation17 + $0x2a0] sm:$0xff]
        %v6163 = vld [vmem:[#allocation17 + $0x2a8] sm:$0xff]
        %v6164 = vld [vmem:[#allocation17 + $0x2b0] sm:$0xff]
        %v6165 = vld [vmem:[#allocation17 + $0x2b8] sm:$0xff]
        %v6166 = vld [vmem:[#allocation17 + $0x2c0] sm:$0xff]
        %v6167 = vld [vmem:[#allocation17 + $0x2c8] sm:$0xff]
        %v6168 = vld [vmem:[#allocation17 + $0x2d0] sm:$0xff]
        %v6169 = vld [vmem:[#allocation17 + $0x2d8] sm:$0xff]
        %v6170 = vld [vmem:[#allocation17 + $0x2e0] sm:$0xff]
        %v6171 = vld [vmem:[#allocation17 + $0x2e8] sm:$0xff]
        %v6172 = vld [vmem:[#allocation17 + $0x2f0] sm:$0xff]
        %v6173 = vld [vmem:[#allocation17 + $0x2f8] sm:$0xff]
        %v6174 = vld [vmem:[#allocation17 + $0x300] sm:$0xff]
        %v6175 = vld [vmem:[#allocation17 + $0x308] sm:$0xff]
        %v6176 = vld [vmem:[#allocation17 + $0x310] sm:$0xff]
        %v6177 = vld [vmem:[#allocation17 + $0x318] sm:$0xff]
        %v6178 = vld [vmem:[#allocation17 + $0x320] sm:$0xff]
        %v6179 = vld [vmem:[#allocation17 + $0x328] sm:$0xff]
        %v6180 = vld [vmem:[#allocation17 + $0x330] sm:$0xff]
        %v6181 = vld [vmem:[#allocation17 + $0x338] sm:$0xff]
        %v6182 = vld [vmem:[#allocation17 + $0x340] sm:$0xff]
        %v6183 = vld [vmem:[#allocation17 + $0x348] sm:$0xff]
        %v6184 = vld [vmem:[#allocation17 + $0x350] sm:$0xff]
        %v6185 = vld [vmem:[#allocation17 + $0x358] sm:$0xff]
        %v6186 = vld [vmem:[#allocation17 + $0x360] sm:$0xff]
        %v6187 = vld [vmem:[#allocation17 + $0x368] sm:$0xff]
        %v6188 = vld [vmem:[#allocation17 + $0x370] sm:$0xff]
        %v6189 = vld [vmem:[#allocation17 + $0x378] sm:$0xff]
        %v6190 = vld [vmem:[#allocation17 + $0x380] sm:$0xff]
        %v6191 = vld [vmem:[#allocation17 + $0x388] sm:$0xff]
        %v6192 = vld [vmem:[#allocation17 + $0x390] sm:$0xff]
        %v6193 = vld [vmem:[#allocation17 + $0x398] sm:$0xff]
        %v6194 = vld [vmem:[#allocation17 + $0x3a0] sm:$0xff]
        %v6195 = vld [vmem:[#allocation17 + $0x3a8] sm:$0xff]
        %v6196 = vld [vmem:[#allocation17 + $0x3b0] sm:$0xff]
        %v6197 = vld [vmem:[#allocation17 + $0x3b8] sm:$0xff]
        %v6198 = vld [vmem:[#allocation17 + $0x3c0] sm:$0xff]
        %v6199 = vld [vmem:[#allocation17 + $0x3c8] sm:$0xff]
        %v6200 = vld [vmem:[#allocation17 + $0x3d0] sm:$0xff]
        %v6201 = vld [vmem:[#allocation17 + $0x3d8] sm:$0xff]
        %v6202 = vld [vmem:[#allocation17 + $0x3e0] sm:$0xff]
        %v6203 = vld [vmem:[#allocation17 + $0x3e8] sm:$0xff]
        %v6204 = vld [vmem:[#allocation17 + $0x3f0] sm:$0xff]
        %v6205 = vld [vmem:[#allocation17 + $0x3f8] sm:$0xff]
        %v6206 = vld [vmem:[#allocation18] sm:$0xf]
        %v6208 = vlaneseq
        %v6209 = vshrl.u32 %v6208, 7
        %v6210 = vsub.s32 0, %v6209
        %v6211 = vrot.slane %v6206, %v6210
        %v6212 = vlaneseq
        %v6213 = vshrl.u32 %v6212, 7
        %v6214 = vsub.s32 1, %v6213
        %v6215 = vrot.slane %v6206, %v6214
        %v6216 = vlaneseq
        %v6217 = vshrl.u32 %v6216, 7
        %v6218 = vsub.s32 2, %v6217
        %v6219 = vrot.slane %v6206, %v6218
        %v6220 = vlaneseq
        %v6221 = vshrl.u32 %v6220, 7
        %v6222 = vsub.s32 3, %v6221
        %v6223 = vrot.slane %v6206, %v6222
        %v6356 = vunpack.c.l.b16 %v6078
        %v6357 = vunpack.c.h.b16 %v6078
        %v6358 = vunpack.c.l.b16 %v6079
        %v6359 = vunpack.c.h.b16 %v6079
        %v6360 = vunpack.c.l.b16 %v6080
        %v6361 = vunpack.c.h.b16 %v6080
        %v6362 = vunpack.c.l.b16 %v6081
        %v6363 = vunpack.c.h.b16 %v6081
        %v6364 = vunpack.c.l.b16 %v6082
        %v6365 = vunpack.c.h.b16 %v6082
        %v6366 = vunpack.c.l.b16 %v6083
        %v6367 = vunpack.c.h.b16 %v6083
        %v6368 = vunpack.c.l.b16 %v6084
        %v6369 = vunpack.c.h.b16 %v6084
        %v6370 = vunpack.c.l.b16 %v6085
        %v6371 = vunpack.c.h.b16 %v6085
        %v6372 = vunpack.c.l.b16 %v6086
        %v6373 = vunpack.c.h.b16 %v6086
        %v6374 = vunpack.c.l.b16 %v6087
        %v6375 = vunpack.c.h.b16 %v6087
        %v6376 = vunpack.c.l.b16 %v6088
        %v6377 = vunpack.c.h.b16 %v6088
        %v6378 = vunpack.c.l.b16 %v6089
        %v6379 = vunpack.c.h.b16 %v6089
        %v6380 = vunpack.c.l.b16 %v6090
        %v6381 = vunpack.c.h.b16 %v6090
        %v6382 = vunpack.c.l.b16 %v6091
        %v6383 = vunpack.c.h.b16 %v6091
        %v6384 = vunpack.c.l.b16 %v6092
        %v6385 = vunpack.c.h.b16 %v6092
        %v6386 = vunpack.c.l.b16 %v6093
        %v6387 = vunpack.c.h.b16 %v6093
        %v6388 = vunpack.c.l.b16 %v6094
        %v6389 = vunpack.c.h.b16 %v6094
        %v6390 = vunpack.c.l.b16 %v6095
        %v6391 = vunpack.c.h.b16 %v6095
        %v6392 = vunpack.c.l.b16 %v6096
        %v6393 = vunpack.c.h.b16 %v6096
        %v6394 = vunpack.c.l.b16 %v6097
        %v6395 = vunpack.c.h.b16 %v6097
        %v6396 = vunpack.c.l.b16 %v6098
        %v6397 = vunpack.c.h.b16 %v6098
        %v6398 = vunpack.c.l.b16 %v6099
        %v6399 = vunpack.c.h.b16 %v6099
        %v6400 = vunpack.c.l.b16 %v6100
        %v6401 = vunpack.c.h.b16 %v6100
        %v6402 = vunpack.c.l.b16 %v6101
        %v6403 = vunpack.c.h.b16 %v6101
        %v6404 = vunpack.c.l.b16 %v6102
        %v6405 = vunpack.c.h.b16 %v6102
        %v6406 = vunpack.c.l.b16 %v6103
        %v6407 = vunpack.c.h.b16 %v6103
        %v6408 = vunpack.c.l.b16 %v6104
        %v6409 = vunpack.c.h.b16 %v6104
        %v6410 = vunpack.c.l.b16 %v6105
        %v6411 = vunpack.c.h.b16 %v6105
        %v6412 = vunpack.c.l.b16 %v6106
        %v6413 = vunpack.c.h.b16 %v6106
        %v6414 = vunpack.c.l.b16 %v6107
        %v6415 = vunpack.c.h.b16 %v6107
        %v6416 = vunpack.c.l.b16 %v6108
        %v6417 = vunpack.c.h.b16 %v6108
        %v6418 = vunpack.c.l.b16 %v6109
        %v6419 = vunpack.c.h.b16 %v6109
        %v6420 = vunpack.c.l.b16 %v6110
        %v6421 = vunpack.c.h.b16 %v6110
        %v6422 = vunpack.c.l.b16 %v6111
        %v6423 = vunpack.c.h.b16 %v6111
        %v6424 = vunpack.c.l.b16 %v6112
        %v6425 = vunpack.c.h.b16 %v6112
        %v6426 = vunpack.c.l.b16 %v6113
        %v6427 = vunpack.c.h.b16 %v6113
        %v6428 = vunpack.c.l.b16 %v6114
        %v6429 = vunpack.c.h.b16 %v6114
        %v6430 = vunpack.c.l.b16 %v6115
        %v6431 = vunpack.c.h.b16 %v6115
        %v6432 = vunpack.c.l.b16 %v6116
        %v6433 = vunpack.c.h.b16 %v6116
        %v6434 = vunpack.c.l.b16 %v6117
        %v6435 = vunpack.c.h.b16 %v6117
        %v6436 = vunpack.c.l.b16 %v6118
        %v6437 = vunpack.c.h.b16 %v6118
        %v6438 = vunpack.c.l.b16 %v6119
        %v6439 = vunpack.c.h.b16 %v6119
        %v6440 = vunpack.c.l.b16 %v6120
        %v6441 = vunpack.c.h.b16 %v6120
        %v6442 = vunpack.c.l.b16 %v6121
        %v6443 = vunpack.c.h.b16 %v6121
        %v6444 = vunpack.c.l.b16 %v6122
        %v6445 = vunpack.c.h.b16 %v6122
        %v6446 = vunpack.c.l.b16 %v6123
        %v6447 = vunpack.c.h.b16 %v6123
        %v6448 = vunpack.c.l.b16 %v6124
        %v6449 = vunpack.c.h.b16 %v6124
        %v6450 = vunpack.c.l.b16 %v6125
        %v6451 = vunpack.c.h.b16 %v6125
        %v6452 = vunpack.c.l.b16 %v6126
        %v6453 = vunpack.c.h.b16 %v6126
        %v6454 = vunpack.c.l.b16 %v6127
        %v6455 = vunpack.c.h.b16 %v6127
        %v6456 = vunpack.c.l.b16 %v6128
        %v6457 = vunpack.c.h.b16 %v6128
        %v6458 = vunpack.c.l.b16 %v6129
        %v6459 = vunpack.c.h.b16 %v6129
        %v6460 = vunpack.c.l.b16 %v6130
        %v6461 = vunpack.c.h.b16 %v6130
        %v6462 = vunpack.c.l.b16 %v6131
        %v6463 = vunpack.c.h.b16 %v6131
        %v6464 = vunpack.c.l.b16 %v6132
        %v6465 = vunpack.c.h.b16 %v6132
        %v6466 = vunpack.c.l.b16 %v6133
        %v6467 = vunpack.c.h.b16 %v6133
        %v6468 = vunpack.c.l.b16 %v6134
        %v6469 = vunpack.c.h.b16 %v6134
        %v6470 = vunpack.c.l.b16 %v6135
        %v6471 = vunpack.c.h.b16 %v6135
        %v6472 = vunpack.c.l.b16 %v6136
        %v6473 = vunpack.c.h.b16 %v6136
        %v6474 = vunpack.c.l.b16 %v6137
        %v6475 = vunpack.c.h.b16 %v6137
        %v6476 = vunpack.c.l.b16 %v6138
        %v6477 = vunpack.c.h.b16 %v6138
        %v6478 = vunpack.c.l.b16 %v6139
        %v6479 = vunpack.c.h.b16 %v6139
        %v6480 = vunpack.c.l.b16 %v6140
        %v6481 = vunpack.c.h.b16 %v6140
        %v6482 = vunpack.c.l.b16 %v6141
        %v6483 = vunpack.c.h.b16 %v6141
        %v6484 = vunpack.c.l.b16 %v6142
        %v6485 = vunpack.c.h.b16 %v6142
        %v6486 = vunpack.c.l.b16 %v6143
        %v6487 = vunpack.c.h.b16 %v6143
        %v6488 = vunpack.c.l.b16 %v6144
        %v6489 = vunpack.c.h.b16 %v6144
        %v6490 = vunpack.c.l.b16 %v6145
        %v6491 = vunpack.c.h.b16 %v6145
        %v6492 = vunpack.c.l.b16 %v6146
        %v6493 = vunpack.c.h.b16 %v6146
        %v6494 = vunpack.c.l.b16 %v6147
        %v6495 = vunpack.c.h.b16 %v6147
        %v6496 = vunpack.c.l.b16 %v6148
        %v6497 = vunpack.c.h.b16 %v6148
        %v6498 = vunpack.c.l.b16 %v6149
        %v6499 = vunpack.c.h.b16 %v6149
        %v6500 = vunpack.c.l.b16 %v6150
        %v6501 = vunpack.c.h.b16 %v6150
        %v6502 = vunpack.c.l.b16 %v6151
        %v6503 = vunpack.c.h.b16 %v6151
        %v6504 = vunpack.c.l.b16 %v6152
        %v6505 = vunpack.c.h.b16 %v6152
        %v6506 = vunpack.c.l.b16 %v6153
        %v6507 = vunpack.c.h.b16 %v6153
        %v6508 = vunpack.c.l.b16 %v6154
        %v6509 = vunpack.c.h.b16 %v6154
        %v6510 = vunpack.c.l.b16 %v6155
        %v6511 = vunpack.c.h.b16 %v6155
        %v6512 = vunpack.c.l.b16 %v6156
        %v6513 = vunpack.c.h.b16 %v6156
        %v6514 = vunpack.c.l.b16 %v6157
        %v6515 = vunpack.c.h.b16 %v6157
        %v6516 = vunpack.c.l.b16 %v6158
        %v6517 = vunpack.c.h.b16 %v6158
        %v6518 = vunpack.c.l.b16 %v6159
        %v6519 = vunpack.c.h.b16 %v6159
        %v6520 = vunpack.c.l.b16 %v6160
        %v6521 = vunpack.c.h.b16 %v6160
        %v6522 = vunpack.c.l.b16 %v6161
        %v6523 = vunpack.c.h.b16 %v6161
        %v6524 = vunpack.c.l.b16 %v6162
        %v6525 = vunpack.c.h.b16 %v6162
        %v6526 = vunpack.c.l.b16 %v6163
        %v6527 = vunpack.c.h.b16 %v6163
        %v6528 = vunpack.c.l.b16 %v6164
        %v6529 = vunpack.c.h.b16 %v6164
        %v6530 = vunpack.c.l.b16 %v6165
        %v6531 = vunpack.c.h.b16 %v6165
        %v6532 = vunpack.c.l.b16 %v6166
        %v6533 = vunpack.c.h.b16 %v6166
        %v6534 = vunpack.c.l.b16 %v6167
        %v6535 = vunpack.c.h.b16 %v6167
        %v6536 = vunpack.c.l.b16 %v6168
        %v6537 = vunpack.c.h.b16 %v6168
        %v6538 = vunpack.c.l.b16 %v6169
        %v6539 = vunpack.c.h.b16 %v6169
        %v6540 = vunpack.c.l.b16 %v6170
        %v6541 = vunpack.c.h.b16 %v6170
        %v6542 = vunpack.c.l.b16 %v6171
        %v6543 = vunpack.c.h.b16 %v6171
        %v6544 = vunpack.c.l.b16 %v6172
        %v6545 = vunpack.c.h.b16 %v6172
        %v6546 = vunpack.c.l.b16 %v6173
        %v6547 = vunpack.c.h.b16 %v6173
        %v6548 = vunpack.c.l.b16 %v6174
        %v6549 = vunpack.c.h.b16 %v6174
        %v6550 = vunpack.c.l.b16 %v6175
        %v6551 = vunpack.c.h.b16 %v6175
        %v6552 = vunpack.c.l.b16 %v6176
        %v6553 = vunpack.c.h.b16 %v6176
        %v6554 = vunpack.c.l.b16 %v6177
        %v6555 = vunpack.c.h.b16 %v6177
        %v6556 = vunpack.c.l.b16 %v6178
        %v6557 = vunpack.c.h.b16 %v6178
        %v6558 = vunpack.c.l.b16 %v6179
        %v6559 = vunpack.c.h.b16 %v6179
        %v6560 = vunpack.c.l.b16 %v6180
        %v6561 = vunpack.c.h.b16 %v6180
        %v6562 = vunpack.c.l.b16 %v6181
        %v6563 = vunpack.c.h.b16 %v6181
        %v6564 = vunpack.c.l.b16 %v6182
        %v6565 = vunpack.c.h.b16 %v6182
        %v6566 = vunpack.c.l.b16 %v6183
        %v6567 = vunpack.c.h.b16 %v6183
        %v6568 = vunpack.c.l.b16 %v6184
        %v6569 = vunpack.c.h.b16 %v6184
        %v6570 = vunpack.c.l.b16 %v6185
        %v6571 = vunpack.c.h.b16 %v6185
        %v6572 = vunpack.c.l.b16 %v6186
        %v6573 = vunpack.c.h.b16 %v6186
        %v6574 = vunpack.c.l.b16 %v6187
        %v6575 = vunpack.c.h.b16 %v6187
        %v6576 = vunpack.c.l.b16 %v6188
        %v6577 = vunpack.c.h.b16 %v6188
        %v6578 = vunpack.c.l.b16 %v6189
        %v6579 = vunpack.c.h.b16 %v6189
        %v6580 = vunpack.c.l.b16 %v6190
        %v6581 = vunpack.c.h.b16 %v6190
        %v6582 = vunpack.c.l.b16 %v6191
        %v6583 = vunpack.c.h.b16 %v6191
        %v6584 = vunpack.c.l.b16 %v6192
        %v6585 = vunpack.c.h.b16 %v6192
        %v6586 = vunpack.c.l.b16 %v6193
        %v6587 = vunpack.c.h.b16 %v6193
        %v6588 = vunpack.c.l.b16 %v6194
        %v6589 = vunpack.c.h.b16 %v6194
        %v6590 = vunpack.c.l.b16 %v6195
        %v6591 = vunpack.c.h.b16 %v6195
        %v6592 = vunpack.c.l.b16 %v6196
        %v6593 = vunpack.c.h.b16 %v6196
        %v6594 = vunpack.c.l.b16 %v6197
        %v6595 = vunpack.c.h.b16 %v6197
        %v6596 = vunpack.c.l.b16 %v6198
        %v6597 = vunpack.c.h.b16 %v6198
        %v6598 = vunpack.c.l.b16 %v6199
        %v6599 = vunpack.c.h.b16 %v6199
        %v6600 = vunpack.c.l.b16 %v6200
        %v6601 = vunpack.c.h.b16 %v6200
        %v6602 = vunpack.c.l.b16 %v6201
        %v6603 = vunpack.c.h.b16 %v6201
        %v6604 = vunpack.c.l.b16 %v6202
        %v6605 = vunpack.c.h.b16 %v6202
        %v6606 = vunpack.c.l.b16 %v6203
        %v6607 = vunpack.c.h.b16 %v6203
        %v6608 = vunpack.c.l.b16 %v6204
        %v6609 = vunpack.c.h.b16 %v6204
        %v6610 = vunpack.c.l.b16 %v6205
        %v6611 = vunpack.c.h.b16 %v6205
        %v6612 = vpack.c.b16 %v6360, %v6356
        %v6613 = vpack.c.b16 %v6361, %v6357
        %v6614 = vpack.c.b16 %v6362, %v6358
        %v6615 = vpack.c.b16 %v6363, %v6359
        %v6616 = vpack.c.b16 %v6368, %v6364
        %v6617 = vpack.c.b16 %v6369, %v6365
        %v6618 = vpack.c.b16 %v6370, %v6366
        %v6619 = vpack.c.b16 %v6371, %v6367
        %v6620 = vpack.c.b16 %v6376, %v6372
        %v6621 = vpack.c.b16 %v6377, %v6373
        %v6622 = vpack.c.b16 %v6378, %v6374
        %v6623 = vpack.c.b16 %v6379, %v6375
        %v6624 = vpack.c.b16 %v6384, %v6380
        %v6625 = vpack.c.b16 %v6385, %v6381
        %v6626 = vpack.c.b16 %v6386, %v6382
        %v6627 = vpack.c.b16 %v6387, %v6383
        %v6628 = vpack.c.b16 %v6392, %v6388
        %v6629 = vpack.c.b16 %v6393, %v6389
        %v6630 = vpack.c.b16 %v6394, %v6390
        %v6631 = vpack.c.b16 %v6395, %v6391
        %v6632 = vpack.c.b16 %v6400, %v6396
        %v6633 = vpack.c.b16 %v6401, %v6397
        %v6634 = vpack.c.b16 %v6402, %v6398
        %v6635 = vpack.c.b16 %v6403, %v6399
        %v6636 = vpack.c.b16 %v6408, %v6404
        %v6637 = vpack.c.b16 %v6409, %v6405
        %v6638 = vpack.c.b16 %v6410, %v6406
        %v6639 = vpack.c.b16 %v6411, %v6407
        %v6640 = vpack.c.b16 %v6416, %v6412
        %v6641 = vpack.c.b16 %v6417, %v6413
        %v6642 = vpack.c.b16 %v6418, %v6414
        %v6643 = vpack.c.b16 %v6419, %v6415
        %v6644 = vpack.c.b16 %v6424, %v6420
        %v6645 = vpack.c.b16 %v6425, %v6421
        %v6646 = vpack.c.b16 %v6426, %v6422
        %v6647 = vpack.c.b16 %v6427, %v6423
        %v6648 = vpack.c.b16 %v6432, %v6428
        %v6649 = vpack.c.b16 %v6433, %v6429
        %v6650 = vpack.c.b16 %v6434, %v6430
        %v6651 = vpack.c.b16 %v6435, %v6431
        %v6652 = vpack.c.b16 %v6440, %v6436
        %v6653 = vpack.c.b16 %v6441, %v6437
        %v6654 = vpack.c.b16 %v6442, %v6438
        %v6655 = vpack.c.b16 %v6443, %v6439
        %v6656 = vpack.c.b16 %v6448, %v6444
        %v6657 = vpack.c.b16 %v6449, %v6445
        %v6658 = vpack.c.b16 %v6450, %v6446
        %v6659 = vpack.c.b16 %v6451, %v6447
        %v6660 = vpack.c.b16 %v6456, %v6452
        %v6661 = vpack.c.b16 %v6457, %v6453
        %v6662 = vpack.c.b16 %v6458, %v6454
        %v6663 = vpack.c.b16 %v6459, %v6455
        %v6664 = vpack.c.b16 %v6464, %v6460
        %v6665 = vpack.c.b16 %v6465, %v6461
        %v6666 = vpack.c.b16 %v6466, %v6462
        %v6667 = vpack.c.b16 %v6467, %v6463
        %v6668 = vpack.c.b16 %v6472, %v6468
        %v6669 = vpack.c.b16 %v6473, %v6469
        %v6670 = vpack.c.b16 %v6474, %v6470
        %v6671 = vpack.c.b16 %v6475, %v6471
        %v6672 = vpack.c.b16 %v6480, %v6476
        %v6673 = vpack.c.b16 %v6481, %v6477
        %v6674 = vpack.c.b16 %v6482, %v6478
        %v6675 = vpack.c.b16 %v6483, %v6479
        %v6676 = vpack.c.b16 %v6488, %v6484
        %v6677 = vpack.c.b16 %v6489, %v6485
        %v6678 = vpack.c.b16 %v6490, %v6486
        %v6679 = vpack.c.b16 %v6491, %v6487
        %v6680 = vpack.c.b16 %v6496, %v6492
        %v6681 = vpack.c.b16 %v6497, %v6493
        %v6682 = vpack.c.b16 %v6498, %v6494
        %v6683 = vpack.c.b16 %v6499, %v6495
        %v6684 = vpack.c.b16 %v6504, %v6500
        %v6685 = vpack.c.b16 %v6505, %v6501
        %v6686 = vpack.c.b16 %v6506, %v6502
        %v6687 = vpack.c.b16 %v6507, %v6503
        %v6688 = vpack.c.b16 %v6512, %v6508
        %v6689 = vpack.c.b16 %v6513, %v6509
        %v6690 = vpack.c.b16 %v6514, %v6510
        %v6691 = vpack.c.b16 %v6515, %v6511
        %v6692 = vpack.c.b16 %v6520, %v6516
        %v6693 = vpack.c.b16 %v6521, %v6517
        %v6694 = vpack.c.b16 %v6522, %v6518
        %v6695 = vpack.c.b16 %v6523, %v6519
        %v6696 = vpack.c.b16 %v6528, %v6524
        %v6697 = vpack.c.b16 %v6529, %v6525
        %v6698 = vpack.c.b16 %v6530, %v6526
        %v6699 = vpack.c.b16 %v6531, %v6527
        %v6700 = vpack.c.b16 %v6536, %v6532
        %v6701 = vpack.c.b16 %v6537, %v6533
        %v6702 = vpack.c.b16 %v6538, %v6534
        %v6703 = vpack.c.b16 %v6539, %v6535
        %v6704 = vpack.c.b16 %v6544, %v6540
        %v6705 = vpack.c.b16 %v6545, %v6541
        %v6706 = vpack.c.b16 %v6546, %v6542
        %v6707 = vpack.c.b16 %v6547, %v6543
        %v6708 = vpack.c.b16 %v6552, %v6548
        %v6709 = vpack.c.b16 %v6553, %v6549
        %v6710 = vpack.c.b16 %v6554, %v6550
        %v6711 = vpack.c.b16 %v6555, %v6551
        %v6712 = vpack.c.b16 %v6560, %v6556
        %v6713 = vpack.c.b16 %v6561, %v6557
        %v6714 = vpack.c.b16 %v6562, %v6558
        %v6715 = vpack.c.b16 %v6563, %v6559
        %v6716 = vpack.c.b16 %v6568, %v6564
        %v6717 = vpack.c.b16 %v6569, %v6565
        %v6718 = vpack.c.b16 %v6570, %v6566
        %v6719 = vpack.c.b16 %v6571, %v6567
        %v6720 = vpack.c.b16 %v6576, %v6572
        %v6721 = vpack.c.b16 %v6577, %v6573
        %v6722 = vpack.c.b16 %v6578, %v6574
        %v6723 = vpack.c.b16 %v6579, %v6575
        %v6724 = vpack.c.b16 %v6584, %v6580
        %v6725 = vpack.c.b16 %v6585, %v6581
        %v6726 = vpack.c.b16 %v6586, %v6582
        %v6727 = vpack.c.b16 %v6587, %v6583
        %v6728 = vpack.c.b16 %v6592, %v6588
        %v6729 = vpack.c.b16 %v6593, %v6589
        %v6730 = vpack.c.b16 %v6594, %v6590
        %v6731 = vpack.c.b16 %v6595, %v6591
        %v6732 = vpack.c.b16 %v6600, %v6596
        %v6733 = vpack.c.b16 %v6601, %v6597
        %v6734 = vpack.c.b16 %v6602, %v6598
        %v6735 = vpack.c.b16 %v6603, %v6599
        %v6736 = vpack.c.b16 %v6608, %v6604
        %v6737 = vpack.c.b16 %v6609, %v6605
        %v6738 = vpack.c.b16 %v6610, %v6606
        %v6739 = vpack.c.b16 %v6611, %v6607
        %6868 = vmatprep.subr.bf16.mxu0 %v6613
        %6869 = vmatpush1.bf16.msra.mxu0 %v6612
        %6870 = vmatprep.subr.bf16.mxu0 %v6617
        %6871 = vmatpush1.bf16.msra.mxu0 %v6616
        %6872 = vmatprep.subr.bf16.mxu0 %v6621
        %6873 = vmatpush1.bf16.msra.mxu0 %v6620
        %6874 = vmatprep.subr.bf16.mxu0 %v6625
        %6875 = vmatpush1.bf16.msra.mxu0 %v6624
        %6876 = vmatprep.subr.bf16.mxu0 %v6629
        %6877 = vmatpush1.bf16.msra.mxu0 %v6628
        %6878 = vmatprep.subr.bf16.mxu0 %v6633
        %6879 = vmatpush1.bf16.msra.mxu0 %v6632
        %6880 = vmatprep.subr.bf16.mxu0 %v6637
        %6881 = vmatpush1.bf16.msra.mxu0 %v6636
        %6882 = vmatprep.subr.bf16.mxu0 %v6641
        %6883 = vmatpush1.bf16.msra.mxu0 %v6640
        %6884 = vmatprep.subr.bf16.mxu0 %v6645
        %6885 = vmatpush1.bf16.msra.mxu0 %v6644
        %6886 = vmatprep.subr.bf16.mxu0 %v6649
        %6887 = vmatpush1.bf16.msra.mxu0 %v6648
        %6888 = vmatprep.subr.bf16.mxu0 %v6653
        %6889 = vmatpush1.bf16.msra.mxu0 %v6652
        %6890 = vmatprep.subr.bf16.mxu0 %v6657
        %6891 = vmatpush1.bf16.msra.mxu0 %v6656
        %6892 = vmatprep.subr.bf16.mxu0 %v6661
        %6893 = vmatpush1.bf16.msra.mxu0 %v6660
        %6894 = vmatprep.subr.bf16.mxu0 %v6665
        %6895 = vmatpush1.bf16.msra.mxu0 %v6664
        %6896 = vmatprep.subr.bf16.mxu0 %v6669
        %6897 = vmatpush1.bf16.msra.mxu0 %v6668
        %6898 = vmatprep.subr.bf16.mxu0 %v6673
        %6899 = vmatpush1.bf16.msra.mxu0 %v6672
        %6900 = vmatprep.mubr.bf16.mxu0 %v6075
        %6901 = vmatmul.mubr.bf16.gmra.mrb[0].mxu0 %v6074
        %v6902 = vpop.f32.mrb[0].mxu0
        %v6903 = vadd.f32 %v6211, %v6902
        %v6904 = vpop.f32.mrb[0].mxu0
        %v6905 = vadd.f32 %v6215, %v6904
        %v6906 = vpop.f32.mrb[0].mxu0
        %v6907 = vpop.f32.mrb[0].mxu0
        %6908 = vdwg.mxu0
        %6909 = vmatprep.subr.bf16.mxu0 %v6677
        %6910 = vmatpush1.bf16.msra.mxu0 %v6676
        %6911 = vmatprep.subr.bf16.mxu0 %v6681
        %6912 = vmatpush1.bf16.msra.mxu0 %v6680
        %6913 = vmatprep.subr.bf16.mxu0 %v6685
        %6914 = vmatpush1.bf16.msra.mxu0 %v6684
        %6915 = vmatprep.subr.bf16.mxu0 %v6689
        %6916 = vmatpush1.bf16.msra.mxu0 %v6688
        %6917 = vmatprep.subr.bf16.mxu0 %v6693
        %6918 = vmatpush1.bf16.msra.mxu0 %v6692
        %6919 = vmatprep.subr.bf16.mxu0 %v6697
        %6920 = vmatpush1.bf16.msra.mxu0 %v6696
        %6921 = vmatprep.subr.bf16.mxu0 %v6701
        %6922 = vmatpush1.bf16.msra.mxu0 %v6700
        %6923 = vmatprep.subr.bf16.mxu0 %v6705
        %6924 = vmatpush1.bf16.msra.mxu0 %v6704
        %6925 = vmatprep.subr.bf16.mxu0 %v6709
        %6926 = vmatpush1.bf16.msra.mxu0 %v6708
        %6927 = vmatprep.subr.bf16.mxu0 %v6713
        %6928 = vmatpush1.bf16.msra.mxu0 %v6712
        %6929 = vmatprep.subr.bf16.mxu0 %v6717
        %6930 = vmatpush1.bf16.msra.mxu0 %v6716
        %6931 = vmatprep.subr.bf16.mxu0 %v6721
        %6932 = vmatpush1.bf16.msra.mxu0 %v6720
        %6933 = vmatprep.subr.bf16.mxu0 %v6725
        %6934 = vmatpush1.bf16.msra.mxu0 %v6724
        %6935 = vmatprep.subr.bf16.mxu0 %v6729
        %6936 = vmatpush1.bf16.msra.mxu0 %v6728
        %6937 = vmatprep.subr.bf16.mxu0 %v6733
        %6938 = vmatpush1.bf16.msra.mxu0 %v6732
        %6939 = vmatprep.subr.bf16.mxu0 %v6737
        %6940 = vmatpush1.bf16.msra.mxu0 %v6736
        %6941 = vmatprep.mubr.bf16.mxu0 %v6077
        %6942 = vmatmul.mubr.bf16.gmra.mrb[0].mxu0 %v6076
        %v6943 = vpop.f32.mrb[0].mxu0
        %v6944 = vadd.f32 %v6903, %v6943
        %v6945 = vpop.f32.mrb[0].mxu0
        %v6946 = vadd.f32 %v6905, %v6945
        %v6947 = vpop.f32.mrb[0].mxu0
        %v6948 = vpop.f32.mrb[0].mxu0
        %6949 = vdwg.mxu0
        %6950 = vmatprep.subr.bf16.mxu0 %v6615
        %6951 = vmatpush1.bf16.msra.mxu0 %v6614
        %6952 = vmatprep.subr.bf16.mxu0 %v6619
        %6953 = vmatpush1.bf16.msra.mxu0 %v6618
        %6954 = vmatprep.subr.bf16.mxu0 %v6623
        %6955 = vmatpush1.bf16.msra.mxu0 %v6622
        %6956 = vmatprep.subr.bf16.mxu0 %v6627
        %6957 = vmatpush1.bf16.msra.mxu0 %v6626
        %6958 = vmatprep.subr.bf16.mxu0 %v6631
        %6959 = vmatpush1.bf16.msra.mxu0 %v6630
        %6960 = vmatprep.subr.bf16.mxu0 %v6635
        %6961 = vmatpush1.bf16.msra.mxu0 %v6634
        %6962 = vmatprep.subr.bf16.mxu0 %v6639
        %6963 = vmatpush1.bf16.msra.mxu0 %v6638
        %6964 = vmatprep.subr.bf16.mxu0 %v6643
        %6965 = vmatpush1.bf16.msra.mxu0 %v6642
        %6966 = vmatprep.subr.bf16.mxu0 %v6647
        %6967 = vmatpush1.bf16.msra.mxu0 %v6646
        %6968 = vmatprep.subr.bf16.mxu0 %v6651
        %6969 = vmatpush1.bf16.msra.mxu0 %v6650
        %6970 = vmatprep.subr.bf16.mxu0 %v6655
        %6971 = vmatpush1.bf16.msra.mxu0 %v6654
        %6972 = vmatprep.subr.bf16.mxu0 %v6659
        %6973 = vmatpush1.bf16.msra.mxu0 %v6658
        %6974 = vmatprep.subr.bf16.mxu0 %v6663
        %6975 = vmatpush1.bf16.msra.mxu0 %v6662
        %6976 = vmatprep.subr.bf16.mxu0 %v6667
        %6977 = vmatpush1.bf16.msra.mxu0 %v6666
        %6978 = vmatprep.subr.bf16.mxu0 %v6671
        %6979 = vmatpush1.bf16.msra.mxu0 %v6670
        %6980 = vmatprep.subr.bf16.mxu0 %v6675
        %6981 = vmatpush1.bf16.msra.mxu0 %v6674
        %6982 = vmatprep.mubr.bf16.mxu0 %v6075
        %6983 = vmatmul.mubr.bf16.gmra.mrb[0].mxu0 %v6074
        %v6984 = vpop.f32.mrb[0].mxu0
        %v6985 = vadd.f32 %v6219, %v6984
        %v6986 = vpop.f32.mrb[0].mxu0
        %v6987 = vadd.f32 %v6223, %v6986
        %v6988 = vpop.f32.mrb[0].mxu0
        %v6989 = vpop.f32.mrb[0].mxu0
        %6990 = vdwg.mxu0
        %6991 = vmatprep.subr.bf16.mxu0 %v6679
        %6992 = vmatpush1.bf16.msra.mxu0 %v6678
        %6993 = vmatprep.subr.bf16.mxu0 %v6683
        %6994 = vmatpush1.bf16.msra.mxu0 %v6682
        %6995 = vmatprep.subr.bf16.mxu0 %v6687
        %6996 = vmatpush1.bf16.msra.mxu0 %v6686
        %6997 = vmatprep.subr.bf16.mxu0 %v6691
        %6998 = vmatpush1.bf16.msra.mxu0 %v6690
        %6999 = vmatprep.subr.bf16.mxu0 %v6695
        %7000 = vmatpush1.bf16.msra.mxu0 %v6694
        %7001 = vmatprep.subr.bf16.mxu0 %v6699
        %7002 = vmatpush1.bf16.msra.mxu0 %v6698
        %7003 = vmatprep.subr.bf16.mxu0 %v6703
        %7004 = vmatpush1.bf16.msra.mxu0 %v6702
        %7005 = vmatprep.subr.bf16.mxu0 %v6707
        %7006 = vmatpush1.bf16.msra.mxu0 %v6706
        %7007 = vmatprep.subr.bf16.mxu0 %v6711
        %7008 = vmatpush1.bf16.msra.mxu0 %v6710
        %7009 = vmatprep.subr.bf16.mxu0 %v6715
        %7010 = vmatpush1.bf16.msra.mxu0 %v6714
        %7011 = vmatprep.subr.bf16.mxu0 %v6719
        %7012 = vmatpush1.bf16.msra.mxu0 %v6718
        %7013 = vmatprep.subr.bf16.mxu0 %v6723
        %7014 = vmatpush1.bf16.msra.mxu0 %v6722
        %7015 = vmatprep.subr.bf16.mxu0 %v6727
        %7016 = vmatpush1.bf16.msra.mxu0 %v6726
        %7017 = vmatprep.subr.bf16.mxu0 %v6731
        %7018 = vmatpush1.bf16.msra.mxu0 %v6730
        %7019 = vmatprep.subr.bf16.mxu0 %v6735
        %7020 = vmatpush1.bf16.msra.mxu0 %v6734
        %7021 = vmatprep.subr.bf16.mxu0 %v6739
        %7022 = vmatpush1.bf16.msra.mxu0 %v6738
        %7023 = vmatprep.mubr.bf16.mxu0 %v6077
        %7024 = vmatmul.mubr.bf16.gmra.mrb[0].mxu0 %v6076
        %v7025 = vpop.f32.mrb[0].mxu0
        %v7026 = vadd.f32 %v6985, %v7025
        %v7027 = vpop.f32.mrb[0].mxu0
        %v7028 = vadd.f32 %v6987, %v7027
        %v7029 = vpop.f32.mrb[0].mxu0
        %v7030 = vpop.f32.mrb[0].mxu0
        %7031 = vdwg.mxu0
        %v7032 = vmax.f32 %v6944, 0.0
        %v7033 = vmax.f32 %v6946, 0.0
        %v7034 = vmax.f32 %v7026, 0.0
        %v7035 = vmax.f32 %v7028, 0.0
        %v7036 = vadd.f32 %v7032, %v6070
        %v7037 = vadd.f32 %v7033, %v6071
        %v7038 = vadd.f32 %v7034, %v6072
        %v7039 = vadd.f32 %v7035, %v6073
        %v7040 = vld [vmem:[#allocation20] sm:$0xf]
        %v7041 = vld [vmem:[#allocation21] sm:$0xf]
        %v7042 = vadd.f32 %v7036, %v7037
        %v7043 = vadd.f32 %v7042, %v7038
        %v7044 = vadd.f32 %v7043, %v7039
        %7045 = vadd.xlane.f32.xlu0 %v7044
        %v7046 = vpop.xlane.xlu0 %7045
        %v7047 = vmul.f32 %v7046, %v6002
        %v7048 = vsub.f32 %v7036, %v7047
        %v7049 = vsub.f32 %v7037, %v7047
        %v7050 = vsub.f32 %v7038, %v7047
        %v7051 = vsub.f32 %v7039, %v7047
        %v7052 = vmul.f32 %v7048, %v7048
        %v7053 = vmul.f32 %v7049, %v7049
        %v7054 = vmul.f32 %v7050, %v7050
        %v7055 = vmul.f32 %v7051, %v7051
        %v7056 = vadd.f32 %v7052, %v7053
        %v7057 = vadd.f32 %v7056, %v7054
        %v7058 = vadd.f32 %v7057, %v7055
        %7059 = vadd.xlane.f32.xlu0 %v7058
        %v7060 = vpop.xlane.xlu0 %7059
        %v7061 = vmul.f32 %v7060, %v6002
        %v7062 = vadd.f32 %v7061, 1e-05
        %v7063 = vrsqrt.pop %v7062
        %v7064 = vmul.f32 %v7048, %v7063
        %v7065 = vmul.f32 %v7049, %v7063
        %v7066 = vmul.f32 %v7050, %v7063
        %v7067 = vmul.f32 %v7051, %v7063
        %v7069 = vlaneseq
        %v7070 = vshrl.u32 %v7069, 7
        %v7071 = vsub.s32 0, %v7070
        %v7072 = vrot.slane %v7040, %v7071
        %v7073 = vlaneseq
        %v7074 = vshrl.u32 %v7073, 7
        %v7075 = vsub.s32 1, %v7074
        %v7076 = vrot.slane %v7040, %v7075
        %v7077 = vlaneseq
        %v7078 = vshrl.u32 %v7077, 7
        %v7079 = vsub.s32 2, %v7078
        %v7080 = vrot.slane %v7040, %v7079
        %v7081 = vlaneseq
        %v7082 = vshrl.u32 %v7081, 7
        %v7083 = vsub.s32 3, %v7082
        %v7084 = vrot.slane %v7040, %v7083
        %v7089 = vmul.f32 %v7064, %v7072
        %v7090 = vmul.f32 %v7065, %v7076
        %v7091 = vmul.f32 %v7066, %v7080
        %v7092 = vmul.f32 %v7067, %v7084
        %v7094 = vlaneseq
        %v7095 = vshrl.u32 %v7094, 7
        %v7096 = vsub.s32 0, %v7095
        %v7097 = vrot.slane %v7041, %v7096
        %v7098 = vlaneseq
        %v7099 = vshrl.u32 %v7098, 7
        %v7100 = vsub.s32 1, %v7099
        %v7101 = vrot.slane %v7041, %v7100
        %v7102 = vlaneseq
        %v7103 = vshrl.u32 %v7102, 7
        %v7104 = vsub.s32 2, %v7103
        %v7105 = vrot.slane %v7041, %v7104
        %v7106 = vlaneseq
        %v7107 = vshrl.u32 %v7106, 7
        %v7108 = vsub.s32 3, %v7107
        %v7109 = vrot.slane %v7041, %v7108
        %v7114 = vadd.f32 %v7089, %v7097
        %v7115 = vadd.f32 %v7090, %v7101
        %v7116 = vadd.f32 %v7091, %v7105
        %v7117 = vadd.f32 %v7092, %v7109
        %7118 = vst [vmem:[%s649] sm:$0xff] %v7114
        %7119 = vst [vmem:[%s649 + $0x8] sm:$0xff] %v7115
        %7120 = vst [vmem:[%s649 + $0x10] sm:$0xff] %v7116
        %7121 = vst [vmem:[%s649 + $0x18] sm:$0xff] %v7117
        %s7122 = sand.u32 %s328, 1
        %s7123 = scalar_lea.sflag [#allocation5], %s7122
        %s7124 = sand.u32 %s328, 1
        %s7125 = smul.addr %s7124, 32
        %s7126 = scalar_lea.vmem [#allocation23], %s7125
        %s7127 = sand.u32 %s356, 1
        %s7128 = scalar_lea.sflag [#allocation25], %s7127
        %s7129 = sand.u32 %s356, 1
        %s7130 = smul.addr %s7129, 32
        %s7131 = scalar_lea.vmem [#allocation24], %s7130
        // Predicated region
        $region121: #{tpu_custom_call.1} parent=67 // pred_check
          %p7132 = pneg %p338
        $region122: #{tpu_custom_call.1} parent=67 // pred_check_branch
          %7134 = sbr.rel (%p7132) target = $region124
        $region123: #{tpu_custom_call.1} parent=67 // pred_region
          %s7136 = ssub.s32 512, 512
          %7137 = vsyncadd %s7123, %s7136
          %s7138 = smul.addr %s47, 4
          %s7139 = smul.addr %s46, 4
          %s7140 = sadd.s32 %s7138, %s7139
          %s7141 = smul.addr %s7140, 128
          %s7142 = scalar_lea.hbm %s12, %s7141
          %s7144 = sshll.u32 %s7126, 4
          %s7145 = int_to_ptr.vmem [resolvable:$true] %s7144
          %7147 = dma.vmem_to_hbm [thread:$0]  %s7145, 512, %s7142, %s7123
        $region124: #{tpu_custom_call.1} parent=67 // pred_fallthru
          _
        // Predicated region
        $region125: #{tpu_custom_call.1} parent=67 // pred_check
          %p7148 = pneg %p366
        $region126: #{tpu_custom_call.1} parent=67 // pred_check_branch
          %7150 = sbr.rel (%p7148) target = $region128
        $region127: #{tpu_custom_call.1} parent=67 // pred_region
          %s7152 = ssub.s32 512, 512
          %7153 = vsyncadd %s7128, %s7152
          %s7154 = smul.addr %s46, 8
          %s7155 = sadd.s32 %s47, %s7154
          %s7156 = smul.addr %s7155, 64
          %s7157 = scalar_lea.hbm %s13, %s7156
          %s7158 = sshll.u32 %s7131, 4
          %s7159 = int_to_ptr.vmem [resolvable:$true] %s7158
          %7164 = dma.vmem_to_hbm [thread:$0]  %s7159, 512, %s7157, %s7128, 64, 64, 4
        $region128: #{tpu_custom_call.1} parent=67 // pred_fallthru
          _
      $region68: #{tpu_custom_call.1} parent=5 // pred_fallthru
        _
      %p7165 = scmp.le.s32.totalorder 2, %s37
      // Predicated region
      $region129: #{tpu_custom_call.1} parent=5 // pred_check
        %p7166 = pneg %p7165
      $region130: #{tpu_custom_call.1} parent=5 // pred_check_branch
        %7168 = sbr.rel (%p7166) target = $region132
      $region131: #{tpu_custom_call.1} parent=5 // pred_region
        %s7169 = ssub.s32 %s37, 2
        // Predicated region
        $region133: #{tpu_custom_call.1} parent=131 // pred_check
          %p7170 = pneg %p344
        $region134: #{tpu_custom_call.1} parent=131 // pred_check_branch
          %7172 = sbr.rel (%p7170) target = $region136
        $region135: #{tpu_custom_call.1} parent=131 // pred_region
          %s7173 = sand.u32 %s329, 1
          %s7174 = scalar_lea.sflag [#allocation5], %s7173
          %s7175 = sand.u32 %s329, 1
          %s7176 = smul.addr %s7175, 32
          %s7177 = scalar_lea.vmem [#allocation23], %s7176
          %7178 = dma.done %s7174, 512
        $region136: #{tpu_custom_call.1} parent=131 // pred_fallthru
          _
        // Predicated region
        $region137: #{tpu_custom_call.1} parent=131 // pred_check
          %p7179 = pneg %p372
        $region138: #{tpu_custom_call.1} parent=131 // pred_check_branch
          %7181 = sbr.rel (%p7179) target = $region140
        $region139: #{tpu_custom_call.1} parent=131 // pred_region
          %s7182 = sand.u32 %s357, 1
          %s7183 = scalar_lea.sflag [#allocation25], %s7182
          %s7184 = sand.u32 %s357, 1
          %s7185 = smul.addr %s7184, 32
          %s7186 = scalar_lea.vmem [#allocation24], %s7185
          %7187 = dma.done %s7183, 512
        $region140: #{tpu_custom_call.1} parent=131 // pred_fallthru
          _
      $region132: #{tpu_custom_call.1} parent=5 // pred_fallthru
        _
    $region6: #{tpu_custom_call.1} parent=1 // loop_footer
      %s41 = sadd.s32 1, %s37
    $region7: #{tpu_custom_call.1} parent=1 // loop_footer_branch
      %36 = sbr.rel target = $region3
    $region8: #{tpu_custom_call.1} parent=1 // loop_exit
      _
    %7188 = vsyncpa [#allocation4], 1
    %s7189 = scalar_lea.sflag [#allocation4], 1
    %7190 = vsyncpa %s7189, 1
    %7191 = vsyncpa [#allocation7], 1
    %s7192 = scalar_lea.sflag [#allocation7], 1
    %7193 = vsyncpa %s7192, 1
    %7194 = vsyncpa [#allocation10], 1
    %7195 = vsyncpa [#allocation13], 1
    %7196 = vsyncpa [#allocation16], 1
    %7197 = vsyncpa [#allocation19], 1
    %7198 = vsyncpa [#allocation22], 1
    %7199 = vsyncpa [#allocation5], 1
    %s7200 = scalar_lea.sflag [#allocation5], 1
    %7201 = vsyncpa %s7200, 1
    %7202 = vsyncpa [#allocation25], 1
    %s7203 = scalar_lea.sflag [#allocation25], 1
    %7204 = vsyncpa %s7203, 1

</llo_original>
